<compile_context>
chip_gen: v7x
topology: tpu7x:2x2x1
jax: 0.10.0
libtpu: 0.0.40
codegen_flags: <defaults>
</compile_context>

<pallas_src>
import jax
import jax.numpy as jnp
from jax import lax
from jax.experimental import pallas as pl
from jax.experimental.pallas import tpu as pltpu


_POOL_SLAB = 192  # 12 * 16 rows per (dy, dx) pooling-parity slab of the conv1 output


# ----------------------------- fused kernel ---------------------------------
def _cnn_mnist_kernel(p1_ref, w1_ref, b1_ref, w2_ref, b2_ref,
                      w3_ref, b3_ref, w4_ref, b4_ref, out_ref):
    c0 = w1_ref.shape[1]          # conv1 out channels (32)
    c1 = w2_ref.shape[2]          # conv2 out channels (64)

    # ---- conv1 as a single im2col matmul (bf16 in, f32 accumulate) ----
    # p1 rows are ordered ((dy*2+dx), oh2, ow2_pad16): 2x2 pooling becomes a max
    # over four contiguous 192-row slabs.
    y1 = jnp.dot(p1_ref[0], w1_ref[...],
                 preferred_element_type=jnp.float32) + b1_ref[...]        # (768, c0)

    # ---- 2x2 max-pool + ReLU epilogue (stays in VMEM, never written to HBM) ----
    m = jnp.maximum(jnp.maximum(y1[0:192], y1[192:384]),
                    jnp.maximum(y1[384:576], y1[576:768]))
    pooled1 = jnp.maximum(m, 0.0)                                         # (192, c0)
    # (oh2, ow2_pad, ci) view; padded columns ow2 >= 12 are never read by conv2.
    pooled1 = pooled1.reshape(12, 16, c0)

    # ---- conv2: in-kernel im2col as 25 shifted matmuls contracting ci ----
    acc = jnp.zeros((64, c1), jnp.float32)
    for i in range(5):
        for j in range(5):
            win = pooled1[i:i + 8, j:j + 8, :].reshape(64, c0)            # rows = oy*8+ox
            acc = acc + jnp.dot(win.astype(jnp.bfloat16), w2_ref[i * 5 + j],
                                preferred_element_type=jnp.float32)
    y2 = acc + b2_ref[...]                                                # (64, c1)
    # TODO(synk): Dropout2d(p=0.5) is a stochastic train-time op; identity here
    # (inference semantics).

    # ---- 2x2 max-pool + ReLU + fc1, accumulated per pooled spatial position ----
    z1 = b3_ref[...].astype(jnp.float32)                                  # (1, 512)
    for py in range(4):
        for px in range(4):
            r = 16 * py + 2 * px
            v = jnp.maximum(jnp.maximum(y2[r:r + 1], y2[r + 1:r + 2]),
                            jnp.maximum(y2[r + 8:r + 9], y2[r + 9:r + 10]))
            v = jnp.maximum(v, 0.0)                                       # (1, c1)
            z1 = z1 + jnp.dot(v.astype(jnp.bfloat16), w3_ref[py * 4 + px],
                              preferred_element_type=jnp.float32)
    h = jnp.maximum(z1, 0.0)                                              # (1, 512)
    # TODO(synk): Dropout(p=0.5) is identity (inference semantics).

    # ---- fc2 + softmax(dim=1), f32 epilogue ----
    logits = jnp.dot(h.astype(jnp.bfloat16), w4_ref[...],
                     preferred_element_type=jnp.float32) + b4_ref[...]    # (1, nc)
    mx = jnp.max(logits, axis=-1, keepdims=True)
    e = jnp.exp(logits - mx)
    out_ref[0] = e / jnp.sum(e, axis=-1, keepdims=True)


# ----------------------------- JAX wrapper -----------------------------------
def _build_conv1_patches(x):
    """x: (B, 1, 28, 28) f32 -> conv1 im2col patches (B, 768, 32) bf16.

    Row order is ((dy*2+dx), oh2, ow2) with ow2 padded 12->16, so that after the
    conv1 matmul the 2x2 max-pool is a max over four contiguous 192-row slabs and
    the pooled activation lands directly in a (12, 16, C) layout whose conv2
    windows are unit-stride slices.  K is zero-padded 25 -> 32.  This single tiny
    gather is the only im2col work done outside the kernel.
    """
    xs = x[:, 0]                                            # (B, 28, 28)
    row = jnp.arange(4 * 12 * 16)
    q, r = row // _POOL_SLAB, row % _POOL_SLAB
    oh2, ow2 = r // 16, r % 16
    dy, dx = q // 2, q % 2
    oh = 2 * oh2 + dy
    ow = 2 * ow2 + dx
    k = jnp.arange(25)
    ki, kj = k // 5, k % 5
    rr = oh[:, None] + ki[None, :]                          # (768, 25)
    cc = ow[:, None] + kj[None, :]
    valid = (ow2 < 12)[:, None] & (cc < 28)
    patches = xs[:, rr, jnp.minimum(cc, 27)]                # (B, 768, 25)
    patches = jnp.where(valid[None, :, :], patches, 0.0)
    patches = jnp.pad(patches, ((0, 0), (0, 0), (0, 7)))    # K: 25 -> 32
    return patches.astype(jnp.bfloat16)


def cnn_mnist_forward(kparams, x):
    """Fused CNNMnist forward.  x: (B, 1, 28, 28) f32 -> softmax probs (B, num_classes)."""
    B = x.shape[0]
    c0 = kparams["w1"].shape[1]
    c1 = kparams["w2"].shape[2]
    nc = kparams["w4"].shape[1]
    p1 = _build_conv1_patches(x)

    out = pl.pallas_call(
        _cnn_mnist_kernel,
        out_shape=jax.ShapeDtypeStruct((B, 1, nc), jnp.float32),
        grid=(B,),
        in_specs=[
            pl.BlockSpec((1, 768, 32), lambda b: (b, 0, 0)),      # per-image patches
            pl.BlockSpec((32, c0), lambda b: (0, 0)),             # conv1 weight (VMEM resident)
            pl.BlockSpec((1, c0), lambda b: (0, 0)),
            pl.BlockSpec((25, c0, c1), lambda b: (0, 0, 0)),      # conv2 weight
            pl.BlockSpec((1, c1), lambda b: (0, 0)),
            pl.BlockSpec((16, c1, 512), lambda b: (0, 0, 0)),     # fc1 weight (per pooled position)
            pl.BlockSpec((1, 512), lambda b: (0, 0)),
            pl.BlockSpec((512, nc), lambda b: (0, 0)),            # fc2 weight
            pl.BlockSpec((1, nc), lambda b: (0, 0)),
        ],
        out_specs=pl.BlockSpec((1, 1, nc), lambda b: (b, 0, 0)),
        compiler_params=pltpu.CompilerParams(
            dimension_semantics=("parallel",)),                   # megacore / 2 TCs on v7x
    )(p1, kparams["w1"], kparams["b1"], kparams["w2"], kparams["b2"],
      kparams["w3"], kparams["b3"], kparams["w4"], kparams["b4"])
    return out[:, 0, :]


# ----------------------------- params ----------------------------------------
def init_torch_params(key, num_channels=(32, 64), num_classes=10):
    """PyTorch-layout parameters (f32), same fan-in uniform init as nn.Conv2d/Linear."""
    c0, c1 = num_channels
    ks = jax.random.split(key, 8)

    def u(k, shape, fan_in):
        bound = float(fan_in) ** -0.5
        return jax.random.uniform(k, shape, jnp.float32, -bound, bound)

    return {
        "conv1_w": u(ks[0], (c0, 1, 5, 5), 1 * 25),
        "conv1_b": u(ks[1], (c0,), 1 * 25),
        "conv2_w": u(ks[2], (c1, c0, 5, 5), c0 * 25),
        "conv2_b": u(ks[3], (c1,), c0 * 25),
        "fc1_w": u(ks[4], (512, c1 * 16), c1 * 16),      # acts on torch.flatten(NCHW)
        "fc1_b": u(ks[5], (512,), c1 * 16),
        "fc2_w": u(ks[6], (num_classes, 512), 512),
        "fc2_b": u(ks[7], (num_classes,), 512),
    }


def prepare_kernel_params(tp):
    """One-time weight repack (hoisted out of the forward path):
       conv weights -> im2col (K, CI, CO) layout (bf16, conv1 K padded 25->32);
       fc1 weight   -> (16, C1, 512) indexed by pooled spatial position p, matching
                       torch.flatten(NCHW) feature order c*16 + p;
       fc2 weight   -> (512, num_classes);  biases kept f32 as (1, N)."""
    c0 = tp["conv1_w"].shape[0]
    c1 = tp["conv2_w"].shape[0]
    nc = tp["fc2_w"].shape[0]
    w1 = jnp.pad(tp["conv1_w"].reshape(c0, 25).T, ((0, 7), (0, 0)))      # (32, c0)
    w2 = tp["conv2_w"].transpose(2, 3, 1, 0).reshape(25, c0, c1)         # (25, c0, c1)
    w3 = tp["fc1_w"].reshape(512, c1, 16).transpose(2, 1, 0)             # (16, c1, 512)
    w4 = tp["fc2_w"].T                                                   # (512, nc)
    return {
        "w1": w1.astype(jnp.bfloat16), "b1": tp["conv1_b"].reshape(1, c0),
        "w2": w2.astype(jnp.bfloat16), "b2": tp["conv2_b"].reshape(1, c1),
        "w3": w3.astype(jnp.bfloat16), "b3": tp["fc1_b"].reshape(1, 512),
        "w4": w4.astype(jnp.bfloat16), "b4": tp["fc2_b"].reshape(1, nc),
    }


# ----------------------------- reference -------------------------------------
def reference_forward(tp, x):
    """Plain-JAX (XLA) reference with identical inference semantics."""
    dn = ("NCHW", "OIHW", "NCHW")
    y = lax.conv_general_dilated(x, tp["conv1_w"], (1, 1), "VALID", dimension_numbers=dn)
    y = y + tp["conv1_b"][None, :, None, None]
    y = lax.reduce_window(y, -jnp.inf, lax.max, (1, 1, 2, 2), (1, 1, 2, 2), "VALID")
    y = jnp.maximum(y, 0.0)
    y = lax.conv_general_dilated(y, tp["conv2_w"], (1, 1), "VALID", dimension_numbers=dn)
    y = y + tp["conv2_b"][None, :, None, None]
    y = lax.reduce_window(y, -jnp.inf, lax.max, (1, 1, 2, 2), (1, 1, 2, 2), "VALID")
    y = jnp.maximum(y, 0.0)
    y = y.reshape(y.shape[0], -1)
    y = jnp.maximum(y @ tp["fc1_w"].T + tp["fc1_b"], 0.0)
    y = y @ tp["fc2_w"].T + tp["fc2_b"]
    return jax.nn.softmax(y, axis=1)


if __name__ == "__main__":
    key = jax.random.PRNGKey(0)
    k_param, k_x = jax.random.split(key)

    B = 2
    x = jax.random.normal(k_x, (B, 1, 28, 28), jnp.float32)   # MNIST-shaped (fc1 expects 64*4*4)
    torch_params = init_torch_params(k_param, num_channels=(32, 64), num_classes=10)
    kparams = prepare_kernel_params(torch_params)

    fwd = jax.jit(cnn_mnist_forward)
    out = jax.block_until_ready(fwd(kparams, x))

    assert out.shape == (B, 10)
    assert bool(jnp.all(jnp.isfinite(out)))
    assert bool(jnp.allclose(jnp.sum(out, axis=1), 1.0, atol=1e-5))

    # Cross-check against the plain-XLA reference (loose tol: kernel uses bf16 matmuls).
    ref = reference_forward(torch_params, x)
    assert bool(jnp.allclose(out, ref, atol=5e-2)), float(jnp.max(jnp.abs(out - ref)))

    print("KERNEL_OK")
</pallas_src>

<mosaic_0001>
module attributes {stable_mosaic.version = 11 : i64} {
  func.func @_cnn_mnist_kernel(%arg0: i32, %arg1: memref<1x768x32xbf16, #tpu.memory_space<vmem>>, %arg2: memref<32x32xbf16, #tpu.memory_space<vmem>>, %arg3: memref<1x32xf32, #tpu.memory_space<vmem>>, %arg4: memref<25x32x64xbf16, #tpu.memory_space<vmem>>, %arg5: memref<1x64xf32, #tpu.memory_space<vmem>>, %arg6: memref<16x64x512xbf16, #tpu.memory_space<vmem>>, %arg7: memref<1x512xf32, #tpu.memory_space<vmem>>, %arg8: memref<512x10xbf16, #tpu.memory_space<vmem>>, %arg9: memref<1x10xf32, #tpu.memory_space<vmem>>, %arg10: memref<1x1x10xf32, #tpu.memory_space<vmem>>) attributes {dimension_semantics = [#tpu.dimension_semantics<parallel>], iteration_bounds = array<i64: 2>, scalar_prefetch = 0 : i64, scratch_operands = 0 : i64, tpu.core_type = #tpu.core_type<tc>, window_params = [{transform_indices = @transform_0, window_bounds = array<i64: 1, 768, 32>}, {pipeline_mode = #tpu.pipeline_mode<synchronous>, transform_indices = @transform_1, window_bounds = array<i64: 32, 32>}, {pipeline_mode = #tpu.pipeline_mode<synchronous>, transform_indices = @transform_2, window_bounds = array<i64: 1, 32>}, {pipeline_mode = #tpu.pipeline_mode<synchronous>, transform_indices = @transform_3, window_bounds = array<i64: 25, 32, 64>}, {pipeline_mode = #tpu.pipeline_mode<synchronous>, transform_indices = @transform_4, window_bounds = array<i64: 1, 64>}, {pipeline_mode = #tpu.pipeline_mode<synchronous>, transform_indices = @transform_5, window_bounds = array<i64: 16, 64, 512>}, {pipeline_mode = #tpu.pipeline_mode<synchronous>, transform_indices = @transform_6, window_bounds = array<i64: 1, 512>}, {pipeline_mode = #tpu.pipeline_mode<synchronous>, transform_indices = @transform_7, window_bounds = array<i64: 512, 10>}, {pipeline_mode = #tpu.pipeline_mode<synchronous>, transform_indices = @transform_8, window_bounds = array<i64: 1, 10>}, {transform_indices = @transform_9, window_bounds = array<i64: 1, 1, 10>}]} {
    %c0 = arith.constant 0 : index
    %c0_0 = arith.constant 0 : index
    %c0_1 = arith.constant 0 : index
    %0 = vector.load %arg1[%c0, %c0_0, %c0_1] : memref<1x768x32xbf16, #tpu.memory_space<vmem>>, vector<1x768x32xbf16>
    %1 = vector.shape_cast %0 : vector<1x768x32xbf16> to vector<768x32xbf16>
    %c0_2 = arith.constant 0 : index
    %c0_3 = arith.constant 0 : index
    %2 = vector.load %arg2[%c0_2, %c0_3] : memref<32x32xbf16, #tpu.memory_space<vmem>>, vector<32x32xbf16>
    %cst = arith.constant dense<0.000000e+00> : vector<768x32xf32>
    %3 = tpu.matmul %1, %2, %cst {dimension_numbers = #tpu.dot_dimension_numbers<[1], [0], [0], [1], [0, 0, 1, 1], [], []>} : vector<768x32xbf16>, vector<32x32xbf16>, vector<768x32xf32> -> vector<768x32xf32>
    %c0_4 = arith.constant 0 : index
    %c0_5 = arith.constant 0 : index
    %4 = vector.load %arg3[%c0_4, %c0_5] : memref<1x32xf32, #tpu.memory_space<vmem>>, vector<1x32xf32>
    %5 = vector.broadcast %4 : vector<1x32xf32> to vector<768x32xf32>
    %6 = arith.addf %3, %5 : vector<768x32xf32>
    %7 = vector.extract_strided_slice %6 {offsets = [0, 0], sizes = [192, 32], strides = [1, 1]} : vector<768x32xf32> to vector<192x32xf32>
    %8 = vector.extract_strided_slice %6 {offsets = [192, 0], sizes = [192, 32], strides = [1, 1]} : vector<768x32xf32> to vector<192x32xf32>
    %9 = arith.maximumf %7, %8 : vector<192x32xf32>
    %10 = vector.extract_strided_slice %6 {offsets = [384, 0], sizes = [192, 32], strides = [1, 1]} : vector<768x32xf32> to vector<192x32xf32>
    %11 = vector.extract_strided_slice %6 {offsets = [576, 0], sizes = [192, 32], strides = [1, 1]} : vector<768x32xf32> to vector<192x32xf32>
    %12 = arith.maximumf %10, %11 : vector<192x32xf32>
    %13 = arith.maximumf %9, %12 : vector<192x32xf32>
    %cst_6 = arith.constant 0.000000e+00 : f32
    %14 = vector.broadcast %cst_6 : f32 to vector<192x32xf32>
    %15 = arith.maximumf %13, %14 : vector<192x32xf32>
    %16 = vector.shape_cast %15 : vector<192x32xf32> to vector<12x16x32xf32>
    %cst_7 = arith.constant 0.000000e+00 : f32
    %17 = vector.broadcast %cst_7 : f32 to vector<64x64xf32>
    %18 = vector.extract_strided_slice %16 {offsets = [0, 0, 0], sizes = [8, 8, 32], strides = [1, 1, 1]} : vector<12x16x32xf32> to vector<8x8x32xf32>
    %19 = vector.shape_cast %18 : vector<8x8x32xf32> to vector<64x32xf32>
    %20 = arith.truncf %19 : vector<64x32xf32> to vector<64x32xbf16>
    %c0_8 = arith.constant 0 : index
    %c0_9 = arith.constant 0 : index
    %c0_10 = arith.constant 0 : index
    %21 = vector.load %arg4[%c0_8, %c0_9, %c0_10] : memref<25x32x64xbf16, #tpu.memory_space<vmem>>, vector<1x32x64xbf16>
    %22 = vector.shape_cast %21 : vector<1x32x64xbf16> to vector<32x64xbf16>
    %cst_11 = arith.constant dense<0.000000e+00> : vector<64x64xf32>
    %23 = tpu.matmul %20, %22, %cst_11 {dimension_numbers = #tpu.dot_dimension_numbers<[1], [0], [0], [1], [0, 0, 1, 1], [], []>} : vector<64x32xbf16>, vector<32x64xbf16>, vector<64x64xf32> -> vector<64x64xf32>
    %24 = arith.addf %17, %23 : vector<64x64xf32>
    %25 = vector.extract_strided_slice %16 {offsets = [0, 1, 0], sizes = [8, 8, 32], strides = [1, 1, 1]} : vector<12x16x32xf32> to vector<8x8x32xf32>
    %26 = vector.shape_cast %25 : vector<8x8x32xf32> to vector<64x32xf32>
    %27 = arith.truncf %26 : vector<64x32xf32> to vector<64x32xbf16>
    %c1 = arith.constant 1 : index
    %c0_12 = arith.constant 0 : index
    %c0_13 = arith.constant 0 : index
    %28 = vector.load %arg4[%c1, %c0_12, %c0_13] : memref<25x32x64xbf16, #tpu.memory_space<vmem>>, vector<1x32x64xbf16>
    %29 = vector.shape_cast %28 : vector<1x32x64xbf16> to vector<32x64xbf16>
    %cst_14 = arith.constant dense<0.000000e+00> : vector<64x64xf32>
    %30 = tpu.matmul %27, %29, %cst_14 {dimension_numbers = #tpu.dot_dimension_numbers<[1], [0], [0], [1], [0, 0, 1, 1], [], []>} : vector<64x32xbf16>, vector<32x64xbf16>, vector<64x64xf32> -> vector<64x64xf32>
    %31 = arith.addf %24, %30 : vector<64x64xf32>
    %32 = vector.extract_strided_slice %16 {offsets = [0, 2, 0], sizes = [8, 8, 32], strides = [1, 1, 1]} : vector<12x16x32xf32> to vector<8x8x32xf32>
    %33 = vector.shape_cast %32 : vector<8x8x32xf32> to vector<64x32xf32>
    %34 = arith.truncf %33 : vector<64x32xf32> to vector<64x32xbf16>
    %c2 = arith.constant 2 : index
    %c0_15 = arith.constant 0 : index
    %c0_16 = arith.constant 0 : index
    %35 = vector.load %arg4[%c2, %c0_15, %c0_16] : memref<25x32x64xbf16, #tpu.memory_space<vmem>>, vector<1x32x64xbf16>
    %36 = vector.shape_cast %35 : vector<1x32x64xbf16> to vector<32x64xbf16>
    %cst_17 = arith.constant dense<0.000000e+00> : vector<64x64xf32>
    %37 = tpu.matmul %34, %36, %cst_17 {dimension_numbers = #tpu.dot_dimension_numbers<[1], [0], [0], [1], [0, 0, 1, 1], [], []>} : vector<64x32xbf16>, vector<32x64xbf16>, vector<64x64xf32> -> vector<64x64xf32>
    %38 = arith.addf %31, %37 : vector<64x64xf32>
    %39 = vector.extract_strided_slice %16 {offsets = [0, 3, 0], sizes = [8, 8, 32], strides = [1, 1, 1]} : vector<12x16x32xf32> to vector<8x8x32xf32>
    %40 = vector.shape_cast %39 : vector<8x8x32xf32> to vector<64x32xf32>
    %41 = arith.truncf %40 : vector<64x32xf32> to vector<64x32xbf16>
    %c3 = arith.constant 3 : index
    %c0_18 = arith.constant 0 : index
    %c0_19 = arith.constant 0 : index
    %42 = vector.load %arg4[%c3, %c0_18, %c0_19] : memref<25x32x64xbf16, #tpu.memory_space<vmem>>, vector<1x32x64xbf16>
    %43 = vector.shape_cast %42 : vector<1x32x64xbf16> to vector<32x64xbf16>
    %cst_20 = arith.constant dense<0.000000e+00> : vector<64x64xf32>
    %44 = tpu.matmul %41, %43, %cst_20 {dimension_numbers = #tpu.dot_dimension_numbers<[1], [0], [0], [1], [0, 0, 1, 1], [], []>} : vector<64x32xbf16>, vector<32x64xbf16>, vector<64x64xf32> -> vector<64x64xf32>
    %45 = arith.addf %38, %44 : vector<64x64xf32>
    %46 = vector.extract_strided_slice %16 {offsets = [0, 4, 0], sizes = [8, 8, 32], strides = [1, 1, 1]} : vector<12x16x32xf32> to vector<8x8x32xf32>
    %47 = vector.shape_cast %46 : vector<8x8x32xf32> to vector<64x32xf32>
    %48 = arith.truncf %47 : vector<64x32xf32> to vector<64x32xbf16>
    %c4 = arith.constant 4 : index
    %c0_21 = arith.constant 0 : index
    %c0_22 = arith.constant 0 : index
    %49 = vector.load %arg4[%c4, %c0_21, %c0_22] : memref<25x32x64xbf16, #tpu.memory_space<vmem>>, vector<1x32x64xbf16>
    %50 = vector.shape_cast %49 : vector<1x32x64xbf16> to vector<32x64xbf16>
    %cst_23 = arith.constant dense<0.000000e+00> : vector<64x64xf32>
    %51 = tpu.matmul %48, %50, %cst_23 {dimension_numbers = #tpu.dot_dimension_numbers<[1], [0], [0], [1], [0, 0, 1, 1], [], []>} : vector<64x32xbf16>, vector<32x64xbf16>, vector<64x64xf32> -> vector<64x64xf32>
    %52 = arith.addf %45, %51 : vector<64x64xf32>
    %53 = vector.extract_strided_slice %16 {offsets = [1, 0, 0], sizes = [8, 8, 32], strides = [1, 1, 1]} : vector<12x16x32xf32> to vector<8x8x32xf32>
    %54 = vector.shape_cast %53 : vector<8x8x32xf32> to vector<64x32xf32>
    %55 = arith.truncf %54 : vector<64x32xf32> to vector<64x32xbf16>
    %c5 = arith.constant 5 : index
    %c0_24 = arith.constant 0 : index
    %c0_25 = arith.constant 0 : index
    %56 = vector.load %arg4[%c5, %c0_24, %c0_25] : memref<25x32x64xbf16, #tpu.memory_space<vmem>>, vector<1x32x64xbf16>
    %57 = vector.shape_cast %56 : vector<1x32x64xbf16> to vector<32x64xbf16>
    %cst_26 = arith.constant dense<0.000000e+00> : vector<64x64xf32>
    %58 = tpu.matmul %55, %57, %cst_26 {dimension_numbers = #tpu.dot_dimension_numbers<[1], [0], [0], [1], [0, 0, 1, 1], [], []>} : vector<64x32xbf16>, vector<32x64xbf16>, vector<64x64xf32> -> vector<64x64xf32>
    %59 = arith.addf %52, %58 : vector<64x64xf32>
    %60 = vector.extract_strided_slice %16 {offsets = [1, 1, 0], sizes = [8, 8, 32], strides = [1, 1, 1]} : vector<12x16x32xf32> to vector<8x8x32xf32>
    %61 = vector.shape_cast %60 : vector<8x8x32xf32> to vector<64x32xf32>
    %62 = arith.truncf %61 : vector<64x32xf32> to vector<64x32xbf16>
    %c6 = arith.constant 6 : index
    %c0_27 = arith.constant 0 : index
    %c0_28 = arith.constant 0 : index
    %63 = vector.load %arg4[%c6, %c0_27, %c0_28] : memref<25x32x64xbf16, #tpu.memory_space<vmem>>, vector<1x32x64xbf16>
    %64 = vector.shape_cast %63 : vector<1x32x64xbf16> to vector<32x64xbf16>
    %cst_29 = arith.constant dense<0.000000e+00> : vector<64x64xf32>
    %65 = tpu.matmul %62, %64, %cst_29 {dimension_numbers = #tpu.dot_dimension_numbers<[1], [0], [0], [1], [0, 0, 1, 1], [], []>} : vector<64x32xbf16>, vector<32x64xbf16>, vector<64x64xf32> -> vector<64x64xf32>
    %66 = arith.addf %59, %65 : vector<64x64xf32>
    %67 = vector.extract_strided_slice %16 {offsets = [1, 2, 0], sizes = [8, 8, 32], strides = [1, 1, 1]} : vector<12x16x32xf32> to vector<8x8x32xf32>
    %68 = vector.shape_cast %67 : vector<8x8x32xf32> to vector<64x32xf32>
    %69 = arith.truncf %68 : vector<64x32xf32> to vector<64x32xbf16>
    %c7 = arith.constant 7 : index
    %c0_30 = arith.constant 0 : index
    %c0_31 = arith.constant 0 : index
    %70 = vector.load %arg4[%c7, %c0_30, %c0_31] : memref<25x32x64xbf16, #tpu.memory_space<vmem>>, vector<1x32x64xbf16>
    %71 = vector.shape_cast %70 : vector<1x32x64xbf16> to vector<32x64xbf16>
    %cst_32 = arith.constant dense<0.000000e+00> : vector<64x64xf32>
    %72 = tpu.matmul %69, %71, %cst_32 {dimension_numbers = #tpu.dot_dimension_numbers<[1], [0], [0], [1], [0, 0, 1, 1], [], []>} : vector<64x32xbf16>, vector<32x64xbf16>, vector<64x64xf32> -> vector<64x64xf32>
    %73 = arith.addf %66, %72 : vector<64x64xf32>
    %74 = vector.extract_strided_slice %16 {offsets = [1, 3, 0], sizes = [8, 8, 32], strides = [1, 1, 1]} : vector<12x16x32xf32> to vector<8x8x32xf32>
    %75 = vector.shape_cast %74 : vector<8x8x32xf32> to vector<64x32xf32>
    %76 = arith.truncf %75 : vector<64x32xf32> to vector<64x32xbf16>
    %c8 = arith.constant 8 : index
    %c0_33 = arith.constant 0 : index
    %c0_34 = arith.constant 0 : index
    %77 = vector.load %arg4[%c8, %c0_33, %c0_34] : memref<25x32x64xbf16, #tpu.memory_space<vmem>>, vector<1x32x64xbf16>
    %78 = vector.shape_cast %77 : vector<1x32x64xbf16> to vector<32x64xbf16>
    %cst_35 = arith.constant dense<0.000000e+00> : vector<64x64xf32>
    %79 = tpu.matmul %76, %78, %cst_35 {dimension_numbers = #tpu.dot_dimension_numbers<[1], [0], [0], [1], [0, 0, 1, 1], [], []>} : vector<64x32xbf16>, vector<32x64xbf16>, vector<64x64xf32> -> vector<64x64xf32>
    %80 = arith.addf %73, %79 : vector<64x64xf32>
    %81 = vector.extract_strided_slice %16 {offsets = [1, 4, 0], sizes = [8, 8, 32], strides = [1, 1, 1]} : vector<12x16x32xf32> to vector<8x8x32xf32>
    %82 = vector.shape_cast %81 : vector<8x8x32xf32> to vector<64x32xf32>
    %83 = arith.truncf %82 : vector<64x32xf32> to vector<64x32xbf16>
    %c9 = arith.constant 9 : index
    %c0_36 = arith.constant 0 : index
    %c0_37 = arith.constant 0 : index
    %84 = vector.load %arg4[%c9, %c0_36, %c0_37] : memref<25x32x64xbf16, #tpu.memory_space<vmem>>, vector<1x32x64xbf16>
    %85 = vector.shape_cast %84 : vector<1x32x64xbf16> to vector<32x64xbf16>
    %cst_38 = arith.constant dense<0.000000e+00> : vector<64x64xf32>
    %86 = tpu.matmul %83, %85, %cst_38 {dimension_numbers = #tpu.dot_dimension_numbers<[1], [0], [0], [1], [0, 0, 1, 1], [], []>} : vector<64x32xbf16>, vector<32x64xbf16>, vector<64x64xf32> -> vector<64x64xf32>
    %87 = arith.addf %80, %86 : vector<64x64xf32>
    %88 = vector.extract_strided_slice %16 {offsets = [2, 0, 0], sizes = [8, 8, 32], strides = [1, 1, 1]} : vector<12x16x32xf32> to vector<8x8x32xf32>
    %89 = vector.shape_cast %88 : vector<8x8x32xf32> to vector<64x32xf32>
    %90 = arith.truncf %89 : vector<64x32xf32> to vector<64x32xbf16>
    %c10 = arith.constant 10 : index
    %c0_39 = arith.constant 0 : index
    %c0_40 = arith.constant 0 : index
    %91 = vector.load %arg4[%c10, %c0_39, %c0_40] : memref<25x32x64xbf16, #tpu.memory_space<vmem>>, vector<1x32x64xbf16>
    %92 = vector.shape_cast %91 : vector<1x32x64xbf16> to vector<32x64xbf16>
    %cst_41 = arith.constant dense<0.000000e+00> : vector<64x64xf32>
    %93 = tpu.matmul %90, %92, %cst_41 {dimension_numbers = #tpu.dot_dimension_numbers<[1], [0], [0], [1], [0, 0, 1, 1], [], []>} : vector<64x32xbf16>, vector<32x64xbf16>, vector<64x64xf32> -> vector<64x64xf32>
    %94 = arith.addf %87, %93 : vector<64x64xf32>
    %95 = vector.extract_strided_slice %16 {offsets = [2, 1, 0], sizes = [8, 8, 32], strides = [1, 1, 1]} : vector<12x16x32xf32> to vector<8x8x32xf32>
    %96 = vector.shape_cast %95 : vector<8x8x32xf32> to vector<64x32xf32>
    %97 = arith.truncf %96 : vector<64x32xf32> to vector<64x32xbf16>
    %c11 = arith.constant 11 : index
    %c0_42 = arith.constant 0 : index
    %c0_43 = arith.constant 0 : index
    %98 = vector.load %arg4[%c11, %c0_42, %c0_43] : memref<25x32x64xbf16, #tpu.memory_space<vmem>>, vector<1x32x64xbf16>
    %99 = vector.shape_cast %98 : vector<1x32x64xbf16> to vector<32x64xbf16>
    %cst_44 = arith.constant dense<0.000000e+00> : vector<64x64xf32>
    %100 = tpu.matmul %97, %99, %cst_44 {dimension_numbers = #tpu.dot_dimension_numbers<[1], [0], [0], [1], [0, 0, 1, 1], [], []>} : vector<64x32xbf16>, vector<32x64xbf16>, vector<64x64xf32> -> vector<64x64xf32>
    %101 = arith.addf %94, %100 : vector<64x64xf32>
    %102 = vector.extract_strided_slice %16 {offsets = [2, 2, 0], sizes = [8, 8, 32], strides = [1, 1, 1]} : vector<12x16x32xf32> to vector<8x8x32xf32>
    %103 = vector.shape_cast %102 : vector<8x8x32xf32> to vector<64x32xf32>
    %104 = arith.truncf %103 : vector<64x32xf32> to vector<64x32xbf16>
    %c12 = arith.constant 12 : index
    %c0_45 = arith.constant 0 : index
    %c0_46 = arith.constant 0 : index
    %105 = vector.load %arg4[%c12, %c0_45, %c0_46] : memref<25x32x64xbf16, #tpu.memory_space<vmem>>, vector<1x32x64xbf16>
    %106 = vector.shape_cast %105 : vector<1x32x64xbf16> to vector<32x64xbf16>
    %cst_47 = arith.constant dense<0.000000e+00> : vector<64x64xf32>
    %107 = tpu.matmul %104, %106, %cst_47 {dimension_numbers = #tpu.dot_dimension_numbers<[1], [0], [0], [1], [0, 0, 1, 1], [], []>} : vector<64x32xbf16>, vector<32x64xbf16>, vector<64x64xf32> -> vector<64x64xf32>
    %108 = arith.addf %101, %107 : vector<64x64xf32>
    %109 = vector.extract_strided_slice %16 {offsets = [2, 3, 0], sizes = [8, 8, 32], strides = [1, 1, 1]} : vector<12x16x32xf32> to vector<8x8x32xf32>
    %110 = vector.shape_cast %109 : vector<8x8x32xf32> to vector<64x32xf32>
    %111 = arith.truncf %110 : vector<64x32xf32> to vector<64x32xbf16>
    %c13 = arith.constant 13 : index
    %c0_48 = arith.constant 0 : index
    %c0_49 = arith.constant 0 : index
    %112 = vector.load %arg4[%c13, %c0_48, %c0_49] : memref<25x32x64xbf16, #tpu.memory_space<vmem>>, vector<1x32x64xbf16>
    %113 = vector.shape_cast %112 : vector<1x32x64xbf16> to vector<32x64xbf16>
    %cst_50 = arith.constant dense<0.000000e+00> : vector<64x64xf32>
    %114 = tpu.matmul %111, %113, %cst_50 {dimension_numbers = #tpu.dot_dimension_numbers<[1], [0], [0], [1], [0, 0, 1, 1], [], []>} : vector<64x32xbf16>, vector<32x64xbf16>, vector<64x64xf32> -> vector<64x64xf32>
    %115 = arith.addf %108, %114 : vector<64x64xf32>
    %116 = vector.extract_strided_slice %16 {offsets = [2, 4, 0], sizes = [8, 8, 32], strides = [1, 1, 1]} : vector<12x16x32xf32> to vector<8x8x32xf32>
    %117 = vector.shape_cast %116 : vector<8x8x32xf32> to vector<64x32xf32>
    %118 = arith.truncf %117 : vector<64x32xf32> to vector<64x32xbf16>
    %c14 = arith.constant 14 : index
    %c0_51 = arith.constant 0 : index
    %c0_52 = arith.constant 0 : index
    %119 = vector.load %arg4[%c14, %c0_51, %c0_52] : memref<25x32x64xbf16, #tpu.memory_space<vmem>>, vector<1x32x64xbf16>
    %120 = vector.shape_cast %119 : vector<1x32x64xbf16> to vector<32x64xbf16>
    %cst_53 = arith.constant dense<0.000000e+00> : vector<64x64xf32>
    %121 = tpu.matmul %118, %120, %cst_53 {dimension_numbers = #tpu.dot_dimension_numbers<[1], [0], [0], [1], [0, 0, 1, 1], [], []>} : vector<64x32xbf16>, vector<32x64xbf16>, vector<64x64xf32> -> vector<64x64xf32>
    %122 = arith.addf %115, %121 : vector<64x64xf32>
    %123 = vector.extract_strided_slice %16 {offsets = [3, 0, 0], sizes = [8, 8, 32], strides = [1, 1, 1]} : vector<12x16x32xf32> to vector<8x8x32xf32>
    %124 = vector.shape_cast %123 : vector<8x8x32xf32> to vector<64x32xf32>
    %125 = arith.truncf %124 : vector<64x32xf32> to vector<64x32xbf16>
    %c15 = arith.constant 15 : index
    %c0_54 = arith.constant 0 : index
    %c0_55 = arith.constant 0 : index
    %126 = vector.load %arg4[%c15, %c0_54, %c0_55] : memref<25x32x64xbf16, #tpu.memory_space<vmem>>, vector<1x32x64xbf16>
    %127 = vector.shape_cast %126 : vector<1x32x64xbf16> to vector<32x64xbf16>
    %cst_56 = arith.constant dense<0.000000e+00> : vector<64x64xf32>
    %128 = tpu.matmul %125, %127, %cst_56 {dimension_numbers = #tpu.dot_dimension_numbers<[1], [0], [0], [1], [0, 0, 1, 1], [], []>} : vector<64x32xbf16>, vector<32x64xbf16>, vector<64x64xf32> -> vector<64x64xf32>
    %129 = arith.addf %122, %128 : vector<64x64xf32>
    %130 = vector.extract_strided_slice %16 {offsets = [3, 1, 0], sizes = [8, 8, 32], strides = [1, 1, 1]} : vector<12x16x32xf32> to vector<8x8x32xf32>
    %131 = vector.shape_cast %130 : vector<8x8x32xf32> to vector<64x32xf32>
    %132 = arith.truncf %131 : vector<64x32xf32> to vector<64x32xbf16>
    %c16 = arith.constant 16 : index
    %c0_57 = arith.constant 0 : index
    %c0_58 = arith.constant 0 : index
    %133 = vector.load %arg4[%c16, %c0_57, %c0_58] : memref<25x32x64xbf16, #tpu.memory_space<vmem>>, vector<1x32x64xbf16>
    %134 = vector.shape_cast %133 : vector<1x32x64xbf16> to vector<32x64xbf16>
    %cst_59 = arith.constant dense<0.000000e+00> : vector<64x64xf32>
    %135 = tpu.matmul %132, %134, %cst_59 {dimension_numbers = #tpu.dot_dimension_numbers<[1], [0], [0], [1], [0, 0, 1, 1], [], []>} : vector<64x32xbf16>, vector<32x64xbf16>, vector<64x64xf32> -> vector<64x64xf32>
    %136 = arith.addf %129, %135 : vector<64x64xf32>
    %137 = vector.extract_strided_slice %16 {offsets = [3, 2, 0], sizes = [8, 8, 32], strides = [1, 1, 1]} : vector<12x16x32xf32> to vector<8x8x32xf32>
    %138 = vector.shape_cast %137 : vector<8x8x32xf32> to vector<64x32xf32>
    %139 = arith.truncf %138 : vector<64x32xf32> to vector<64x32xbf16>
    %c17 = arith.constant 17 : index
    %c0_60 = arith.constant 0 : index
    %c0_61 = arith.constant 0 : index
    %140 = vector.load %arg4[%c17, %c0_60, %c0_61] : memref<25x32x64xbf16, #tpu.memory_space<vmem>>, vector<1x32x64xbf16>
    %141 = vector.shape_cast %140 : vector<1x32x64xbf16> to vector<32x64xbf16>
    %cst_62 = arith.constant dense<0.000000e+00> : vector<64x64xf32>
    %142 = tpu.matmul %139, %141, %cst_62 {dimension_numbers = #tpu.dot_dimension_numbers<[1], [0], [0], [1], [0, 0, 1, 1], [], []>} : vector<64x32xbf16>, vector<32x64xbf16>, vector<64x64xf32> -> vector<64x64xf32>
    %143 = arith.addf %136, %142 : vector<64x64xf32>
    %144 = vector.extract_strided_slice %16 {offsets = [3, 3, 0], sizes = [8, 8, 32], strides = [1, 1, 1]} : vector<12x16x32xf32> to vector<8x8x32xf32>
    %145 = vector.shape_cast %144 : vector<8x8x32xf32> to vector<64x32xf32>
    %146 = arith.truncf %145 : vector<64x32xf32> to vector<64x32xbf16>
    %c18 = arith.constant 18 : index
    %c0_63 = arith.constant 0 : index
    %c0_64 = arith.constant 0 : index
    %147 = vector.load %arg4[%c18, %c0_63, %c0_64] : memref<25x32x64xbf16, #tpu.memory_space<vmem>>, vector<1x32x64xbf16>
    %148 = vector.shape_cast %147 : vector<1x32x64xbf16> to vector<32x64xbf16>
    %cst_65 = arith.constant dense<0.000000e+00> : vector<64x64xf32>
    %149 = tpu.matmul %146, %148, %cst_65 {dimension_numbers = #tpu.dot_dimension_numbers<[1], [0], [0], [1], [0, 0, 1, 1], [], []>} : vector<64x32xbf16>, vector<32x64xbf16>, vector<64x64xf32> -> vector<64x64xf32>
    %150 = arith.addf %143, %149 : vector<64x64xf32>
    %151 = vector.extract_strided_slice %16 {offsets = [3, 4, 0], sizes = [8, 8, 32], strides = [1, 1, 1]} : vector<12x16x32xf32> to vector<8x8x32xf32>
    %152 = vector.shape_cast %151 : vector<8x8x32xf32> to vector<64x32xf32>
    %153 = arith.truncf %152 : vector<64x32xf32> to vector<64x32xbf16>
    %c19 = arith.constant 19 : index
    %c0_66 = arith.constant 0 : index
    %c0_67 = arith.constant 0 : index
    %154 = vector.load %arg4[%c19, %c0_66, %c0_67] : memref<25x32x64xbf16, #tpu.memory_space<vmem>>, vector<1x32x64xbf16>
    %155 = vector.shape_cast %154 : vector<1x32x64xbf16> to vector<32x64xbf16>
    %cst_68 = arith.constant dense<0.000000e+00> : vector<64x64xf32>
    %156 = tpu.matmul %153, %155, %cst_68 {dimension_numbers = #tpu.dot_dimension_numbers<[1], [0], [0], [1], [0, 0, 1, 1], [], []>} : vector<64x32xbf16>, vector<32x64xbf16>, vector<64x64xf32> -> vector<64x64xf32>
    %157 = arith.addf %150, %156 : vector<64x64xf32>
    %158 = vector.extract_strided_slice %16 {offsets = [4, 0, 0], sizes = [8, 8, 32], strides = [1, 1, 1]} : vector<12x16x32xf32> to vector<8x8x32xf32>
    %159 = vector.shape_cast %158 : vector<8x8x32xf32> to vector<64x32xf32>
    %160 = arith.truncf %159 : vector<64x32xf32> to vector<64x32xbf16>
    %c20 = arith.constant 20 : index
    %c0_69 = arith.constant 0 : index
    %c0_70 = arith.constant 0 : index
    %161 = vector.load %arg4[%c20, %c0_69, %c0_70] : memref<25x32x64xbf16, #tpu.memory_space<vmem>>, vector<1x32x64xbf16>
    %162 = vector.shape_cast %161 : vector<1x32x64xbf16> to vector<32x64xbf16>
    %cst_71 = arith.constant dense<0.000000e+00> : vector<64x64xf32>
    %163 = tpu.matmul %160, %162, %cst_71 {dimension_numbers = #tpu.dot_dimension_numbers<[1], [0], [0], [1], [0, 0, 1, 1], [], []>} : vector<64x32xbf16>, vector<32x64xbf16>, vector<64x64xf32> -> vector<64x64xf32>
    %164 = arith.addf %157, %163 : vector<64x64xf32>
    %165 = vector.extract_strided_slice %16 {offsets = [4, 1, 0], sizes = [8, 8, 32], strides = [1, 1, 1]} : vector<12x16x32xf32> to vector<8x8x32xf32>
    %166 = vector.shape_cast %165 : vector<8x8x32xf32> to vector<64x32xf32>
    %167 = arith.truncf %166 : vector<64x32xf32> to vector<64x32xbf16>
    %c21 = arith.constant 21 : index
    %c0_72 = arith.constant 0 : index
    %c0_73 = arith.constant 0 : index
    %168 = vector.load %arg4[%c21, %c0_72, %c0_73] : memref<25x32x64xbf16, #tpu.memory_space<vmem>>, vector<1x32x64xbf16>
    %169 = vector.shape_cast %168 : vector<1x32x64xbf16> to vector<32x64xbf16>
    %cst_74 = arith.constant dense<0.000000e+00> : vector<64x64xf32>
    %170 = tpu.matmul %167, %169, %cst_74 {dimension_numbers = #tpu.dot_dimension_numbers<[1], [0], [0], [1], [0, 0, 1, 1], [], []>} : vector<64x32xbf16>, vector<32x64xbf16>, vector<64x64xf32> -> vector<64x64xf32>
    %171 = arith.addf %164, %170 : vector<64x64xf32>
    %172 = vector.extract_strided_slice %16 {offsets = [4, 2, 0], sizes = [8, 8, 32], strides = [1, 1, 1]} : vector<12x16x32xf32> to vector<8x8x32xf32>
    %173 = vector.shape_cast %172 : vector<8x8x32xf32> to vector<64x32xf32>
    %174 = arith.truncf %173 : vector<64x32xf32> to vector<64x32xbf16>
    %c22 = arith.constant 22 : index
    %c0_75 = arith.constant 0 : index
    %c0_76 = arith.constant 0 : index
    %175 = vector.load %arg4[%c22, %c0_75, %c0_76] : memref<25x32x64xbf16, #tpu.memory_space<vmem>>, vector<1x32x64xbf16>
    %176 = vector.shape_cast %175 : vector<1x32x64xbf16> to vector<32x64xbf16>
    %cst_77 = arith.constant dense<0.000000e+00> : vector<64x64xf32>
    %177 = tpu.matmul %174, %176, %cst_77 {dimension_numbers = #tpu.dot_dimension_numbers<[1], [0], [0], [1], [0, 0, 1, 1], [], []>} : vector<64x32xbf16>, vector<32x64xbf16>, vector<64x64xf32> -> vector<64x64xf32>
    %178 = arith.addf %171, %177 : vector<64x64xf32>
    %179 = vector.extract_strided_slice %16 {offsets = [4, 3, 0], sizes = [8, 8, 32], strides = [1, 1, 1]} : vector<12x16x32xf32> to vector<8x8x32xf32>
    %180 = vector.shape_cast %179 : vector<8x8x32xf32> to vector<64x32xf32>
    %181 = arith.truncf %180 : vector<64x32xf32> to vector<64x32xbf16>
    %c23 = arith.constant 23 : index
    %c0_78 = arith.constant 0 : index
    %c0_79 = arith.constant 0 : index
    %182 = vector.load %arg4[%c23, %c0_78, %c0_79] : memref<25x32x64xbf16, #tpu.memory_space<vmem>>, vector<1x32x64xbf16>
    %183 = vector.shape_cast %182 : vector<1x32x64xbf16> to vector<32x64xbf16>
    %cst_80 = arith.constant dense<0.000000e+00> : vector<64x64xf32>
    %184 = tpu.matmul %181, %183, %cst_80 {dimension_numbers = #tpu.dot_dimension_numbers<[1], [0], [0], [1], [0, 0, 1, 1], [], []>} : vector<64x32xbf16>, vector<32x64xbf16>, vector<64x64xf32> -> vector<64x64xf32>
    %185 = arith.addf %178, %184 : vector<64x64xf32>
    %186 = vector.extract_strided_slice %16 {offsets = [4, 4, 0], sizes = [8, 8, 32], strides = [1, 1, 1]} : vector<12x16x32xf32> to vector<8x8x32xf32>
    %187 = vector.shape_cast %186 : vector<8x8x32xf32> to vector<64x32xf32>
    %188 = arith.truncf %187 : vector<64x32xf32> to vector<64x32xbf16>
    %c24 = arith.constant 24 : index
    %c0_81 = arith.constant 0 : index
    %c0_82 = arith.constant 0 : index
    %189 = vector.load %arg4[%c24, %c0_81, %c0_82] : memref<25x32x64xbf16, #tpu.memory_space<vmem>>, vector<1x32x64xbf16>
    %190 = vector.shape_cast %189 : vector<1x32x64xbf16> to vector<32x64xbf16>
    %cst_83 = arith.constant dense<0.000000e+00> : vector<64x64xf32>
    %191 = tpu.matmul %188, %190, %cst_83 {dimension_numbers = #tpu.dot_dimension_numbers<[1], [0], [0], [1], [0, 0, 1, 1], [], []>} : vector<64x32xbf16>, vector<32x64xbf16>, vector<64x64xf32> -> vector<64x64xf32>
    %192 = arith.addf %185, %191 : vector<64x64xf32>
    %c0_84 = arith.constant 0 : index
    %c0_85 = arith.constant 0 : index
    %193 = vector.load %arg5[%c0_84, %c0_85] : memref<1x64xf32, #tpu.memory_space<vmem>>, vector<1x64xf32>
    %194 = vector.broadcast %193 : vector<1x64xf32> to vector<64x64xf32>
    %195 = arith.addf %192, %194 : vector<64x64xf32>
    %c0_86 = arith.constant 0 : index
    %c0_87 = arith.constant 0 : index
    %196 = vector.load %arg7[%c0_86, %c0_87] : memref<1x512xf32, #tpu.memory_space<vmem>>, vector<1x512xf32>
    %197 = vector.extract_strided_slice %195 {offsets = [0, 0], sizes = [1, 64], strides = [1, 1]} : vector<64x64xf32> to vector<1x64xf32>
    %198 = vector.extract_strided_slice %195 {offsets = [1, 0], sizes = [1, 64], strides = [1, 1]} : vector<64x64xf32> to vector<1x64xf32>
    %199 = arith.maximumf %197, %198 : vector<1x64xf32>
    %200 = vector.extract_strided_slice %195 {offsets = [8, 0], sizes = [1, 64], strides = [1, 1]} : vector<64x64xf32> to vector<1x64xf32>
    %201 = vector.extract_strided_slice %195 {offsets = [9, 0], sizes = [1, 64], strides = [1, 1]} : vector<64x64xf32> to vector<1x64xf32>
    %202 = arith.maximumf %200, %201 : vector<1x64xf32>
    %203 = arith.maximumf %199, %202 : vector<1x64xf32>
    %cst_88 = arith.constant 0.000000e+00 : f32
    %204 = vector.broadcast %cst_88 : f32 to vector<1x64xf32>
    %205 = arith.maximumf %203, %204 : vector<1x64xf32>
    %206 = arith.truncf %205 : vector<1x64xf32> to vector<1x64xbf16>
    %c0_89 = arith.constant 0 : index
    %c0_90 = arith.constant 0 : index
    %c0_91 = arith.constant 0 : index
    %207 = vector.load %arg6[%c0_89, %c0_90, %c0_91] : memref<16x64x512xbf16, #tpu.memory_space<vmem>>, vector<1x64x512xbf16>
    %208 = vector.shape_cast %207 : vector<1x64x512xbf16> to vector<64x512xbf16>
    %cst_92 = arith.constant dense<0.000000e+00> : vector<1x512xf32>
    %209 = tpu.matmul %206, %208, %cst_92 {dimension_numbers = #tpu.dot_dimension_numbers<[1], [0], [0], [1], [0, 0, 1, 1], [], []>} : vector<1x64xbf16>, vector<64x512xbf16>, vector<1x512xf32> -> vector<1x512xf32>
    %210 = arith.addf %196, %209 : vector<1x512xf32>
    %211 = vector.extract_strided_slice %195 {offsets = [2, 0], sizes = [1, 64], strides = [1, 1]} : vector<64x64xf32> to vector<1x64xf32>
    %212 = vector.extract_strided_slice %195 {offsets = [3, 0], sizes = [1, 64], strides = [1, 1]} : vector<64x64xf32> to vector<1x64xf32>
    %213 = arith.maximumf %211, %212 : vector<1x64xf32>
    %214 = vector.extract_strided_slice %195 {offsets = [10, 0], sizes = [1, 64], strides = [1, 1]} : vector<64x64xf32> to vector<1x64xf32>
    %215 = vector.extract_strided_slice %195 {offsets = [11, 0], sizes = [1, 64], strides = [1, 1]} : vector<64x64xf32> to vector<1x64xf32>
    %216 = arith.maximumf %214, %215 : vector<1x64xf32>
    %217 = arith.maximumf %213, %216 : vector<1x64xf32>
    %cst_93 = arith.constant 0.000000e+00 : f32
    %218 = vector.broadcast %cst_93 : f32 to vector<1x64xf32>
    %219 = arith.maximumf %217, %218 : vector<1x64xf32>
    %220 = arith.truncf %219 : vector<1x64xf32> to vector<1x64xbf16>
    %c1_94 = arith.constant 1 : index
    %c0_95 = arith.constant 0 : index
    %c0_96 = arith.constant 0 : index
    %221 = vector.load %arg6[%c1_94, %c0_95, %c0_96] : memref<16x64x512xbf16, #tpu.memory_space<vmem>>, vector<1x64x512xbf16>
    %222 = vector.shape_cast %221 : vector<1x64x512xbf16> to vector<64x512xbf16>
    %cst_97 = arith.constant dense<0.000000e+00> : vector<1x512xf32>
    %223 = tpu.matmul %220, %222, %cst_97 {dimension_numbers = #tpu.dot_dimension_numbers<[1], [0], [0], [1], [0, 0, 1, 1], [], []>} : vector<1x64xbf16>, vector<64x512xbf16>, vector<1x512xf32> -> vector<1x512xf32>
    %224 = arith.addf %210, %223 : vector<1x512xf32>
    %225 = vector.extract_strided_slice %195 {offsets = [4, 0], sizes = [1, 64], strides = [1, 1]} : vector<64x64xf32> to vector<1x64xf32>
    %226 = vector.extract_strided_slice %195 {offsets = [5, 0], sizes = [1, 64], strides = [1, 1]} : vector<64x64xf32> to vector<1x64xf32>
    %227 = arith.maximumf %225, %226 : vector<1x64xf32>
    %228 = vector.extract_strided_slice %195 {offsets = [12, 0], sizes = [1, 64], strides = [1, 1]} : vector<64x64xf32> to vector<1x64xf32>
    %229 = vector.extract_strided_slice %195 {offsets = [13, 0], sizes = [1, 64], strides = [1, 1]} : vector<64x64xf32> to vector<1x64xf32>
    %230 = arith.maximumf %228, %229 : vector<1x64xf32>
    %231 = arith.maximumf %227, %230 : vector<1x64xf32>
    %cst_98 = arith.constant 0.000000e+00 : f32
    %232 = vector.broadcast %cst_98 : f32 to vector<1x64xf32>
    %233 = arith.maximumf %231, %232 : vector<1x64xf32>
    %234 = arith.truncf %233 : vector<1x64xf32> to vector<1x64xbf16>
    %c2_99 = arith.constant 2 : index
    %c0_100 = arith.constant 0 : index
    %c0_101 = arith.constant 0 : index
    %235 = vector.load %arg6[%c2_99, %c0_100, %c0_101] : memref<16x64x512xbf16, #tpu.memory_space<vmem>>, vector<1x64x512xbf16>
    %236 = vector.shape_cast %235 : vector<1x64x512xbf16> to vector<64x512xbf16>
    %cst_102 = arith.constant dense<0.000000e+00> : vector<1x512xf32>
    %237 = tpu.matmul %234, %236, %cst_102 {dimension_numbers = #tpu.dot_dimension_numbers<[1], [0], [0], [1], [0, 0, 1, 1], [], []>} : vector<1x64xbf16>, vector<64x512xbf16>, vector<1x512xf32> -> vector<1x512xf32>
    %238 = arith.addf %224, %237 : vector<1x512xf32>
    %239 = vector.extract_strided_slice %195 {offsets = [6, 0], sizes = [1, 64], strides = [1, 1]} : vector<64x64xf32> to vector<1x64xf32>
    %240 = vector.extract_strided_slice %195 {offsets = [7, 0], sizes = [1, 64], strides = [1, 1]} : vector<64x64xf32> to vector<1x64xf32>
    %241 = arith.maximumf %239, %240 : vector<1x64xf32>
    %242 = vector.extract_strided_slice %195 {offsets = [14, 0], sizes = [1, 64], strides = [1, 1]} : vector<64x64xf32> to vector<1x64xf32>
    %243 = vector.extract_strided_slice %195 {offsets = [15, 0], sizes = [1, 64], strides = [1, 1]} : vector<64x64xf32> to vector<1x64xf32>
    %244 = arith.maximumf %242, %243 : vector<1x64xf32>
    %245 = arith.maximumf %241, %244 : vector<1x64xf32>
    %cst_103 = arith.constant 0.000000e+00 : f32
    %246 = vector.broadcast %cst_103 : f32 to vector<1x64xf32>
    %247 = arith.maximumf %245, %246 : vector<1x64xf32>
    %248 = arith.truncf %247 : vector<1x64xf32> to vector<1x64xbf16>
    %c3_104 = arith.constant 3 : index
    %c0_105 = arith.constant 0 : index
    %c0_106 = arith.constant 0 : index
    %249 = vector.load %arg6[%c3_104, %c0_105, %c0_106] : memref<16x64x512xbf16, #tpu.memory_space<vmem>>, vector<1x64x512xbf16>
    %250 = vector.shape_cast %249 : vector<1x64x512xbf16> to vector<64x512xbf16>
    %cst_107 = arith.constant dense<0.000000e+00> : vector<1x512xf32>
    %251 = tpu.matmul %248, %250, %cst_107 {dimension_numbers = #tpu.dot_dimension_numbers<[1], [0], [0], [1], [0, 0, 1, 1], [], []>} : vector<1x64xbf16>, vector<64x512xbf16>, vector<1x512xf32> -> vector<1x512xf32>
    %252 = arith.addf %238, %251 : vector<1x512xf32>
    %253 = vector.extract_strided_slice %195 {offsets = [16, 0], sizes = [1, 64], strides = [1, 1]} : vector<64x64xf32> to vector<1x64xf32>
    %254 = vector.extract_strided_slice %195 {offsets = [17, 0], sizes = [1, 64], strides = [1, 1]} : vector<64x64xf32> to vector<1x64xf32>
    %255 = arith.maximumf %253, %254 : vector<1x64xf32>
    %256 = vector.extract_strided_slice %195 {offsets = [24, 0], sizes = [1, 64], strides = [1, 1]} : vector<64x64xf32> to vector<1x64xf32>
    %257 = vector.extract_strided_slice %195 {offsets = [25, 0], sizes = [1, 64], strides = [1, 1]} : vector<64x64xf32> to vector<1x64xf32>
    %258 = arith.maximumf %256, %257 : vector<1x64xf32>
    %259 = arith.maximumf %255, %258 : vector<1x64xf32>
    %cst_108 = arith.constant 0.000000e+00 : f32
    %260 = vector.broadcast %cst_108 : f32 to vector<1x64xf32>
    %261 = arith.maximumf %259, %260 : vector<1x64xf32>
    %262 = arith.truncf %261 : vector<1x64xf32> to vector<1x64xbf16>
    %c4_109 = arith.constant 4 : index
    %c0_110 = arith.constant 0 : index
    %c0_111 = arith.constant 0 : index
    %263 = vector.load %arg6[%c4_109, %c0_110, %c0_111] : memref<16x64x512xbf16, #tpu.memory_space<vmem>>, vector<1x64x512xbf16>
    %264 = vector.shape_cast %263 : vector<1x64x512xbf16> to vector<64x512xbf16>
    %cst_112 = arith.constant dense<0.000000e+00> : vector<1x512xf32>
    %265 = tpu.matmul %262, %264, %cst_112 {dimension_numbers = #tpu.dot_dimension_numbers<[1], [0], [0], [1], [0, 0, 1, 1], [], []>} : vector<1x64xbf16>, vector<64x512xbf16>, vector<1x512xf32> -> vector<1x512xf32>
    %266 = arith.addf %252, %265 : vector<1x512xf32>
    %267 = vector.extract_strided_slice %195 {offsets = [18, 0], sizes = [1, 64], strides = [1, 1]} : vector<64x64xf32> to vector<1x64xf32>
    %268 = vector.extract_strided_slice %195 {offsets = [19, 0], sizes = [1, 64], strides = [1, 1]} : vector<64x64xf32> to vector<1x64xf32>
    %269 = arith.maximumf %267, %268 : vector<1x64xf32>
    %270 = vector.extract_strided_slice %195 {offsets = [26, 0], sizes = [1, 64], strides = [1, 1]} : vector<64x64xf32> to vector<1x64xf32>
    %271 = vector.extract_strided_slice %195 {offsets = [27, 0], sizes = [1, 64], strides = [1, 1]} : vector<64x64xf32> to vector<1x64xf32>
    %272 = arith.maximumf %270, %271 : vector<1x64xf32>
    %273 = arith.maximumf %269, %272 : vector<1x64xf32>
    %cst_113 = arith.constant 0.000000e+00 : f32
    %274 = vector.broadcast %cst_113 : f32 to vector<1x64xf32>
    %275 = arith.maximumf %273, %274 : vector<1x64xf32>
    %276 = arith.truncf %275 : vector<1x64xf32> to vector<1x64xbf16>
    %c5_114 = arith.constant 5 : index
    %c0_115 = arith.constant 0 : index
    %c0_116 = arith.constant 0 : index
    %277 = vector.load %arg6[%c5_114, %c0_115, %c0_116] : memref<16x64x512xbf16, #tpu.memory_space<vmem>>, vector<1x64x512xbf16>
    %278 = vector.shape_cast %277 : vector<1x64x512xbf16> to vector<64x512xbf16>
    %cst_117 = arith.constant dense<0.000000e+00> : vector<1x512xf32>
    %279 = tpu.matmul %276, %278, %cst_117 {dimension_numbers = #tpu.dot_dimension_numbers<[1], [0], [0], [1], [0, 0, 1, 1], [], []>} : vector<1x64xbf16>, vector<64x512xbf16>, vector<1x512xf32> -> vector<1x512xf32>
    %280 = arith.addf %266, %279 : vector<1x512xf32>
    %281 = vector.extract_strided_slice %195 {offsets = [20, 0], sizes = [1, 64], strides = [1, 1]} : vector<64x64xf32> to vector<1x64xf32>
    %282 = vector.extract_strided_slice %195 {offsets = [21, 0], sizes = [1, 64], strides = [1, 1]} : vector<64x64xf32> to vector<1x64xf32>
    %283 = arith.maximumf %281, %282 : vector<1x64xf32>
    %284 = vector.extract_strided_slice %195 {offsets = [28, 0], sizes = [1, 64], strides = [1, 1]} : vector<64x64xf32> to vector<1x64xf32>
    %285 = vector.extract_strided_slice %195 {offsets = [29, 0], sizes = [1, 64], strides = [1, 1]} : vector<64x64xf32> to vector<1x64xf32>
    %286 = arith.maximumf %284, %285 : vector<1x64xf32>
    %287 = arith.maximumf %283, %286 : vector<1x64xf32>
    %cst_118 = arith.constant 0.000000e+00 : f32
    %288 = vector.broadcast %cst_118 : f32 to vector<1x64xf32>
    %289 = arith.maximumf %287, %288 : vector<1x64xf32>
    %290 = arith.truncf %289 : vector<1x64xf32> to vector<1x64xbf16>
    %c6_119 = arith.constant 6 : index
    %c0_120 = arith.constant 0 : index
    %c0_121 = arith.constant 0 : index
    %291 = vector.load %arg6[%c6_119, %c0_120, %c0_121] : memref<16x64x512xbf16, #tpu.memory_space<vmem>>, vector<1x64x512xbf16>
    %292 = vector.shape_cast %291 : vector<1x64x512xbf16> to vector<64x512xbf16>
    %cst_122 = arith.constant dense<0.000000e+00> : vector<1x512xf32>
    %293 = tpu.matmul %290, %292, %cst_122 {dimension_numbers = #tpu.dot_dimension_numbers<[1], [0], [0], [1], [0, 0, 1, 1], [], []>} : vector<1x64xbf16>, vector<64x512xbf16>, vector<1x512xf32> -> vector<1x512xf32>
    %294 = arith.addf %280, %293 : vector<1x512xf32>
    %295 = vector.extract_strided_slice %195 {offsets = [22, 0], sizes = [1, 64], strides = [1, 1]} : vector<64x64xf32> to vector<1x64xf32>
    %296 = vector.extract_strided_slice %195 {offsets = [23, 0], sizes = [1, 64], strides = [1, 1]} : vector<64x64xf32> to vector<1x64xf32>
    %297 = arith.maximumf %295, %296 : vector<1x64xf32>
    %298 = vector.extract_strided_slice %195 {offsets = [30, 0], sizes = [1, 64], strides = [1, 1]} : vector<64x64xf32> to vector<1x64xf32>
    %299 = vector.extract_strided_slice %195 {offsets = [31, 0], sizes = [1, 64], strides = [1, 1]} : vector<64x64xf32> to vector<1x64xf32>
    %300 = arith.maximumf %298, %299 : vector<1x64xf32>
    %301 = arith.maximumf %297, %300 : vector<1x64xf32>
    %cst_123 = arith.constant 0.000000e+00 : f32
    %302 = vector.broadcast %cst_123 : f32 to vector<1x64xf32>
    %303 = arith.maximumf %301, %302 : vector<1x64xf32>
    %304 = arith.truncf %303 : vector<1x64xf32> to vector<1x64xbf16>
    %c7_124 = arith.constant 7 : index
    %c0_125 = arith.constant 0 : index
    %c0_126 = arith.constant 0 : index
    %305 = vector.load %arg6[%c7_124, %c0_125, %c0_126] : memref<16x64x512xbf16, #tpu.memory_space<vmem>>, vector<1x64x512xbf16>
    %306 = vector.shape_cast %305 : vector<1x64x512xbf16> to vector<64x512xbf16>
    %cst_127 = arith.constant dense<0.000000e+00> : vector<1x512xf32>
    %307 = tpu.matmul %304, %306, %cst_127 {dimension_numbers = #tpu.dot_dimension_numbers<[1], [0], [0], [1], [0, 0, 1, 1], [], []>} : vector<1x64xbf16>, vector<64x512xbf16>, vector<1x512xf32> -> vector<1x512xf32>
    %308 = arith.addf %294, %307 : vector<1x512xf32>
    %309 = vector.extract_strided_slice %195 {offsets = [32, 0], sizes = [1, 64], strides = [1, 1]} : vector<64x64xf32> to vector<1x64xf32>
    %310 = vector.extract_strided_slice %195 {offsets = [33, 0], sizes = [1, 64], strides = [1, 1]} : vector<64x64xf32> to vector<1x64xf32>
    %311 = arith.maximumf %309, %310 : vector<1x64xf32>
    %312 = vector.extract_strided_slice %195 {offsets = [40, 0], sizes = [1, 64], strides = [1, 1]} : vector<64x64xf32> to vector<1x64xf32>
    %313 = vector.extract_strided_slice %195 {offsets = [41, 0], sizes = [1, 64], strides = [1, 1]} : vector<64x64xf32> to vector<1x64xf32>
    %314 = arith.maximumf %312, %313 : vector<1x64xf32>
    %315 = arith.maximumf %311, %314 : vector<1x64xf32>
    %cst_128 = arith.constant 0.000000e+00 : f32
    %316 = vector.broadcast %cst_128 : f32 to vector<1x64xf32>
    %317 = arith.maximumf %315, %316 : vector<1x64xf32>
    %318 = arith.truncf %317 : vector<1x64xf32> to vector<1x64xbf16>
    %c8_129 = arith.constant 8 : index
    %c0_130 = arith.constant 0 : index
    %c0_131 = arith.constant 0 : index
    %319 = vector.load %arg6[%c8_129, %c0_130, %c0_131] : memref<16x64x512xbf16, #tpu.memory_space<vmem>>, vector<1x64x512xbf16>
    %320 = vector.shape_cast %319 : vector<1x64x512xbf16> to vector<64x512xbf16>
    %cst_132 = arith.constant dense<0.000000e+00> : vector<1x512xf32>
    %321 = tpu.matmul %318, %320, %cst_132 {dimension_numbers = #tpu.dot_dimension_numbers<[1], [0], [0], [1], [0, 0, 1, 1], [], []>} : vector<1x64xbf16>, vector<64x512xbf16>, vector<1x512xf32> -> vector<1x512xf32>
    %322 = arith.addf %308, %321 : vector<1x512xf32>
    %323 = vector.extract_strided_slice %195 {offsets = [34, 0], sizes = [1, 64], strides = [1, 1]} : vector<64x64xf32> to vector<1x64xf32>
    %324 = vector.extract_strided_slice %195 {offsets = [35, 0], sizes = [1, 64], strides = [1, 1]} : vector<64x64xf32> to vector<1x64xf32>
    %325 = arith.maximumf %323, %324 : vector<1x64xf32>
    %326 = vector.extract_strided_slice %195 {offsets = [42, 0], sizes = [1, 64], strides = [1, 1]} : vector<64x64xf32> to vector<1x64xf32>
    %327 = vector.extract_strided_slice %195 {offsets = [43, 0], sizes = [1, 64], strides = [1, 1]} : vector<64x64xf32> to vector<1x64xf32>
    %328 = arith.maximumf %326, %327 : vector<1x64xf32>
    %329 = arith.maximumf %325, %328 : vector<1x64xf32>
    %cst_133 = arith.constant 0.000000e+00 : f32
    %330 = vector.broadcast %cst_133 : f32 to vector<1x64xf32>
    %331 = arith.maximumf %329, %330 : vector<1x64xf32>
    %332 = arith.truncf %331 : vector<1x64xf32> to vector<1x64xbf16>
    %c9_134 = arith.constant 9 : index
    %c0_135 = arith.constant 0 : index
    %c0_136 = arith.constant 0 : index
    %333 = vector.load %arg6[%c9_134, %c0_135, %c0_136] : memref<16x64x512xbf16, #tpu.memory_space<vmem>>, vector<1x64x512xbf16>
    %334 = vector.shape_cast %333 : vector<1x64x512xbf16> to vector<64x512xbf16>
    %cst_137 = arith.constant dense<0.000000e+00> : vector<1x512xf32>
    %335 = tpu.matmul %332, %334, %cst_137 {dimension_numbers = #tpu.dot_dimension_numbers<[1], [0], [0], [1], [0, 0, 1, 1], [], []>} : vector<1x64xbf16>, vector<64x512xbf16>, vector<1x512xf32> -> vector<1x512xf32>
    %336 = arith.addf %322, %335 : vector<1x512xf32>
    %337 = vector.extract_strided_slice %195 {offsets = [36, 0], sizes = [1, 64], strides = [1, 1]} : vector<64x64xf32> to vector<1x64xf32>
    %338 = vector.extract_strided_slice %195 {offsets = [37, 0], sizes = [1, 64], strides = [1, 1]} : vector<64x64xf32> to vector<1x64xf32>
    %339 = arith.maximumf %337, %338 : vector<1x64xf32>
    %340 = vector.extract_strided_slice %195 {offsets = [44, 0], sizes = [1, 64], strides = [1, 1]} : vector<64x64xf32> to vector<1x64xf32>
    %341 = vector.extract_strided_slice %195 {offsets = [45, 0], sizes = [1, 64], strides = [1, 1]} : vector<64x64xf32> to vector<1x64xf32>
    %342 = arith.maximumf %340, %341 : vector<1x64xf32>
    %343 = arith.maximumf %339, %342 : vector<1x64xf32>
    %cst_138 = arith.constant 0.000000e+00 : f32
    %344 = vector.broadcast %cst_138 : f32 to vector<1x64xf32>
    %345 = arith.maximumf %343, %344 : vector<1x64xf32>
    %346 = arith.truncf %345 : vector<1x64xf32> to vector<1x64xbf16>
    %c10_139 = arith.constant 10 : index
    %c0_140 = arith.constant 0 : index
    %c0_141 = arith.constant 0 : index
    %347 = vector.load %arg6[%c10_139, %c0_140, %c0_141] : memref<16x64x512xbf16, #tpu.memory_space<vmem>>, vector<1x64x512xbf16>
    %348 = vector.shape_cast %347 : vector<1x64x512xbf16> to vector<64x512xbf16>
    %cst_142 = arith.constant dense<0.000000e+00> : vector<1x512xf32>
    %349 = tpu.matmul %346, %348, %cst_142 {dimension_numbers = #tpu.dot_dimension_numbers<[1], [0], [0], [1], [0, 0, 1, 1], [], []>} : vector<1x64xbf16>, vector<64x512xbf16>, vector<1x512xf32> -> vector<1x512xf32>
    %350 = arith.addf %336, %349 : vector<1x512xf32>
    %351 = vector.extract_strided_slice %195 {offsets = [38, 0], sizes = [1, 64], strides = [1, 1]} : vector<64x64xf32> to vector<1x64xf32>
    %352 = vector.extract_strided_slice %195 {offsets = [39, 0], sizes = [1, 64], strides = [1, 1]} : vector<64x64xf32> to vector<1x64xf32>
    %353 = arith.maximumf %351, %352 : vector<1x64xf32>
    %354 = vector.extract_strided_slice %195 {offsets = [46, 0], sizes = [1, 64], strides = [1, 1]} : vector<64x64xf32> to vector<1x64xf32>
    %355 = vector.extract_strided_slice %195 {offsets = [47, 0], sizes = [1, 64], strides = [1, 1]} : vector<64x64xf32> to vector<1x64xf32>
    %356 = arith.maximumf %354, %355 : vector<1x64xf32>
    %357 = arith.maximumf %353, %356 : vector<1x64xf32>
    %cst_143 = arith.constant 0.000000e+00 : f32
    %358 = vector.broadcast %cst_143 : f32 to vector<1x64xf32>
    %359 = arith.maximumf %357, %358 : vector<1x64xf32>
    %360 = arith.truncf %359 : vector<1x64xf32> to vector<1x64xbf16>
    %c11_144 = arith.constant 11 : index
    %c0_145 = arith.constant 0 : index
    %c0_146 = arith.constant 0 : index
    %361 = vector.load %arg6[%c11_144, %c0_145, %c0_146] : memref<16x64x512xbf16, #tpu.memory_space<vmem>>, vector<1x64x512xbf16>
    %362 = vector.shape_cast %361 : vector<1x64x512xbf16> to vector<64x512xbf16>
    %cst_147 = arith.constant dense<0.000000e+00> : vector<1x512xf32>
    %363 = tpu.matmul %360, %362, %cst_147 {dimension_numbers = #tpu.dot_dimension_numbers<[1], [0], [0], [1], [0, 0, 1, 1], [], []>} : vector<1x64xbf16>, vector<64x512xbf16>, vector<1x512xf32> -> vector<1x512xf32>
    %364 = arith.addf %350, %363 : vector<1x512xf32>
    %365 = vector.extract_strided_slice %195 {offsets = [48, 0], sizes = [1, 64], strides = [1, 1]} : vector<64x64xf32> to vector<1x64xf32>
    %366 = vector.extract_strided_slice %195 {offsets = [49, 0], sizes = [1, 64], strides = [1, 1]} : vector<64x64xf32> to vector<1x64xf32>
    %367 = arith.maximumf %365, %366 : vector<1x64xf32>
    %368 = vector.extract_strided_slice %195 {offsets = [56, 0], sizes = [1, 64], strides = [1, 1]} : vector<64x64xf32> to vector<1x64xf32>
    %369 = vector.extract_strided_slice %195 {offsets = [57, 0], sizes = [1, 64], strides = [1, 1]} : vector<64x64xf32> to vector<1x64xf32>
    %370 = arith.maximumf %368, %369 : vector<1x64xf32>
    %371 = arith.maximumf %367, %370 : vector<1x64xf32>
    %cst_148 = arith.constant 0.000000e+00 : f32
    %372 = vector.broadcast %cst_148 : f32 to vector<1x64xf32>
    %373 = arith.maximumf %371, %372 : vector<1x64xf32>
    %374 = arith.truncf %373 : vector<1x64xf32> to vector<1x64xbf16>
    %c12_149 = arith.constant 12 : index
    %c0_150 = arith.constant 0 : index
    %c0_151 = arith.constant 0 : index
    %375 = vector.load %arg6[%c12_149, %c0_150, %c0_151] : memref<16x64x512xbf16, #tpu.memory_space<vmem>>, vector<1x64x512xbf16>
    %376 = vector.shape_cast %375 : vector<1x64x512xbf16> to vector<64x512xbf16>
    %cst_152 = arith.constant dense<0.000000e+00> : vector<1x512xf32>
    %377 = tpu.matmul %374, %376, %cst_152 {dimension_numbers = #tpu.dot_dimension_numbers<[1], [0], [0], [1], [0, 0, 1, 1], [], []>} : vector<1x64xbf16>, vector<64x512xbf16>, vector<1x512xf32> -> vector<1x512xf32>
    %378 = arith.addf %364, %377 : vector<1x512xf32>
    %379 = vector.extract_strided_slice %195 {offsets = [50, 0], sizes = [1, 64], strides = [1, 1]} : vector<64x64xf32> to vector<1x64xf32>
    %380 = vector.extract_strided_slice %195 {offsets = [51, 0], sizes = [1, 64], strides = [1, 1]} : vector<64x64xf32> to vector<1x64xf32>
    %381 = arith.maximumf %379, %380 : vector<1x64xf32>
    %382 = vector.extract_strided_slice %195 {offsets = [58, 0], sizes = [1, 64], strides = [1, 1]} : vector<64x64xf32> to vector<1x64xf32>
    %383 = vector.extract_strided_slice %195 {offsets = [59, 0], sizes = [1, 64], strides = [1, 1]} : vector<64x64xf32> to vector<1x64xf32>
    %384 = arith.maximumf %382, %383 : vector<1x64xf32>
    %385 = arith.maximumf %381, %384 : vector<1x64xf32>
    %cst_153 = arith.constant 0.000000e+00 : f32
    %386 = vector.broadcast %cst_153 : f32 to vector<1x64xf32>
    %387 = arith.maximumf %385, %386 : vector<1x64xf32>
    %388 = arith.truncf %387 : vector<1x64xf32> to vector<1x64xbf16>
    %c13_154 = arith.constant 13 : index
    %c0_155 = arith.constant 0 : index
    %c0_156 = arith.constant 0 : index
    %389 = vector.load %arg6[%c13_154, %c0_155, %c0_156] : memref<16x64x512xbf16, #tpu.memory_space<vmem>>, vector<1x64x512xbf16>
    %390 = vector.shape_cast %389 : vector<1x64x512xbf16> to vector<64x512xbf16>
    %cst_157 = arith.constant dense<0.000000e+00> : vector<1x512xf32>
    %391 = tpu.matmul %388, %390, %cst_157 {dimension_numbers = #tpu.dot_dimension_numbers<[1], [0], [0], [1], [0, 0, 1, 1], [], []>} : vector<1x64xbf16>, vector<64x512xbf16>, vector<1x512xf32> -> vector<1x512xf32>
    %392 = arith.addf %378, %391 : vector<1x512xf32>
    %393 = vector.extract_strided_slice %195 {offsets = [52, 0], sizes = [1, 64], strides = [1, 1]} : vector<64x64xf32> to vector<1x64xf32>
    %394 = vector.extract_strided_slice %195 {offsets = [53, 0], sizes = [1, 64], strides = [1, 1]} : vector<64x64xf32> to vector<1x64xf32>
    %395 = arith.maximumf %393, %394 : vector<1x64xf32>
    %396 = vector.extract_strided_slice %195 {offsets = [60, 0], sizes = [1, 64], strides = [1, 1]} : vector<64x64xf32> to vector<1x64xf32>
    %397 = vector.extract_strided_slice %195 {offsets = [61, 0], sizes = [1, 64], strides = [1, 1]} : vector<64x64xf32> to vector<1x64xf32>
    %398 = arith.maximumf %396, %397 : vector<1x64xf32>
    %399 = arith.maximumf %395, %398 : vector<1x64xf32>
    %cst_158 = arith.constant 0.000000e+00 : f32
    %400 = vector.broadcast %cst_158 : f32 to vector<1x64xf32>
    %401 = arith.maximumf %399, %400 : vector<1x64xf32>
    %402 = arith.truncf %401 : vector<1x64xf32> to vector<1x64xbf16>
    %c14_159 = arith.constant 14 : index
    %c0_160 = arith.constant 0 : index
    %c0_161 = arith.constant 0 : index
    %403 = vector.load %arg6[%c14_159, %c0_160, %c0_161] : memref<16x64x512xbf16, #tpu.memory_space<vmem>>, vector<1x64x512xbf16>
    %404 = vector.shape_cast %403 : vector<1x64x512xbf16> to vector<64x512xbf16>
    %cst_162 = arith.constant dense<0.000000e+00> : vector<1x512xf32>
    %405 = tpu.matmul %402, %404, %cst_162 {dimension_numbers = #tpu.dot_dimension_numbers<[1], [0], [0], [1], [0, 0, 1, 1], [], []>} : vector<1x64xbf16>, vector<64x512xbf16>, vector<1x512xf32> -> vector<1x512xf32>
    %406 = arith.addf %392, %405 : vector<1x512xf32>
    %407 = vector.extract_strided_slice %195 {offsets = [54, 0], sizes = [1, 64], strides = [1, 1]} : vector<64x64xf32> to vector<1x64xf32>
    %408 = vector.extract_strided_slice %195 {offsets = [55, 0], sizes = [1, 64], strides = [1, 1]} : vector<64x64xf32> to vector<1x64xf32>
    %409 = arith.maximumf %407, %408 : vector<1x64xf32>
    %410 = vector.extract_strided_slice %195 {offsets = [62, 0], sizes = [1, 64], strides = [1, 1]} : vector<64x64xf32> to vector<1x64xf32>
    %411 = vector.extract_strided_slice %195 {offsets = [63, 0], sizes = [1, 64], strides = [1, 1]} : vector<64x64xf32> to vector<1x64xf32>
    %412 = arith.maximumf %410, %411 : vector<1x64xf32>
    %413 = arith.maximumf %409, %412 : vector<1x64xf32>
    %cst_163 = arith.constant 0.000000e+00 : f32
    %414 = vector.broadcast %cst_163 : f32 to vector<1x64xf32>
    %415 = arith.maximumf %413, %414 : vector<1x64xf32>
    %416 = arith.truncf %415 : vector<1x64xf32> to vector<1x64xbf16>
    %c15_164 = arith.constant 15 : index
    %c0_165 = arith.constant 0 : index
    %c0_166 = arith.constant 0 : index
    %417 = vector.load %arg6[%c15_164, %c0_165, %c0_166] : memref<16x64x512xbf16, #tpu.memory_space<vmem>>, vector<1x64x512xbf16>
    %418 = vector.shape_cast %417 : vector<1x64x512xbf16> to vector<64x512xbf16>
    %cst_167 = arith.constant dense<0.000000e+00> : vector<1x512xf32>
    %419 = tpu.matmul %416, %418, %cst_167 {dimension_numbers = #tpu.dot_dimension_numbers<[1], [0], [0], [1], [0, 0, 1, 1], [], []>} : vector<1x64xbf16>, vector<64x512xbf16>, vector<1x512xf32> -> vector<1x512xf32>
    %420 = arith.addf %406, %419 : vector<1x512xf32>
    %cst_168 = arith.constant 0.000000e+00 : f32
    %421 = vector.broadcast %cst_168 : f32 to vector<1x512xf32>
    %422 = arith.maximumf %420, %421 : vector<1x512xf32>
    %423 = arith.truncf %422 : vector<1x512xf32> to vector<1x512xbf16>
    %c0_169 = arith.constant 0 : index
    %c0_170 = arith.constant 0 : index
    %424 = vector.load %arg8[%c0_169, %c0_170] : memref<512x10xbf16, #tpu.memory_space<vmem>>, vector<512x10xbf16>
    %cst_171 = arith.constant dense<0.000000e+00> : vector<1x10xf32>
    %425 = tpu.matmul %423, %424, %cst_171 {dimension_numbers = #tpu.dot_dimension_numbers<[1], [0], [0], [1], [0, 0, 1, 1], [], []>} : vector<1x512xbf16>, vector<512x10xbf16>, vector<1x10xf32> -> vector<1x10xf32>
    %c0_172 = arith.constant 0 : index
    %c0_173 = arith.constant 0 : index
    %426 = vector.load %arg9[%c0_172, %c0_173] : memref<1x10xf32, #tpu.memory_space<vmem>>, vector<1x10xf32>
    %427 = arith.addf %425, %426 : vector<1x10xf32>
    %cst_174 = arith.constant dense<0xFF800000> : vector<1xf32>
    %428 = vector.multi_reduction <maximumf>, %427, %cst_174 [1] : vector<1x10xf32> to vector<1xf32>
    %429 = vector.shape_cast %428 : vector<1xf32> to vector<1x1xf32>
    %430 = vector.broadcast %429 : vector<1x1xf32> to vector<1x10xf32>
    %431 = arith.subf %427, %430 : vector<1x10xf32>
    %432 = math.exp %431 : vector<1x10xf32>
    %cst_175 = arith.constant dense<0.000000e+00> : vector<1xf32>
    %433 = vector.multi_reduction <add>, %432, %cst_175 [1] : vector<1x10xf32> to vector<1xf32>
    %434 = vector.shape_cast %433 : vector<1xf32> to vector<1x1xf32>
    %435 = vector.broadcast %434 : vector<1x1xf32> to vector<1x10xf32>
    %436 = arith.divf %432, %435 : vector<1x10xf32>
    %c0_176 = arith.constant 0 : index
    %c0_177 = arith.constant 0 : index
    %c0_178 = arith.constant 0 : index
    %437 = vector.load %arg10[%c0_176, %c0_177, %c0_178] : memref<1x1x10xf32, #tpu.memory_space<vmem>>, vector<1x1x10xf32>
    %438 = vector.shape_cast %437 : vector<1x1x10xf32> to vector<1x10xf32>
    %439 = vector.shape_cast %436 : vector<1x10xf32> to vector<1x1x10xf32>
    tpu.vector_store %arg10[%c0_176, %c0_177, %c0_178], %439 {strides = array<i32>} : memref<1x1x10xf32, #tpu.memory_space<vmem>>, vector<1x1x10xf32>,
    return
  }
  func.func @transform_0(%arg0: i32) -> (i32, i32, i32) {
    %c0_i32 = arith.constant 0 : i32
    %c0_i32_0 = arith.constant 0 : i32
    %c0_i32_1 = arith.constant 0 : i32
    return %arg0, %c0_i32, %c0_i32_0 : i32, i32, i32
  }
  func.func @transform_1(%arg0: i32) -> (i32, i32) {
    %c0_i32 = arith.constant 0 : i32
    %c0_i32_0 = arith.constant 0 : i32
    %c0_i32_1 = arith.constant 0 : i32
    return %c0_i32, %c0_i32_0 : i32, i32
  }
  func.func @transform_2(%arg0: i32) -> (i32, i32) {
    %c0_i32 = arith.constant 0 : i32
    %c0_i32_0 = arith.constant 0 : i32
    %c0_i32_1 = arith.constant 0 : i32
    return %c0_i32, %c0_i32_0 : i32, i32
  }
  func.func @transform_3(%arg0: i32) -> (i32, i32, i32) {
    %c0_i32 = arith.constant 0 : i32
    %c0_i32_0 = arith.constant 0 : i32
    %c0_i32_1 = arith.constant 0 : i32
    %c0_i32_2 = arith.constant 0 : i32
    return %c0_i32, %c0_i32_0, %c0_i32_1 : i32, i32, i32
  }
  func.func @transform_4(%arg0: i32) -> (i32, i32) {
    %c0_i32 = arith.constant 0 : i32
    %c0_i32_0 = arith.constant 0 : i32
    %c0_i32_1 = arith.constant 0 : i32
    return %c0_i32, %c0_i32_0 : i32, i32
  }
  func.func @transform_5(%arg0: i32) -> (i32, i32, i32) {
    %c0_i32 = arith.constant 0 : i32
    %c0_i32_0 = arith.constant 0 : i32
    %c0_i32_1 = arith.constant 0 : i32
    %c0_i32_2 = arith.constant 0 : i32
    return %c0_i32, %c0_i32_0, %c0_i32_1 : i32, i32, i32
  }
  func.func @transform_6(%arg0: i32) -> (i32, i32) {
    %c0_i32 = arith.constant 0 : i32
    %c0_i32_0 = arith.constant 0 : i32
    %c0_i32_1 = arith.constant 0 : i32
    return %c0_i32, %c0_i32_0 : i32, i32
  }
  func.func @transform_7(%arg0: i32) -> (i32, i32) {
    %c0_i32 = arith.constant 0 : i32
    %c0_i32_0 = arith.constant 0 : i32
    %c0_i32_1 = arith.constant 0 : i32
    return %c0_i32, %c0_i32_0 : i32, i32
  }
  func.func @transform_8(%arg0: i32) -> (i32, i32) {
    %c0_i32 = arith.constant 0 : i32
    %c0_i32_0 = arith.constant 0 : i32
    %c0_i32_1 = arith.constant 0 : i32
    return %c0_i32, %c0_i32_0 : i32, i32
  }
  func.func @transform_9(%arg0: i32) -> (i32, i32, i32) {
    %c0_i32 = arith.constant 0 : i32
    %c0_i32_0 = arith.constant 0 : i32
    %c0_i32_1 = arith.constant 0 : i32
    return %arg0, %c0_i32, %c0_i32_0 : i32, i32, i32
  }
}

</mosaic_0001>

<llo_original>
// kernel: cnn_mnist_forward.1
$region0: #{cnn_mnist_forward.1}
  #allocation0 [shape = 'u32[]', space=smem, size = 0x4, offset = 0x4, fixed_abs, tag = 'smem constant byte address 0x4 - core index']
  #allocation1 [shape = 'u32[144,128]{1,0:T(1,128)}', space=vmem, size = 0x12000, scoped, tag = 'internal scratch']
  %s0 = inlined_call_operand.vmem [shape: bf16[2,768,32], index: 0, kind: input, shape index: {}]
  %s1 = inlined_call_operand.vmem [shape: bf16[32,32], index: 1, kind: input, shape index: {}]
  %s2 = inlined_call_operand.vmem [shape: f32[1,32], index: 2, kind: input, shape index: {}]
  %s3 = inlined_call_operand.vmem [shape: bf16[25,32,64], index: 3, kind: input, shape index: {}]
  %s4 = inlined_call_operand.vmem [shape: f32[1,64], index: 4, kind: input, shape index: {}]
  %s5 = inlined_call_operand.vmem [shape: bf16[16,64,512], index: 5, kind: input, shape index: {}]
  %s6 = inlined_call_operand.vmem [shape: f32[1,512], index: 6, kind: input, shape index: {}]
  %s7 = inlined_call_operand.vmem [shape: bf16[512,10], index: 7, kind: input, shape index: {}]
  %s8 = inlined_call_operand.vmem [shape: f32[1,10], index: 8, kind: input, shape index: {}]
  %s9 = inlined_call_operand.hbm [shape: f32[2,1,10], index: 9, kind: output, shape index: {}]
  %s10 = sld [smem:[#allocation0]]
  $region69: #{cnn_mnist_forward.1} parent=0
    _
  %s12 = ssub.s32 1, %s10
  %s13 = scalar_select 0, %s12, %s10
  $region1: #{cnn_mnist_forward.1} parent=0
    #allocation2 [shape = 'u8[1024]{0}', space=vmem, size = 0x400, scoped, tag = 'output window, operand 0']
    #allocation3 [shape = 's32[2]{0}', space=sflag, size = 0x8, scoped, tag = 'scoped memory for cnn_mnist_forward.1']
    %14 = vsyncpa [#allocation3], 0
    %s15 = scalar_lea.sflag [#allocation3], 1
    %16 = vsyncpa %s15, 0
    loop: start=0, step=1, limit=4
    $region2: #{cnn_mnist_forward.1} parent=1 // loop_pre_header
      _
    $region3: #{cnn_mnist_forward.1} parent=1 // loop_header
      %s18 = sphi 0, %s22
      %p19 = scmp.ge.s32.totalorder %s18, 4
      %s28 = sphi 0, %s30
      %s31 = sphi 0, %s28
      %s32 = sphi 0, %s31
      %s48 = sphi 0, %s32
      %s52 = sphi 0, %s52
      %s54 = sphi 0, %s52
      %s55 = sphi 0, %s54
      %s69 = sphi 0, %s55
      %s73 = sphi 0, %s73
      %s75 = sphi 0, %s73
      %s76 = sphi 0, %s75
      %s90 = sphi 0, %s76
      %s94 = sphi 0, %s94
      %s96 = sphi 0, %s94
      %s97 = sphi 0, %s96
      %s111 = sphi 0, %s97
      %s115 = sphi 0, %s115
      %s117 = sphi 0, %s115
      %s118 = sphi 0, %s117
      %s132 = sphi 0, %s118
      %s136 = sphi 0, %s136
      %s138 = sphi 0, %s136
      %s139 = sphi 0, %s138
      %s153 = sphi 0, %s139
      %s157 = sphi 0, %s157
      %s159 = sphi 0, %s157
      %s160 = sphi 0, %s159
      %s174 = sphi 0, %s160
      %s178 = sphi 0, %s178
      %s180 = sphi 0, %s178
      %s181 = sphi 0, %s180
      %s195 = sphi 0, %s181
      %s199 = sphi 0, %s199
      %s201 = sphi 0, %s199
      %s202 = sphi 0, %s201
      %s216 = sphi 0, %s202
      %s222 = sphi 0, %s224
      %s225 = sphi 0, %s222
      %s226 = sphi 0, %s225
      %s242 = sphi 0, %s226
    $region4: #{cnn_mnist_forward.1} parent=1 // loop_header_branch
      %21 = sbr.rel (%p19) target = $region8
    $region5: #{cnn_mnist_forward.1} parent=1 // loop_body
      %s23 = ssub.s32 %s18, 1
      %s24 = ssub.s32 %s18, 2
      %s25 = sadd.s32 %s18, 1
      %s26 = ssub.s32 %s18, %s25
      %p27 = scmp.eq.s32.totalorder %s26, 0
      %s29 = sadd.s32 %s28, 1
      %s30 = scalar_select %p27, %s28, %s29
      %p33 = pneg %p27
      %p34 = scmp.eq.s32.totalorder %s18, 1
      %p35 = por %p33, %p34
      %p36 = scmp.ne.s32.totalorder %s28, %s31
      %p37 = scmp.eq.s32.totalorder %s18, 0
      %p38 = por %p36, %p37
      %p39 = scmp.ne.s32.totalorder %s28, %s31
      %p40 = scmp.eq.s32.totalorder %s23, 1
      %p41 = por %p39, %p40
      %p42 = scmp.ne.s32.totalorder %s31, %s32
      %p43 = scmp.eq.s32.totalorder %s23, 0
      %p44 = por %p42, %p43
      %p45 = scmp.ne.s32.totalorder %s31, %s32
      %p46 = scmp.eq.s32.totalorder %s24, 1
      %p47 = por %p45, %p46
      %p49 = scmp.ne.s32.totalorder %s32, %s48
      %p50 = scmp.eq.s32.totalorder %s24, 0
      %p51 = por %p49, %p50
      %s53 = sadd.s32 %s52, 1
      %p56 = scmp.eq.s32.totalorder %s18, 1
      %p57 = scmp.ne.s32.totalorder %s52, %s54
      %p58 = scmp.eq.s32.totalorder %s18, 0
      %p59 = por %p57, %p58
      %p60 = scmp.ne.s32.totalorder %s52, %s54
      %p61 = scmp.eq.s32.totalorder %s23, 1
      %p62 = por %p60, %p61
      %p63 = scmp.ne.s32.totalorder %s54, %s55
      %p64 = scmp.eq.s32.totalorder %s23, 0
      %p65 = por %p63, %p64
      %p66 = scmp.ne.s32.totalorder %s54, %s55
      %p67 = scmp.eq.s32.totalorder %s24, 1
      %p68 = por %p66, %p67
      %p70 = scmp.ne.s32.totalorder %s55, %s69
      %p71 = scmp.eq.s32.totalorder %s24, 0
      %p72 = por %p70, %p71
      %s74 = sadd.s32 %s73, 1
      %p77 = scmp.eq.s32.totalorder %s18, 1
      %p78 = scmp.ne.s32.totalorder %s73, %s75
      %p79 = scmp.eq.s32.totalorder %s18, 0
      %p80 = por %p78, %p79
      %p81 = scmp.ne.s32.totalorder %s73, %s75
      %p82 = scmp.eq.s32.totalorder %s23, 1
      %p83 = por %p81, %p82
      %p84 = scmp.ne.s32.totalorder %s75, %s76
      %p85 = scmp.eq.s32.totalorder %s23, 0
      %p86 = por %p84, %p85
      %p87 = scmp.ne.s32.totalorder %s75, %s76
      %p88 = scmp.eq.s32.totalorder %s24, 1
      %p89 = por %p87, %p88
      %p91 = scmp.ne.s32.totalorder %s76, %s90
      %p92 = scmp.eq.s32.totalorder %s24, 0
      %p93 = por %p91, %p92
      %s95 = sadd.s32 %s94, 1
      %p98 = scmp.eq.s32.totalorder %s18, 1
      %p99 = scmp.ne.s32.totalorder %s94, %s96
      %p100 = scmp.eq.s32.totalorder %s18, 0
      %p101 = por %p99, %p100
      %p102 = scmp.ne.s32.totalorder %s94, %s96
      %p103 = scmp.eq.s32.totalorder %s23, 1
      %p104 = por %p102, %p103
      %p105 = scmp.ne.s32.totalorder %s96, %s97
      %p106 = scmp.eq.s32.totalorder %s23, 0
      %p107 = por %p105, %p106
      %p108 = scmp.ne.s32.totalorder %s96, %s97
      %p109 = scmp.eq.s32.totalorder %s24, 1
      %p110 = por %p108, %p109
      %p112 = scmp.ne.s32.totalorder %s97, %s111
      %p113 = scmp.eq.s32.totalorder %s24, 0
      %p114 = por %p112, %p113
      %s116 = sadd.s32 %s115, 1
      %p119 = scmp.eq.s32.totalorder %s18, 1
      %p120 = scmp.ne.s32.totalorder %s115, %s117
      %p121 = scmp.eq.s32.totalorder %s18, 0
      %p122 = por %p120, %p121
      %p123 = scmp.ne.s32.totalorder %s115, %s117
      %p124 = scmp.eq.s32.totalorder %s23, 1
      %p125 = por %p123, %p124
      %p126 = scmp.ne.s32.totalorder %s117, %s118
      %p127 = scmp.eq.s32.totalorder %s23, 0
      %p128 = por %p126, %p127
      %p129 = scmp.ne.s32.totalorder %s117, %s118
      %p130 = scmp.eq.s32.totalorder %s24, 1
      %p131 = por %p129, %p130
      %p133 = scmp.ne.s32.totalorder %s118, %s132
      %p134 = scmp.eq.s32.totalorder %s24, 0
      %p135 = por %p133, %p134
      %s137 = sadd.s32 %s136, 1
      %p140 = scmp.eq.s32.totalorder %s18, 1
      %p141 = scmp.ne.s32.totalorder %s136, %s138
      %p142 = scmp.eq.s32.totalorder %s18, 0
      %p143 = por %p141, %p142
      %p144 = scmp.ne.s32.totalorder %s136, %s138
      %p145 = scmp.eq.s32.totalorder %s23, 1
      %p146 = por %p144, %p145
      %p147 = scmp.ne.s32.totalorder %s138, %s139
      %p148 = scmp.eq.s32.totalorder %s23, 0
      %p149 = por %p147, %p148
      %p150 = scmp.ne.s32.totalorder %s138, %s139
      %p151 = scmp.eq.s32.totalorder %s24, 1
      %p152 = por %p150, %p151
      %p154 = scmp.ne.s32.totalorder %s139, %s153
      %p155 = scmp.eq.s32.totalorder %s24, 0
      %p156 = por %p154, %p155
      %s158 = sadd.s32 %s157, 1
      %p161 = scmp.eq.s32.totalorder %s18, 1
      %p162 = scmp.ne.s32.totalorder %s157, %s159
      %p163 = scmp.eq.s32.totalorder %s18, 0
      %p164 = por %p162, %p163
      %p165 = scmp.ne.s32.totalorder %s157, %s159
      %p166 = scmp.eq.s32.totalorder %s23, 1
      %p167 = por %p165, %p166
      %p168 = scmp.ne.s32.totalorder %s159, %s160
      %p169 = scmp.eq.s32.totalorder %s23, 0
      %p170 = por %p168, %p169
      %p171 = scmp.ne.s32.totalorder %s159, %s160
      %p172 = scmp.eq.s32.totalorder %s24, 1
      %p173 = por %p171, %p172
      %p175 = scmp.ne.s32.totalorder %s160, %s174
      %p176 = scmp.eq.s32.totalorder %s24, 0
      %p177 = por %p175, %p176
      %s179 = sadd.s32 %s178, 1
      %p182 = scmp.eq.s32.totalorder %s18, 1
      %p183 = scmp.ne.s32.totalorder %s178, %s180
      %p184 = scmp.eq.s32.totalorder %s18, 0
      %p185 = por %p183, %p184
      %p186 = scmp.ne.s32.totalorder %s178, %s180
      %p187 = scmp.eq.s32.totalorder %s23, 1
      %p188 = por %p186, %p187
      %p189 = scmp.ne.s32.totalorder %s180, %s181
      %p190 = scmp.eq.s32.totalorder %s23, 0
      %p191 = por %p189, %p190
      %p192 = scmp.ne.s32.totalorder %s180, %s181
      %p193 = scmp.eq.s32.totalorder %s24, 1
      %p194 = por %p192, %p193
      %p196 = scmp.ne.s32.totalorder %s181, %s195
      %p197 = scmp.eq.s32.totalorder %s24, 0
      %p198 = por %p196, %p197
      %s200 = sadd.s32 %s199, 1
      %p203 = scmp.eq.s32.totalorder %s18, 1
      %p204 = scmp.ne.s32.totalorder %s199, %s201
      %p205 = scmp.eq.s32.totalorder %s18, 0
      %p206 = por %p204, %p205
      %p207 = scmp.ne.s32.totalorder %s199, %s201
      %p208 = scmp.eq.s32.totalorder %s23, 1
      %p209 = por %p207, %p208
      %p210 = scmp.ne.s32.totalorder %s201, %s202
      %p211 = scmp.eq.s32.totalorder %s23, 0
      %p212 = por %p210, %p211
      %p213 = scmp.ne.s32.totalorder %s201, %s202
      %p214 = scmp.eq.s32.totalorder %s24, 1
      %p215 = por %p213, %p214
      %p217 = scmp.ne.s32.totalorder %s202, %s216
      %p218 = scmp.eq.s32.totalorder %s24, 0
      %p219 = por %p217, %p218
      %s220 = ssub.s32 %s18, %s25
      %p221 = scmp.eq.s32.totalorder %s220, 0
      %s223 = sadd.s32 %s222, 1
      %s224 = scalar_select %p221, %s222, %s223
      %p227 = pneg %p221
      %p228 = scmp.eq.s32.totalorder %s18, 1
      %p229 = por %p227, %p228
      %p230 = scmp.ne.s32.totalorder %s222, %s225
      %p231 = scmp.eq.s32.totalorder %s18, 0
      %p232 = por %p230, %p231
      %p233 = scmp.ne.s32.totalorder %s222, %s225
      %p234 = scmp.eq.s32.totalorder %s23, 1
      %p235 = por %p233, %p234
      %p236 = scmp.ne.s32.totalorder %s225, %s226
      %p237 = scmp.eq.s32.totalorder %s23, 0
      %p238 = por %p236, %p237
      %p239 = scmp.ne.s32.totalorder %s225, %s226
      %p240 = scmp.eq.s32.totalorder %s24, 1
      %p241 = por %p239, %p240
      %p243 = scmp.ne.s32.totalorder %s226, %s242
      %p244 = scmp.eq.s32.totalorder %s24, 0
      %p245 = por %p243, %p244
      %p246 = scmp.le.s32.totalorder 1, %s18
      %p247 = scmp.lt.s32.totalorder %s18, 3
      %p248 = pnand %p246, %p247
      %p249 = pneg %p248
      // Predicated region
      $region9: #{cnn_mnist_forward.1} parent=5 // pred_check
        _
      $region10: #{cnn_mnist_forward.1} parent=5 // pred_check_branch
        %251 = sbr.rel (%p248) target = $region12
      $region11: #{cnn_mnist_forward.1} parent=5 // pred_region
        %s252 = ssub.s32 %s18, 1
        // Predicated region
        $region13: #{cnn_mnist_forward.1} parent=11 // pred_check
          %p253 = pneg %p65
        $region14: #{cnn_mnist_forward.1} parent=11 // pred_check_branch
          %255 = sbr.rel (%p253) target = $region16
        $region15: #{cnn_mnist_forward.1} parent=11 // pred_region
          _
        $region16: #{cnn_mnist_forward.1} parent=11 // pred_fallthru
          _
        // Predicated region
        $region17: #{cnn_mnist_forward.1} parent=11 // pred_check
          %p256 = pneg %p86
        $region18: #{cnn_mnist_forward.1} parent=11 // pred_check_branch
          %258 = sbr.rel (%p256) target = $region20
        $region19: #{cnn_mnist_forward.1} parent=11 // pred_region
          _
        $region20: #{cnn_mnist_forward.1} parent=11 // pred_fallthru
          _
        // Predicated region
        $region21: #{cnn_mnist_forward.1} parent=11 // pred_check
          %p259 = pneg %p107
        $region22: #{cnn_mnist_forward.1} parent=11 // pred_check_branch
          %261 = sbr.rel (%p259) target = $region24
        $region23: #{cnn_mnist_forward.1} parent=11 // pred_region
          _
        $region24: #{cnn_mnist_forward.1} parent=11 // pred_fallthru
          _
        // Predicated region
        $region25: #{cnn_mnist_forward.1} parent=11 // pred_check
          %p262 = pneg %p128
        $region26: #{cnn_mnist_forward.1} parent=11 // pred_check_branch
          %264 = sbr.rel (%p262) target = $region28
        $region27: #{cnn_mnist_forward.1} parent=11 // pred_region
          _
        $region28: #{cnn_mnist_forward.1} parent=11 // pred_fallthru
          _
        // Predicated region
        $region29: #{cnn_mnist_forward.1} parent=11 // pred_check
          %p265 = pneg %p149
        $region30: #{cnn_mnist_forward.1} parent=11 // pred_check_branch
          %267 = sbr.rel (%p265) target = $region32
        $region31: #{cnn_mnist_forward.1} parent=11 // pred_region
          _
        $region32: #{cnn_mnist_forward.1} parent=11 // pred_fallthru
          _
        // Predicated region
        $region33: #{cnn_mnist_forward.1} parent=11 // pred_check
          %p268 = pneg %p170
        $region34: #{cnn_mnist_forward.1} parent=11 // pred_check_branch
          %270 = sbr.rel (%p268) target = $region36
        $region35: #{cnn_mnist_forward.1} parent=11 // pred_region
          _
        $region36: #{cnn_mnist_forward.1} parent=11 // pred_fallthru
          _
        // Predicated region
        $region37: #{cnn_mnist_forward.1} parent=11 // pred_check
          %p271 = pneg %p191
        $region38: #{cnn_mnist_forward.1} parent=11 // pred_check_branch
          %273 = sbr.rel (%p271) target = $region40
        $region39: #{cnn_mnist_forward.1} parent=11 // pred_region
          _
        $region40: #{cnn_mnist_forward.1} parent=11 // pred_fallthru
          _
        // Predicated region
        $region41: #{cnn_mnist_forward.1} parent=11 // pred_check
          %p274 = pneg %p212
        $region42: #{cnn_mnist_forward.1} parent=11 // pred_check_branch
          %276 = sbr.rel (%p274) target = $region44
        $region43: #{cnn_mnist_forward.1} parent=11 // pred_region
          _
        $region44: #{cnn_mnist_forward.1} parent=11 // pred_fallthru
          _
      $region12: #{cnn_mnist_forward.1} parent=5 // pred_fallthru
        _
      %p277 = scmp.lt.s32.totalorder %s18, 2
      // Predicated region
      $region45: #{cnn_mnist_forward.1} parent=5 // pred_check
        %p278 = pneg %p277
      $region46: #{cnn_mnist_forward.1} parent=5 // pred_check_branch
        %280 = sbr.rel (%p278) target = $region48
      $region47: #{cnn_mnist_forward.1} parent=5 // pred_region
        // Predicated region
        $region49: #{cnn_mnist_forward.1} parent=47 // pred_check
          %p281 = pneg %p38
        $region50: #{cnn_mnist_forward.1} parent=47 // pred_check_branch
          %283 = sbr.rel (%p281) target = $region52
        $region51: #{cnn_mnist_forward.1} parent=47 // pred_region
          %p284 = scmp.lt.s32.totalorder %s18, 1
          %s285 = scalar_select %p284, %s18, 1
          %s286 = smul.addr %s285, 96
          %s287 = smul.addr %s286, 4
          %s288 = scalar_lea.vmem %s0, %s287
        $region52: #{cnn_mnist_forward.1} parent=47 // pred_fallthru
          _
      $region48: #{cnn_mnist_forward.1} parent=5 // pred_fallthru
        _
      %p289 = scmp.le.s32.totalorder 1, %s18
      %p290 = scmp.lt.s32.totalorder %s18, 3
      %p291 = pnand %p289, %p290
      %p292 = pneg %p291
      // Predicated region
      $region53: #{cnn_mnist_forward.1} parent=5 // pred_check
        _
      $region54: #{cnn_mnist_forward.1} parent=5 // pred_check_branch
        %294 = sbr.rel (%p291) target = $region56
      $region55: #{cnn_mnist_forward.1} parent=5 // pred_region
        %s295 = ssub.s32 %s18, 1
        %p296 = scmp.lt.s32.totalorder %s23, 1
        %s297 = scalar_select %p296, %s23, 1
        %s298 = smul.addr %s297, 96
        %s299 = smul.addr %s298, 4
        %s300 = scalar_lea.vmem %s0, %s299
        %p301 = pneg %p44
        %p302 = pneg %p41
        %p303 = pneg %p65
        %p304 = pneg %p62
        %p305 = pneg %p86
        %p306 = pneg %p83
        %p307 = pneg %p107
        %p308 = pneg %p104
        %p309 = pneg %p128
        %p310 = pneg %p125
        %p311 = pneg %p149
        %p312 = pneg %p146
        %p313 = pneg %p170
        %p314 = pneg %p167
        %p315 = pneg %p191
        %p316 = pneg %p188
        %p317 = pneg %p212
        %p318 = pneg %p209
        %p319 = pneg %p238
        %p320 = pneg %p235
        %s321 = sand.u32 %s225, 1
        %s322 = scalar_lea.sflag [#allocation3], %s321
        %s323 = sand.u32 %s225, 1
        %s324 = scalar_lea.vmem [#allocation2], %s323
        %p325 = scmp.lt.s32.totalorder %s23, 1
        %s326 = scalar_select %p325, %s23, 1
        %s327 = smul.addr %s326, 96
        %s328 = smul.addr %s327, 4
        %s329 = scalar_lea.vmem %s0, %s328
        %v331 = vld [vmem:[%s329] sm:$0xf]
        %v332 = vld [vmem:[%s329 + $0x4] sm:$0xf]
        %v333 = vld [vmem:[%s329 + $0x8] sm:$0xf]
        %v334 = vld [vmem:[%s329 + $0xc] sm:$0xf]
        %v335 = vld [vmem:[%s329 + $0x10] sm:$0xf]
        %v336 = vld [vmem:[%s329 + $0x14] sm:$0xf]
        %v337 = vld [vmem:[%s329 + $0x18] sm:$0xf]
        %v338 = vld [vmem:[%s329 + $0x1c] sm:$0xf]
        %v339 = vld [vmem:[%s329 + $0x20] sm:$0xf]
        %v340 = vld [vmem:[%s329 + $0x24] sm:$0xf]
        %v341 = vld [vmem:[%s329 + $0x28] sm:$0xf]
        %v342 = vld [vmem:[%s329 + $0x2c] sm:$0xf]
        %v343 = vld [vmem:[%s329 + $0x30] sm:$0xf]
        %v344 = vld [vmem:[%s329 + $0x34] sm:$0xf]
        %v345 = vld [vmem:[%s329 + $0x38] sm:$0xf]
        %v346 = vld [vmem:[%s329 + $0x3c] sm:$0xf]
        %v347 = vld [vmem:[%s329 + $0x40] sm:$0xf]
        %v348 = vld [vmem:[%s329 + $0x44] sm:$0xf]
        %v349 = vld [vmem:[%s329 + $0x48] sm:$0xf]
        %v350 = vld [vmem:[%s329 + $0x4c] sm:$0xf]
        %v351 = vld [vmem:[%s329 + $0x50] sm:$0xf]
        %v352 = vld [vmem:[%s329 + $0x54] sm:$0xf]
        %v353 = vld [vmem:[%s329 + $0x58] sm:$0xf]
        %v354 = vld [vmem:[%s329 + $0x5c] sm:$0xf]
        %v355 = vld [vmem:[%s329 + $0x60] sm:$0xf]
        %v356 = vld [vmem:[%s329 + $0x64] sm:$0xf]
        %v357 = vld [vmem:[%s329 + $0x68] sm:$0xf]
        %v358 = vld [vmem:[%s329 + $0x6c] sm:$0xf]
        %v359 = vld [vmem:[%s329 + $0x70] sm:$0xf]
        %v360 = vld [vmem:[%s329 + $0x74] sm:$0xf]
        %v361 = vld [vmem:[%s329 + $0x78] sm:$0xf]
        %v362 = vld [vmem:[%s329 + $0x7c] sm:$0xf]
        %v363 = vld [vmem:[%s329 + $0x80] sm:$0xf]
        %v364 = vld [vmem:[%s329 + $0x84] sm:$0xf]
        %v365 = vld [vmem:[%s329 + $0x88] sm:$0xf]
        %v366 = vld [vmem:[%s329 + $0x8c] sm:$0xf]
        %v367 = vld [vmem:[%s329 + $0x90] sm:$0xf]
        %v368 = vld [vmem:[%s329 + $0x94] sm:$0xf]
        %v369 = vld [vmem:[%s329 + $0x98] sm:$0xf]
        %v370 = vld [vmem:[%s329 + $0x9c] sm:$0xf]
        %v371 = vld [vmem:[%s329 + $0xa0] sm:$0xf]
        %v372 = vld [vmem:[%s329 + $0xa4] sm:$0xf]
        %v373 = vld [vmem:[%s329 + $0xa8] sm:$0xf]
        %v374 = vld [vmem:[%s329 + $0xac] sm:$0xf]
        %v375 = vld [vmem:[%s329 + $0xb0] sm:$0xf]
        %v376 = vld [vmem:[%s329 + $0xb4] sm:$0xf]
        %v377 = vld [vmem:[%s329 + $0xb8] sm:$0xf]
        %v378 = vld [vmem:[%s329 + $0xbc] sm:$0xf]
        %v379 = vld [vmem:[%s329 + $0xc0] sm:$0xf]
        %v380 = vld [vmem:[%s329 + $0xc4] sm:$0xf]
        %v381 = vld [vmem:[%s329 + $0xc8] sm:$0xf]
        %v382 = vld [vmem:[%s329 + $0xcc] sm:$0xf]
        %v383 = vld [vmem:[%s329 + $0xd0] sm:$0xf]
        %v384 = vld [vmem:[%s329 + $0xd4] sm:$0xf]
        %v385 = vld [vmem:[%s329 + $0xd8] sm:$0xf]
        %v386 = vld [vmem:[%s329 + $0xdc] sm:$0xf]
        %v387 = vld [vmem:[%s329 + $0xe0] sm:$0xf]
        %v388 = vld [vmem:[%s329 + $0xe4] sm:$0xf]
        %v389 = vld [vmem:[%s329 + $0xe8] sm:$0xf]
        %v390 = vld [vmem:[%s329 + $0xec] sm:$0xf]
        %v391 = vld [vmem:[%s329 + $0xf0] sm:$0xf]
        %v392 = vld [vmem:[%s329 + $0xf4] sm:$0xf]
        %v393 = vld [vmem:[%s329 + $0xf8] sm:$0xf]
        %v394 = vld [vmem:[%s329 + $0xfc] sm:$0xf]
        %v395 = vld [vmem:[%s329 + $0x100] sm:$0xf]
        %v396 = vld [vmem:[%s329 + $0x104] sm:$0xf]
        %v397 = vld [vmem:[%s329 + $0x108] sm:$0xf]
        %v398 = vld [vmem:[%s329 + $0x10c] sm:$0xf]
        %v399 = vld [vmem:[%s329 + $0x110] sm:$0xf]
        %v400 = vld [vmem:[%s329 + $0x114] sm:$0xf]
        %v401 = vld [vmem:[%s329 + $0x118] sm:$0xf]
        %v402 = vld [vmem:[%s329 + $0x11c] sm:$0xf]
        %v403 = vld [vmem:[%s329 + $0x120] sm:$0xf]
        %v404 = vld [vmem:[%s329 + $0x124] sm:$0xf]
        %v405 = vld [vmem:[%s329 + $0x128] sm:$0xf]
        %v406 = vld [vmem:[%s329 + $0x12c] sm:$0xf]
        %v407 = vld [vmem:[%s329 + $0x130] sm:$0xf]
        %v408 = vld [vmem:[%s329 + $0x134] sm:$0xf]
        %v409 = vld [vmem:[%s329 + $0x138] sm:$0xf]
        %v410 = vld [vmem:[%s329 + $0x13c] sm:$0xf]
        %v411 = vld [vmem:[%s329 + $0x140] sm:$0xf]
        %v412 = vld [vmem:[%s329 + $0x144] sm:$0xf]
        %v413 = vld [vmem:[%s329 + $0x148] sm:$0xf]
        %v414 = vld [vmem:[%s329 + $0x14c] sm:$0xf]
        %v415 = vld [vmem:[%s329 + $0x150] sm:$0xf]
        %v416 = vld [vmem:[%s329 + $0x154] sm:$0xf]
        %v417 = vld [vmem:[%s329 + $0x158] sm:$0xf]
        %v418 = vld [vmem:[%s329 + $0x15c] sm:$0xf]
        %v419 = vld [vmem:[%s329 + $0x160] sm:$0xf]
        %v420 = vld [vmem:[%s329 + $0x164] sm:$0xf]
        %v421 = vld [vmem:[%s329 + $0x168] sm:$0xf]
        %v422 = vld [vmem:[%s329 + $0x16c] sm:$0xf]
        %v423 = vld [vmem:[%s329 + $0x170] sm:$0xf]
        %v424 = vld [vmem:[%s329 + $0x174] sm:$0xf]
        %v425 = vld [vmem:[%s329 + $0x178] sm:$0xf]
        %v426 = vld [vmem:[%s329 + $0x17c] sm:$0xf]
        %v427 = vld [vmem:[%s1] sm:$0xf]
        %v428 = vld [vmem:[%s1 + $0x4] sm:$0xf]
        %v429 = vld [vmem:[%s1 + $0x8] sm:$0xf]
        %v430 = vld [vmem:[%s1 + $0xc] sm:$0xf]
        %v431 = vld [vmem:[%s2] sm:$0x1]
        %v433 = vlaneseq
        %v434 = vshrl.u32 %v433, 7
        %v435 = vsub.s32 0, %v434
        %v436 = vrot.slane %v431, %v435
        %v534 = vunpack.c.l.b16 %v331
        %v535 = vunpack.c.l.b16 %v332
        %v536 = vunpack.c.l.b16 %v333
        %v537 = vunpack.c.l.b16 %v334
        %v538 = vunpack.c.l.b16 %v335
        %v539 = vunpack.c.l.b16 %v336
        %v540 = vunpack.c.l.b16 %v337
        %v541 = vunpack.c.l.b16 %v338
        %v542 = vunpack.c.l.b16 %v339
        %v543 = vunpack.c.l.b16 %v340
        %v544 = vunpack.c.l.b16 %v341
        %v545 = vunpack.c.l.b16 %v342
        %v546 = vunpack.c.l.b16 %v343
        %v547 = vunpack.c.l.b16 %v344
        %v548 = vunpack.c.l.b16 %v345
        %v549 = vunpack.c.l.b16 %v346
        %v550 = vunpack.c.l.b16 %v347
        %v551 = vunpack.c.l.b16 %v348
        %v552 = vunpack.c.l.b16 %v349
        %v553 = vunpack.c.l.b16 %v350
        %v554 = vunpack.c.l.b16 %v351
        %v555 = vunpack.c.l.b16 %v352
        %v556 = vunpack.c.l.b16 %v353
        %v557 = vunpack.c.l.b16 %v354
        %v558 = vunpack.c.l.b16 %v355
        %v559 = vunpack.c.l.b16 %v356
        %v560 = vunpack.c.l.b16 %v357
        %v561 = vunpack.c.l.b16 %v358
        %v562 = vunpack.c.l.b16 %v359
        %v563 = vunpack.c.l.b16 %v360
        %v564 = vunpack.c.l.b16 %v361
        %v565 = vunpack.c.l.b16 %v362
        %v566 = vunpack.c.l.b16 %v363
        %v567 = vunpack.c.l.b16 %v364
        %v568 = vunpack.c.l.b16 %v365
        %v569 = vunpack.c.l.b16 %v366
        %v570 = vunpack.c.l.b16 %v367
        %v571 = vunpack.c.l.b16 %v368
        %v572 = vunpack.c.l.b16 %v369
        %v573 = vunpack.c.l.b16 %v370
        %v574 = vunpack.c.l.b16 %v371
        %v575 = vunpack.c.l.b16 %v372
        %v576 = vunpack.c.l.b16 %v373
        %v577 = vunpack.c.l.b16 %v374
        %v578 = vunpack.c.l.b16 %v375
        %v579 = vunpack.c.l.b16 %v376
        %v580 = vunpack.c.l.b16 %v377
        %v581 = vunpack.c.l.b16 %v378
        %v582 = vunpack.c.l.b16 %v379
        %v583 = vunpack.c.l.b16 %v380
        %v584 = vunpack.c.l.b16 %v381
        %v585 = vunpack.c.l.b16 %v382
        %v586 = vunpack.c.l.b16 %v383
        %v587 = vunpack.c.l.b16 %v384
        %v588 = vunpack.c.l.b16 %v385
        %v589 = vunpack.c.l.b16 %v386
        %v590 = vunpack.c.l.b16 %v387
        %v591 = vunpack.c.l.b16 %v388
        %v592 = vunpack.c.l.b16 %v389
        %v593 = vunpack.c.l.b16 %v390
        %v594 = vunpack.c.l.b16 %v391
        %v595 = vunpack.c.l.b16 %v392
        %v596 = vunpack.c.l.b16 %v393
        %v597 = vunpack.c.l.b16 %v394
        %v598 = vunpack.c.l.b16 %v395
        %v599 = vunpack.c.l.b16 %v396
        %v600 = vunpack.c.l.b16 %v397
        %v601 = vunpack.c.l.b16 %v398
        %v602 = vunpack.c.l.b16 %v399
        %v603 = vunpack.c.l.b16 %v400
        %v604 = vunpack.c.l.b16 %v401
        %v605 = vunpack.c.l.b16 %v402
        %v606 = vunpack.c.l.b16 %v403
        %v607 = vunpack.c.l.b16 %v404
        %v608 = vunpack.c.l.b16 %v405
        %v609 = vunpack.c.l.b16 %v406
        %v610 = vunpack.c.l.b16 %v407
        %v611 = vunpack.c.l.b16 %v408
        %v612 = vunpack.c.l.b16 %v409
        %v613 = vunpack.c.l.b16 %v410
        %v614 = vunpack.c.l.b16 %v411
        %v615 = vunpack.c.l.b16 %v412
        %v616 = vunpack.c.l.b16 %v413
        %v617 = vunpack.c.l.b16 %v414
        %v618 = vunpack.c.l.b16 %v415
        %v619 = vunpack.c.l.b16 %v416
        %v620 = vunpack.c.l.b16 %v417
        %v621 = vunpack.c.l.b16 %v418
        %v622 = vunpack.c.l.b16 %v419
        %v623 = vunpack.c.l.b16 %v420
        %v624 = vunpack.c.l.b16 %v421
        %v625 = vunpack.c.l.b16 %v422
        %v626 = vunpack.c.l.b16 %v423
        %v627 = vunpack.c.l.b16 %v424
        %v628 = vunpack.c.l.b16 %v425
        %v629 = vunpack.c.l.b16 %v426
        %v630 = vpack.c.b16 %v535, %v534
        %v631 = vpack.c.b16 %v537, %v536
        %v632 = vpack.c.b16 %v539, %v538
        %v633 = vpack.c.b16 %v541, %v540
        %v634 = vpack.c.b16 %v543, %v542
        %v635 = vpack.c.b16 %v545, %v544
        %v636 = vpack.c.b16 %v547, %v546
        %v637 = vpack.c.b16 %v549, %v548
        %v638 = vpack.c.b16 %v551, %v550
        %v639 = vpack.c.b16 %v553, %v552
        %v640 = vpack.c.b16 %v555, %v554
        %v641 = vpack.c.b16 %v557, %v556
        %v642 = vpack.c.b16 %v559, %v558
        %v643 = vpack.c.b16 %v561, %v560
        %v644 = vpack.c.b16 %v563, %v562
        %v645 = vpack.c.b16 %v565, %v564
        %v646 = vpack.c.b16 %v567, %v566
        %v647 = vpack.c.b16 %v569, %v568
        %v648 = vpack.c.b16 %v571, %v570
        %v649 = vpack.c.b16 %v573, %v572
        %v650 = vpack.c.b16 %v575, %v574
        %v651 = vpack.c.b16 %v577, %v576
        %v652 = vpack.c.b16 %v579, %v578
        %v653 = vpack.c.b16 %v581, %v580
        %v654 = vpack.c.b16 %v583, %v582
        %v655 = vpack.c.b16 %v585, %v584
        %v656 = vpack.c.b16 %v587, %v586
        %v657 = vpack.c.b16 %v589, %v588
        %v658 = vpack.c.b16 %v591, %v590
        %v659 = vpack.c.b16 %v593, %v592
        %v660 = vpack.c.b16 %v595, %v594
        %v661 = vpack.c.b16 %v597, %v596
        %v662 = vpack.c.b16 %v599, %v598
        %v663 = vpack.c.b16 %v601, %v600
        %v664 = vpack.c.b16 %v603, %v602
        %v665 = vpack.c.b16 %v605, %v604
        %v666 = vpack.c.b16 %v607, %v606
        %v667 = vpack.c.b16 %v609, %v608
        %v668 = vpack.c.b16 %v611, %v610
        %v669 = vpack.c.b16 %v613, %v612
        %v670 = vpack.c.b16 %v615, %v614
        %v671 = vpack.c.b16 %v617, %v616
        %v672 = vpack.c.b16 %v619, %v618
        %v673 = vpack.c.b16 %v621, %v620
        %v674 = vpack.c.b16 %v623, %v622
        %v675 = vpack.c.b16 %v625, %v624
        %v676 = vpack.c.b16 %v627, %v626
        %v677 = vpack.c.b16 %v629, %v628
        %v682 = vunpack.c.l.b16 %v427
        %v683 = vunpack.c.l.b16 %v428
        %v684 = vunpack.c.l.b16 %v429
        %v685 = vunpack.c.l.b16 %v430
        %v686 = vpack.c.b16 %v683, %v682
        %v687 = vpack.c.b16 %v685, %v684
        %vm690 = vcmask 261120
        %v692 = vsel %vm690, %v630, 0
        %v695 = vsel %vm690, %v631, 0
        %v698 = vsel %vm690, %v632, 0
        %v701 = vsel %vm690, %v633, 0
        %v704 = vsel %vm690, %v634, 0
        %v707 = vsel %vm690, %v635, 0
        %v710 = vsel %vm690, %v636, 0
        %v713 = vsel %vm690, %v637, 0
        %v716 = vsel %vm690, %v638, 0
        %v719 = vsel %vm690, %v639, 0
        %v722 = vsel %vm690, %v640, 0
        %v725 = vsel %vm690, %v641, 0
        %v728 = vsel %vm690, %v642, 0
        %v731 = vsel %vm690, %v643, 0
        %v734 = vsel %vm690, %v644, 0
        %v737 = vsel %vm690, %v645, 0
        %v740 = vsel %vm690, %v646, 0
        %v743 = vsel %vm690, %v647, 0
        %v746 = vsel %vm690, %v648, 0
        %v749 = vsel %vm690, %v649, 0
        %v752 = vsel %vm690, %v650, 0
        %v755 = vsel %vm690, %v651, 0
        %v758 = vsel %vm690, %v652, 0
        %v761 = vsel %vm690, %v653, 0
        %v764 = vsel %vm690, %v654, 0
        %v767 = vsel %vm690, %v655, 0
        %v770 = vsel %vm690, %v656, 0
        %v773 = vsel %vm690, %v657, 0
        %v776 = vsel %vm690, %v658, 0
        %v779 = vsel %vm690, %v659, 0
        %v782 = vsel %vm690, %v660, 0
        %v785 = vsel %vm690, %v661, 0
        %v788 = vsel %vm690, %v662, 0
        %v791 = vsel %vm690, %v663, 0
        %v794 = vsel %vm690, %v664, 0
        %v797 = vsel %vm690, %v665, 0
        %v800 = vsel %vm690, %v666, 0
        %v803 = vsel %vm690, %v667, 0
        %v806 = vsel %vm690, %v668, 0
        %v809 = vsel %vm690, %v669, 0
        %v812 = vsel %vm690, %v670, 0
        %v815 = vsel %vm690, %v671, 0
        %v818 = vsel %vm690, %v672, 0
        %v821 = vsel %vm690, %v673, 0
        %v824 = vsel %vm690, %v674, 0
        %v827 = vsel %vm690, %v675, 0
        %v830 = vsel %vm690, %v676, 0
        %v833 = vsel %vm690, %v677, 0
        %835 = vmatprep.subr.bf16.mxu0 0
        %836 = vmatpush1.bf16.msra.mxu0 %v686
        %837 = vmatprep.subr.bf16.mxu0 0
        %838 = vmatpush1.bf16.msra.mxu0 %v687
        %839 = vmatprep.subr.bf16.mxu0 0
        %840 = vmatpush1.bf16.msra.mxu0 0
        %841 = vmatprep.subr.bf16.mxu0 0
        %842 = vmatpush1.bf16.msra.mxu0 0
        %843 = vmatprep.subr.bf16.mxu0 0
        %844 = vmatpush1.bf16.msra.mxu0 0
        %845 = vmatprep.subr.bf16.mxu0 0
        %846 = vmatpush1.bf16.msra.mxu0 0
        %847 = vmatprep.subr.bf16.mxu0 0
        %848 = vmatpush1.bf16.msra.mxu0 0
        %849 = vmatprep.subr.bf16.mxu0 0
        %850 = vmatpush1.bf16.msra.mxu0 0
        %851 = vmatprep.subr.bf16.mxu0 0
        %852 = vmatpush1.bf16.msra.mxu0 0
        %853 = vmatprep.subr.bf16.mxu0 0
        %854 = vmatpush1.bf16.msra.mxu0 0
        %855 = vmatprep.subr.bf16.mxu0 0
        %856 = vmatpush1.bf16.msra.mxu0 0
        %857 = vmatprep.subr.bf16.mxu0 0
        %858 = vmatpush1.bf16.msra.mxu0 0
        %859 = vmatprep.subr.bf16.mxu0 0
        %860 = vmatpush1.bf16.msra.mxu0 0
        %861 = vmatprep.subr.bf16.mxu0 0
        %862 = vmatpush1.bf16.msra.mxu0 0
        %863 = vmatprep.subr.bf16.mxu0 0
        %864 = vmatpush1.bf16.msra.mxu0 0
        %865 = vmatprep.subr.bf16.mxu0 0
        %866 = vmatpush1.bf16.msra.mxu0 0
        %867 = vmatprep.mubr.bf16.mxu0 0
        %868 = vmatmul.mubr.bf16.gmra.mrb[0].mxu0 %v692
        %v869 = vpop.f32.mrb[0].mxu0
        %v870 = vadd.f32 %v436, %v869
        %v871 = vpop.f32.mrb[0].mxu0
        %v872 = vpop.f32.mrb[0].mxu0
        %v873 = vadd.f32 %v436, %v872
        %v874 = vpop.f32.mrb[0].mxu0
        %875 = vmatprep.mubr.bf16.mxu0 0
        %876 = vmatmul.mubr.bf16.gmra.mrb[0].mxu0 %v695
        %v877 = vpop.f32.mrb[0].mxu0
        %v878 = vadd.f32 %v436, %v877
        %v879 = vpop.f32.mrb[0].mxu0
        %v880 = vpop.f32.mrb[0].mxu0
        %v881 = vadd.f32 %v436, %v880
        %v882 = vpop.f32.mrb[0].mxu0
        %883 = vmatprep.mubr.bf16.mxu0 0
        %884 = vmatmul.mubr.bf16.gmra.mrb[0].mxu0 %v698
        %v885 = vpop.f32.mrb[0].mxu0
        %v886 = vadd.f32 %v436, %v885
        %v887 = vpop.f32.mrb[0].mxu0
        %v888 = vpop.f32.mrb[0].mxu0
        %v889 = vadd.f32 %v436, %v888
        %v890 = vpop.f32.mrb[0].mxu0
        %891 = vmatprep.mubr.bf16.mxu0 0
        %892 = vmatmul.mubr.bf16.gmra.mrb[0].mxu0 %v701
        %v893 = vpop.f32.mrb[0].mxu0
        %v894 = vadd.f32 %v436, %v893
        %v895 = vpop.f32.mrb[0].mxu0
        %v896 = vpop.f32.mrb[0].mxu0
        %v897 = vadd.f32 %v436, %v896
        %v898 = vpop.f32.mrb[0].mxu0
        %899 = vmatprep.mubr.bf16.mxu0 0
        %900 = vmatmul.mubr.bf16.gmra.mrb[0].mxu0 %v704
        %v901 = vpop.f32.mrb[0].mxu0
        %v902 = vadd.f32 %v436, %v901
        %v903 = vpop.f32.mrb[0].mxu0
        %v904 = vpop.f32.mrb[0].mxu0
        %v905 = vadd.f32 %v436, %v904
        %v906 = vpop.f32.mrb[0].mxu0
        %907 = vmatprep.mubr.bf16.mxu0 0
        %908 = vmatmul.mubr.bf16.gmra.mrb[0].mxu0 %v707
        %v909 = vpop.f32.mrb[0].mxu0
        %v910 = vadd.f32 %v436, %v909
        %v911 = vpop.f32.mrb[0].mxu0
        %v912 = vpop.f32.mrb[0].mxu0
        %v913 = vadd.f32 %v436, %v912
        %v914 = vpop.f32.mrb[0].mxu0
        %915 = vmatprep.mubr.bf16.mxu0 0
        %916 = vmatmul.mubr.bf16.gmra.mrb[0].mxu0 %v710
        %v917 = vpop.f32.mrb[0].mxu0
        %v918 = vadd.f32 %v436, %v917
        %v919 = vpop.f32.mrb[0].mxu0
        %v920 = vpop.f32.mrb[0].mxu0
        %v921 = vadd.f32 %v436, %v920
        %v922 = vpop.f32.mrb[0].mxu0
        %923 = vmatprep.mubr.bf16.mxu0 0
        %924 = vmatmul.mubr.bf16.gmra.mrb[0].mxu0 %v713
        %v925 = vpop.f32.mrb[0].mxu0
        %v926 = vadd.f32 %v436, %v925
        %v927 = vpop.f32.mrb[0].mxu0
        %v928 = vpop.f32.mrb[0].mxu0
        %v929 = vadd.f32 %v436, %v928
        %v930 = vpop.f32.mrb[0].mxu0
        %931 = vmatprep.mubr.bf16.mxu0 0
        %932 = vmatmul.mubr.bf16.gmra.mrb[0].mxu0 %v716
        %v933 = vpop.f32.mrb[0].mxu0
        %v934 = vadd.f32 %v436, %v933
        %v935 = vpop.f32.mrb[0].mxu0
        %v936 = vpop.f32.mrb[0].mxu0
        %v937 = vadd.f32 %v436, %v936
        %v938 = vpop.f32.mrb[0].mxu0
        %939 = vmatprep.mubr.bf16.mxu0 0
        %940 = vmatmul.mubr.bf16.gmra.mrb[0].mxu0 %v719
        %v941 = vpop.f32.mrb[0].mxu0
        %v942 = vadd.f32 %v436, %v941
        %v943 = vpop.f32.mrb[0].mxu0
        %v944 = vpop.f32.mrb[0].mxu0
        %v945 = vadd.f32 %v436, %v944
        %v946 = vpop.f32.mrb[0].mxu0
        %947 = vmatprep.mubr.bf16.mxu0 0
        %948 = vmatmul.mubr.bf16.gmra.mrb[0].mxu0 %v722
        %v949 = vpop.f32.mrb[0].mxu0
        %v950 = vadd.f32 %v436, %v949
        %v951 = vpop.f32.mrb[0].mxu0
        %v952 = vpop.f32.mrb[0].mxu0
        %v953 = vadd.f32 %v436, %v952
        %v954 = vpop.f32.mrb[0].mxu0
        %955 = vmatprep.mubr.bf16.mxu0 0
        %956 = vmatmul.mubr.bf16.gmra.mrb[0].mxu0 %v725
        %v957 = vpop.f32.mrb[0].mxu0
        %v958 = vadd.f32 %v436, %v957
        %v959 = vpop.f32.mrb[0].mxu0
        %v960 = vpop.f32.mrb[0].mxu0
        %v961 = vadd.f32 %v436, %v960
        %v962 = vpop.f32.mrb[0].mxu0
        %963 = vmatprep.mubr.bf16.mxu0 0
        %964 = vmatmul.mubr.bf16.gmra.mrb[0].mxu0 %v728
        %v965 = vpop.f32.mrb[0].mxu0
        %v966 = vadd.f32 %v436, %v965
        %v967 = vpop.f32.mrb[0].mxu0
        %v968 = vpop.f32.mrb[0].mxu0
        %v969 = vadd.f32 %v436, %v968
        %v970 = vpop.f32.mrb[0].mxu0
        %971 = vmatprep.mubr.bf16.mxu0 0
        %972 = vmatmul.mubr.bf16.gmra.mrb[0].mxu0 %v731
        %v973 = vpop.f32.mrb[0].mxu0
        %v974 = vadd.f32 %v436, %v973
        %v975 = vpop.f32.mrb[0].mxu0
        %v976 = vpop.f32.mrb[0].mxu0
        %v977 = vadd.f32 %v436, %v976
        %v978 = vpop.f32.mrb[0].mxu0
        %979 = vmatprep.mubr.bf16.mxu0 0
        %980 = vmatmul.mubr.bf16.gmra.mrb[0].mxu0 %v734
        %v981 = vpop.f32.mrb[0].mxu0
        %v982 = vadd.f32 %v436, %v981
        %v983 = vpop.f32.mrb[0].mxu0
        %v984 = vpop.f32.mrb[0].mxu0
        %v985 = vadd.f32 %v436, %v984
        %v986 = vpop.f32.mrb[0].mxu0
        %987 = vmatprep.mubr.bf16.mxu0 0
        %988 = vmatmul.mubr.bf16.gmra.mrb[0].mxu0 %v737
        %v989 = vpop.f32.mrb[0].mxu0
        %v990 = vadd.f32 %v436, %v989
        %v991 = vpop.f32.mrb[0].mxu0
        %v992 = vpop.f32.mrb[0].mxu0
        %v993 = vadd.f32 %v436, %v992
        %v994 = vpop.f32.mrb[0].mxu0
        %995 = vmatprep.mubr.bf16.mxu0 0
        %996 = vmatmul.mubr.bf16.gmra.mrb[0].mxu0 %v740
        %v997 = vpop.f32.mrb[0].mxu0
        %v998 = vadd.f32 %v436, %v997
        %v999 = vpop.f32.mrb[0].mxu0
        %v1000 = vpop.f32.mrb[0].mxu0
        %v1001 = vadd.f32 %v436, %v1000
        %v1002 = vpop.f32.mrb[0].mxu0
        %1003 = vmatprep.mubr.bf16.mxu0 0
        %1004 = vmatmul.mubr.bf16.gmra.mrb[0].mxu0 %v743
        %v1005 = vpop.f32.mrb[0].mxu0
        %v1006 = vadd.f32 %v436, %v1005
        %v1007 = vpop.f32.mrb[0].mxu0
        %v1008 = vpop.f32.mrb[0].mxu0
        %v1009 = vadd.f32 %v436, %v1008
        %v1010 = vpop.f32.mrb[0].mxu0
        %1011 = vmatprep.mubr.bf16.mxu0 0
        %1012 = vmatmul.mubr.bf16.gmra.mrb[0].mxu0 %v746
        %v1013 = vpop.f32.mrb[0].mxu0
        %v1014 = vadd.f32 %v436, %v1013
        %v1015 = vpop.f32.mrb[0].mxu0
        %v1016 = vpop.f32.mrb[0].mxu0
        %v1017 = vadd.f32 %v436, %v1016
        %v1018 = vpop.f32.mrb[0].mxu0
        %1019 = vmatprep.mubr.bf16.mxu0 0
        %1020 = vmatmul.mubr.bf16.gmra.mrb[0].mxu0 %v749
        %v1021 = vpop.f32.mrb[0].mxu0
        %v1022 = vadd.f32 %v436, %v1021
        %v1023 = vpop.f32.mrb[0].mxu0
        %v1024 = vpop.f32.mrb[0].mxu0
        %v1025 = vadd.f32 %v436, %v1024
        %v1026 = vpop.f32.mrb[0].mxu0
        %1027 = vmatprep.mubr.bf16.mxu0 0
        %1028 = vmatmul.mubr.bf16.gmra.mrb[0].mxu0 %v752
        %v1029 = vpop.f32.mrb[0].mxu0
        %v1030 = vadd.f32 %v436, %v1029
        %v1031 = vpop.f32.mrb[0].mxu0
        %v1032 = vpop.f32.mrb[0].mxu0
        %v1033 = vadd.f32 %v436, %v1032
        %v1034 = vpop.f32.mrb[0].mxu0
        %1035 = vmatprep.mubr.bf16.mxu0 0
        %1036 = vmatmul.mubr.bf16.gmra.mrb[0].mxu0 %v755
        %v1037 = vpop.f32.mrb[0].mxu0
        %v1038 = vadd.f32 %v436, %v1037
        %v1039 = vpop.f32.mrb[0].mxu0
        %v1040 = vpop.f32.mrb[0].mxu0
        %v1041 = vadd.f32 %v436, %v1040
        %v1042 = vpop.f32.mrb[0].mxu0
        %1043 = vmatprep.mubr.bf16.mxu0 0
        %1044 = vmatmul.mubr.bf16.gmra.mrb[0].mxu0 %v758
        %v1045 = vpop.f32.mrb[0].mxu0
        %v1046 = vadd.f32 %v436, %v1045
        %v1047 = vpop.f32.mrb[0].mxu0
        %v1048 = vpop.f32.mrb[0].mxu0
        %v1049 = vadd.f32 %v436, %v1048
        %v1050 = vpop.f32.mrb[0].mxu0
        %1051 = vmatprep.mubr.bf16.mxu0 0
        %1052 = vmatmul.mubr.bf16.gmra.mrb[0].mxu0 %v761
        %v1053 = vpop.f32.mrb[0].mxu0
        %v1054 = vadd.f32 %v436, %v1053
        %v1055 = vpop.f32.mrb[0].mxu0
        %v1056 = vpop.f32.mrb[0].mxu0
        %v1057 = vadd.f32 %v436, %v1056
        %v1058 = vpop.f32.mrb[0].mxu0
        %1059 = vmatprep.mubr.bf16.mxu0 0
        %1060 = vmatmul.mubr.bf16.gmra.mrb[0].mxu0 %v764
        %v1061 = vpop.f32.mrb[0].mxu0
        %v1062 = vadd.f32 %v436, %v1061
        %v1063 = vpop.f32.mrb[0].mxu0
        %v1064 = vpop.f32.mrb[0].mxu0
        %v1065 = vadd.f32 %v436, %v1064
        %v1066 = vpop.f32.mrb[0].mxu0
        %1067 = vmatprep.mubr.bf16.mxu0 0
        %1068 = vmatmul.mubr.bf16.gmra.mrb[0].mxu0 %v767
        %v1069 = vpop.f32.mrb[0].mxu0
        %v1070 = vadd.f32 %v436, %v1069
        %v1071 = vpop.f32.mrb[0].mxu0
        %v1072 = vpop.f32.mrb[0].mxu0
        %v1073 = vadd.f32 %v436, %v1072
        %v1074 = vpop.f32.mrb[0].mxu0
        %1075 = vmatprep.mubr.bf16.mxu0 0
        %1076 = vmatmul.mubr.bf16.gmra.mrb[0].mxu0 %v770
        %v1077 = vpop.f32.mrb[0].mxu0
        %v1078 = vadd.f32 %v436, %v1077
        %v1079 = vpop.f32.mrb[0].mxu0
        %v1080 = vpop.f32.mrb[0].mxu0
        %v1081 = vadd.f32 %v436, %v1080
        %v1082 = vpop.f32.mrb[0].mxu0
        %1083 = vmatprep.mubr.bf16.mxu0 0
        %1084 = vmatmul.mubr.bf16.gmra.mrb[0].mxu0 %v773
        %v1085 = vpop.f32.mrb[0].mxu0
        %v1086 = vadd.f32 %v436, %v1085
        %v1087 = vpop.f32.mrb[0].mxu0
        %v1088 = vpop.f32.mrb[0].mxu0
        %v1089 = vadd.f32 %v436, %v1088
        %v1090 = vpop.f32.mrb[0].mxu0
        %1091 = vmatprep.mubr.bf16.mxu0 0
        %1092 = vmatmul.mubr.bf16.gmra.mrb[0].mxu0 %v776
        %v1093 = vpop.f32.mrb[0].mxu0
        %v1094 = vadd.f32 %v436, %v1093
        %v1095 = vpop.f32.mrb[0].mxu0
        %v1096 = vpop.f32.mrb[0].mxu0
        %v1097 = vadd.f32 %v436, %v1096
        %v1098 = vpop.f32.mrb[0].mxu0
        %1099 = vmatprep.mubr.bf16.mxu0 0
        %1100 = vmatmul.mubr.bf16.gmra.mrb[0].mxu0 %v779
        %v1101 = vpop.f32.mrb[0].mxu0
        %v1102 = vadd.f32 %v436, %v1101
        %v1103 = vpop.f32.mrb[0].mxu0
        %v1104 = vpop.f32.mrb[0].mxu0
        %v1105 = vadd.f32 %v436, %v1104
        %v1106 = vpop.f32.mrb[0].mxu0
        %1107 = vmatprep.mubr.bf16.mxu0 0
        %1108 = vmatmul.mubr.bf16.gmra.mrb[0].mxu0 %v782
        %v1109 = vpop.f32.mrb[0].mxu0
        %v1110 = vadd.f32 %v436, %v1109
        %v1111 = vpop.f32.mrb[0].mxu0
        %v1112 = vpop.f32.mrb[0].mxu0
        %v1113 = vadd.f32 %v436, %v1112
        %v1114 = vpop.f32.mrb[0].mxu0
        %1115 = vmatprep.mubr.bf16.mxu0 0
        %1116 = vmatmul.mubr.bf16.gmra.mrb[0].mxu0 %v785
        %v1117 = vpop.f32.mrb[0].mxu0
        %v1118 = vadd.f32 %v436, %v1117
        %v1119 = vpop.f32.mrb[0].mxu0
        %v1120 = vpop.f32.mrb[0].mxu0
        %v1121 = vadd.f32 %v436, %v1120
        %v1122 = vpop.f32.mrb[0].mxu0
        %1123 = vmatprep.mubr.bf16.mxu0 0
        %1124 = vmatmul.mubr.bf16.gmra.mrb[0].mxu0 %v788
        %v1125 = vpop.f32.mrb[0].mxu0
        %v1126 = vadd.f32 %v436, %v1125
        %v1127 = vpop.f32.mrb[0].mxu0
        %v1128 = vpop.f32.mrb[0].mxu0
        %v1129 = vadd.f32 %v436, %v1128
        %v1130 = vpop.f32.mrb[0].mxu0
        %1131 = vmatprep.mubr.bf16.mxu0 0
        %1132 = vmatmul.mubr.bf16.gmra.mrb[0].mxu0 %v791
        %v1133 = vpop.f32.mrb[0].mxu0
        %v1134 = vadd.f32 %v436, %v1133
        %v1135 = vpop.f32.mrb[0].mxu0
        %v1136 = vpop.f32.mrb[0].mxu0
        %v1137 = vadd.f32 %v436, %v1136
        %v1138 = vpop.f32.mrb[0].mxu0
        %1139 = vmatprep.mubr.bf16.mxu0 0
        %1140 = vmatmul.mubr.bf16.gmra.mrb[0].mxu0 %v794
        %v1141 = vpop.f32.mrb[0].mxu0
        %v1142 = vadd.f32 %v436, %v1141
        %v1143 = vpop.f32.mrb[0].mxu0
        %v1144 = vpop.f32.mrb[0].mxu0
        %v1145 = vadd.f32 %v436, %v1144
        %v1146 = vpop.f32.mrb[0].mxu0
        %1147 = vmatprep.mubr.bf16.mxu0 0
        %1148 = vmatmul.mubr.bf16.gmra.mrb[0].mxu0 %v797
        %v1149 = vpop.f32.mrb[0].mxu0
        %v1150 = vadd.f32 %v436, %v1149
        %v1151 = vpop.f32.mrb[0].mxu0
        %v1152 = vpop.f32.mrb[0].mxu0
        %v1153 = vadd.f32 %v436, %v1152
        %v1154 = vpop.f32.mrb[0].mxu0
        %1155 = vmatprep.mubr.bf16.mxu0 0
        %1156 = vmatmul.mubr.bf16.gmra.mrb[0].mxu0 %v800
        %v1157 = vpop.f32.mrb[0].mxu0
        %v1158 = vadd.f32 %v436, %v1157
        %v1159 = vpop.f32.mrb[0].mxu0
        %v1160 = vpop.f32.mrb[0].mxu0
        %v1161 = vadd.f32 %v436, %v1160
        %v1162 = vpop.f32.mrb[0].mxu0
        %1163 = vmatprep.mubr.bf16.mxu0 0
        %1164 = vmatmul.mubr.bf16.gmra.mrb[0].mxu0 %v803
        %v1165 = vpop.f32.mrb[0].mxu0
        %v1166 = vadd.f32 %v436, %v1165
        %v1167 = vpop.f32.mrb[0].mxu0
        %v1168 = vpop.f32.mrb[0].mxu0
        %v1169 = vadd.f32 %v436, %v1168
        %v1170 = vpop.f32.mrb[0].mxu0
        %1171 = vmatprep.mubr.bf16.mxu0 0
        %1172 = vmatmul.mubr.bf16.gmra.mrb[0].mxu0 %v806
        %v1173 = vpop.f32.mrb[0].mxu0
        %v1174 = vadd.f32 %v436, %v1173
        %v1175 = vpop.f32.mrb[0].mxu0
        %v1176 = vpop.f32.mrb[0].mxu0
        %v1177 = vadd.f32 %v436, %v1176
        %v1178 = vpop.f32.mrb[0].mxu0
        %1179 = vmatprep.mubr.bf16.mxu0 0
        %1180 = vmatmul.mubr.bf16.gmra.mrb[0].mxu0 %v809
        %v1181 = vpop.f32.mrb[0].mxu0
        %v1182 = vadd.f32 %v436, %v1181
        %v1183 = vpop.f32.mrb[0].mxu0
        %v1184 = vpop.f32.mrb[0].mxu0
        %v1185 = vadd.f32 %v436, %v1184
        %v1186 = vpop.f32.mrb[0].mxu0
        %1187 = vmatprep.mubr.bf16.mxu0 0
        %1188 = vmatmul.mubr.bf16.gmra.mrb[0].mxu0 %v812
        %v1189 = vpop.f32.mrb[0].mxu0
        %v1190 = vadd.f32 %v436, %v1189
        %v1191 = vpop.f32.mrb[0].mxu0
        %v1192 = vpop.f32.mrb[0].mxu0
        %v1193 = vadd.f32 %v436, %v1192
        %v1194 = vpop.f32.mrb[0].mxu0
        %1195 = vmatprep.mubr.bf16.mxu0 0
        %1196 = vmatmul.mubr.bf16.gmra.mrb[0].mxu0 %v815
        %v1197 = vpop.f32.mrb[0].mxu0
        %v1198 = vadd.f32 %v436, %v1197
        %v1199 = vpop.f32.mrb[0].mxu0
        %v1200 = vpop.f32.mrb[0].mxu0
        %v1201 = vadd.f32 %v436, %v1200
        %v1202 = vpop.f32.mrb[0].mxu0
        %1203 = vmatprep.mubr.bf16.mxu0 0
        %1204 = vmatmul.mubr.bf16.gmra.mrb[0].mxu0 %v818
        %v1205 = vpop.f32.mrb[0].mxu0
        %v1206 = vadd.f32 %v436, %v1205
        %v1207 = vpop.f32.mrb[0].mxu0
        %v1208 = vpop.f32.mrb[0].mxu0
        %v1209 = vadd.f32 %v436, %v1208
        %v1210 = vpop.f32.mrb[0].mxu0
        %1211 = vmatprep.mubr.bf16.mxu0 0
        %1212 = vmatmul.mubr.bf16.gmra.mrb[0].mxu0 %v821
        %v1213 = vpop.f32.mrb[0].mxu0
        %v1214 = vadd.f32 %v436, %v1213
        %v1215 = vpop.f32.mrb[0].mxu0
        %v1216 = vpop.f32.mrb[0].mxu0
        %v1217 = vadd.f32 %v436, %v1216
        %v1218 = vpop.f32.mrb[0].mxu0
        %1219 = vmatprep.mubr.bf16.mxu0 0
        %1220 = vmatmul.mubr.bf16.gmra.mrb[0].mxu0 %v824
        %v1221 = vpop.f32.mrb[0].mxu0
        %v1222 = vadd.f32 %v436, %v1221
        %v1223 = vpop.f32.mrb[0].mxu0
        %v1224 = vpop.f32.mrb[0].mxu0
        %v1225 = vadd.f32 %v436, %v1224
        %v1226 = vpop.f32.mrb[0].mxu0
        %1227 = vmatprep.mubr.bf16.mxu0 0
        %1228 = vmatmul.mubr.bf16.gmra.mrb[0].mxu0 %v827
        %v1229 = vpop.f32.mrb[0].mxu0
        %v1230 = vadd.f32 %v436, %v1229
        %v1231 = vpop.f32.mrb[0].mxu0
        %v1232 = vpop.f32.mrb[0].mxu0
        %v1233 = vadd.f32 %v436, %v1232
        %v1234 = vpop.f32.mrb[0].mxu0
        %1235 = vmatprep.mubr.bf16.mxu0 0
        %1236 = vmatmul.mubr.bf16.gmra.mrb[0].mxu0 %v830
        %v1237 = vpop.f32.mrb[0].mxu0
        %v1238 = vadd.f32 %v436, %v1237
        %v1239 = vpop.f32.mrb[0].mxu0
        %v1240 = vpop.f32.mrb[0].mxu0
        %v1241 = vadd.f32 %v436, %v1240
        %v1242 = vpop.f32.mrb[0].mxu0
        %1243 = vmatprep.mubr.bf16.mxu0 0
        %1244 = vmatmul.mubr.bf16.gmra.mrb[0].mxu0 %v833
        %v1245 = vpop.f32.mrb[0].mxu0
        %v1246 = vadd.f32 %v436, %v1245
        %v1247 = vpop.f32.mrb[0].mxu0
        %v1248 = vpop.f32.mrb[0].mxu0
        %v1249 = vadd.f32 %v436, %v1248
        %v1250 = vpop.f32.mrb[0].mxu0
        %1251 = vdwg.mxu0
        %v1252 = vmax.f32 %v870, %v966
        %v1253 = vmax.f32 %v873, %v969
        %v1254 = vmax.f32 %v878, %v974
        %v1255 = vmax.f32 %v881, %v977
        %v1256 = vmax.f32 %v886, %v982
        %v1257 = vmax.f32 %v889, %v985
        %v1258 = vmax.f32 %v894, %v990
        %v1259 = vmax.f32 %v897, %v993
        %v1260 = vmax.f32 %v902, %v998
        %v1261 = vmax.f32 %v905, %v1001
        %v1262 = vmax.f32 %v910, %v1006
        %v1263 = vmax.f32 %v913, %v1009
        %v1264 = vmax.f32 %v918, %v1014
        %v1265 = vmax.f32 %v921, %v1017
        %v1266 = vmax.f32 %v926, %v1022
        %v1267 = vmax.f32 %v929, %v1025
        %v1268 = vmax.f32 %v934, %v1030
        %v1269 = vmax.f32 %v937, %v1033
        %v1270 = vmax.f32 %v942, %v1038
        %v1271 = vmax.f32 %v945, %v1041
        %v1272 = vmax.f32 %v950, %v1046
        %v1273 = vmax.f32 %v953, %v1049
        %v1274 = vmax.f32 %v958, %v1054
        %v1275 = vmax.f32 %v961, %v1057
        %v1276 = vmax.f32 %v1062, %v1158
        %v1277 = vmax.f32 %v1065, %v1161
        %v1278 = vmax.f32 %v1070, %v1166
        %v1279 = vmax.f32 %v1073, %v1169
        %v1280 = vmax.f32 %v1078, %v1174
        %v1281 = vmax.f32 %v1081, %v1177
        %v1282 = vmax.f32 %v1086, %v1182
        %v1283 = vmax.f32 %v1089, %v1185
        %v1284 = vmax.f32 %v1094, %v1190
        %v1285 = vmax.f32 %v1097, %v1193
        %v1286 = vmax.f32 %v1102, %v1198
        %v1287 = vmax.f32 %v1105, %v1201
        %v1288 = vmax.f32 %v1110, %v1206
        %v1289 = vmax.f32 %v1113, %v1209
        %v1290 = vmax.f32 %v1118, %v1214
        %v1291 = vmax.f32 %v1121, %v1217
        %v1292 = vmax.f32 %v1126, %v1222
        %v1293 = vmax.f32 %v1129, %v1225
        %v1294 = vmax.f32 %v1134, %v1230
        %v1295 = vmax.f32 %v1137, %v1233
        %v1296 = vmax.f32 %v1142, %v1238
        %v1297 = vmax.f32 %v1145, %v1241
        %v1298 = vmax.f32 %v1150, %v1246
        %v1299 = vmax.f32 %v1153, %v1249
        %v1300 = vmax.f32 %v1252, %v1276
        %v1301 = vmax.f32 %v1253, %v1277
        %v1302 = vmax.f32 %v1254, %v1278
        %v1303 = vmax.f32 %v1255, %v1279
        %v1304 = vmax.f32 %v1256, %v1280
        %v1305 = vmax.f32 %v1257, %v1281
        %v1306 = vmax.f32 %v1258, %v1282
        %v1307 = vmax.f32 %v1259, %v1283
        %v1308 = vmax.f32 %v1260, %v1284
        %v1309 = vmax.f32 %v1261, %v1285
        %v1310 = vmax.f32 %v1262, %v1286
        %v1311 = vmax.f32 %v1263, %v1287
        %v1312 = vmax.f32 %v1264, %v1288
        %v1313 = vmax.f32 %v1265, %v1289
        %v1314 = vmax.f32 %v1266, %v1290
        %v1315 = vmax.f32 %v1267, %v1291
        %v1316 = vmax.f32 %v1268, %v1292
        %v1317 = vmax.f32 %v1269, %v1293
        %v1318 = vmax.f32 %v1270, %v1294
        %v1319 = vmax.f32 %v1271, %v1295
        %v1320 = vmax.f32 %v1272, %v1296
        %v1321 = vmax.f32 %v1273, %v1297
        %v1322 = vmax.f32 %v1274, %v1298
        %v1323 = vmax.f32 %v1275, %v1299
        %v1324 = vmax.f32 %v1300, 0.0
        %v1325 = vmax.f32 %v1301, 0.0
        %v1326 = vmax.f32 %v1302, 0.0
        %v1327 = vmax.f32 %v1303, 0.0
        %v1328 = vmax.f32 %v1304, 0.0
        %v1329 = vmax.f32 %v1305, 0.0
        %v1330 = vmax.f32 %v1306, 0.0
        %v1331 = vmax.f32 %v1307, 0.0
        %v1332 = vmax.f32 %v1308, 0.0
        %v1333 = vmax.f32 %v1309, 0.0
        %v1334 = vmax.f32 %v1310, 0.0
        %v1335 = vmax.f32 %v1311, 0.0
        %v1336 = vmax.f32 %v1312, 0.0
        %v1337 = vmax.f32 %v1313, 0.0
        %v1338 = vmax.f32 %v1314, 0.0
        %v1339 = vmax.f32 %v1315, 0.0
        %v1340 = vmax.f32 %v1316, 0.0
        %v1341 = vmax.f32 %v1317, 0.0
        %v1342 = vmax.f32 %v1318, 0.0
        %v1343 = vmax.f32 %v1319, 0.0
        %v1344 = vmax.f32 %v1320, 0.0
        %v1345 = vmax.f32 %v1321, 0.0
        %v1346 = vmax.f32 %v1322, 0.0
        %v1347 = vmax.f32 %v1323, 0.0
        %v1348 = vpack.c.bf16 %v1326, %v1324
        %v1349 = vpack.c.bf16 %v1330, %v1328
        %v1350 = vpack.c.bf16 %v1334, %v1332
        %v1351 = vpack.c.bf16 %v1338, %v1336
        %v1352 = vld [vmem:[%s3] sm:$0xf]
        %v1353 = vld [vmem:[%s3 + $0x4] sm:$0xf]
        %v1354 = vld [vmem:[%s3 + $0x8] sm:$0xf]
        %v1355 = vld [vmem:[%s3 + $0xc] sm:$0xf]
        %vm1372 = vcmask 1046528
        %v1373 = vrot.slane %v1324, 1
        %v1374 = vrot.slane %v1325, 1
        %v1375 = vsel %vm1372, %v1373, %v1374
        %v1376 = vrot.slane %v1326, 1
        %v1377 = vrot.slane %v1327, 1
        %v1378 = vsel %vm1372, %v1376, %v1377
        %v1379 = vrot.slane %v1328, 1
        %v1380 = vrot.slane %v1329, 1
        %v1381 = vsel %vm1372, %v1379, %v1380
        %v1382 = vrot.slane %v1330, 1
        %v1383 = vrot.slane %v1331, 1
        %v1384 = vsel %vm1372, %v1382, %v1383
        %v1385 = vrot.slane %v1332, 1
        %v1386 = vrot.slane %v1333, 1
        %v1387 = vsel %vm1372, %v1385, %v1386
        %v1388 = vrot.slane %v1334, 1
        %v1389 = vrot.slane %v1335, 1
        %v1390 = vsel %vm1372, %v1388, %v1389
        %v1391 = vrot.slane %v1336, 1
        %v1392 = vrot.slane %v1337, 1
        %v1393 = vsel %vm1372, %v1391, %v1392
        %v1394 = vrot.slane %v1338, 1
        %v1395 = vrot.slane %v1339, 1
        %v1396 = vsel %vm1372, %v1394, %v1395
        %v1405 = vpack.c.bf16 %v1378, %v1375
        %v1406 = vpack.c.bf16 %v1384, %v1381
        %v1407 = vpack.c.bf16 %v1390, %v1387
        %v1408 = vpack.c.bf16 %v1396, %v1393
        %s1409 = scalar_lea.vmem %s3, 16
        %v1410 = vld [vmem:[%s1409] sm:$0xf]
        %v1411 = vld [vmem:[%s1409 + $0x4] sm:$0xf]
        %v1412 = vld [vmem:[%s1409 + $0x8] sm:$0xf]
        %v1413 = vld [vmem:[%s1409 + $0xc] sm:$0xf]
        %v1418 = vunpack.c.l.b16 %v1410
        %v1419 = vunpack.c.l.b16 %v1411
        %v1420 = vunpack.c.l.b16 %v1412
        %v1421 = vunpack.c.l.b16 %v1413
        %v1422 = vpack.c.b16 %v1419, %v1418
        %v1423 = vpack.c.b16 %v1421, %v1420
        %v1427 = vsel %vm690, %v1405, 0
        %v1430 = vsel %vm690, %v1406, 0
        %v1433 = vsel %vm690, %v1407, 0
        %v1436 = vsel %vm690, %v1408, 0
        %1438 = vmatprep.subr.bf16.mxu0 0
        %1439 = vmatpush1.bf16.msra.mxu0 %v1422
        %1440 = vmatprep.subr.bf16.mxu0 0
        %1441 = vmatpush1.bf16.msra.mxu0 %v1423
        %1442 = vmatprep.subr.bf16.mxu0 0
        %1443 = vmatpush1.bf16.msra.mxu0 0
        %1444 = vmatprep.subr.bf16.mxu0 0
        %1445 = vmatpush1.bf16.msra.mxu0 0
        %1446 = vmatprep.subr.bf16.mxu0 0
        %1447 = vmatpush1.bf16.msra.mxu0 0
        %1448 = vmatprep.subr.bf16.mxu0 0
        %1449 = vmatpush1.bf16.msra.mxu0 0
        %1450 = vmatprep.subr.bf16.mxu0 0
        %1451 = vmatpush1.bf16.msra.mxu0 0
        %1452 = vmatprep.subr.bf16.mxu0 0
        %1453 = vmatpush1.bf16.msra.mxu0 0
        %1454 = vmatprep.subr.bf16.mxu0 0
        %1455 = vmatpush1.bf16.msra.mxu0 0
        %1456 = vmatprep.subr.bf16.mxu0 0
        %1457 = vmatpush1.bf16.msra.mxu0 0
        %1458 = vmatprep.subr.bf16.mxu0 0
        %1459 = vmatpush1.bf16.msra.mxu0 0
        %1460 = vmatprep.subr.bf16.mxu0 0
        %1461 = vmatpush1.bf16.msra.mxu0 0
        %1462 = vmatprep.subr.bf16.mxu0 0
        %1463 = vmatpush1.bf16.msra.mxu0 0
        %1464 = vmatprep.subr.bf16.mxu0 0
        %1465 = vmatpush1.bf16.msra.mxu0 0
        %1466 = vmatprep.subr.bf16.mxu0 0
        %1467 = vmatpush1.bf16.msra.mxu0 0
        %1468 = vmatprep.subr.bf16.mxu0 0
        %1469 = vmatpush1.bf16.msra.mxu0 0
        %1470 = vmatprep.mubr.bf16.mxu0 0
        %1471 = vmatmul.mubr.bf16.gmra.mrb[0].mxu0 %v1427
        %v1472 = vpop.f32.mrb[0].mxu0
        %v1473 = vadd.f32 0.0, %v1472
        %v1474 = vpop.f32.mrb[0].mxu0
        %v1475 = vpop.f32.mrb[0].mxu0
        %v1476 = vadd.f32 0.0, %v1475
        %v1477 = vpop.f32.mrb[0].mxu0
        %1478 = vmatprep.mubr.bf16.mxu0 0
        %1479 = vmatmul.mubr.bf16.gmra.mrb[0].mxu0 %v1430
        %v1480 = vpop.f32.mrb[0].mxu0
        %v1481 = vadd.f32 0.0, %v1480
        %v1482 = vpop.f32.mrb[0].mxu0
        %v1483 = vpop.f32.mrb[0].mxu0
        %v1484 = vadd.f32 0.0, %v1483
        %v1485 = vpop.f32.mrb[0].mxu0
        %1486 = vmatprep.mubr.bf16.mxu0 0
        %1487 = vmatmul.mubr.bf16.gmra.mrb[0].mxu0 %v1433
        %v1488 = vpop.f32.mrb[0].mxu0
        %v1489 = vadd.f32 0.0, %v1488
        %v1490 = vpop.f32.mrb[0].mxu0
        %v1491 = vpop.f32.mrb[0].mxu0
        %v1492 = vadd.f32 0.0, %v1491
        %v1493 = vpop.f32.mrb[0].mxu0
        %1494 = vmatprep.mubr.bf16.mxu0 0
        %1495 = vmatmul.mubr.bf16.gmra.mrb[0].mxu0 %v1436
        %v1496 = vpop.f32.mrb[0].mxu0
        %v1497 = vadd.f32 0.0, %v1496
        %v1498 = vpop.f32.mrb[0].mxu0
        %v1499 = vpop.f32.mrb[0].mxu0
        %v1500 = vadd.f32 0.0, %v1499
        %v1501 = vpop.f32.mrb[0].mxu0
        %1502 = vdwg.mxu0
        %v1507 = vunpack.c.l.b16 %v1352
        %v1508 = vunpack.c.l.b16 %v1353
        %v1509 = vunpack.c.l.b16 %v1354
        %v1510 = vunpack.c.l.b16 %v1355
        %v1511 = vpack.c.b16 %v1508, %v1507
        %v1512 = vpack.c.b16 %v1510, %v1509
        %v1516 = vsel %vm690, %v1348, 0
        %v1519 = vsel %vm690, %v1349, 0
        %v1522 = vsel %vm690, %v1350, 0
        %v1525 = vsel %vm690, %v1351, 0
        %1527 = vmatprep.subr.bf16.mxu0 0
        %1528 = vmatpush1.bf16.msra.mxu0 %v1511
        %1529 = vmatprep.subr.bf16.mxu0 0
        %1530 = vmatpush1.bf16.msra.mxu0 %v1512
        %1531 = vmatprep.subr.bf16.mxu0 0
        %1532 = vmatpush1.bf16.msra.mxu0 0
        %1533 = vmatprep.subr.bf16.mxu0 0
        %1534 = vmatpush1.bf16.msra.mxu0 0
        %1535 = vmatprep.subr.bf16.mxu0 0
        %1536 = vmatpush1.bf16.msra.mxu0 0
        %1537 = vmatprep.subr.bf16.mxu0 0
        %1538 = vmatpush1.bf16.msra.mxu0 0
        %1539 = vmatprep.subr.bf16.mxu0 0
        %1540 = vmatpush1.bf16.msra.mxu0 0
        %1541 = vmatprep.subr.bf16.mxu0 0
        %1542 = vmatpush1.bf16.msra.mxu0 0
        %1543 = vmatprep.subr.bf16.mxu0 0
        %1544 = vmatpush1.bf16.msra.mxu0 0
        %1545 = vmatprep.subr.bf16.mxu0 0
        %1546 = vmatpush1.bf16.msra.mxu0 0
        %1547 = vmatprep.subr.bf16.mxu0 0
        %1548 = vmatpush1.bf16.msra.mxu0 0
        %1549 = vmatprep.subr.bf16.mxu0 0
        %1550 = vmatpush1.bf16.msra.mxu0 0
        %1551 = vmatprep.subr.bf16.mxu0 0
        %1552 = vmatpush1.bf16.msra.mxu0 0
        %1553 = vmatprep.subr.bf16.mxu0 0
        %1554 = vmatpush1.bf16.msra.mxu0 0
        %1555 = vmatprep.subr.bf16.mxu0 0
        %1556 = vmatpush1.bf16.msra.mxu0 0
        %1557 = vmatprep.subr.bf16.mxu0 0
        %1558 = vmatpush1.bf16.msra.mxu0 0
        %1559 = vmatprep.mubr.bf16.mxu0 0
        %1560 = vmatmul.mubr.bf16.gmra.mrb[0].mxu0 %v1516
        %v1561 = vpop.f32.mrb[0].mxu0
        %v1562 = vadd.f32 %v1473, %v1561
        %v1563 = vpop.f32.mrb[0].mxu0
        %v1564 = vpop.f32.mrb[0].mxu0
        %v1565 = vadd.f32 %v1476, %v1564
        %v1566 = vpop.f32.mrb[0].mxu0
        %1567 = vmatprep.mubr.bf16.mxu0 0
        %1568 = vmatmul.mubr.bf16.gmra.mrb[0].mxu0 %v1519
        %v1569 = vpop.f32.mrb[0].mxu0
        %v1570 = vadd.f32 %v1481, %v1569
        %v1571 = vpop.f32.mrb[0].mxu0
        %v1572 = vpop.f32.mrb[0].mxu0
        %v1573 = vadd.f32 %v1484, %v1572
        %v1574 = vpop.f32.mrb[0].mxu0
        %1575 = vmatprep.mubr.bf16.mxu0 0
        %1576 = vmatmul.mubr.bf16.gmra.mrb[0].mxu0 %v1522
        %v1577 = vpop.f32.mrb[0].mxu0
        %v1578 = vadd.f32 %v1489, %v1577
        %v1579 = vpop.f32.mrb[0].mxu0
        %v1580 = vpop.f32.mrb[0].mxu0
        %v1581 = vadd.f32 %v1492, %v1580
        %v1582 = vpop.f32.mrb[0].mxu0
        %1583 = vmatprep.mubr.bf16.mxu0 0
        %1584 = vmatmul.mubr.bf16.gmra.mrb[0].mxu0 %v1525
        %v1585 = vpop.f32.mrb[0].mxu0
        %v1586 = vadd.f32 %v1497, %v1585
        %v1587 = vpop.f32.mrb[0].mxu0
        %v1588 = vpop.f32.mrb[0].mxu0
        %v1589 = vadd.f32 %v1500, %v1588
        %v1590 = vpop.f32.mrb[0].mxu0
        %1591 = vdwg.mxu0
        %vm1592 = vcmask 1045504
        %v1593 = vrot.slane %v1324, 2
        %v1594 = vrot.slane %v1325, 2
        %v1595 = vsel %vm1592, %v1593, %v1594
        %v1596 = vrot.slane %v1326, 2
        %v1597 = vrot.slane %v1327, 2
        %v1598 = vsel %vm1592, %v1596, %v1597
        %v1599 = vrot.slane %v1328, 2
        %v1600 = vrot.slane %v1329, 2
        %v1601 = vsel %vm1592, %v1599, %v1600
        %v1602 = vrot.slane %v1330, 2
        %v1603 = vrot.slane %v1331, 2
        %v1604 = vsel %vm1592, %v1602, %v1603
        %v1605 = vrot.slane %v1332, 2
        %v1606 = vrot.slane %v1333, 2
        %v1607 = vsel %vm1592, %v1605, %v1606
        %v1608 = vrot.slane %v1334, 2
        %v1609 = vrot.slane %v1335, 2
        %v1610 = vsel %vm1592, %v1608, %v1609
        %v1611 = vrot.slane %v1336, 2
        %v1612 = vrot.slane %v1337, 2
        %v1613 = vsel %vm1592, %v1611, %v1612
        %v1614 = vrot.slane %v1338, 2
        %v1615 = vrot.slane %v1339, 2
        %v1616 = vsel %vm1592, %v1614, %v1615
        %v1625 = vpack.c.bf16 %v1598, %v1595
        %v1626 = vpack.c.bf16 %v1604, %v1601
        %v1627 = vpack.c.bf16 %v1610, %v1607
        %v1628 = vpack.c.bf16 %v1616, %v1613
        %s1629 = scalar_lea.vmem %s3, 32
        %v1630 = vld [vmem:[%s1629] sm:$0xf]
        %v1631 = vld [vmem:[%s1629 + $0x4] sm:$0xf]
        %v1632 = vld [vmem:[%s1629 + $0x8] sm:$0xf]
        %v1633 = vld [vmem:[%s1629 + $0xc] sm:$0xf]
        %v1638 = vunpack.c.l.b16 %v1630
        %v1639 = vunpack.c.l.b16 %v1631
        %v1640 = vunpack.c.l.b16 %v1632
        %v1641 = vunpack.c.l.b16 %v1633
        %v1642 = vpack.c.b16 %v1639, %v1638
        %v1643 = vpack.c.b16 %v1641, %v1640
        %v1647 = vsel %vm690, %v1625, 0
        %v1650 = vsel %vm690, %v1626, 0
        %v1653 = vsel %vm690, %v1627, 0
        %v1656 = vsel %vm690, %v1628, 0
        %1658 = vmatprep.subr.bf16.mxu0 0
        %1659 = vmatpush1.bf16.msra.mxu0 %v1642
        %1660 = vmatprep.subr.bf16.mxu0 0
        %1661 = vmatpush1.bf16.msra.mxu0 %v1643
        %1662 = vmatprep.subr.bf16.mxu0 0
        %1663 = vmatpush1.bf16.msra.mxu0 0
        %1664 = vmatprep.subr.bf16.mxu0 0
        %1665 = vmatpush1.bf16.msra.mxu0 0
        %1666 = vmatprep.subr.bf16.mxu0 0
        %1667 = vmatpush1.bf16.msra.mxu0 0
        %1668 = vmatprep.subr.bf16.mxu0 0
        %1669 = vmatpush1.bf16.msra.mxu0 0
        %1670 = vmatprep.subr.bf16.mxu0 0
        %1671 = vmatpush1.bf16.msra.mxu0 0
        %1672 = vmatprep.subr.bf16.mxu0 0
        %1673 = vmatpush1.bf16.msra.mxu0 0
        %1674 = vmatprep.subr.bf16.mxu0 0
        %1675 = vmatpush1.bf16.msra.mxu0 0
        %1676 = vmatprep.subr.bf16.mxu0 0
        %1677 = vmatpush1.bf16.msra.mxu0 0
        %1678 = vmatprep.subr.bf16.mxu0 0
        %1679 = vmatpush1.bf16.msra.mxu0 0
        %1680 = vmatprep.subr.bf16.mxu0 0
        %1681 = vmatpush1.bf16.msra.mxu0 0
        %1682 = vmatprep.subr.bf16.mxu0 0
        %1683 = vmatpush1.bf16.msra.mxu0 0
        %1684 = vmatprep.subr.bf16.mxu0 0
        %1685 = vmatpush1.bf16.msra.mxu0 0
        %1686 = vmatprep.subr.bf16.mxu0 0
        %1687 = vmatpush1.bf16.msra.mxu0 0
        %1688 = vmatprep.subr.bf16.mxu0 0
        %1689 = vmatpush1.bf16.msra.mxu0 0
        %1690 = vmatprep.mubr.bf16.mxu0 0
        %1691 = vmatmul.mubr.bf16.gmra.mrb[0].mxu0 %v1647
        %v1692 = vpop.f32.mrb[0].mxu0
        %v1693 = vadd.f32 0.0, %v1692
        %v1694 = vpop.f32.mrb[0].mxu0
        %v1695 = vpop.f32.mrb[0].mxu0
        %v1696 = vadd.f32 0.0, %v1695
        %v1697 = vpop.f32.mrb[0].mxu0
        %1698 = vmatprep.mubr.bf16.mxu0 0
        %1699 = vmatmul.mubr.bf16.gmra.mrb[0].mxu0 %v1650
        %v1700 = vpop.f32.mrb[0].mxu0
        %v1701 = vadd.f32 0.0, %v1700
        %v1702 = vpop.f32.mrb[0].mxu0
        %v1703 = vpop.f32.mrb[0].mxu0
        %v1704 = vadd.f32 0.0, %v1703
        %v1705 = vpop.f32.mrb[0].mxu0
        %1706 = vmatprep.mubr.bf16.mxu0 0
        %1707 = vmatmul.mubr.bf16.gmra.mrb[0].mxu0 %v1653
        %v1708 = vpop.f32.mrb[0].mxu0
        %v1709 = vadd.f32 0.0, %v1708
        %v1710 = vpop.f32.mrb[0].mxu0
        %v1711 = vpop.f32.mrb[0].mxu0
        %v1712 = vadd.f32 0.0, %v1711
        %v1713 = vpop.f32.mrb[0].mxu0
        %1714 = vmatprep.mubr.bf16.mxu0 0
        %1715 = vmatmul.mubr.bf16.gmra.mrb[0].mxu0 %v1656
        %v1716 = vpop.f32.mrb[0].mxu0
        %v1717 = vadd.f32 0.0, %v1716
        %v1718 = vpop.f32.mrb[0].mxu0
        %v1719 = vpop.f32.mrb[0].mxu0
        %v1720 = vadd.f32 0.0, %v1719
        %v1721 = vpop.f32.mrb[0].mxu0
        %1722 = vdwg.mxu0
        %v1723 = vadd.f32 %v1562, %v1693
        %v1724 = vadd.f32 %v1565, %v1696
        %v1725 = vadd.f32 %v1570, %v1701
        %v1726 = vadd.f32 %v1573, %v1704
        %v1727 = vadd.f32 %v1578, %v1709
        %v1728 = vadd.f32 %v1581, %v1712
        %v1729 = vadd.f32 %v1586, %v1717
        %v1730 = vadd.f32 %v1589, %v1720
        %vm1731 = vcmask 1044480
        %v1732 = vrot.slane %v1324, 3
        %v1733 = vrot.slane %v1325, 3
        %v1734 = vsel %vm1731, %v1732, %v1733
        %v1735 = vrot.slane %v1326, 3
        %v1736 = vrot.slane %v1327, 3
        %v1737 = vsel %vm1731, %v1735, %v1736
        %v1738 = vrot.slane %v1328, 3
        %v1739 = vrot.slane %v1329, 3
        %v1740 = vsel %vm1731, %v1738, %v1739
        %v1741 = vrot.slane %v1330, 3
        %v1742 = vrot.slane %v1331, 3
        %v1743 = vsel %vm1731, %v1741, %v1742
        %v1744 = vrot.slane %v1332, 3
        %v1745 = vrot.slane %v1333, 3
        %v1746 = vsel %vm1731, %v1744, %v1745
        %v1747 = vrot.slane %v1334, 3
        %v1748 = vrot.slane %v1335, 3
        %v1749 = vsel %vm1731, %v1747, %v1748
        %v1750 = vrot.slane %v1336, 3
        %v1751 = vrot.slane %v1337, 3
        %v1752 = vsel %vm1731, %v1750, %v1751
        %v1753 = vrot.slane %v1338, 3
        %v1754 = vrot.slane %v1339, 3
        %v1755 = vsel %vm1731, %v1753, %v1754
        %v1764 = vpack.c.bf16 %v1737, %v1734
        %v1765 = vpack.c.bf16 %v1743, %v1740
        %v1766 = vpack.c.bf16 %v1749, %v1746
        %v1767 = vpack.c.bf16 %v1755, %v1752
        %s1768 = scalar_lea.vmem %s3, 48
        %v1769 = vld [vmem:[%s1768] sm:$0xf]
        %v1770 = vld [vmem:[%s1768 + $0x4] sm:$0xf]
        %v1771 = vld [vmem:[%s1768 + $0x8] sm:$0xf]
        %v1772 = vld [vmem:[%s1768 + $0xc] sm:$0xf]
        %v1777 = vunpack.c.l.b16 %v1769
        %v1778 = vunpack.c.l.b16 %v1770
        %v1779 = vunpack.c.l.b16 %v1771
        %v1780 = vunpack.c.l.b16 %v1772
        %v1781 = vpack.c.b16 %v1778, %v1777
        %v1782 = vpack.c.b16 %v1780, %v1779
        %v1786 = vsel %vm690, %v1764, 0
        %v1789 = vsel %vm690, %v1765, 0
        %v1792 = vsel %vm690, %v1766, 0
        %v1795 = vsel %vm690, %v1767, 0
        %1797 = vmatprep.subr.bf16.mxu0 0
        %1798 = vmatpush1.bf16.msra.mxu0 %v1781
        %1799 = vmatprep.subr.bf16.mxu0 0
        %1800 = vmatpush1.bf16.msra.mxu0 %v1782
        %1801 = vmatprep.subr.bf16.mxu0 0
        %1802 = vmatpush1.bf16.msra.mxu0 0
        %1803 = vmatprep.subr.bf16.mxu0 0
        %1804 = vmatpush1.bf16.msra.mxu0 0
        %1805 = vmatprep.subr.bf16.mxu0 0
        %1806 = vmatpush1.bf16.msra.mxu0 0
        %1807 = vmatprep.subr.bf16.mxu0 0
        %1808 = vmatpush1.bf16.msra.mxu0 0
        %1809 = vmatprep.subr.bf16.mxu0 0
        %1810 = vmatpush1.bf16.msra.mxu0 0
        %1811 = vmatprep.subr.bf16.mxu0 0
        %1812 = vmatpush1.bf16.msra.mxu0 0
        %1813 = vmatprep.subr.bf16.mxu0 0
        %1814 = vmatpush1.bf16.msra.mxu0 0
        %1815 = vmatprep.subr.bf16.mxu0 0
        %1816 = vmatpush1.bf16.msra.mxu0 0
        %1817 = vmatprep.subr.bf16.mxu0 0
        %1818 = vmatpush1.bf16.msra.mxu0 0
        %1819 = vmatprep.subr.bf16.mxu0 0
        %1820 = vmatpush1.bf16.msra.mxu0 0
        %1821 = vmatprep.subr.bf16.mxu0 0
        %1822 = vmatpush1.bf16.msra.mxu0 0
        %1823 = vmatprep.subr.bf16.mxu0 0
        %1824 = vmatpush1.bf16.msra.mxu0 0
        %1825 = vmatprep.subr.bf16.mxu0 0
        %1826 = vmatpush1.bf16.msra.mxu0 0
        %1827 = vmatprep.subr.bf16.mxu0 0
        %1828 = vmatpush1.bf16.msra.mxu0 0
        %1829 = vmatprep.mubr.bf16.mxu0 0
        %1830 = vmatmul.mubr.bf16.gmra.mrb[0].mxu0 %v1786
        %v1831 = vpop.f32.mrb[0].mxu0
        %v1832 = vadd.f32 0.0, %v1831
        %v1833 = vpop.f32.mrb[0].mxu0
        %v1834 = vpop.f32.mrb[0].mxu0
        %v1835 = vadd.f32 0.0, %v1834
        %v1836 = vpop.f32.mrb[0].mxu0
        %1837 = vmatprep.mubr.bf16.mxu0 0
        %1838 = vmatmul.mubr.bf16.gmra.mrb[0].mxu0 %v1789
        %v1839 = vpop.f32.mrb[0].mxu0
        %v1840 = vadd.f32 0.0, %v1839
        %v1841 = vpop.f32.mrb[0].mxu0
        %v1842 = vpop.f32.mrb[0].mxu0
        %v1843 = vadd.f32 0.0, %v1842
        %v1844 = vpop.f32.mrb[0].mxu0
        %1845 = vmatprep.mubr.bf16.mxu0 0
        %1846 = vmatmul.mubr.bf16.gmra.mrb[0].mxu0 %v1792
        %v1847 = vpop.f32.mrb[0].mxu0
        %v1848 = vadd.f32 0.0, %v1847
        %v1849 = vpop.f32.mrb[0].mxu0
        %v1850 = vpop.f32.mrb[0].mxu0
        %v1851 = vadd.f32 0.0, %v1850
        %v1852 = vpop.f32.mrb[0].mxu0
        %1853 = vmatprep.mubr.bf16.mxu0 0
        %1854 = vmatmul.mubr.bf16.gmra.mrb[0].mxu0 %v1795
        %v1855 = vpop.f32.mrb[0].mxu0
        %v1856 = vadd.f32 0.0, %v1855
        %v1857 = vpop.f32.mrb[0].mxu0
        %v1858 = vpop.f32.mrb[0].mxu0
        %v1859 = vadd.f32 0.0, %v1858
        %v1860 = vpop.f32.mrb[0].mxu0
        %1861 = vdwg.mxu0
        %v1862 = vadd.f32 %v1723, %v1832
        %v1863 = vadd.f32 %v1724, %v1835
        %v1864 = vadd.f32 %v1725, %v1840
        %v1865 = vadd.f32 %v1726, %v1843
        %v1866 = vadd.f32 %v1727, %v1848
        %v1867 = vadd.f32 %v1728, %v1851
        %v1868 = vadd.f32 %v1729, %v1856
        %v1869 = vadd.f32 %v1730, %v1859
        %vm1870 = vcmask 1043456
        %v1871 = vrot.slane %v1324, 4
        %v1872 = vrot.slane %v1325, 4
        %v1873 = vsel %vm1870, %v1871, %v1872
        %v1874 = vrot.slane %v1326, 4
        %v1875 = vrot.slane %v1327, 4
        %v1876 = vsel %vm1870, %v1874, %v1875
        %v1877 = vrot.slane %v1328, 4
        %v1878 = vrot.slane %v1329, 4
        %v1879 = vsel %vm1870, %v1877, %v1878
        %v1880 = vrot.slane %v1330, 4
        %v1881 = vrot.slane %v1331, 4
        %v1882 = vsel %vm1870, %v1880, %v1881
        %v1883 = vrot.slane %v1332, 4
        %v1884 = vrot.slane %v1333, 4
        %v1885 = vsel %vm1870, %v1883, %v1884
        %v1886 = vrot.slane %v1334, 4
        %v1887 = vrot.slane %v1335, 4
        %v1888 = vsel %vm1870, %v1886, %v1887
        %v1889 = vrot.slane %v1336, 4
        %v1890 = vrot.slane %v1337, 4
        %v1891 = vsel %vm1870, %v1889, %v1890
        %v1892 = vrot.slane %v1338, 4
        %v1893 = vrot.slane %v1339, 4
        %v1894 = vsel %vm1870, %v1892, %v1893
        %v1903 = vpack.c.bf16 %v1876, %v1873
        %v1904 = vpack.c.bf16 %v1882, %v1879
        %v1905 = vpack.c.bf16 %v1888, %v1885
        %v1906 = vpack.c.bf16 %v1894, %v1891
        %s1907 = scalar_lea.vmem %s3, 64
        %v1908 = vld [vmem:[%s1907] sm:$0xf]
        %v1909 = vld [vmem:[%s1907 + $0x4] sm:$0xf]
        %v1910 = vld [vmem:[%s1907 + $0x8] sm:$0xf]
        %v1911 = vld [vmem:[%s1907 + $0xc] sm:$0xf]
        %v1916 = vunpack.c.l.b16 %v1908
        %v1917 = vunpack.c.l.b16 %v1909
        %v1918 = vunpack.c.l.b16 %v1910
        %v1919 = vunpack.c.l.b16 %v1911
        %v1920 = vpack.c.b16 %v1917, %v1916
        %v1921 = vpack.c.b16 %v1919, %v1918
        %v1925 = vsel %vm690, %v1903, 0
        %v1928 = vsel %vm690, %v1904, 0
        %v1931 = vsel %vm690, %v1905, 0
        %v1934 = vsel %vm690, %v1906, 0
        %1936 = vmatprep.subr.bf16.mxu0 0
        %1937 = vmatpush1.bf16.msra.mxu0 %v1920
        %1938 = vmatprep.subr.bf16.mxu0 0
        %1939 = vmatpush1.bf16.msra.mxu0 %v1921
        %1940 = vmatprep.subr.bf16.mxu0 0
        %1941 = vmatpush1.bf16.msra.mxu0 0
        %1942 = vmatprep.subr.bf16.mxu0 0
        %1943 = vmatpush1.bf16.msra.mxu0 0
        %1944 = vmatprep.subr.bf16.mxu0 0
        %1945 = vmatpush1.bf16.msra.mxu0 0
        %1946 = vmatprep.subr.bf16.mxu0 0
        %1947 = vmatpush1.bf16.msra.mxu0 0
        %1948 = vmatprep.subr.bf16.mxu0 0
        %1949 = vmatpush1.bf16.msra.mxu0 0
        %1950 = vmatprep.subr.bf16.mxu0 0
        %1951 = vmatpush1.bf16.msra.mxu0 0
        %1952 = vmatprep.subr.bf16.mxu0 0
        %1953 = vmatpush1.bf16.msra.mxu0 0
        %1954 = vmatprep.subr.bf16.mxu0 0
        %1955 = vmatpush1.bf16.msra.mxu0 0
        %1956 = vmatprep.subr.bf16.mxu0 0
        %1957 = vmatpush1.bf16.msra.mxu0 0
        %1958 = vmatprep.subr.bf16.mxu0 0
        %1959 = vmatpush1.bf16.msra.mxu0 0
        %1960 = vmatprep.subr.bf16.mxu0 0
        %1961 = vmatpush1.bf16.msra.mxu0 0
        %1962 = vmatprep.subr.bf16.mxu0 0
        %1963 = vmatpush1.bf16.msra.mxu0 0
        %1964 = vmatprep.subr.bf16.mxu0 0
        %1965 = vmatpush1.bf16.msra.mxu0 0
        %1966 = vmatprep.subr.bf16.mxu0 0
        %1967 = vmatpush1.bf16.msra.mxu0 0
        %1968 = vmatprep.mubr.bf16.mxu0 0
        %1969 = vmatmul.mubr.bf16.gmra.mrb[0].mxu0 %v1925
        %v1970 = vpop.f32.mrb[0].mxu0
        %v1971 = vadd.f32 0.0, %v1970
        %v1972 = vpop.f32.mrb[0].mxu0
        %v1973 = vpop.f32.mrb[0].mxu0
        %v1974 = vadd.f32 0.0, %v1973
        %v1975 = vpop.f32.mrb[0].mxu0
        %1976 = vmatprep.mubr.bf16.mxu0 0
        %1977 = vmatmul.mubr.bf16.gmra.mrb[0].mxu0 %v1928
        %v1978 = vpop.f32.mrb[0].mxu0
        %v1979 = vadd.f32 0.0, %v1978
        %v1980 = vpop.f32.mrb[0].mxu0
        %v1981 = vpop.f32.mrb[0].mxu0
        %v1982 = vadd.f32 0.0, %v1981
        %v1983 = vpop.f32.mrb[0].mxu0
        %1984 = vmatprep.mubr.bf16.mxu0 0
        %1985 = vmatmul.mubr.bf16.gmra.mrb[0].mxu0 %v1931
        %v1986 = vpop.f32.mrb[0].mxu0
        %v1987 = vadd.f32 0.0, %v1986
        %v1988 = vpop.f32.mrb[0].mxu0
        %v1989 = vpop.f32.mrb[0].mxu0
        %v1990 = vadd.f32 0.0, %v1989
        %v1991 = vpop.f32.mrb[0].mxu0
        %1992 = vmatprep.mubr.bf16.mxu0 0
        %1993 = vmatmul.mubr.bf16.gmra.mrb[0].mxu0 %v1934
        %v1994 = vpop.f32.mrb[0].mxu0
        %v1995 = vadd.f32 0.0, %v1994
        %v1996 = vpop.f32.mrb[0].mxu0
        %v1997 = vpop.f32.mrb[0].mxu0
        %v1998 = vadd.f32 0.0, %v1997
        %v1999 = vpop.f32.mrb[0].mxu0
        %2000 = vdwg.mxu0
        %v2001 = vadd.f32 %v1862, %v1971
        %v2002 = vadd.f32 %v1863, %v1974
        %v2003 = vadd.f32 %v1864, %v1979
        %v2004 = vadd.f32 %v1865, %v1982
        %v2005 = vadd.f32 %v1866, %v1987
        %v2006 = vadd.f32 %v1867, %v1990
        %v2007 = vadd.f32 %v1868, %v1995
        %v2008 = vadd.f32 %v1869, %v1998
        %v2009 = vpack.c.bf16 %v1328, %v1326
        %v2010 = vpack.c.bf16 %v1332, %v1330
        %v2011 = vpack.c.bf16 %v1336, %v1334
        %v2012 = vpack.c.bf16 %v1340, %v1338
        %s2013 = scalar_lea.vmem %s3, 80
        %v2014 = vld [vmem:[%s2013] sm:$0xf]
        %v2015 = vld [vmem:[%s2013 + $0x4] sm:$0xf]
        %v2016 = vld [vmem:[%s2013 + $0x8] sm:$0xf]
        %v2017 = vld [vmem:[%s2013 + $0xc] sm:$0xf]
        %v2022 = vunpack.c.l.b16 %v2014
        %v2023 = vunpack.c.l.b16 %v2015
        %v2024 = vunpack.c.l.b16 %v2016
        %v2025 = vunpack.c.l.b16 %v2017
        %v2026 = vpack.c.b16 %v2023, %v2022
        %v2027 = vpack.c.b16 %v2025, %v2024
        %v2031 = vsel %vm690, %v2009, 0
        %v2034 = vsel %vm690, %v2010, 0
        %v2037 = vsel %vm690, %v2011, 0
        %v2040 = vsel %vm690, %v2012, 0
        %2042 = vmatprep.subr.bf16.mxu0 0
        %2043 = vmatpush1.bf16.msra.mxu0 %v2026
        %2044 = vmatprep.subr.bf16.mxu0 0
        %2045 = vmatpush1.bf16.msra.mxu0 %v2027
        %2046 = vmatprep.subr.bf16.mxu0 0
        %2047 = vmatpush1.bf16.msra.mxu0 0
        %2048 = vmatprep.subr.bf16.mxu0 0
        %2049 = vmatpush1.bf16.msra.mxu0 0
        %2050 = vmatprep.subr.bf16.mxu0 0
        %2051 = vmatpush1.bf16.msra.mxu0 0
        %2052 = vmatprep.subr.bf16.mxu0 0
        %2053 = vmatpush1.bf16.msra.mxu0 0
        %2054 = vmatprep.subr.bf16.mxu0 0
        %2055 = vmatpush1.bf16.msra.mxu0 0
        %2056 = vmatprep.subr.bf16.mxu0 0
        %2057 = vmatpush1.bf16.msra.mxu0 0
        %2058 = vmatprep.subr.bf16.mxu0 0
        %2059 = vmatpush1.bf16.msra.mxu0 0
        %2060 = vmatprep.subr.bf16.mxu0 0
        %2061 = vmatpush1.bf16.msra.mxu0 0
        %2062 = vmatprep.subr.bf16.mxu0 0
        %2063 = vmatpush1.bf16.msra.mxu0 0
        %2064 = vmatprep.subr.bf16.mxu0 0
        %2065 = vmatpush1.bf16.msra.mxu0 0
        %2066 = vmatprep.subr.bf16.mxu0 0
        %2067 = vmatpush1.bf16.msra.mxu0 0
        %2068 = vmatprep.subr.bf16.mxu0 0
        %2069 = vmatpush1.bf16.msra.mxu0 0
        %2070 = vmatprep.subr.bf16.mxu0 0
        %2071 = vmatpush1.bf16.msra.mxu0 0
        %2072 = vmatprep.subr.bf16.mxu0 0
        %2073 = vmatpush1.bf16.msra.mxu0 0
        %2074 = vmatprep.mubr.bf16.mxu0 0
        %2075 = vmatmul.mubr.bf16.gmra.mrb[0].mxu0 %v2031
        %v2076 = vpop.f32.mrb[0].mxu0
        %v2077 = vadd.f32 0.0, %v2076
        %v2078 = vpop.f32.mrb[0].mxu0
        %v2079 = vpop.f32.mrb[0].mxu0
        %v2080 = vadd.f32 0.0, %v2079
        %v2081 = vpop.f32.mrb[0].mxu0
        %2082 = vmatprep.mubr.bf16.mxu0 0
        %2083 = vmatmul.mubr.bf16.gmra.mrb[0].mxu0 %v2034
        %v2084 = vpop.f32.mrb[0].mxu0
        %v2085 = vadd.f32 0.0, %v2084
        %v2086 = vpop.f32.mrb[0].mxu0
        %v2087 = vpop.f32.mrb[0].mxu0
        %v2088 = vadd.f32 0.0, %v2087
        %v2089 = vpop.f32.mrb[0].mxu0
        %2090 = vmatprep.mubr.bf16.mxu0 0
        %2091 = vmatmul.mubr.bf16.gmra.mrb[0].mxu0 %v2037
        %v2092 = vpop.f32.mrb[0].mxu0
        %v2093 = vadd.f32 0.0, %v2092
        %v2094 = vpop.f32.mrb[0].mxu0
        %v2095 = vpop.f32.mrb[0].mxu0
        %v2096 = vadd.f32 0.0, %v2095
        %v2097 = vpop.f32.mrb[0].mxu0
        %2098 = vmatprep.mubr.bf16.mxu0 0
        %2099 = vmatmul.mubr.bf16.gmra.mrb[0].mxu0 %v2040
        %v2100 = vpop.f32.mrb[0].mxu0
        %v2101 = vadd.f32 0.0, %v2100
        %v2102 = vpop.f32.mrb[0].mxu0
        %v2103 = vpop.f32.mrb[0].mxu0
        %v2104 = vadd.f32 0.0, %v2103
        %v2105 = vpop.f32.mrb[0].mxu0
        %2106 = vdwg.mxu0
        %v2107 = vadd.f32 %v2001, %v2077
        %v2108 = vadd.f32 %v2002, %v2080
        %v2109 = vadd.f32 %v2003, %v2085
        %v2110 = vadd.f32 %v2004, %v2088
        %v2111 = vadd.f32 %v2005, %v2093
        %v2112 = vadd.f32 %v2006, %v2096
        %v2113 = vadd.f32 %v2007, %v2101
        %v2114 = vadd.f32 %v2008, %v2104
        %v2117 = vrot.slane %v1340, 1
        %v2118 = vrot.slane %v1341, 1
        %v2119 = vsel %vm1372, %v2117, %v2118
        %v2121 = vpack.c.bf16 %v1381, %v1378
        %v2122 = vpack.c.bf16 %v1387, %v1384
        %v2123 = vpack.c.bf16 %v1393, %v1390
        %v2124 = vpack.c.bf16 %v2119, %v1396
        %s2125 = scalar_lea.vmem %s3, 96
        %v2126 = vld [vmem:[%s2125] sm:$0xf]
        %v2127 = vld [vmem:[%s2125 + $0x4] sm:$0xf]
        %v2128 = vld [vmem:[%s2125 + $0x8] sm:$0xf]
        %v2129 = vld [vmem:[%s2125 + $0xc] sm:$0xf]
        %v2134 = vunpack.c.l.b16 %v2126
        %v2135 = vunpack.c.l.b16 %v2127
        %v2136 = vunpack.c.l.b16 %v2128
        %v2137 = vunpack.c.l.b16 %v2129
        %v2138 = vpack.c.b16 %v2135, %v2134
        %v2139 = vpack.c.b16 %v2137, %v2136
        %v2143 = vsel %vm690, %v2121, 0
        %v2146 = vsel %vm690, %v2122, 0
        %v2149 = vsel %vm690, %v2123, 0
        %v2152 = vsel %vm690, %v2124, 0
        %2154 = vmatprep.subr.bf16.mxu0 0
        %2155 = vmatpush1.bf16.msra.mxu0 %v2138
        %2156 = vmatprep.subr.bf16.mxu0 0
        %2157 = vmatpush1.bf16.msra.mxu0 %v2139
        %2158 = vmatprep.subr.bf16.mxu0 0
        %2159 = vmatpush1.bf16.msra.mxu0 0
        %2160 = vmatprep.subr.bf16.mxu0 0
        %2161 = vmatpush1.bf16.msra.mxu0 0
        %2162 = vmatprep.subr.bf16.mxu0 0
        %2163 = vmatpush1.bf16.msra.mxu0 0
        %2164 = vmatprep.subr.bf16.mxu0 0
        %2165 = vmatpush1.bf16.msra.mxu0 0
        %2166 = vmatprep.subr.bf16.mxu0 0
        %2167 = vmatpush1.bf16.msra.mxu0 0
        %2168 = vmatprep.subr.bf16.mxu0 0
        %2169 = vmatpush1.bf16.msra.mxu0 0
        %2170 = vmatprep.subr.bf16.mxu0 0
        %2171 = vmatpush1.bf16.msra.mxu0 0
        %2172 = vmatprep.subr.bf16.mxu0 0
        %2173 = vmatpush1.bf16.msra.mxu0 0
        %2174 = vmatprep.subr.bf16.mxu0 0
        %2175 = vmatpush1.bf16.msra.mxu0 0
        %2176 = vmatprep.subr.bf16.mxu0 0
        %2177 = vmatpush1.bf16.msra.mxu0 0
        %2178 = vmatprep.subr.bf16.mxu0 0
        %2179 = vmatpush1.bf16.msra.mxu0 0
        %2180 = vmatprep.subr.bf16.mxu0 0
        %2181 = vmatpush1.bf16.msra.mxu0 0
        %2182 = vmatprep.subr.bf16.mxu0 0
        %2183 = vmatpush1.bf16.msra.mxu0 0
        %2184 = vmatprep.subr.bf16.mxu0 0
        %2185 = vmatpush1.bf16.msra.mxu0 0
        %2186 = vmatprep.mubr.bf16.mxu0 0
        %2187 = vmatmul.mubr.bf16.gmra.mrb[0].mxu0 %v2143
        %v2188 = vpop.f32.mrb[0].mxu0
        %v2189 = vadd.f32 0.0, %v2188
        %v2190 = vpop.f32.mrb[0].mxu0
        %v2191 = vpop.f32.mrb[0].mxu0
        %v2192 = vadd.f32 0.0, %v2191
        %v2193 = vpop.f32.mrb[0].mxu0
        %2194 = vmatprep.mubr.bf16.mxu0 0
        %2195 = vmatmul.mubr.bf16.gmra.mrb[0].mxu0 %v2146
        %v2196 = vpop.f32.mrb[0].mxu0
        %v2197 = vadd.f32 0.0, %v2196
        %v2198 = vpop.f32.mrb[0].mxu0
        %v2199 = vpop.f32.mrb[0].mxu0
        %v2200 = vadd.f32 0.0, %v2199
        %v2201 = vpop.f32.mrb[0].mxu0
        %2202 = vmatprep.mubr.bf16.mxu0 0
        %2203 = vmatmul.mubr.bf16.gmra.mrb[0].mxu0 %v2149
        %v2204 = vpop.f32.mrb[0].mxu0
        %v2205 = vadd.f32 0.0, %v2204
        %v2206 = vpop.f32.mrb[0].mxu0
        %v2207 = vpop.f32.mrb[0].mxu0
        %v2208 = vadd.f32 0.0, %v2207
        %v2209 = vpop.f32.mrb[0].mxu0
        %2210 = vmatprep.mubr.bf16.mxu0 0
        %2211 = vmatmul.mubr.bf16.gmra.mrb[0].mxu0 %v2152
        %v2212 = vpop.f32.mrb[0].mxu0
        %v2213 = vadd.f32 0.0, %v2212
        %v2214 = vpop.f32.mrb[0].mxu0
        %v2215 = vpop.f32.mrb[0].mxu0
        %v2216 = vadd.f32 0.0, %v2215
        %v2217 = vpop.f32.mrb[0].mxu0
        %2218 = vdwg.mxu0
        %v2219 = vadd.f32 %v2107, %v2189
        %v2220 = vadd.f32 %v2108, %v2192
        %v2221 = vadd.f32 %v2109, %v2197
        %v2222 = vadd.f32 %v2110, %v2200
        %v2223 = vadd.f32 %v2111, %v2205
        %v2224 = vadd.f32 %v2112, %v2208
        %v2225 = vadd.f32 %v2113, %v2213
        %v2226 = vadd.f32 %v2114, %v2216
        %v2227 = vrot.slane %v1340, 2
        %v2228 = vrot.slane %v1341, 2
        %v2229 = vsel %vm1592, %v2227, %v2228
        %v2231 = vpack.c.bf16 %v1601, %v1598
        %v2232 = vpack.c.bf16 %v1607, %v1604
        %v2233 = vpack.c.bf16 %v1613, %v1610
        %v2234 = vpack.c.bf16 %v2229, %v1616
        %s2235 = scalar_lea.vmem %s3, 112
        %v2236 = vld [vmem:[%s2235] sm:$0xf]
        %v2237 = vld [vmem:[%s2235 + $0x4] sm:$0xf]
        %v2238 = vld [vmem:[%s2235 + $0x8] sm:$0xf]
        %v2239 = vld [vmem:[%s2235 + $0xc] sm:$0xf]
        %v2244 = vunpack.c.l.b16 %v2236
        %v2245 = vunpack.c.l.b16 %v2237
        %v2246 = vunpack.c.l.b16 %v2238
        %v2247 = vunpack.c.l.b16 %v2239
        %v2248 = vpack.c.b16 %v2245, %v2244
        %v2249 = vpack.c.b16 %v2247, %v2246
        %v2253 = vsel %vm690, %v2231, 0
        %v2256 = vsel %vm690, %v2232, 0
        %v2259 = vsel %vm690, %v2233, 0
        %v2262 = vsel %vm690, %v2234, 0
        %2264 = vmatprep.subr.bf16.mxu0 0
        %2265 = vmatpush1.bf16.msra.mxu0 %v2248
        %2266 = vmatprep.subr.bf16.mxu0 0
        %2267 = vmatpush1.bf16.msra.mxu0 %v2249
        %2268 = vmatprep.subr.bf16.mxu0 0
        %2269 = vmatpush1.bf16.msra.mxu0 0
        %2270 = vmatprep.subr.bf16.mxu0 0
        %2271 = vmatpush1.bf16.msra.mxu0 0
        %2272 = vmatprep.subr.bf16.mxu0 0
        %2273 = vmatpush1.bf16.msra.mxu0 0
        %2274 = vmatprep.subr.bf16.mxu0 0
        %2275 = vmatpush1.bf16.msra.mxu0 0
        %2276 = vmatprep.subr.bf16.mxu0 0
        %2277 = vmatpush1.bf16.msra.mxu0 0
        %2278 = vmatprep.subr.bf16.mxu0 0
        %2279 = vmatpush1.bf16.msra.mxu0 0
        %2280 = vmatprep.subr.bf16.mxu0 0
        %2281 = vmatpush1.bf16.msra.mxu0 0
        %2282 = vmatprep.subr.bf16.mxu0 0
        %2283 = vmatpush1.bf16.msra.mxu0 0
        %2284 = vmatprep.subr.bf16.mxu0 0
        %2285 = vmatpush1.bf16.msra.mxu0 0
        %2286 = vmatprep.subr.bf16.mxu0 0
        %2287 = vmatpush1.bf16.msra.mxu0 0
        %2288 = vmatprep.subr.bf16.mxu0 0
        %2289 = vmatpush1.bf16.msra.mxu0 0
        %2290 = vmatprep.subr.bf16.mxu0 0
        %2291 = vmatpush1.bf16.msra.mxu0 0
        %2292 = vmatprep.subr.bf16.mxu0 0
        %2293 = vmatpush1.bf16.msra.mxu0 0
        %2294 = vmatprep.subr.bf16.mxu0 0
        %2295 = vmatpush1.bf16.msra.mxu0 0
        %2296 = vmatprep.mubr.bf16.mxu0 0
        %2297 = vmatmul.mubr.bf16.gmra.mrb[0].mxu0 %v2253
        %v2298 = vpop.f32.mrb[0].mxu0
        %v2299 = vadd.f32 0.0, %v2298
        %v2300 = vpop.f32.mrb[0].mxu0
        %v2301 = vpop.f32.mrb[0].mxu0
        %v2302 = vadd.f32 0.0, %v2301
        %v2303 = vpop.f32.mrb[0].mxu0
        %2304 = vmatprep.mubr.bf16.mxu0 0
        %2305 = vmatmul.mubr.bf16.gmra.mrb[0].mxu0 %v2256
        %v2306 = vpop.f32.mrb[0].mxu0
        %v2307 = vadd.f32 0.0, %v2306
        %v2308 = vpop.f32.mrb[0].mxu0
        %v2309 = vpop.f32.mrb[0].mxu0
        %v2310 = vadd.f32 0.0, %v2309
        %v2311 = vpop.f32.mrb[0].mxu0
        %2312 = vmatprep.mubr.bf16.mxu0 0
        %2313 = vmatmul.mubr.bf16.gmra.mrb[0].mxu0 %v2259
        %v2314 = vpop.f32.mrb[0].mxu0
        %v2315 = vadd.f32 0.0, %v2314
        %v2316 = vpop.f32.mrb[0].mxu0
        %v2317 = vpop.f32.mrb[0].mxu0
        %v2318 = vadd.f32 0.0, %v2317
        %v2319 = vpop.f32.mrb[0].mxu0
        %2320 = vmatprep.mubr.bf16.mxu0 0
        %2321 = vmatmul.mubr.bf16.gmra.mrb[0].mxu0 %v2262
        %v2322 = vpop.f32.mrb[0].mxu0
        %v2323 = vadd.f32 0.0, %v2322
        %v2324 = vpop.f32.mrb[0].mxu0
        %v2325 = vpop.f32.mrb[0].mxu0
        %v2326 = vadd.f32 0.0, %v2325
        %v2327 = vpop.f32.mrb[0].mxu0
        %2328 = vdwg.mxu0
        %v2329 = vadd.f32 %v2219, %v2299
        %v2330 = vadd.f32 %v2220, %v2302
        %v2331 = vadd.f32 %v2221, %v2307
        %v2332 = vadd.f32 %v2222, %v2310
        %v2333 = vadd.f32 %v2223, %v2315
        %v2334 = vadd.f32 %v2224, %v2318
        %v2335 = vadd.f32 %v2225, %v2323
        %v2336 = vadd.f32 %v2226, %v2326
        %v2337 = vrot.slane %v1340, 3
        %v2338 = vrot.slane %v1341, 3
        %v2339 = vsel %vm1731, %v2337, %v2338
        %v2341 = vpack.c.bf16 %v1740, %v1737
        %v2342 = vpack.c.bf16 %v1746, %v1743
        %v2343 = vpack.c.bf16 %v1752, %v1749
        %v2344 = vpack.c.bf16 %v2339, %v1755
        %s2345 = scalar_lea.vmem %s3, 128
        %v2346 = vld [vmem:[%s2345] sm:$0xf]
        %v2347 = vld [vmem:[%s2345 + $0x4] sm:$0xf]
        %v2348 = vld [vmem:[%s2345 + $0x8] sm:$0xf]
        %v2349 = vld [vmem:[%s2345 + $0xc] sm:$0xf]
        %v2354 = vunpack.c.l.b16 %v2346
        %v2355 = vunpack.c.l.b16 %v2347
        %v2356 = vunpack.c.l.b16 %v2348
        %v2357 = vunpack.c.l.b16 %v2349
        %v2358 = vpack.c.b16 %v2355, %v2354
        %v2359 = vpack.c.b16 %v2357, %v2356
        %v2363 = vsel %vm690, %v2341, 0
        %v2366 = vsel %vm690, %v2342, 0
        %v2369 = vsel %vm690, %v2343, 0
        %v2372 = vsel %vm690, %v2344, 0
        %2374 = vmatprep.subr.bf16.mxu0 0
        %2375 = vmatpush1.bf16.msra.mxu0 %v2358
        %2376 = vmatprep.subr.bf16.mxu0 0
        %2377 = vmatpush1.bf16.msra.mxu0 %v2359
        %2378 = vmatprep.subr.bf16.mxu0 0
        %2379 = vmatpush1.bf16.msra.mxu0 0
        %2380 = vmatprep.subr.bf16.mxu0 0
        %2381 = vmatpush1.bf16.msra.mxu0 0
        %2382 = vmatprep.subr.bf16.mxu0 0
        %2383 = vmatpush1.bf16.msra.mxu0 0
        %2384 = vmatprep.subr.bf16.mxu0 0
        %2385 = vmatpush1.bf16.msra.mxu0 0
        %2386 = vmatprep.subr.bf16.mxu0 0
        %2387 = vmatpush1.bf16.msra.mxu0 0
        %2388 = vmatprep.subr.bf16.mxu0 0
        %2389 = vmatpush1.bf16.msra.mxu0 0
        %2390 = vmatprep.subr.bf16.mxu0 0
        %2391 = vmatpush1.bf16.msra.mxu0 0
        %2392 = vmatprep.subr.bf16.mxu0 0
        %2393 = vmatpush1.bf16.msra.mxu0 0
        %2394 = vmatprep.subr.bf16.mxu0 0
        %2395 = vmatpush1.bf16.msra.mxu0 0
        %2396 = vmatprep.subr.bf16.mxu0 0
        %2397 = vmatpush1.bf16.msra.mxu0 0
        %2398 = vmatprep.subr.bf16.mxu0 0
        %2399 = vmatpush1.bf16.msra.mxu0 0
        %2400 = vmatprep.subr.bf16.mxu0 0
        %2401 = vmatpush1.bf16.msra.mxu0 0
        %2402 = vmatprep.subr.bf16.mxu0 0
        %2403 = vmatpush1.bf16.msra.mxu0 0
        %2404 = vmatprep.subr.bf16.mxu0 0
        %2405 = vmatpush1.bf16.msra.mxu0 0
        %2406 = vmatprep.mubr.bf16.mxu0 0
        %2407 = vmatmul.mubr.bf16.gmra.mrb[0].mxu0 %v2363
        %v2408 = vpop.f32.mrb[0].mxu0
        %v2409 = vadd.f32 0.0, %v2408
        %v2410 = vpop.f32.mrb[0].mxu0
        %v2411 = vpop.f32.mrb[0].mxu0
        %v2412 = vadd.f32 0.0, %v2411
        %v2413 = vpop.f32.mrb[0].mxu0
        %2414 = vmatprep.mubr.bf16.mxu0 0
        %2415 = vmatmul.mubr.bf16.gmra.mrb[0].mxu0 %v2366
        %v2416 = vpop.f32.mrb[0].mxu0
        %v2417 = vadd.f32 0.0, %v2416
        %v2418 = vpop.f32.mrb[0].mxu0
        %v2419 = vpop.f32.mrb[0].mxu0
        %v2420 = vadd.f32 0.0, %v2419
        %v2421 = vpop.f32.mrb[0].mxu0
        %2422 = vmatprep.mubr.bf16.mxu0 0
        %2423 = vmatmul.mubr.bf16.gmra.mrb[0].mxu0 %v2369
        %v2424 = vpop.f32.mrb[0].mxu0
        %v2425 = vadd.f32 0.0, %v2424
        %v2426 = vpop.f32.mrb[0].mxu0
        %v2427 = vpop.f32.mrb[0].mxu0
        %v2428 = vadd.f32 0.0, %v2427
        %v2429 = vpop.f32.mrb[0].mxu0
        %2430 = vmatprep.mubr.bf16.mxu0 0
        %2431 = vmatmul.mubr.bf16.gmra.mrb[0].mxu0 %v2372
        %v2432 = vpop.f32.mrb[0].mxu0
        %v2433 = vadd.f32 0.0, %v2432
        %v2434 = vpop.f32.mrb[0].mxu0
        %v2435 = vpop.f32.mrb[0].mxu0
        %v2436 = vadd.f32 0.0, %v2435
        %v2437 = vpop.f32.mrb[0].mxu0
        %2438 = vdwg.mxu0
        %v2439 = vadd.f32 %v2329, %v2409
        %v2440 = vadd.f32 %v2330, %v2412
        %v2441 = vadd.f32 %v2331, %v2417
        %v2442 = vadd.f32 %v2332, %v2420
        %v2443 = vadd.f32 %v2333, %v2425
        %v2444 = vadd.f32 %v2334, %v2428
        %v2445 = vadd.f32 %v2335, %v2433
        %v2446 = vadd.f32 %v2336, %v2436
        %v2447 = vrot.slane %v1340, 4
        %v2448 = vrot.slane %v1341, 4
        %v2449 = vsel %vm1870, %v2447, %v2448
        %v2451 = vpack.c.bf16 %v1879, %v1876
        %v2452 = vpack.c.bf16 %v1885, %v1882
        %v2453 = vpack.c.bf16 %v1891, %v1888
        %v2454 = vpack.c.bf16 %v2449, %v1894
        %s2455 = scalar_lea.vmem %s3, 144
        %v2456 = vld [vmem:[%s2455] sm:$0xf]
        %v2457 = vld [vmem:[%s2455 + $0x4] sm:$0xf]
        %v2458 = vld [vmem:[%s2455 + $0x8] sm:$0xf]
        %v2459 = vld [vmem:[%s2455 + $0xc] sm:$0xf]
        %v2464 = vunpack.c.l.b16 %v2456
        %v2465 = vunpack.c.l.b16 %v2457
        %v2466 = vunpack.c.l.b16 %v2458
        %v2467 = vunpack.c.l.b16 %v2459
        %v2468 = vpack.c.b16 %v2465, %v2464
        %v2469 = vpack.c.b16 %v2467, %v2466
        %v2473 = vsel %vm690, %v2451, 0
        %v2476 = vsel %vm690, %v2452, 0
        %v2479 = vsel %vm690, %v2453, 0
        %v2482 = vsel %vm690, %v2454, 0
        %2484 = vmatprep.subr.bf16.mxu0 0
        %2485 = vmatpush1.bf16.msra.mxu0 %v2468
        %2486 = vmatprep.subr.bf16.mxu0 0
        %2487 = vmatpush1.bf16.msra.mxu0 %v2469
        %2488 = vmatprep.subr.bf16.mxu0 0
        %2489 = vmatpush1.bf16.msra.mxu0 0
        %2490 = vmatprep.subr.bf16.mxu0 0
        %2491 = vmatpush1.bf16.msra.mxu0 0
        %2492 = vmatprep.subr.bf16.mxu0 0
        %2493 = vmatpush1.bf16.msra.mxu0 0
        %2494 = vmatprep.subr.bf16.mxu0 0
        %2495 = vmatpush1.bf16.msra.mxu0 0
        %2496 = vmatprep.subr.bf16.mxu0 0
        %2497 = vmatpush1.bf16.msra.mxu0 0
        %2498 = vmatprep.subr.bf16.mxu0 0
        %2499 = vmatpush1.bf16.msra.mxu0 0
        %2500 = vmatprep.subr.bf16.mxu0 0
        %2501 = vmatpush1.bf16.msra.mxu0 0
        %2502 = vmatprep.subr.bf16.mxu0 0
        %2503 = vmatpush1.bf16.msra.mxu0 0
        %2504 = vmatprep.subr.bf16.mxu0 0
        %2505 = vmatpush1.bf16.msra.mxu0 0
        %2506 = vmatprep.subr.bf16.mxu0 0
        %2507 = vmatpush1.bf16.msra.mxu0 0
        %2508 = vmatprep.subr.bf16.mxu0 0
        %2509 = vmatpush1.bf16.msra.mxu0 0
        %2510 = vmatprep.subr.bf16.mxu0 0
        %2511 = vmatpush1.bf16.msra.mxu0 0
        %2512 = vmatprep.subr.bf16.mxu0 0
        %2513 = vmatpush1.bf16.msra.mxu0 0
        %2514 = vmatprep.subr.bf16.mxu0 0
        %2515 = vmatpush1.bf16.msra.mxu0 0
        %2516 = vmatprep.mubr.bf16.mxu0 0
        %2517 = vmatmul.mubr.bf16.gmra.mrb[0].mxu0 %v2473
        %v2518 = vpop.f32.mrb[0].mxu0
        %v2519 = vadd.f32 0.0, %v2518
        %v2520 = vpop.f32.mrb[0].mxu0
        %v2521 = vpop.f32.mrb[0].mxu0
        %v2522 = vadd.f32 0.0, %v2521
        %v2523 = vpop.f32.mrb[0].mxu0
        %2524 = vmatprep.mubr.bf16.mxu0 0
        %2525 = vmatmul.mubr.bf16.gmra.mrb[0].mxu0 %v2476
        %v2526 = vpop.f32.mrb[0].mxu0
        %v2527 = vadd.f32 0.0, %v2526
        %v2528 = vpop.f32.mrb[0].mxu0
        %v2529 = vpop.f32.mrb[0].mxu0
        %v2530 = vadd.f32 0.0, %v2529
        %v2531 = vpop.f32.mrb[0].mxu0
        %2532 = vmatprep.mubr.bf16.mxu0 0
        %2533 = vmatmul.mubr.bf16.gmra.mrb[0].mxu0 %v2479
        %v2534 = vpop.f32.mrb[0].mxu0
        %v2535 = vadd.f32 0.0, %v2534
        %v2536 = vpop.f32.mrb[0].mxu0
        %v2537 = vpop.f32.mrb[0].mxu0
        %v2538 = vadd.f32 0.0, %v2537
        %v2539 = vpop.f32.mrb[0].mxu0
        %2540 = vmatprep.mubr.bf16.mxu0 0
        %2541 = vmatmul.mubr.bf16.gmra.mrb[0].mxu0 %v2482
        %v2542 = vpop.f32.mrb[0].mxu0
        %v2543 = vadd.f32 0.0, %v2542
        %v2544 = vpop.f32.mrb[0].mxu0
        %v2545 = vpop.f32.mrb[0].mxu0
        %v2546 = vadd.f32 0.0, %v2545
        %v2547 = vpop.f32.mrb[0].mxu0
        %2548 = vdwg.mxu0
        %v2549 = vadd.f32 %v2439, %v2519
        %v2550 = vadd.f32 %v2440, %v2522
        %v2551 = vadd.f32 %v2441, %v2527
        %v2552 = vadd.f32 %v2442, %v2530
        %v2553 = vadd.f32 %v2443, %v2535
        %v2554 = vadd.f32 %v2444, %v2538
        %v2555 = vadd.f32 %v2445, %v2543
        %v2556 = vadd.f32 %v2446, %v2546
        %v2557 = vpack.c.bf16 %v1342, %v1340
        %s2558 = scalar_lea.vmem %s3, 160
        %v2559 = vld [vmem:[%s2558] sm:$0xf]
        %v2560 = vld [vmem:[%s2558 + $0x4] sm:$0xf]
        %v2561 = vld [vmem:[%s2558 + $0x8] sm:$0xf]
        %v2562 = vld [vmem:[%s2558 + $0xc] sm:$0xf]
        %v2567 = vunpack.c.l.b16 %v2559
        %v2568 = vunpack.c.l.b16 %v2560
        %v2569 = vunpack.c.l.b16 %v2561
        %v2570 = vunpack.c.l.b16 %v2562
        %v2571 = vpack.c.b16 %v2568, %v2567
        %v2572 = vpack.c.b16 %v2570, %v2569
        %v2576 = vsel %vm690, %v2557, 0
        %2578 = vmatprep.subr.bf16.mxu0 0
        %2579 = vmatpush1.bf16.msra.mxu0 %v2571
        %2580 = vmatprep.subr.bf16.mxu0 0
        %2581 = vmatpush1.bf16.msra.mxu0 %v2572
        %2582 = vmatprep.subr.bf16.mxu0 0
        %2583 = vmatpush1.bf16.msra.mxu0 0
        %2584 = vmatprep.subr.bf16.mxu0 0
        %2585 = vmatpush1.bf16.msra.mxu0 0
        %2586 = vmatprep.subr.bf16.mxu0 0
        %2587 = vmatpush1.bf16.msra.mxu0 0
        %2588 = vmatprep.subr.bf16.mxu0 0
        %2589 = vmatpush1.bf16.msra.mxu0 0
        %2590 = vmatprep.subr.bf16.mxu0 0
        %2591 = vmatpush1.bf16.msra.mxu0 0
        %2592 = vmatprep.subr.bf16.mxu0 0
        %2593 = vmatpush1.bf16.msra.mxu0 0
        %2594 = vmatprep.subr.bf16.mxu0 0
        %2595 = vmatpush1.bf16.msra.mxu0 0
        %2596 = vmatprep.subr.bf16.mxu0 0
        %2597 = vmatpush1.bf16.msra.mxu0 0
        %2598 = vmatprep.subr.bf16.mxu0 0
        %2599 = vmatpush1.bf16.msra.mxu0 0
        %2600 = vmatprep.subr.bf16.mxu0 0
        %2601 = vmatpush1.bf16.msra.mxu0 0
        %2602 = vmatprep.subr.bf16.mxu0 0
        %2603 = vmatpush1.bf16.msra.mxu0 0
        %2604 = vmatprep.subr.bf16.mxu0 0
        %2605 = vmatpush1.bf16.msra.mxu0 0
        %2606 = vmatprep.subr.bf16.mxu0 0
        %2607 = vmatpush1.bf16.msra.mxu0 0
        %2608 = vmatprep.subr.bf16.mxu0 0
        %2609 = vmatpush1.bf16.msra.mxu0 0
        %2610 = vmatprep.mubr.bf16.mxu0 0
        %2611 = vmatmul.mubr.bf16.gmra.mrb[0].mxu0 %v1519
        %v2612 = vpop.f32.mrb[0].mxu0
        %v2613 = vadd.f32 0.0, %v2612
        %v2614 = vpop.f32.mrb[0].mxu0
        %v2615 = vpop.f32.mrb[0].mxu0
        %v2616 = vadd.f32 0.0, %v2615
        %v2617 = vpop.f32.mrb[0].mxu0
        %2618 = vmatprep.mubr.bf16.mxu0 0
        %2619 = vmatmul.mubr.bf16.gmra.mrb[0].mxu0 %v1522
        %v2620 = vpop.f32.mrb[0].mxu0
        %v2621 = vadd.f32 0.0, %v2620
        %v2622 = vpop.f32.mrb[0].mxu0
        %v2623 = vpop.f32.mrb[0].mxu0
        %v2624 = vadd.f32 0.0, %v2623
        %v2625 = vpop.f32.mrb[0].mxu0
        %2626 = vmatprep.mubr.bf16.mxu0 0
        %2627 = vmatmul.mubr.bf16.gmra.mrb[0].mxu0 %v1525
        %v2628 = vpop.f32.mrb[0].mxu0
        %v2629 = vadd.f32 0.0, %v2628
        %v2630 = vpop.f32.mrb[0].mxu0
        %v2631 = vpop.f32.mrb[0].mxu0
        %v2632 = vadd.f32 0.0, %v2631
        %v2633 = vpop.f32.mrb[0].mxu0
        %2634 = vmatprep.mubr.bf16.mxu0 0
        %2635 = vmatmul.mubr.bf16.gmra.mrb[0].mxu0 %v2576
        %v2636 = vpop.f32.mrb[0].mxu0
        %v2637 = vadd.f32 0.0, %v2636
        %v2638 = vpop.f32.mrb[0].mxu0
        %v2639 = vpop.f32.mrb[0].mxu0
        %v2640 = vadd.f32 0.0, %v2639
        %v2641 = vpop.f32.mrb[0].mxu0
        %2642 = vdwg.mxu0
        %v2643 = vadd.f32 %v2549, %v2613
        %v2644 = vadd.f32 %v2550, %v2616
        %v2645 = vadd.f32 %v2551, %v2621
        %v2646 = vadd.f32 %v2552, %v2624
        %v2647 = vadd.f32 %v2553, %v2629
        %v2648 = vadd.f32 %v2554, %v2632
        %v2649 = vadd.f32 %v2555, %v2637
        %v2650 = vadd.f32 %v2556, %v2640
        %v2653 = vrot.slane %v1342, 1
        %v2654 = vrot.slane %v1343, 1
        %v2655 = vsel %vm1372, %v2653, %v2654
        %v2657 = vpack.c.bf16 %v2655, %v2119
        %s2658 = scalar_lea.vmem %s3, 176
        %v2659 = vld [vmem:[%s2658] sm:$0xf]
        %v2660 = vld [vmem:[%s2658 + $0x4] sm:$0xf]
        %v2661 = vld [vmem:[%s2658 + $0x8] sm:$0xf]
        %v2662 = vld [vmem:[%s2658 + $0xc] sm:$0xf]
        %v2667 = vunpack.c.l.b16 %v2659
        %v2668 = vunpack.c.l.b16 %v2660
        %v2669 = vunpack.c.l.b16 %v2661
        %v2670 = vunpack.c.l.b16 %v2662
        %v2671 = vpack.c.b16 %v2668, %v2667
        %v2672 = vpack.c.b16 %v2670, %v2669
        %v2676 = vsel %vm690, %v2657, 0
        %2678 = vmatprep.subr.bf16.mxu0 0
        %2679 = vmatpush1.bf16.msra.mxu0 %v2671
        %2680 = vmatprep.subr.bf16.mxu0 0
        %2681 = vmatpush1.bf16.msra.mxu0 %v2672
        %2682 = vmatprep.subr.bf16.mxu0 0
        %2683 = vmatpush1.bf16.msra.mxu0 0
        %2684 = vmatprep.subr.bf16.mxu0 0
        %2685 = vmatpush1.bf16.msra.mxu0 0
        %2686 = vmatprep.subr.bf16.mxu0 0
        %2687 = vmatpush1.bf16.msra.mxu0 0
        %2688 = vmatprep.subr.bf16.mxu0 0
        %2689 = vmatpush1.bf16.msra.mxu0 0
        %2690 = vmatprep.subr.bf16.mxu0 0
        %2691 = vmatpush1.bf16.msra.mxu0 0
        %2692 = vmatprep.subr.bf16.mxu0 0
        %2693 = vmatpush1.bf16.msra.mxu0 0
        %2694 = vmatprep.subr.bf16.mxu0 0
        %2695 = vmatpush1.bf16.msra.mxu0 0
        %2696 = vmatprep.subr.bf16.mxu0 0
        %2697 = vmatpush1.bf16.msra.mxu0 0
        %2698 = vmatprep.subr.bf16.mxu0 0
        %2699 = vmatpush1.bf16.msra.mxu0 0
        %2700 = vmatprep.subr.bf16.mxu0 0
        %2701 = vmatpush1.bf16.msra.mxu0 0
        %2702 = vmatprep.subr.bf16.mxu0 0
        %2703 = vmatpush1.bf16.msra.mxu0 0
        %2704 = vmatprep.subr.bf16.mxu0 0
        %2705 = vmatpush1.bf16.msra.mxu0 0
        %2706 = vmatprep.subr.bf16.mxu0 0
        %2707 = vmatpush1.bf16.msra.mxu0 0
        %2708 = vmatprep.subr.bf16.mxu0 0
        %2709 = vmatpush1.bf16.msra.mxu0 0
        %2710 = vmatprep.mubr.bf16.mxu0 0
        %2711 = vmatmul.mubr.bf16.gmra.mrb[0].mxu0 %v1430
        %v2712 = vpop.f32.mrb[0].mxu0
        %v2713 = vadd.f32 0.0, %v2712
        %v2714 = vpop.f32.mrb[0].mxu0
        %v2715 = vpop.f32.mrb[0].mxu0
        %v2716 = vadd.f32 0.0, %v2715
        %v2717 = vpop.f32.mrb[0].mxu0
        %2718 = vmatprep.mubr.bf16.mxu0 0
        %2719 = vmatmul.mubr.bf16.gmra.mrb[0].mxu0 %v1433
        %v2720 = vpop.f32.mrb[0].mxu0
        %v2721 = vadd.f32 0.0, %v2720
        %v2722 = vpop.f32.mrb[0].mxu0
        %v2723 = vpop.f32.mrb[0].mxu0
        %v2724 = vadd.f32 0.0, %v2723
        %v2725 = vpop.f32.mrb[0].mxu0
        %2726 = vmatprep.mubr.bf16.mxu0 0
        %2727 = vmatmul.mubr.bf16.gmra.mrb[0].mxu0 %v1436
        %v2728 = vpop.f32.mrb[0].mxu0
        %v2729 = vadd.f32 0.0, %v2728
        %v2730 = vpop.f32.mrb[0].mxu0
        %v2731 = vpop.f32.mrb[0].mxu0
        %v2732 = vadd.f32 0.0, %v2731
        %v2733 = vpop.f32.mrb[0].mxu0
        %2734 = vmatprep.mubr.bf16.mxu0 0
        %2735 = vmatmul.mubr.bf16.gmra.mrb[0].mxu0 %v2676
        %v2736 = vpop.f32.mrb[0].mxu0
        %v2737 = vadd.f32 0.0, %v2736
        %v2738 = vpop.f32.mrb[0].mxu0
        %v2739 = vpop.f32.mrb[0].mxu0
        %v2740 = vadd.f32 0.0, %v2739
        %v2741 = vpop.f32.mrb[0].mxu0
        %2742 = vdwg.mxu0
        %v2743 = vadd.f32 %v2643, %v2713
        %v2744 = vadd.f32 %v2644, %v2716
        %v2745 = vadd.f32 %v2645, %v2721
        %v2746 = vadd.f32 %v2646, %v2724
        %v2747 = vadd.f32 %v2647, %v2729
        %v2748 = vadd.f32 %v2648, %v2732
        %v2749 = vadd.f32 %v2649, %v2737
        %v2750 = vadd.f32 %v2650, %v2740
        %v2751 = vrot.slane %v1342, 2
        %v2752 = vrot.slane %v1343, 2
        %v2753 = vsel %vm1592, %v2751, %v2752
        %v2755 = vpack.c.bf16 %v2753, %v2229
        %s2756 = scalar_lea.vmem %s3, 192
        %v2757 = vld [vmem:[%s2756] sm:$0xf]
        %v2758 = vld [vmem:[%s2756 + $0x4] sm:$0xf]
        %v2759 = vld [vmem:[%s2756 + $0x8] sm:$0xf]
        %v2760 = vld [vmem:[%s2756 + $0xc] sm:$0xf]
        %v2765 = vunpack.c.l.b16 %v2757
        %v2766 = vunpack.c.l.b16 %v2758
        %v2767 = vunpack.c.l.b16 %v2759
        %v2768 = vunpack.c.l.b16 %v2760
        %v2769 = vpack.c.b16 %v2766, %v2765
        %v2770 = vpack.c.b16 %v2768, %v2767
        %v2774 = vsel %vm690, %v2755, 0
        %2776 = vmatprep.subr.bf16.mxu0 0
        %2777 = vmatpush1.bf16.msra.mxu0 %v2769
        %2778 = vmatprep.subr.bf16.mxu0 0
        %2779 = vmatpush1.bf16.msra.mxu0 %v2770
        %2780 = vmatprep.subr.bf16.mxu0 0
        %2781 = vmatpush1.bf16.msra.mxu0 0
        %2782 = vmatprep.subr.bf16.mxu0 0
        %2783 = vmatpush1.bf16.msra.mxu0 0
        %2784 = vmatprep.subr.bf16.mxu0 0
        %2785 = vmatpush1.bf16.msra.mxu0 0
        %2786 = vmatprep.subr.bf16.mxu0 0
        %2787 = vmatpush1.bf16.msra.mxu0 0
        %2788 = vmatprep.subr.bf16.mxu0 0
        %2789 = vmatpush1.bf16.msra.mxu0 0
        %2790 = vmatprep.subr.bf16.mxu0 0
        %2791 = vmatpush1.bf16.msra.mxu0 0
        %2792 = vmatprep.subr.bf16.mxu0 0
        %2793 = vmatpush1.bf16.msra.mxu0 0
        %2794 = vmatprep.subr.bf16.mxu0 0
        %2795 = vmatpush1.bf16.msra.mxu0 0
        %2796 = vmatprep.subr.bf16.mxu0 0
        %2797 = vmatpush1.bf16.msra.mxu0 0
        %2798 = vmatprep.subr.bf16.mxu0 0
        %2799 = vmatpush1.bf16.msra.mxu0 0
        %2800 = vmatprep.subr.bf16.mxu0 0
        %2801 = vmatpush1.bf16.msra.mxu0 0
        %2802 = vmatprep.subr.bf16.mxu0 0
        %2803 = vmatpush1.bf16.msra.mxu0 0
        %2804 = vmatprep.subr.bf16.mxu0 0
        %2805 = vmatpush1.bf16.msra.mxu0 0
        %2806 = vmatprep.subr.bf16.mxu0 0
        %2807 = vmatpush1.bf16.msra.mxu0 0
        %2808 = vmatprep.mubr.bf16.mxu0 0
        %2809 = vmatmul.mubr.bf16.gmra.mrb[0].mxu0 %v1650
        %v2810 = vpop.f32.mrb[0].mxu0
        %v2811 = vadd.f32 0.0, %v2810
        %v2812 = vpop.f32.mrb[0].mxu0
        %v2813 = vpop.f32.mrb[0].mxu0
        %v2814 = vadd.f32 0.0, %v2813
        %v2815 = vpop.f32.mrb[0].mxu0
        %2816 = vmatprep.mubr.bf16.mxu0 0
        %2817 = vmatmul.mubr.bf16.gmra.mrb[0].mxu0 %v1653
        %v2818 = vpop.f32.mrb[0].mxu0
        %v2819 = vadd.f32 0.0, %v2818
        %v2820 = vpop.f32.mrb[0].mxu0
        %v2821 = vpop.f32.mrb[0].mxu0
        %v2822 = vadd.f32 0.0, %v2821
        %v2823 = vpop.f32.mrb[0].mxu0
        %2824 = vmatprep.mubr.bf16.mxu0 0
        %2825 = vmatmul.mubr.bf16.gmra.mrb[0].mxu0 %v1656
        %v2826 = vpop.f32.mrb[0].mxu0
        %v2827 = vadd.f32 0.0, %v2826
        %v2828 = vpop.f32.mrb[0].mxu0
        %v2829 = vpop.f32.mrb[0].mxu0
        %v2830 = vadd.f32 0.0, %v2829
        %v2831 = vpop.f32.mrb[0].mxu0
        %2832 = vmatprep.mubr.bf16.mxu0 0
        %2833 = vmatmul.mubr.bf16.gmra.mrb[0].mxu0 %v2774
        %v2834 = vpop.f32.mrb[0].mxu0
        %v2835 = vadd.f32 0.0, %v2834
        %v2836 = vpop.f32.mrb[0].mxu0
        %v2837 = vpop.f32.mrb[0].mxu0
        %v2838 = vadd.f32 0.0, %v2837
        %v2839 = vpop.f32.mrb[0].mxu0
        %2840 = vdwg.mxu0
        %v2841 = vadd.f32 %v2743, %v2811
        %v2842 = vadd.f32 %v2744, %v2814
        %v2843 = vadd.f32 %v2745, %v2819
        %v2844 = vadd.f32 %v2746, %v2822
        %v2845 = vadd.f32 %v2747, %v2827
        %v2846 = vadd.f32 %v2748, %v2830
        %v2847 = vadd.f32 %v2749, %v2835
        %v2848 = vadd.f32 %v2750, %v2838
        %v2849 = vrot.slane %v1342, 3
        %v2850 = vrot.slane %v1343, 3
        %v2851 = vsel %vm1731, %v2849, %v2850
        %v2853 = vpack.c.bf16 %v2851, %v2339
        %s2854 = scalar_lea.vmem %s3, 208
        %v2855 = vld [vmem:[%s2854] sm:$0xf]
        %v2856 = vld [vmem:[%s2854 + $0x4] sm:$0xf]
        %v2857 = vld [vmem:[%s2854 + $0x8] sm:$0xf]
        %v2858 = vld [vmem:[%s2854 + $0xc] sm:$0xf]
        %v2863 = vunpack.c.l.b16 %v2855
        %v2864 = vunpack.c.l.b16 %v2856
        %v2865 = vunpack.c.l.b16 %v2857
        %v2866 = vunpack.c.l.b16 %v2858
        %v2867 = vpack.c.b16 %v2864, %v2863
        %v2868 = vpack.c.b16 %v2866, %v2865
        %v2872 = vsel %vm690, %v2853, 0
        %2874 = vmatprep.subr.bf16.mxu0 0
        %2875 = vmatpush1.bf16.msra.mxu0 %v2867
        %2876 = vmatprep.subr.bf16.mxu0 0
        %2877 = vmatpush1.bf16.msra.mxu0 %v2868
        %2878 = vmatprep.subr.bf16.mxu0 0
        %2879 = vmatpush1.bf16.msra.mxu0 0
        %2880 = vmatprep.subr.bf16.mxu0 0
        %2881 = vmatpush1.bf16.msra.mxu0 0
        %2882 = vmatprep.subr.bf16.mxu0 0
        %2883 = vmatpush1.bf16.msra.mxu0 0
        %2884 = vmatprep.subr.bf16.mxu0 0
        %2885 = vmatpush1.bf16.msra.mxu0 0
        %2886 = vmatprep.subr.bf16.mxu0 0
        %2887 = vmatpush1.bf16.msra.mxu0 0
        %2888 = vmatprep.subr.bf16.mxu0 0
        %2889 = vmatpush1.bf16.msra.mxu0 0
        %2890 = vmatprep.subr.bf16.mxu0 0
        %2891 = vmatpush1.bf16.msra.mxu0 0
        %2892 = vmatprep.subr.bf16.mxu0 0
        %2893 = vmatpush1.bf16.msra.mxu0 0
        %2894 = vmatprep.subr.bf16.mxu0 0
        %2895 = vmatpush1.bf16.msra.mxu0 0
        %2896 = vmatprep.subr.bf16.mxu0 0
        %2897 = vmatpush1.bf16.msra.mxu0 0
        %2898 = vmatprep.subr.bf16.mxu0 0
        %2899 = vmatpush1.bf16.msra.mxu0 0
        %2900 = vmatprep.subr.bf16.mxu0 0
        %2901 = vmatpush1.bf16.msra.mxu0 0
        %2902 = vmatprep.subr.bf16.mxu0 0
        %2903 = vmatpush1.bf16.msra.mxu0 0
        %2904 = vmatprep.subr.bf16.mxu0 0
        %2905 = vmatpush1.bf16.msra.mxu0 0
        %2906 = vmatprep.mubr.bf16.mxu0 0
        %2907 = vmatmul.mubr.bf16.gmra.mrb[0].mxu0 %v1789
        %v2908 = vpop.f32.mrb[0].mxu0
        %v2909 = vadd.f32 0.0, %v2908
        %v2910 = vpop.f32.mrb[0].mxu0
        %v2911 = vpop.f32.mrb[0].mxu0
        %v2912 = vadd.f32 0.0, %v2911
        %v2913 = vpop.f32.mrb[0].mxu0
        %2914 = vmatprep.mubr.bf16.mxu0 0
        %2915 = vmatmul.mubr.bf16.gmra.mrb[0].mxu0 %v1792
        %v2916 = vpop.f32.mrb[0].mxu0
        %v2917 = vadd.f32 0.0, %v2916
        %v2918 = vpop.f32.mrb[0].mxu0
        %v2919 = vpop.f32.mrb[0].mxu0
        %v2920 = vadd.f32 0.0, %v2919
        %v2921 = vpop.f32.mrb[0].mxu0
        %2922 = vmatprep.mubr.bf16.mxu0 0
        %2923 = vmatmul.mubr.bf16.gmra.mrb[0].mxu0 %v1795
        %v2924 = vpop.f32.mrb[0].mxu0
        %v2925 = vadd.f32 0.0, %v2924
        %v2926 = vpop.f32.mrb[0].mxu0
        %v2927 = vpop.f32.mrb[0].mxu0
        %v2928 = vadd.f32 0.0, %v2927
        %v2929 = vpop.f32.mrb[0].mxu0
        %2930 = vmatprep.mubr.bf16.mxu0 0
        %2931 = vmatmul.mubr.bf16.gmra.mrb[0].mxu0 %v2872
        %v2932 = vpop.f32.mrb[0].mxu0
        %v2933 = vadd.f32 0.0, %v2932
        %v2934 = vpop.f32.mrb[0].mxu0
        %v2935 = vpop.f32.mrb[0].mxu0
        %v2936 = vadd.f32 0.0, %v2935
        %v2937 = vpop.f32.mrb[0].mxu0
        %2938 = vdwg.mxu0
        %v2939 = vadd.f32 %v2841, %v2909
        %v2940 = vadd.f32 %v2842, %v2912
        %v2941 = vadd.f32 %v2843, %v2917
        %v2942 = vadd.f32 %v2844, %v2920
        %v2943 = vadd.f32 %v2845, %v2925
        %v2944 = vadd.f32 %v2846, %v2928
        %v2945 = vadd.f32 %v2847, %v2933
        %v2946 = vadd.f32 %v2848, %v2936
        %v2947 = vrot.slane %v1342, 4
        %v2948 = vrot.slane %v1343, 4
        %v2949 = vsel %vm1870, %v2947, %v2948
        %v2951 = vpack.c.bf16 %v2949, %v2449
        %s2952 = scalar_lea.vmem %s3, 224
        %v2953 = vld [vmem:[%s2952] sm:$0xf]
        %v2954 = vld [vmem:[%s2952 + $0x4] sm:$0xf]
        %v2955 = vld [vmem:[%s2952 + $0x8] sm:$0xf]
        %v2956 = vld [vmem:[%s2952 + $0xc] sm:$0xf]
        %v2961 = vunpack.c.l.b16 %v2953
        %v2962 = vunpack.c.l.b16 %v2954
        %v2963 = vunpack.c.l.b16 %v2955
        %v2964 = vunpack.c.l.b16 %v2956
        %v2965 = vpack.c.b16 %v2962, %v2961
        %v2966 = vpack.c.b16 %v2964, %v2963
        %v2970 = vsel %vm690, %v2951, 0
        %2972 = vmatprep.subr.bf16.mxu0 0
        %2973 = vmatpush1.bf16.msra.mxu0 %v2965
        %2974 = vmatprep.subr.bf16.mxu0 0
        %2975 = vmatpush1.bf16.msra.mxu0 %v2966
        %2976 = vmatprep.subr.bf16.mxu0 0
        %2977 = vmatpush1.bf16.msra.mxu0 0
        %2978 = vmatprep.subr.bf16.mxu0 0
        %2979 = vmatpush1.bf16.msra.mxu0 0
        %2980 = vmatprep.subr.bf16.mxu0 0
        %2981 = vmatpush1.bf16.msra.mxu0 0
        %2982 = vmatprep.subr.bf16.mxu0 0
        %2983 = vmatpush1.bf16.msra.mxu0 0
        %2984 = vmatprep.subr.bf16.mxu0 0
        %2985 = vmatpush1.bf16.msra.mxu0 0
        %2986 = vmatprep.subr.bf16.mxu0 0
        %2987 = vmatpush1.bf16.msra.mxu0 0
        %2988 = vmatprep.subr.bf16.mxu0 0
        %2989 = vmatpush1.bf16.msra.mxu0 0
        %2990 = vmatprep.subr.bf16.mxu0 0
        %2991 = vmatpush1.bf16.msra.mxu0 0
        %2992 = vmatprep.subr.bf16.mxu0 0
        %2993 = vmatpush1.bf16.msra.mxu0 0
        %2994 = vmatprep.subr.bf16.mxu0 0
        %2995 = vmatpush1.bf16.msra.mxu0 0
        %2996 = vmatprep.subr.bf16.mxu0 0
        %2997 = vmatpush1.bf16.msra.mxu0 0
        %2998 = vmatprep.subr.bf16.mxu0 0
        %2999 = vmatpush1.bf16.msra.mxu0 0
        %3000 = vmatprep.subr.bf16.mxu0 0
        %3001 = vmatpush1.bf16.msra.mxu0 0
        %3002 = vmatprep.subr.bf16.mxu0 0
        %3003 = vmatpush1.bf16.msra.mxu0 0
        %3004 = vmatprep.mubr.bf16.mxu0 0
        %3005 = vmatmul.mubr.bf16.gmra.mrb[0].mxu0 %v1928
        %v3006 = vpop.f32.mrb[0].mxu0
        %v3007 = vadd.f32 0.0, %v3006
        %v3008 = vpop.f32.mrb[0].mxu0
        %v3009 = vpop.f32.mrb[0].mxu0
        %v3010 = vadd.f32 0.0, %v3009
        %v3011 = vpop.f32.mrb[0].mxu0
        %3012 = vmatprep.mubr.bf16.mxu0 0
        %3013 = vmatmul.mubr.bf16.gmra.mrb[0].mxu0 %v1931
        %v3014 = vpop.f32.mrb[0].mxu0
        %v3015 = vadd.f32 0.0, %v3014
        %v3016 = vpop.f32.mrb[0].mxu0
        %v3017 = vpop.f32.mrb[0].mxu0
        %v3018 = vadd.f32 0.0, %v3017
        %v3019 = vpop.f32.mrb[0].mxu0
        %3020 = vmatprep.mubr.bf16.mxu0 0
        %3021 = vmatmul.mubr.bf16.gmra.mrb[0].mxu0 %v1934
        %v3022 = vpop.f32.mrb[0].mxu0
        %v3023 = vadd.f32 0.0, %v3022
        %v3024 = vpop.f32.mrb[0].mxu0
        %v3025 = vpop.f32.mrb[0].mxu0
        %v3026 = vadd.f32 0.0, %v3025
        %v3027 = vpop.f32.mrb[0].mxu0
        %3028 = vmatprep.mubr.bf16.mxu0 0
        %3029 = vmatmul.mubr.bf16.gmra.mrb[0].mxu0 %v2970
        %v3030 = vpop.f32.mrb[0].mxu0
        %v3031 = vadd.f32 0.0, %v3030
        %v3032 = vpop.f32.mrb[0].mxu0
        %v3033 = vpop.f32.mrb[0].mxu0
        %v3034 = vadd.f32 0.0, %v3033
        %v3035 = vpop.f32.mrb[0].mxu0
        %3036 = vdwg.mxu0
        %v3037 = vadd.f32 %v2939, %v3007
        %v3038 = vadd.f32 %v2940, %v3010
        %v3039 = vadd.f32 %v2941, %v3015
        %v3040 = vadd.f32 %v2942, %v3018
        %v3041 = vadd.f32 %v2943, %v3023
        %v3042 = vadd.f32 %v2944, %v3026
        %v3043 = vadd.f32 %v2945, %v3031
        %v3044 = vadd.f32 %v2946, %v3034
        %v3045 = vpack.c.bf16 %v1344, %v1342
        %s3046 = scalar_lea.vmem %s3, 240
        %v3047 = vld [vmem:[%s3046] sm:$0xf]
        %v3048 = vld [vmem:[%s3046 + $0x4] sm:$0xf]
        %v3049 = vld [vmem:[%s3046 + $0x8] sm:$0xf]
        %v3050 = vld [vmem:[%s3046 + $0xc] sm:$0xf]
        %v3055 = vunpack.c.l.b16 %v3047
        %v3056 = vunpack.c.l.b16 %v3048
        %v3057 = vunpack.c.l.b16 %v3049
        %v3058 = vunpack.c.l.b16 %v3050
        %v3059 = vpack.c.b16 %v3056, %v3055
        %v3060 = vpack.c.b16 %v3058, %v3057
        %v3064 = vsel %vm690, %v3045, 0
        %3066 = vmatprep.subr.bf16.mxu0 0
        %3067 = vmatpush1.bf16.msra.mxu0 %v3059
        %3068 = vmatprep.subr.bf16.mxu0 0
        %3069 = vmatpush1.bf16.msra.mxu0 %v3060
        %3070 = vmatprep.subr.bf16.mxu0 0
        %3071 = vmatpush1.bf16.msra.mxu0 0
        %3072 = vmatprep.subr.bf16.mxu0 0
        %3073 = vmatpush1.bf16.msra.mxu0 0
        %3074 = vmatprep.subr.bf16.mxu0 0
        %3075 = vmatpush1.bf16.msra.mxu0 0
        %3076 = vmatprep.subr.bf16.mxu0 0
        %3077 = vmatpush1.bf16.msra.mxu0 0
        %3078 = vmatprep.subr.bf16.mxu0 0
        %3079 = vmatpush1.bf16.msra.mxu0 0
        %3080 = vmatprep.subr.bf16.mxu0 0
        %3081 = vmatpush1.bf16.msra.mxu0 0
        %3082 = vmatprep.subr.bf16.mxu0 0
        %3083 = vmatpush1.bf16.msra.mxu0 0
        %3084 = vmatprep.subr.bf16.mxu0 0
        %3085 = vmatpush1.bf16.msra.mxu0 0
        %3086 = vmatprep.subr.bf16.mxu0 0
        %3087 = vmatpush1.bf16.msra.mxu0 0
        %3088 = vmatprep.subr.bf16.mxu0 0
        %3089 = vmatpush1.bf16.msra.mxu0 0
        %3090 = vmatprep.subr.bf16.mxu0 0
        %3091 = vmatpush1.bf16.msra.mxu0 0
        %3092 = vmatprep.subr.bf16.mxu0 0
        %3093 = vmatpush1.bf16.msra.mxu0 0
        %3094 = vmatprep.subr.bf16.mxu0 0
        %3095 = vmatpush1.bf16.msra.mxu0 0
        %3096 = vmatprep.subr.bf16.mxu0 0
        %3097 = vmatpush1.bf16.msra.mxu0 0
        %3098 = vmatprep.mubr.bf16.mxu0 0
        %3099 = vmatmul.mubr.bf16.gmra.mrb[0].mxu0 %v2034
        %v3100 = vpop.f32.mrb[0].mxu0
        %v3101 = vadd.f32 0.0, %v3100
        %v3102 = vpop.f32.mrb[0].mxu0
        %v3103 = vpop.f32.mrb[0].mxu0
        %v3104 = vadd.f32 0.0, %v3103
        %v3105 = vpop.f32.mrb[0].mxu0
        %3106 = vmatprep.mubr.bf16.mxu0 0
        %3107 = vmatmul.mubr.bf16.gmra.mrb[0].mxu0 %v2037
        %v3108 = vpop.f32.mrb[0].mxu0
        %v3109 = vadd.f32 0.0, %v3108
        %v3110 = vpop.f32.mrb[0].mxu0
        %v3111 = vpop.f32.mrb[0].mxu0
        %v3112 = vadd.f32 0.0, %v3111
        %v3113 = vpop.f32.mrb[0].mxu0
        %3114 = vmatprep.mubr.bf16.mxu0 0
        %3115 = vmatmul.mubr.bf16.gmra.mrb[0].mxu0 %v2040
        %v3116 = vpop.f32.mrb[0].mxu0
        %v3117 = vadd.f32 0.0, %v3116
        %v3118 = vpop.f32.mrb[0].mxu0
        %v3119 = vpop.f32.mrb[0].mxu0
        %v3120 = vadd.f32 0.0, %v3119
        %v3121 = vpop.f32.mrb[0].mxu0
        %3122 = vmatprep.mubr.bf16.mxu0 0
        %3123 = vmatmul.mubr.bf16.gmra.mrb[0].mxu0 %v3064
        %v3124 = vpop.f32.mrb[0].mxu0
        %v3125 = vadd.f32 0.0, %v3124
        %v3126 = vpop.f32.mrb[0].mxu0
        %v3127 = vpop.f32.mrb[0].mxu0
        %v3128 = vadd.f32 0.0, %v3127
        %v3129 = vpop.f32.mrb[0].mxu0
        %3130 = vdwg.mxu0
        %v3131 = vadd.f32 %v3037, %v3101
        %v3132 = vadd.f32 %v3038, %v3104
        %v3133 = vadd.f32 %v3039, %v3109
        %v3134 = vadd.f32 %v3040, %v3112
        %v3135 = vadd.f32 %v3041, %v3117
        %v3136 = vadd.f32 %v3042, %v3120
        %v3137 = vadd.f32 %v3043, %v3125
        %v3138 = vadd.f32 %v3044, %v3128
        %v3141 = vrot.slane %v1344, 1
        %v3142 = vrot.slane %v1345, 1
        %v3143 = vsel %vm1372, %v3141, %v3142
        %v3145 = vpack.c.bf16 %v3143, %v2655
        %s3146 = scalar_lea.vmem %s3, 256
        %v3147 = vld [vmem:[%s3146] sm:$0xf]
        %v3148 = vld [vmem:[%s3146 + $0x4] sm:$0xf]
        %v3149 = vld [vmem:[%s3146 + $0x8] sm:$0xf]
        %v3150 = vld [vmem:[%s3146 + $0xc] sm:$0xf]
        %v3155 = vunpack.c.l.b16 %v3147
        %v3156 = vunpack.c.l.b16 %v3148
        %v3157 = vunpack.c.l.b16 %v3149
        %v3158 = vunpack.c.l.b16 %v3150
        %v3159 = vpack.c.b16 %v3156, %v3155
        %v3160 = vpack.c.b16 %v3158, %v3157
        %v3164 = vsel %vm690, %v3145, 0
        %3166 = vmatprep.subr.bf16.mxu0 0
        %3167 = vmatpush1.bf16.msra.mxu0 %v3159
        %3168 = vmatprep.subr.bf16.mxu0 0
        %3169 = vmatpush1.bf16.msra.mxu0 %v3160
        %3170 = vmatprep.subr.bf16.mxu0 0
        %3171 = vmatpush1.bf16.msra.mxu0 0
        %3172 = vmatprep.subr.bf16.mxu0 0
        %3173 = vmatpush1.bf16.msra.mxu0 0
        %3174 = vmatprep.subr.bf16.mxu0 0
        %3175 = vmatpush1.bf16.msra.mxu0 0
        %3176 = vmatprep.subr.bf16.mxu0 0
        %3177 = vmatpush1.bf16.msra.mxu0 0
        %3178 = vmatprep.subr.bf16.mxu0 0
        %3179 = vmatpush1.bf16.msra.mxu0 0
        %3180 = vmatprep.subr.bf16.mxu0 0
        %3181 = vmatpush1.bf16.msra.mxu0 0
        %3182 = vmatprep.subr.bf16.mxu0 0
        %3183 = vmatpush1.bf16.msra.mxu0 0
        %3184 = vmatprep.subr.bf16.mxu0 0
        %3185 = vmatpush1.bf16.msra.mxu0 0
        %3186 = vmatprep.subr.bf16.mxu0 0
        %3187 = vmatpush1.bf16.msra.mxu0 0
        %3188 = vmatprep.subr.bf16.mxu0 0
        %3189 = vmatpush1.bf16.msra.mxu0 0
        %3190 = vmatprep.subr.bf16.mxu0 0
        %3191 = vmatpush1.bf16.msra.mxu0 0
        %3192 = vmatprep.subr.bf16.mxu0 0
        %3193 = vmatpush1.bf16.msra.mxu0 0
        %3194 = vmatprep.subr.bf16.mxu0 0
        %3195 = vmatpush1.bf16.msra.mxu0 0
        %3196 = vmatprep.subr.bf16.mxu0 0
        %3197 = vmatpush1.bf16.msra.mxu0 0
        %3198 = vmatprep.mubr.bf16.mxu0 0
        %3199 = vmatmul.mubr.bf16.gmra.mrb[0].mxu0 %v2146
        %v3200 = vpop.f32.mrb[0].mxu0
        %v3201 = vadd.f32 0.0, %v3200
        %v3202 = vpop.f32.mrb[0].mxu0
        %v3203 = vpop.f32.mrb[0].mxu0
        %v3204 = vadd.f32 0.0, %v3203
        %v3205 = vpop.f32.mrb[0].mxu0
        %3206 = vmatprep.mubr.bf16.mxu0 0
        %3207 = vmatmul.mubr.bf16.gmra.mrb[0].mxu0 %v2149
        %v3208 = vpop.f32.mrb[0].mxu0
        %v3209 = vadd.f32 0.0, %v3208
        %v3210 = vpop.f32.mrb[0].mxu0
        %v3211 = vpop.f32.mrb[0].mxu0
        %v3212 = vadd.f32 0.0, %v3211
        %v3213 = vpop.f32.mrb[0].mxu0
        %3214 = vmatprep.mubr.bf16.mxu0 0
        %3215 = vmatmul.mubr.bf16.gmra.mrb[0].mxu0 %v2152
        %v3216 = vpop.f32.mrb[0].mxu0
        %v3217 = vadd.f32 0.0, %v3216
        %v3218 = vpop.f32.mrb[0].mxu0
        %v3219 = vpop.f32.mrb[0].mxu0
        %v3220 = vadd.f32 0.0, %v3219
        %v3221 = vpop.f32.mrb[0].mxu0
        %3222 = vmatprep.mubr.bf16.mxu0 0
        %3223 = vmatmul.mubr.bf16.gmra.mrb[0].mxu0 %v3164
        %v3224 = vpop.f32.mrb[0].mxu0
        %v3225 = vadd.f32 0.0, %v3224
        %v3226 = vpop.f32.mrb[0].mxu0
        %v3227 = vpop.f32.mrb[0].mxu0
        %v3228 = vadd.f32 0.0, %v3227
        %v3229 = vpop.f32.mrb[0].mxu0
        %3230 = vdwg.mxu0
        %v3231 = vadd.f32 %v3131, %v3201
        %v3232 = vadd.f32 %v3132, %v3204
        %v3233 = vadd.f32 %v3133, %v3209
        %v3234 = vadd.f32 %v3134, %v3212
        %v3235 = vadd.f32 %v3135, %v3217
        %v3236 = vadd.f32 %v3136, %v3220
        %v3237 = vadd.f32 %v3137, %v3225
        %v3238 = vadd.f32 %v3138, %v3228
        %v3239 = vrot.slane %v1344, 2
        %v3240 = vrot.slane %v1345, 2
        %v3241 = vsel %vm1592, %v3239, %v3240
        %v3243 = vpack.c.bf16 %v3241, %v2753
        %s3244 = scalar_lea.vmem %s3, 272
        %v3245 = vld [vmem:[%s3244] sm:$0xf]
        %v3246 = vld [vmem:[%s3244 + $0x4] sm:$0xf]
        %v3247 = vld [vmem:[%s3244 + $0x8] sm:$0xf]
        %v3248 = vld [vmem:[%s3244 + $0xc] sm:$0xf]
        %v3253 = vunpack.c.l.b16 %v3245
        %v3254 = vunpack.c.l.b16 %v3246
        %v3255 = vunpack.c.l.b16 %v3247
        %v3256 = vunpack.c.l.b16 %v3248
        %v3257 = vpack.c.b16 %v3254, %v3253
        %v3258 = vpack.c.b16 %v3256, %v3255
        %v3262 = vsel %vm690, %v3243, 0
        %3264 = vmatprep.subr.bf16.mxu0 0
        %3265 = vmatpush1.bf16.msra.mxu0 %v3257
        %3266 = vmatprep.subr.bf16.mxu0 0
        %3267 = vmatpush1.bf16.msra.mxu0 %v3258
        %3268 = vmatprep.subr.bf16.mxu0 0
        %3269 = vmatpush1.bf16.msra.mxu0 0
        %3270 = vmatprep.subr.bf16.mxu0 0
        %3271 = vmatpush1.bf16.msra.mxu0 0
        %3272 = vmatprep.subr.bf16.mxu0 0
        %3273 = vmatpush1.bf16.msra.mxu0 0
        %3274 = vmatprep.subr.bf16.mxu0 0
        %3275 = vmatpush1.bf16.msra.mxu0 0
        %3276 = vmatprep.subr.bf16.mxu0 0
        %3277 = vmatpush1.bf16.msra.mxu0 0
        %3278 = vmatprep.subr.bf16.mxu0 0
        %3279 = vmatpush1.bf16.msra.mxu0 0
        %3280 = vmatprep.subr.bf16.mxu0 0
        %3281 = vmatpush1.bf16.msra.mxu0 0
        %3282 = vmatprep.subr.bf16.mxu0 0
        %3283 = vmatpush1.bf16.msra.mxu0 0
        %3284 = vmatprep.subr.bf16.mxu0 0
        %3285 = vmatpush1.bf16.msra.mxu0 0
        %3286 = vmatprep.subr.bf16.mxu0 0
        %3287 = vmatpush1.bf16.msra.mxu0 0
        %3288 = vmatprep.subr.bf16.mxu0 0
        %3289 = vmatpush1.bf16.msra.mxu0 0
        %3290 = vmatprep.subr.bf16.mxu0 0
        %3291 = vmatpush1.bf16.msra.mxu0 0
        %3292 = vmatprep.subr.bf16.mxu0 0
        %3293 = vmatpush1.bf16.msra.mxu0 0
        %3294 = vmatprep.subr.bf16.mxu0 0
        %3295 = vmatpush1.bf16.msra.mxu0 0
        %3296 = vmatprep.mubr.bf16.mxu0 0
        %3297 = vmatmul.mubr.bf16.gmra.mrb[0].mxu0 %v2256
        %v3298 = vpop.f32.mrb[0].mxu0
        %v3299 = vadd.f32 0.0, %v3298
        %v3300 = vpop.f32.mrb[0].mxu0
        %v3301 = vpop.f32.mrb[0].mxu0
        %v3302 = vadd.f32 0.0, %v3301
        %v3303 = vpop.f32.mrb[0].mxu0
        %3304 = vmatprep.mubr.bf16.mxu0 0
        %3305 = vmatmul.mubr.bf16.gmra.mrb[0].mxu0 %v2259
        %v3306 = vpop.f32.mrb[0].mxu0
        %v3307 = vadd.f32 0.0, %v3306
        %v3308 = vpop.f32.mrb[0].mxu0
        %v3309 = vpop.f32.mrb[0].mxu0
        %v3310 = vadd.f32 0.0, %v3309
        %v3311 = vpop.f32.mrb[0].mxu0
        %3312 = vmatprep.mubr.bf16.mxu0 0
        %3313 = vmatmul.mubr.bf16.gmra.mrb[0].mxu0 %v2262
        %v3314 = vpop.f32.mrb[0].mxu0
        %v3315 = vadd.f32 0.0, %v3314
        %v3316 = vpop.f32.mrb[0].mxu0
        %v3317 = vpop.f32.mrb[0].mxu0
        %v3318 = vadd.f32 0.0, %v3317
        %v3319 = vpop.f32.mrb[0].mxu0
        %3320 = vmatprep.mubr.bf16.mxu0 0
        %3321 = vmatmul.mubr.bf16.gmra.mrb[0].mxu0 %v3262
        %v3322 = vpop.f32.mrb[0].mxu0
        %v3323 = vadd.f32 0.0, %v3322
        %v3324 = vpop.f32.mrb[0].mxu0
        %v3325 = vpop.f32.mrb[0].mxu0
        %v3326 = vadd.f32 0.0, %v3325
        %v3327 = vpop.f32.mrb[0].mxu0
        %3328 = vdwg.mxu0
        %v3329 = vadd.f32 %v3231, %v3299
        %v3330 = vadd.f32 %v3232, %v3302
        %v3331 = vadd.f32 %v3233, %v3307
        %v3332 = vadd.f32 %v3234, %v3310
        %v3333 = vadd.f32 %v3235, %v3315
        %v3334 = vadd.f32 %v3236, %v3318
        %v3335 = vadd.f32 %v3237, %v3323
        %v3336 = vadd.f32 %v3238, %v3326
        %v3337 = vrot.slane %v1344, 3
        %v3338 = vrot.slane %v1345, 3
        %v3339 = vsel %vm1731, %v3337, %v3338
        %v3341 = vpack.c.bf16 %v3339, %v2851
        %s3342 = scalar_lea.vmem %s3, 288
        %v3343 = vld [vmem:[%s3342] sm:$0xf]
        %v3344 = vld [vmem:[%s3342 + $0x4] sm:$0xf]
        %v3345 = vld [vmem:[%s3342 + $0x8] sm:$0xf]
        %v3346 = vld [vmem:[%s3342 + $0xc] sm:$0xf]
        %v3351 = vunpack.c.l.b16 %v3343
        %v3352 = vunpack.c.l.b16 %v3344
        %v3353 = vunpack.c.l.b16 %v3345
        %v3354 = vunpack.c.l.b16 %v3346
        %v3355 = vpack.c.b16 %v3352, %v3351
        %v3356 = vpack.c.b16 %v3354, %v3353
        %v3360 = vsel %vm690, %v3341, 0
        %3362 = vmatprep.subr.bf16.mxu0 0
        %3363 = vmatpush1.bf16.msra.mxu0 %v3355
        %3364 = vmatprep.subr.bf16.mxu0 0
        %3365 = vmatpush1.bf16.msra.mxu0 %v3356
        %3366 = vmatprep.subr.bf16.mxu0 0
        %3367 = vmatpush1.bf16.msra.mxu0 0
        %3368 = vmatprep.subr.bf16.mxu0 0
        %3369 = vmatpush1.bf16.msra.mxu0 0
        %3370 = vmatprep.subr.bf16.mxu0 0
        %3371 = vmatpush1.bf16.msra.mxu0 0
        %3372 = vmatprep.subr.bf16.mxu0 0
        %3373 = vmatpush1.bf16.msra.mxu0 0
        %3374 = vmatprep.subr.bf16.mxu0 0
        %3375 = vmatpush1.bf16.msra.mxu0 0
        %3376 = vmatprep.subr.bf16.mxu0 0
        %3377 = vmatpush1.bf16.msra.mxu0 0
        %3378 = vmatprep.subr.bf16.mxu0 0
        %3379 = vmatpush1.bf16.msra.mxu0 0
        %3380 = vmatprep.subr.bf16.mxu0 0
        %3381 = vmatpush1.bf16.msra.mxu0 0
        %3382 = vmatprep.subr.bf16.mxu0 0
        %3383 = vmatpush1.bf16.msra.mxu0 0
        %3384 = vmatprep.subr.bf16.mxu0 0
        %3385 = vmatpush1.bf16.msra.mxu0 0
        %3386 = vmatprep.subr.bf16.mxu0 0
        %3387 = vmatpush1.bf16.msra.mxu0 0
        %3388 = vmatprep.subr.bf16.mxu0 0
        %3389 = vmatpush1.bf16.msra.mxu0 0
        %3390 = vmatprep.subr.bf16.mxu0 0
        %3391 = vmatpush1.bf16.msra.mxu0 0
        %3392 = vmatprep.subr.bf16.mxu0 0
        %3393 = vmatpush1.bf16.msra.mxu0 0
        %3394 = vmatprep.mubr.bf16.mxu0 0
        %3395 = vmatmul.mubr.bf16.gmra.mrb[0].mxu0 %v2366
        %v3396 = vpop.f32.mrb[0].mxu0
        %v3397 = vadd.f32 0.0, %v3396
        %v3398 = vpop.f32.mrb[0].mxu0
        %v3399 = vpop.f32.mrb[0].mxu0
        %v3400 = vadd.f32 0.0, %v3399
        %v3401 = vpop.f32.mrb[0].mxu0
        %3402 = vmatprep.mubr.bf16.mxu0 0
        %3403 = vmatmul.mubr.bf16.gmra.mrb[0].mxu0 %v2369
        %v3404 = vpop.f32.mrb[0].mxu0
        %v3405 = vadd.f32 0.0, %v3404
        %v3406 = vpop.f32.mrb[0].mxu0
        %v3407 = vpop.f32.mrb[0].mxu0
        %v3408 = vadd.f32 0.0, %v3407
        %v3409 = vpop.f32.mrb[0].mxu0
        %3410 = vmatprep.mubr.bf16.mxu0 0
        %3411 = vmatmul.mubr.bf16.gmra.mrb[0].mxu0 %v2372
        %v3412 = vpop.f32.mrb[0].mxu0
        %v3413 = vadd.f32 0.0, %v3412
        %v3414 = vpop.f32.mrb[0].mxu0
        %v3415 = vpop.f32.mrb[0].mxu0
        %v3416 = vadd.f32 0.0, %v3415
        %v3417 = vpop.f32.mrb[0].mxu0
        %3418 = vmatprep.mubr.bf16.mxu0 0
        %3419 = vmatmul.mubr.bf16.gmra.mrb[0].mxu0 %v3360
        %v3420 = vpop.f32.mrb[0].mxu0
        %v3421 = vadd.f32 0.0, %v3420
        %v3422 = vpop.f32.mrb[0].mxu0
        %v3423 = vpop.f32.mrb[0].mxu0
        %v3424 = vadd.f32 0.0, %v3423
        %v3425 = vpop.f32.mrb[0].mxu0
        %3426 = vdwg.mxu0
        %v3427 = vadd.f32 %v3329, %v3397
        %v3428 = vadd.f32 %v3330, %v3400
        %v3429 = vadd.f32 %v3331, %v3405
        %v3430 = vadd.f32 %v3332, %v3408
        %v3431 = vadd.f32 %v3333, %v3413
        %v3432 = vadd.f32 %v3334, %v3416
        %v3433 = vadd.f32 %v3335, %v3421
        %v3434 = vadd.f32 %v3336, %v3424
        %v3435 = vrot.slane %v1344, 4
        %v3436 = vrot.slane %v1345, 4
        %v3437 = vsel %vm1870, %v3435, %v3436
        %v3439 = vpack.c.bf16 %v3437, %v2949
        %s3440 = scalar_lea.vmem %s3, 304
        %v3441 = vld [vmem:[%s3440] sm:$0xf]
        %v3442 = vld [vmem:[%s3440 + $0x4] sm:$0xf]
        %v3443 = vld [vmem:[%s3440 + $0x8] sm:$0xf]
        %v3444 = vld [vmem:[%s3440 + $0xc] sm:$0xf]
        %v3449 = vunpack.c.l.b16 %v3441
        %v3450 = vunpack.c.l.b16 %v3442
        %v3451 = vunpack.c.l.b16 %v3443
        %v3452 = vunpack.c.l.b16 %v3444
        %v3453 = vpack.c.b16 %v3450, %v3449
        %v3454 = vpack.c.b16 %v3452, %v3451
        %v3458 = vsel %vm690, %v3439, 0
        %3460 = vmatprep.subr.bf16.mxu0 0
        %3461 = vmatpush1.bf16.msra.mxu0 %v3453
        %3462 = vmatprep.subr.bf16.mxu0 0
        %3463 = vmatpush1.bf16.msra.mxu0 %v3454
        %3464 = vmatprep.subr.bf16.mxu0 0
        %3465 = vmatpush1.bf16.msra.mxu0 0
        %3466 = vmatprep.subr.bf16.mxu0 0
        %3467 = vmatpush1.bf16.msra.mxu0 0
        %3468 = vmatprep.subr.bf16.mxu0 0
        %3469 = vmatpush1.bf16.msra.mxu0 0
        %3470 = vmatprep.subr.bf16.mxu0 0
        %3471 = vmatpush1.bf16.msra.mxu0 0
        %3472 = vmatprep.subr.bf16.mxu0 0
        %3473 = vmatpush1.bf16.msra.mxu0 0
        %3474 = vmatprep.subr.bf16.mxu0 0
        %3475 = vmatpush1.bf16.msra.mxu0 0
        %3476 = vmatprep.subr.bf16.mxu0 0
        %3477 = vmatpush1.bf16.msra.mxu0 0
        %3478 = vmatprep.subr.bf16.mxu0 0
        %3479 = vmatpush1.bf16.msra.mxu0 0
        %3480 = vmatprep.subr.bf16.mxu0 0
        %3481 = vmatpush1.bf16.msra.mxu0 0
        %3482 = vmatprep.subr.bf16.mxu0 0
        %3483 = vmatpush1.bf16.msra.mxu0 0
        %3484 = vmatprep.subr.bf16.mxu0 0
        %3485 = vmatpush1.bf16.msra.mxu0 0
        %3486 = vmatprep.subr.bf16.mxu0 0
        %3487 = vmatpush1.bf16.msra.mxu0 0
        %3488 = vmatprep.subr.bf16.mxu0 0
        %3489 = vmatpush1.bf16.msra.mxu0 0
        %3490 = vmatprep.subr.bf16.mxu0 0
        %3491 = vmatpush1.bf16.msra.mxu0 0
        %3492 = vmatprep.mubr.bf16.mxu0 0
        %3493 = vmatmul.mubr.bf16.gmra.mrb[0].mxu0 %v2476
        %v3494 = vpop.f32.mrb[0].mxu0
        %v3495 = vadd.f32 0.0, %v3494
        %v3496 = vpop.f32.mrb[0].mxu0
        %v3497 = vpop.f32.mrb[0].mxu0
        %v3498 = vadd.f32 0.0, %v3497
        %v3499 = vpop.f32.mrb[0].mxu0
        %3500 = vmatprep.mubr.bf16.mxu0 0
        %3501 = vmatmul.mubr.bf16.gmra.mrb[0].mxu0 %v2479
        %v3502 = vpop.f32.mrb[0].mxu0
        %v3503 = vadd.f32 0.0, %v3502
        %v3504 = vpop.f32.mrb[0].mxu0
        %v3505 = vpop.f32.mrb[0].mxu0
        %v3506 = vadd.f32 0.0, %v3505
        %v3507 = vpop.f32.mrb[0].mxu0
        %3508 = vmatprep.mubr.bf16.mxu0 0
        %3509 = vmatmul.mubr.bf16.gmra.mrb[0].mxu0 %v2482
        %v3510 = vpop.f32.mrb[0].mxu0
        %v3511 = vadd.f32 0.0, %v3510
        %v3512 = vpop.f32.mrb[0].mxu0
        %v3513 = vpop.f32.mrb[0].mxu0
        %v3514 = vadd.f32 0.0, %v3513
        %v3515 = vpop.f32.mrb[0].mxu0
        %3516 = vmatprep.mubr.bf16.mxu0 0
        %3517 = vmatmul.mubr.bf16.gmra.mrb[0].mxu0 %v3458
        %v3518 = vpop.f32.mrb[0].mxu0
        %v3519 = vadd.f32 0.0, %v3518
        %v3520 = vpop.f32.mrb[0].mxu0
        %v3521 = vpop.f32.mrb[0].mxu0
        %v3522 = vadd.f32 0.0, %v3521
        %v3523 = vpop.f32.mrb[0].mxu0
        %3524 = vdwg.mxu0
        %v3525 = vadd.f32 %v3427, %v3495
        %v3526 = vadd.f32 %v3428, %v3498
        %v3527 = vadd.f32 %v3429, %v3503
        %v3528 = vadd.f32 %v3430, %v3506
        %v3529 = vadd.f32 %v3431, %v3511
        %v3530 = vadd.f32 %v3432, %v3514
        %v3531 = vadd.f32 %v3433, %v3519
        %v3532 = vadd.f32 %v3434, %v3522
        %v3533 = vpack.c.bf16 %v1346, %v1344
        %s3534 = scalar_lea.vmem %s3, 320
        %v3535 = vld [vmem:[%s3534] sm:$0xf]
        %v3536 = vld [vmem:[%s3534 + $0x4] sm:$0xf]
        %v3537 = vld [vmem:[%s3534 + $0x8] sm:$0xf]
        %v3538 = vld [vmem:[%s3534 + $0xc] sm:$0xf]
        %v3543 = vunpack.c.l.b16 %v3535
        %v3544 = vunpack.c.l.b16 %v3536
        %v3545 = vunpack.c.l.b16 %v3537
        %v3546 = vunpack.c.l.b16 %v3538
        %v3547 = vpack.c.b16 %v3544, %v3543
        %v3548 = vpack.c.b16 %v3546, %v3545
        %v3552 = vsel %vm690, %v3533, 0
        %3554 = vmatprep.subr.bf16.mxu0 0
        %3555 = vmatpush1.bf16.msra.mxu0 %v3547
        %3556 = vmatprep.subr.bf16.mxu0 0
        %3557 = vmatpush1.bf16.msra.mxu0 %v3548
        %3558 = vmatprep.subr.bf16.mxu0 0
        %3559 = vmatpush1.bf16.msra.mxu0 0
        %3560 = vmatprep.subr.bf16.mxu0 0
        %3561 = vmatpush1.bf16.msra.mxu0 0
        %3562 = vmatprep.subr.bf16.mxu0 0
        %3563 = vmatpush1.bf16.msra.mxu0 0
        %3564 = vmatprep.subr.bf16.mxu0 0
        %3565 = vmatpush1.bf16.msra.mxu0 0
        %3566 = vmatprep.subr.bf16.mxu0 0
        %3567 = vmatpush1.bf16.msra.mxu0 0
        %3568 = vmatprep.subr.bf16.mxu0 0
        %3569 = vmatpush1.bf16.msra.mxu0 0
        %3570 = vmatprep.subr.bf16.mxu0 0
        %3571 = vmatpush1.bf16.msra.mxu0 0
        %3572 = vmatprep.subr.bf16.mxu0 0
        %3573 = vmatpush1.bf16.msra.mxu0 0
        %3574 = vmatprep.subr.bf16.mxu0 0
        %3575 = vmatpush1.bf16.msra.mxu0 0
        %3576 = vmatprep.subr.bf16.mxu0 0
        %3577 = vmatpush1.bf16.msra.mxu0 0
        %3578 = vmatprep.subr.bf16.mxu0 0
        %3579 = vmatpush1.bf16.msra.mxu0 0
        %3580 = vmatprep.subr.bf16.mxu0 0
        %3581 = vmatpush1.bf16.msra.mxu0 0
        %3582 = vmatprep.subr.bf16.mxu0 0
        %3583 = vmatpush1.bf16.msra.mxu0 0
        %3584 = vmatprep.subr.bf16.mxu0 0
        %3585 = vmatpush1.bf16.msra.mxu0 0
        %3586 = vmatprep.mubr.bf16.mxu0 0
        %3587 = vmatmul.mubr.bf16.gmra.mrb[0].mxu0 %v1522
        %v3588 = vpop.f32.mrb[0].mxu0
        %v3589 = vadd.f32 0.0, %v3588
        %v3590 = vpop.f32.mrb[0].mxu0
        %v3591 = vpop.f32.mrb[0].mxu0
        %v3592 = vadd.f32 0.0, %v3591
        %v3593 = vpop.f32.mrb[0].mxu0
        %3594 = vmatprep.mubr.bf16.mxu0 0
        %3595 = vmatmul.mubr.bf16.gmra.mrb[0].mxu0 %v1525
        %v3596 = vpop.f32.mrb[0].mxu0
        %v3597 = vadd.f32 0.0, %v3596
        %v3598 = vpop.f32.mrb[0].mxu0
        %v3599 = vpop.f32.mrb[0].mxu0
        %v3600 = vadd.f32 0.0, %v3599
        %v3601 = vpop.f32.mrb[0].mxu0
        %3602 = vmatprep.mubr.bf16.mxu0 0
        %3603 = vmatmul.mubr.bf16.gmra.mrb[0].mxu0 %v2576
        %v3604 = vpop.f32.mrb[0].mxu0
        %v3605 = vadd.f32 0.0, %v3604
        %v3606 = vpop.f32.mrb[0].mxu0
        %v3607 = vpop.f32.mrb[0].mxu0
        %v3608 = vadd.f32 0.0, %v3607
        %v3609 = vpop.f32.mrb[0].mxu0
        %3610 = vmatprep.mubr.bf16.mxu0 0
        %3611 = vmatmul.mubr.bf16.gmra.mrb[0].mxu0 %v3552
        %v3612 = vpop.f32.mrb[0].mxu0
        %v3613 = vadd.f32 0.0, %v3612
        %v3614 = vpop.f32.mrb[0].mxu0
        %v3615 = vpop.f32.mrb[0].mxu0
        %v3616 = vadd.f32 0.0, %v3615
        %v3617 = vpop.f32.mrb[0].mxu0
        %3618 = vdwg.mxu0
        %v3619 = vadd.f32 %v3525, %v3589
        %v3620 = vadd.f32 %v3526, %v3592
        %v3621 = vadd.f32 %v3527, %v3597
        %v3622 = vadd.f32 %v3528, %v3600
        %v3623 = vadd.f32 %v3529, %v3605
        %v3624 = vadd.f32 %v3530, %v3608
        %v3625 = vadd.f32 %v3531, %v3613
        %v3626 = vadd.f32 %v3532, %v3616
        %v3629 = vrot.slane %v1346, 1
        %v3630 = vrot.slane %v1347, 1
        %v3631 = vsel %vm1372, %v3629, %v3630
        %v3633 = vpack.c.bf16 %v3631, %v3143
        %s3634 = scalar_lea.vmem %s3, 336
        %v3635 = vld [vmem:[%s3634] sm:$0xf]
        %v3636 = vld [vmem:[%s3634 + $0x4] sm:$0xf]
        %v3637 = vld [vmem:[%s3634 + $0x8] sm:$0xf]
        %v3638 = vld [vmem:[%s3634 + $0xc] sm:$0xf]
        %v3643 = vunpack.c.l.b16 %v3635
        %v3644 = vunpack.c.l.b16 %v3636
        %v3645 = vunpack.c.l.b16 %v3637
        %v3646 = vunpack.c.l.b16 %v3638
        %v3647 = vpack.c.b16 %v3644, %v3643
        %v3648 = vpack.c.b16 %v3646, %v3645
        %v3652 = vsel %vm690, %v3633, 0
        %3654 = vmatprep.subr.bf16.mxu0 0
        %3655 = vmatpush1.bf16.msra.mxu0 %v3647
        %3656 = vmatprep.subr.bf16.mxu0 0
        %3657 = vmatpush1.bf16.msra.mxu0 %v3648
        %3658 = vmatprep.subr.bf16.mxu0 0
        %3659 = vmatpush1.bf16.msra.mxu0 0
        %3660 = vmatprep.subr.bf16.mxu0 0
        %3661 = vmatpush1.bf16.msra.mxu0 0
        %3662 = vmatprep.subr.bf16.mxu0 0
        %3663 = vmatpush1.bf16.msra.mxu0 0
        %3664 = vmatprep.subr.bf16.mxu0 0
        %3665 = vmatpush1.bf16.msra.mxu0 0
        %3666 = vmatprep.subr.bf16.mxu0 0
        %3667 = vmatpush1.bf16.msra.mxu0 0
        %3668 = vmatprep.subr.bf16.mxu0 0
        %3669 = vmatpush1.bf16.msra.mxu0 0
        %3670 = vmatprep.subr.bf16.mxu0 0
        %3671 = vmatpush1.bf16.msra.mxu0 0
        %3672 = vmatprep.subr.bf16.mxu0 0
        %3673 = vmatpush1.bf16.msra.mxu0 0
        %3674 = vmatprep.subr.bf16.mxu0 0
        %3675 = vmatpush1.bf16.msra.mxu0 0
        %3676 = vmatprep.subr.bf16.mxu0 0
        %3677 = vmatpush1.bf16.msra.mxu0 0
        %3678 = vmatprep.subr.bf16.mxu0 0
        %3679 = vmatpush1.bf16.msra.mxu0 0
        %3680 = vmatprep.subr.bf16.mxu0 0
        %3681 = vmatpush1.bf16.msra.mxu0 0
        %3682 = vmatprep.subr.bf16.mxu0 0
        %3683 = vmatpush1.bf16.msra.mxu0 0
        %3684 = vmatprep.subr.bf16.mxu0 0
        %3685 = vmatpush1.bf16.msra.mxu0 0
        %3686 = vmatprep.mubr.bf16.mxu0 0
        %3687 = vmatmul.mubr.bf16.gmra.mrb[0].mxu0 %v1433
        %v3688 = vpop.f32.mrb[0].mxu0
        %v3689 = vadd.f32 0.0, %v3688
        %v3690 = vpop.f32.mrb[0].mxu0
        %v3691 = vpop.f32.mrb[0].mxu0
        %v3692 = vadd.f32 0.0, %v3691
        %v3693 = vpop.f32.mrb[0].mxu0
        %3694 = vmatprep.mubr.bf16.mxu0 0
        %3695 = vmatmul.mubr.bf16.gmra.mrb[0].mxu0 %v1436
        %v3696 = vpop.f32.mrb[0].mxu0
        %v3697 = vadd.f32 0.0, %v3696
        %v3698 = vpop.f32.mrb[0].mxu0
        %v3699 = vpop.f32.mrb[0].mxu0
        %v3700 = vadd.f32 0.0, %v3699
        %v3701 = vpop.f32.mrb[0].mxu0
        %3702 = vmatprep.mubr.bf16.mxu0 0
        %3703 = vmatmul.mubr.bf16.gmra.mrb[0].mxu0 %v2676
        %v3704 = vpop.f32.mrb[0].mxu0
        %v3705 = vadd.f32 0.0, %v3704
        %v3706 = vpop.f32.mrb[0].mxu0
        %v3707 = vpop.f32.mrb[0].mxu0
        %v3708 = vadd.f32 0.0, %v3707
        %v3709 = vpop.f32.mrb[0].mxu0
        %3710 = vmatprep.mubr.bf16.mxu0 0
        %3711 = vmatmul.mubr.bf16.gmra.mrb[0].mxu0 %v3652
        %v3712 = vpop.f32.mrb[0].mxu0
        %v3713 = vadd.f32 0.0, %v3712
        %v3714 = vpop.f32.mrb[0].mxu0
        %v3715 = vpop.f32.mrb[0].mxu0
        %v3716 = vadd.f32 0.0, %v3715
        %v3717 = vpop.f32.mrb[0].mxu0
        %3718 = vdwg.mxu0
        %v3719 = vadd.f32 %v3619, %v3689
        %v3720 = vadd.f32 %v3620, %v3692
        %v3721 = vadd.f32 %v3621, %v3697
        %v3722 = vadd.f32 %v3622, %v3700
        %v3723 = vadd.f32 %v3623, %v3705
        %v3724 = vadd.f32 %v3624, %v3708
        %v3725 = vadd.f32 %v3625, %v3713
        %v3726 = vadd.f32 %v3626, %v3716
        %v3727 = vrot.slane %v1346, 2
        %v3728 = vrot.slane %v1347, 2
        %v3729 = vsel %vm1592, %v3727, %v3728
        %v3731 = vpack.c.bf16 %v3729, %v3241
        %s3732 = scalar_lea.vmem %s3, 352
        %v3733 = vld [vmem:[%s3732] sm:$0xf]
        %v3734 = vld [vmem:[%s3732 + $0x4] sm:$0xf]
        %v3735 = vld [vmem:[%s3732 + $0x8] sm:$0xf]
        %v3736 = vld [vmem:[%s3732 + $0xc] sm:$0xf]
        %v3741 = vunpack.c.l.b16 %v3733
        %v3742 = vunpack.c.l.b16 %v3734
        %v3743 = vunpack.c.l.b16 %v3735
        %v3744 = vunpack.c.l.b16 %v3736
        %v3745 = vpack.c.b16 %v3742, %v3741
        %v3746 = vpack.c.b16 %v3744, %v3743
        %v3750 = vsel %vm690, %v3731, 0
        %3752 = vmatprep.subr.bf16.mxu0 0
        %3753 = vmatpush1.bf16.msra.mxu0 %v3745
        %3754 = vmatprep.subr.bf16.mxu0 0
        %3755 = vmatpush1.bf16.msra.mxu0 %v3746
        %3756 = vmatprep.subr.bf16.mxu0 0
        %3757 = vmatpush1.bf16.msra.mxu0 0
        %3758 = vmatprep.subr.bf16.mxu0 0
        %3759 = vmatpush1.bf16.msra.mxu0 0
        %3760 = vmatprep.subr.bf16.mxu0 0
        %3761 = vmatpush1.bf16.msra.mxu0 0
        %3762 = vmatprep.subr.bf16.mxu0 0
        %3763 = vmatpush1.bf16.msra.mxu0 0
        %3764 = vmatprep.subr.bf16.mxu0 0
        %3765 = vmatpush1.bf16.msra.mxu0 0
        %3766 = vmatprep.subr.bf16.mxu0 0
        %3767 = vmatpush1.bf16.msra.mxu0 0
        %3768 = vmatprep.subr.bf16.mxu0 0
        %3769 = vmatpush1.bf16.msra.mxu0 0
        %3770 = vmatprep.subr.bf16.mxu0 0
        %3771 = vmatpush1.bf16.msra.mxu0 0
        %3772 = vmatprep.subr.bf16.mxu0 0
        %3773 = vmatpush1.bf16.msra.mxu0 0
        %3774 = vmatprep.subr.bf16.mxu0 0
        %3775 = vmatpush1.bf16.msra.mxu0 0
        %3776 = vmatprep.subr.bf16.mxu0 0
        %3777 = vmatpush1.bf16.msra.mxu0 0
        %3778 = vmatprep.subr.bf16.mxu0 0
        %3779 = vmatpush1.bf16.msra.mxu0 0
        %3780 = vmatprep.subr.bf16.mxu0 0
        %3781 = vmatpush1.bf16.msra.mxu0 0
        %3782 = vmatprep.subr.bf16.mxu0 0
        %3783 = vmatpush1.bf16.msra.mxu0 0
        %3784 = vmatprep.mubr.bf16.mxu0 0
        %3785 = vmatmul.mubr.bf16.gmra.mrb[0].mxu0 %v1653
        %v3786 = vpop.f32.mrb[0].mxu0
        %v3787 = vadd.f32 0.0, %v3786
        %v3788 = vpop.f32.mrb[0].mxu0
        %v3789 = vpop.f32.mrb[0].mxu0
        %v3790 = vadd.f32 0.0, %v3789
        %v3791 = vpop.f32.mrb[0].mxu0
        %3792 = vmatprep.mubr.bf16.mxu0 0
        %3793 = vmatmul.mubr.bf16.gmra.mrb[0].mxu0 %v1656
        %v3794 = vpop.f32.mrb[0].mxu0
        %v3795 = vadd.f32 0.0, %v3794
        %v3796 = vpop.f32.mrb[0].mxu0
        %v3797 = vpop.f32.mrb[0].mxu0
        %v3798 = vadd.f32 0.0, %v3797
        %v3799 = vpop.f32.mrb[0].mxu0
        %3800 = vmatprep.mubr.bf16.mxu0 0
        %3801 = vmatmul.mubr.bf16.gmra.mrb[0].mxu0 %v2774
        %v3802 = vpop.f32.mrb[0].mxu0
        %v3803 = vadd.f32 0.0, %v3802
        %v3804 = vpop.f32.mrb[0].mxu0
        %v3805 = vpop.f32.mrb[0].mxu0
        %v3806 = vadd.f32 0.0, %v3805
        %v3807 = vpop.f32.mrb[0].mxu0
        %3808 = vmatprep.mubr.bf16.mxu0 0
        %3809 = vmatmul.mubr.bf16.gmra.mrb[0].mxu0 %v3750
        %v3810 = vpop.f32.mrb[0].mxu0
        %v3811 = vadd.f32 0.0, %v3810
        %v3812 = vpop.f32.mrb[0].mxu0
        %v3813 = vpop.f32.mrb[0].mxu0
        %v3814 = vadd.f32 0.0, %v3813
        %v3815 = vpop.f32.mrb[0].mxu0
        %3816 = vdwg.mxu0
        %v3817 = vadd.f32 %v3719, %v3787
        %v3818 = vadd.f32 %v3720, %v3790
        %v3819 = vadd.f32 %v3721, %v3795
        %v3820 = vadd.f32 %v3722, %v3798
        %v3821 = vadd.f32 %v3723, %v3803
        %v3822 = vadd.f32 %v3724, %v3806
        %v3823 = vadd.f32 %v3725, %v3811
        %v3824 = vadd.f32 %v3726, %v3814
        %v3825 = vrot.slane %v1346, 3
        %v3826 = vrot.slane %v1347, 3
        %v3827 = vsel %vm1731, %v3825, %v3826
        %v3829 = vpack.c.bf16 %v3827, %v3339
        %s3830 = scalar_lea.vmem %s3, 368
        %v3831 = vld [vmem:[%s3830] sm:$0xf]
        %v3832 = vld [vmem:[%s3830 + $0x4] sm:$0xf]
        %v3833 = vld [vmem:[%s3830 + $0x8] sm:$0xf]
        %v3834 = vld [vmem:[%s3830 + $0xc] sm:$0xf]
        %v3839 = vunpack.c.l.b16 %v3831
        %v3840 = vunpack.c.l.b16 %v3832
        %v3841 = vunpack.c.l.b16 %v3833
        %v3842 = vunpack.c.l.b16 %v3834
        %v3843 = vpack.c.b16 %v3840, %v3839
        %v3844 = vpack.c.b16 %v3842, %v3841
        %v3848 = vsel %vm690, %v3829, 0
        %3850 = vmatprep.subr.bf16.mxu0 0
        %3851 = vmatpush1.bf16.msra.mxu0 %v3843
        %3852 = vmatprep.subr.bf16.mxu0 0
        %3853 = vmatpush1.bf16.msra.mxu0 %v3844
        %3854 = vmatprep.subr.bf16.mxu0 0
        %3855 = vmatpush1.bf16.msra.mxu0 0
        %3856 = vmatprep.subr.bf16.mxu0 0
        %3857 = vmatpush1.bf16.msra.mxu0 0
        %3858 = vmatprep.subr.bf16.mxu0 0
        %3859 = vmatpush1.bf16.msra.mxu0 0
        %3860 = vmatprep.subr.bf16.mxu0 0
        %3861 = vmatpush1.bf16.msra.mxu0 0
        %3862 = vmatprep.subr.bf16.mxu0 0
        %3863 = vmatpush1.bf16.msra.mxu0 0
        %3864 = vmatprep.subr.bf16.mxu0 0
        %3865 = vmatpush1.bf16.msra.mxu0 0
        %3866 = vmatprep.subr.bf16.mxu0 0
        %3867 = vmatpush1.bf16.msra.mxu0 0
        %3868 = vmatprep.subr.bf16.mxu0 0
        %3869 = vmatpush1.bf16.msra.mxu0 0
        %3870 = vmatprep.subr.bf16.mxu0 0
        %3871 = vmatpush1.bf16.msra.mxu0 0
        %3872 = vmatprep.subr.bf16.mxu0 0
        %3873 = vmatpush1.bf16.msra.mxu0 0
        %3874 = vmatprep.subr.bf16.mxu0 0
        %3875 = vmatpush1.bf16.msra.mxu0 0
        %3876 = vmatprep.subr.bf16.mxu0 0
        %3877 = vmatpush1.bf16.msra.mxu0 0
        %3878 = vmatprep.subr.bf16.mxu0 0
        %3879 = vmatpush1.bf16.msra.mxu0 0
        %3880 = vmatprep.subr.bf16.mxu0 0
        %3881 = vmatpush1.bf16.msra.mxu0 0
        %3882 = vmatprep.mubr.bf16.mxu0 0
        %3883 = vmatmul.mubr.bf16.gmra.mrb[0].mxu0 %v1792
        %v3884 = vpop.f32.mrb[0].mxu0
        %v3885 = vadd.f32 0.0, %v3884
        %v3886 = vpop.f32.mrb[0].mxu0
        %v3887 = vpop.f32.mrb[0].mxu0
        %v3888 = vadd.f32 0.0, %v3887
        %v3889 = vpop.f32.mrb[0].mxu0
        %3890 = vmatprep.mubr.bf16.mxu0 0
        %3891 = vmatmul.mubr.bf16.gmra.mrb[0].mxu0 %v1795
        %v3892 = vpop.f32.mrb[0].mxu0
        %v3893 = vadd.f32 0.0, %v3892
        %v3894 = vpop.f32.mrb[0].mxu0
        %v3895 = vpop.f32.mrb[0].mxu0
        %v3896 = vadd.f32 0.0, %v3895
        %v3897 = vpop.f32.mrb[0].mxu0
        %3898 = vmatprep.mubr.bf16.mxu0 0
        %3899 = vmatmul.mubr.bf16.gmra.mrb[0].mxu0 %v2872
        %v3900 = vpop.f32.mrb[0].mxu0
        %v3901 = vadd.f32 0.0, %v3900
        %v3902 = vpop.f32.mrb[0].mxu0
        %v3903 = vpop.f32.mrb[0].mxu0
        %v3904 = vadd.f32 0.0, %v3903
        %v3905 = vpop.f32.mrb[0].mxu0
        %3906 = vmatprep.mubr.bf16.mxu0 0
        %3907 = vmatmul.mubr.bf16.gmra.mrb[0].mxu0 %v3848
        %v3908 = vpop.f32.mrb[0].mxu0
        %v3909 = vadd.f32 0.0, %v3908
        %v3910 = vpop.f32.mrb[0].mxu0
        %v3911 = vpop.f32.mrb[0].mxu0
        %v3912 = vadd.f32 0.0, %v3911
        %v3913 = vpop.f32.mrb[0].mxu0
        %3914 = vdwg.mxu0
        %v3915 = vadd.f32 %v3817, %v3885
        %v3916 = vadd.f32 %v3818, %v3888
        %v3917 = vadd.f32 %v3819, %v3893
        %v3918 = vadd.f32 %v3820, %v3896
        %v3919 = vadd.f32 %v3821, %v3901
        %v3920 = vadd.f32 %v3822, %v3904
        %v3921 = vadd.f32 %v3823, %v3909
        %v3922 = vadd.f32 %v3824, %v3912
        %v3923 = vrot.slane %v1346, 4
        %v3924 = vrot.slane %v1347, 4
        %v3925 = vsel %vm1870, %v3923, %v3924
        %v3927 = vpack.c.bf16 %v3925, %v3437
        %s3928 = scalar_lea.vmem %s3, 384
        %v3929 = vld [vmem:[%s3928] sm:$0xf]
        %v3930 = vld [vmem:[%s3928 + $0x4] sm:$0xf]
        %v3931 = vld [vmem:[%s3928 + $0x8] sm:$0xf]
        %v3932 = vld [vmem:[%s3928 + $0xc] sm:$0xf]
        %v3937 = vunpack.c.l.b16 %v3929
        %v3938 = vunpack.c.l.b16 %v3930
        %v3939 = vunpack.c.l.b16 %v3931
        %v3940 = vunpack.c.l.b16 %v3932
        %v3941 = vpack.c.b16 %v3938, %v3937
        %v3942 = vpack.c.b16 %v3940, %v3939
        %v3946 = vsel %vm690, %v3927, 0
        %3948 = vmatprep.subr.bf16.mxu0 0
        %3949 = vmatpush1.bf16.msra.mxu0 %v3941
        %3950 = vmatprep.subr.bf16.mxu0 0
        %3951 = vmatpush1.bf16.msra.mxu0 %v3942
        %3952 = vmatprep.subr.bf16.mxu0 0
        %3953 = vmatpush1.bf16.msra.mxu0 0
        %3954 = vmatprep.subr.bf16.mxu0 0
        %3955 = vmatpush1.bf16.msra.mxu0 0
        %3956 = vmatprep.subr.bf16.mxu0 0
        %3957 = vmatpush1.bf16.msra.mxu0 0
        %3958 = vmatprep.subr.bf16.mxu0 0
        %3959 = vmatpush1.bf16.msra.mxu0 0
        %3960 = vmatprep.subr.bf16.mxu0 0
        %3961 = vmatpush1.bf16.msra.mxu0 0
        %3962 = vmatprep.subr.bf16.mxu0 0
        %3963 = vmatpush1.bf16.msra.mxu0 0
        %3964 = vmatprep.subr.bf16.mxu0 0
        %3965 = vmatpush1.bf16.msra.mxu0 0
        %3966 = vmatprep.subr.bf16.mxu0 0
        %3967 = vmatpush1.bf16.msra.mxu0 0
        %3968 = vmatprep.subr.bf16.mxu0 0
        %3969 = vmatpush1.bf16.msra.mxu0 0
        %3970 = vmatprep.subr.bf16.mxu0 0
        %3971 = vmatpush1.bf16.msra.mxu0 0
        %3972 = vmatprep.subr.bf16.mxu0 0
        %3973 = vmatpush1.bf16.msra.mxu0 0
        %3974 = vmatprep.subr.bf16.mxu0 0
        %3975 = vmatpush1.bf16.msra.mxu0 0
        %3976 = vmatprep.subr.bf16.mxu0 0
        %3977 = vmatpush1.bf16.msra.mxu0 0
        %3978 = vmatprep.subr.bf16.mxu0 0
        %3979 = vmatpush1.bf16.msra.mxu0 0
        %3980 = vmatprep.mubr.bf16.mxu0 0
        %3981 = vmatmul.mubr.bf16.gmra.mrb[0].mxu0 %v1931
        %v3982 = vpop.f32.mrb[0].mxu0
        %v3983 = vadd.f32 0.0, %v3982
        %v3984 = vpop.f32.mrb[0].mxu0
        %v3985 = vpop.f32.mrb[0].mxu0
        %v3986 = vadd.f32 0.0, %v3985
        %v3987 = vpop.f32.mrb[0].mxu0
        %3988 = vmatprep.mubr.bf16.mxu0 0
        %3989 = vmatmul.mubr.bf16.gmra.mrb[0].mxu0 %v1934
        %v3990 = vpop.f32.mrb[0].mxu0
        %v3991 = vadd.f32 0.0, %v3990
        %v3992 = vpop.f32.mrb[0].mxu0
        %v3993 = vpop.f32.mrb[0].mxu0
        %v3994 = vadd.f32 0.0, %v3993
        %v3995 = vpop.f32.mrb[0].mxu0
        %3996 = vmatprep.mubr.bf16.mxu0 0
        %3997 = vmatmul.mubr.bf16.gmra.mrb[0].mxu0 %v2970
        %v3998 = vpop.f32.mrb[0].mxu0
        %v3999 = vadd.f32 0.0, %v3998
        %v4000 = vpop.f32.mrb[0].mxu0
        %v4001 = vpop.f32.mrb[0].mxu0
        %v4002 = vadd.f32 0.0, %v4001
        %v4003 = vpop.f32.mrb[0].mxu0
        %4004 = vmatprep.mubr.bf16.mxu0 0
        %4005 = vmatmul.mubr.bf16.gmra.mrb[0].mxu0 %v3946
        %v4006 = vpop.f32.mrb[0].mxu0
        %v4007 = vadd.f32 0.0, %v4006
        %v4008 = vpop.f32.mrb[0].mxu0
        %v4009 = vpop.f32.mrb[0].mxu0
        %v4010 = vadd.f32 0.0, %v4009
        %v4011 = vpop.f32.mrb[0].mxu0
        %4012 = vdwg.mxu0
        %v4013 = vadd.f32 %v3915, %v3983
        %v4014 = vadd.f32 %v3916, %v3986
        %v4015 = vadd.f32 %v3917, %v3991
        %v4016 = vadd.f32 %v3918, %v3994
        %v4017 = vadd.f32 %v3919, %v3999
        %v4018 = vadd.f32 %v3920, %v4002
        %v4019 = vadd.f32 %v3921, %v4007
        %v4020 = vadd.f32 %v3922, %v4010
        %v4021 = vld [vmem:[%s4] sm:$0x1]
        %v4023 = vlaneseq
        %v4024 = vshrl.u32 %v4023, 7
        %v4025 = vsub.s32 0, %v4024
        %v4026 = vrot.slane %v4021, %v4025
        %v4028 = vadd.f32 %v4013, %v4026
        %v4029 = vadd.f32 %v4014, %v4026
        %v4030 = vadd.f32 %v4015, %v4026
        %v4031 = vadd.f32 %v4016, %v4026
        %v4032 = vadd.f32 %v4017, %v4026
        %v4033 = vadd.f32 %v4018, %v4026
        %v4034 = vadd.f32 %v4019, %v4026
        %v4035 = vadd.f32 %v4020, %v4026
        %v4036 = vld [vmem:[%s6] sm:$0xf]
        %v4038 = vrot.slane %v4028, 1
        %v4040 = vmax.f32 %v4028, %v4038
        %v4042 = vrot.slane %v4029, 1
        %v4044 = vmax.f32 %v4029, %v4042
        %v4045 = vmax.f32 %v4040, %v4044
        %v4046 = vmax.f32 %v4045, 0.0
        %v4047 = vpack.c.bf16 %v4046, %v4046
        %v4048 = vld [vmem:[%s5] sm:$0xff]
        %v4049 = vld [vmem:[%s5 + $0x8] sm:$0xff]
        %v4050 = vld [vmem:[%s5 + $0x10] sm:$0xff]
        %v4051 = vld [vmem:[%s5 + $0x18] sm:$0xff]
        %v4052 = vld [vmem:[%s5 + $0x20] sm:$0xff]
        %v4053 = vld [vmem:[%s5 + $0x28] sm:$0xff]
        %v4054 = vld [vmem:[%s5 + $0x30] sm:$0xff]
        %v4055 = vld [vmem:[%s5 + $0x38] sm:$0xff]
        %v4056 = vld [vmem:[%s5 + $0x40] sm:$0xff]
        %v4057 = vld [vmem:[%s5 + $0x48] sm:$0xff]
        %v4058 = vld [vmem:[%s5 + $0x50] sm:$0xff]
        %v4059 = vld [vmem:[%s5 + $0x58] sm:$0xff]
        %v4060 = vld [vmem:[%s5 + $0x60] sm:$0xff]
        %v4061 = vld [vmem:[%s5 + $0x68] sm:$0xff]
        %v4062 = vld [vmem:[%s5 + $0x70] sm:$0xff]
        %v4063 = vld [vmem:[%s5 + $0x78] sm:$0xff]
        %v4080 = vunpack.c.l.b16 %v4048
        %v4081 = vunpack.c.h.b16 %v4048
        %v4082 = vunpack.c.l.b16 %v4049
        %v4083 = vunpack.c.h.b16 %v4049
        %v4084 = vunpack.c.l.b16 %v4050
        %v4085 = vunpack.c.h.b16 %v4050
        %v4086 = vunpack.c.l.b16 %v4051
        %v4087 = vunpack.c.h.b16 %v4051
        %v4088 = vunpack.c.l.b16 %v4052
        %v4089 = vunpack.c.h.b16 %v4052
        %v4090 = vunpack.c.l.b16 %v4053
        %v4091 = vunpack.c.h.b16 %v4053
        %v4092 = vunpack.c.l.b16 %v4054
        %v4093 = vunpack.c.h.b16 %v4054
        %v4094 = vunpack.c.l.b16 %v4055
        %v4095 = vunpack.c.h.b16 %v4055
        %v4096 = vunpack.c.l.b16 %v4056
        %v4097 = vunpack.c.h.b16 %v4056
        %v4098 = vunpack.c.l.b16 %v4057
        %v4099 = vunpack.c.h.b16 %v4057
        %v4100 = vunpack.c.l.b16 %v4058
        %v4101 = vunpack.c.h.b16 %v4058
        %v4102 = vunpack.c.l.b16 %v4059
        %v4103 = vunpack.c.h.b16 %v4059
        %v4104 = vunpack.c.l.b16 %v4060
        %v4105 = vunpack.c.h.b16 %v4060
        %v4106 = vunpack.c.l.b16 %v4061
        %v4107 = vunpack.c.h.b16 %v4061
        %v4108 = vunpack.c.l.b16 %v4062
        %v4109 = vunpack.c.h.b16 %v4062
        %v4110 = vunpack.c.l.b16 %v4063
        %v4111 = vunpack.c.h.b16 %v4063
        %v4112 = vpack.c.b16 %v4084, %v4080
        %v4113 = vpack.c.b16 %v4085, %v4081
        %v4114 = vpack.c.b16 %v4086, %v4082
        %v4115 = vpack.c.b16 %v4087, %v4083
        %v4116 = vpack.c.b16 %v4092, %v4088
        %v4117 = vpack.c.b16 %v4093, %v4089
        %v4118 = vpack.c.b16 %v4094, %v4090
        %v4119 = vpack.c.b16 %v4095, %v4091
        %v4120 = vpack.c.b16 %v4100, %v4096
        %v4121 = vpack.c.b16 %v4101, %v4097
        %v4122 = vpack.c.b16 %v4102, %v4098
        %v4123 = vpack.c.b16 %v4103, %v4099
        %v4124 = vpack.c.b16 %v4108, %v4104
        %v4125 = vpack.c.b16 %v4109, %v4105
        %v4126 = vpack.c.b16 %v4110, %v4106
        %v4127 = vpack.c.b16 %v4111, %v4107
        %vm4144 = vcmask 523264
        %v4146 = vsel %vm4144, %v4047, 0
        %4148 = vmatprep.subr.bf16.mxu0 %v4113
        %4149 = vmatpush1.bf16.msra.mxu0 %v4112
        %4150 = vmatprep.subr.bf16.mxu0 %v4117
        %4151 = vmatpush1.bf16.msra.mxu0 %v4116
        %4152 = vmatprep.subr.bf16.mxu0 %v4121
        %4153 = vmatpush1.bf16.msra.mxu0 %v4120
        %4154 = vmatprep.subr.bf16.mxu0 %v4125
        %4155 = vmatpush1.bf16.msra.mxu0 %v4124
        %4156 = vmatprep.subr.bf16.mxu0 0
        %4157 = vmatpush1.bf16.msra.mxu0 0
        %4158 = vmatprep.subr.bf16.mxu0 0
        %4159 = vmatpush1.bf16.msra.mxu0 0
        %4160 = vmatprep.subr.bf16.mxu0 0
        %4161 = vmatpush1.bf16.msra.mxu0 0
        %4162 = vmatprep.subr.bf16.mxu0 0
        %4163 = vmatpush1.bf16.msra.mxu0 0
        %4164 = vmatprep.subr.bf16.mxu0 0
        %4165 = vmatpush1.bf16.msra.mxu0 0
        %4166 = vmatprep.subr.bf16.mxu0 0
        %4167 = vmatpush1.bf16.msra.mxu0 0
        %4168 = vmatprep.subr.bf16.mxu0 0
        %4169 = vmatpush1.bf16.msra.mxu0 0
        %4170 = vmatprep.subr.bf16.mxu0 0
        %4171 = vmatpush1.bf16.msra.mxu0 0
        %4172 = vmatprep.subr.bf16.mxu0 0
        %4173 = vmatpush1.bf16.msra.mxu0 0
        %4174 = vmatprep.subr.bf16.mxu0 0
        %4175 = vmatpush1.bf16.msra.mxu0 0
        %4176 = vmatprep.subr.bf16.mxu0 0
        %4177 = vmatpush1.bf16.msra.mxu0 0
        %4178 = vmatprep.subr.bf16.mxu0 0
        %4179 = vmatpush1.bf16.msra.mxu0 0
        %4180 = vmatprep.mubr.bf16.mxu0 0
        %4181 = vmatmul.mubr.bf16.gmra.mrb[0].mxu0 %v4146
        %v4182 = vpop.f32.mrb[0].mxu0
        %v4183 = vadd.f32 0.0, %v4182
        %v4184 = vpop.f32.mrb[0].mxu0
        %v4185 = vadd.f32 0.0, %v4184
        %v4186 = vpop.f32.mrb[0].mxu0
        %v4187 = vpop.f32.mrb[0].mxu0
        %4188 = vdwg.mxu0
        %4189 = vmatprep.subr.bf16.mxu0 %v4115
        %4190 = vmatpush1.bf16.msra.mxu0 %v4114
        %4191 = vmatprep.subr.bf16.mxu0 %v4119
        %4192 = vmatpush1.bf16.msra.mxu0 %v4118
        %4193 = vmatprep.subr.bf16.mxu0 %v4123
        %4194 = vmatpush1.bf16.msra.mxu0 %v4122
        %4195 = vmatprep.subr.bf16.mxu0 %v4127
        %4196 = vmatpush1.bf16.msra.mxu0 %v4126
        %4197 = vmatprep.subr.bf16.mxu0 0
        %4198 = vmatpush1.bf16.msra.mxu0 0
        %4199 = vmatprep.subr.bf16.mxu0 0
        %4200 = vmatpush1.bf16.msra.mxu0 0
        %4201 = vmatprep.subr.bf16.mxu0 0
        %4202 = vmatpush1.bf16.msra.mxu0 0
        %4203 = vmatprep.subr.bf16.mxu0 0
        %4204 = vmatpush1.bf16.msra.mxu0 0
        %4205 = vmatprep.subr.bf16.mxu0 0
        %4206 = vmatpush1.bf16.msra.mxu0 0
        %4207 = vmatprep.subr.bf16.mxu0 0
        %4208 = vmatpush1.bf16.msra.mxu0 0
        %4209 = vmatprep.subr.bf16.mxu0 0
        %4210 = vmatpush1.bf16.msra.mxu0 0
        %4211 = vmatprep.subr.bf16.mxu0 0
        %4212 = vmatpush1.bf16.msra.mxu0 0
        %4213 = vmatprep.subr.bf16.mxu0 0
        %4214 = vmatpush1.bf16.msra.mxu0 0
        %4215 = vmatprep.subr.bf16.mxu0 0
        %4216 = vmatpush1.bf16.msra.mxu0 0
        %4217 = vmatprep.subr.bf16.mxu0 0
        %4218 = vmatpush1.bf16.msra.mxu0 0
        %4219 = vmatprep.subr.bf16.mxu0 0
        %4220 = vmatpush1.bf16.msra.mxu0 0
        %4221 = vmatprep.mubr.bf16.mxu0 0
        %4222 = vmatmul.mubr.bf16.gmra.mrb[0].mxu0 %v4146
        %v4223 = vpop.f32.mrb[0].mxu0
        %v4224 = vadd.f32 0.0, %v4223
        %v4225 = vpop.f32.mrb[0].mxu0
        %v4226 = vadd.f32 0.0, %v4225
        %v4227 = vpop.f32.mrb[0].mxu0
        %v4228 = vpop.f32.mrb[0].mxu0
        %4229 = vdwg.mxu0
        %v4234 = vcombine.low %v4183, %v4185
        %v4235 = vcombine.low %v4224, %v4226
        %v4237 = vunpack.c.l.s4 1966171168
        %v4238 = vunpack.c.0.s8 %v4237
        %v4239 = vlaneseq
        %v4240 = vshrl.u32 %v4239, 7
        %v4241 = vsub.s32 %v4238, %v4240
        %v4242 = vrot.slane %v4234, %v4241
        %v4244 = vunpack.c.l.s4 1966171168
        %v4245 = vunpack.c.0.s8 %v4244
        %v4246 = vlaneseq
        %v4247 = vshrl.u32 %v4246, 7
        %v4248 = vsub.s32 %v4245, %v4247
        %v4249 = vrot.slane %v4235, %v4248
        %v4250 = vcombine.low %v4242, %v4249
        %v4252 = vunpack.c.l.s4 1966171168
        %v4253 = vunpack.c.0.s8 %v4252
        %v4254 = vlaneseq
        %v4255 = vshrl.u32 %v4254, 7
        %v4256 = vsub.s32 %v4253, %v4255
        %v4257 = vrot.slane %v4250, %v4256
        %v4259 = vadd.f32 %v4036, %v4257
        %s4260 = scalar_lea.vmem %s5, 128
        %v4261 = vld [vmem:[%s4260] sm:$0xff]
        %v4262 = vld [vmem:[%s4260 + $0x8] sm:$0xff]
        %v4263 = vld [vmem:[%s4260 + $0x10] sm:$0xff]
        %v4264 = vld [vmem:[%s4260 + $0x18] sm:$0xff]
        %v4265 = vld [vmem:[%s4260 + $0x20] sm:$0xff]
        %v4266 = vld [vmem:[%s4260 + $0x28] sm:$0xff]
        %v4267 = vld [vmem:[%s4260 + $0x30] sm:$0xff]
        %v4268 = vld [vmem:[%s4260 + $0x38] sm:$0xff]
        %v4269 = vld [vmem:[%s4260 + $0x40] sm:$0xff]
        %v4270 = vld [vmem:[%s4260 + $0x48] sm:$0xff]
        %v4271 = vld [vmem:[%s4260 + $0x50] sm:$0xff]
        %v4272 = vld [vmem:[%s4260 + $0x58] sm:$0xff]
        %v4273 = vld [vmem:[%s4260 + $0x60] sm:$0xff]
        %v4274 = vld [vmem:[%s4260 + $0x68] sm:$0xff]
        %v4275 = vld [vmem:[%s4260 + $0x70] sm:$0xff]
        %v4276 = vld [vmem:[%s4260 + $0x78] sm:$0xff]
        %v4278 = vrot.slane %v4047, 1
        %v4295 = vunpack.c.l.b16 %v4261
        %v4296 = vunpack.c.h.b16 %v4261
        %v4297 = vunpack.c.l.b16 %v4262
        %v4298 = vunpack.c.h.b16 %v4262
        %v4299 = vunpack.c.l.b16 %v4263
        %v4300 = vunpack.c.h.b16 %v4263
        %v4301 = vunpack.c.l.b16 %v4264
        %v4302 = vunpack.c.h.b16 %v4264
        %v4303 = vunpack.c.l.b16 %v4265
        %v4304 = vunpack.c.h.b16 %v4265
        %v4305 = vunpack.c.l.b16 %v4266
        %v4306 = vunpack.c.h.b16 %v4266
        %v4307 = vunpack.c.l.b16 %v4267
        %v4308 = vunpack.c.h.b16 %v4267
        %v4309 = vunpack.c.l.b16 %v4268
        %v4310 = vunpack.c.h.b16 %v4268
        %v4311 = vunpack.c.l.b16 %v4269
        %v4312 = vunpack.c.h.b16 %v4269
        %v4313 = vunpack.c.l.b16 %v4270
        %v4314 = vunpack.c.h.b16 %v4270
        %v4315 = vunpack.c.l.b16 %v4271
        %v4316 = vunpack.c.h.b16 %v4271
        %v4317 = vunpack.c.l.b16 %v4272
        %v4318 = vunpack.c.h.b16 %v4272
        %v4319 = vunpack.c.l.b16 %v4273
        %v4320 = vunpack.c.h.b16 %v4273
        %v4321 = vunpack.c.l.b16 %v4274
        %v4322 = vunpack.c.h.b16 %v4274
        %v4323 = vunpack.c.l.b16 %v4275
        %v4324 = vunpack.c.h.b16 %v4275
        %v4325 = vunpack.c.l.b16 %v4276
        %v4326 = vunpack.c.h.b16 %v4276
        %v4327 = vpack.c.b16 %v4299, %v4295
        %v4328 = vpack.c.b16 %v4300, %v4296
        %v4329 = vpack.c.b16 %v4301, %v4297
        %v4330 = vpack.c.b16 %v4302, %v4298
        %v4331 = vpack.c.b16 %v4307, %v4303
        %v4332 = vpack.c.b16 %v4308, %v4304
        %v4333 = vpack.c.b16 %v4309, %v4305
        %v4334 = vpack.c.b16 %v4310, %v4306
        %v4335 = vpack.c.b16 %v4315, %v4311
        %v4336 = vpack.c.b16 %v4316, %v4312
        %v4337 = vpack.c.b16 %v4317, %v4313
        %v4338 = vpack.c.b16 %v4318, %v4314
        %v4339 = vpack.c.b16 %v4323, %v4319
        %v4340 = vpack.c.b16 %v4324, %v4320
        %v4341 = vpack.c.b16 %v4325, %v4321
        %v4342 = vpack.c.b16 %v4326, %v4322
        %v4360 = vsel %vm4144, %v4278, 0
        %4362 = vmatprep.subr.bf16.mxu0 %v4328
        %4363 = vmatpush1.bf16.msra.mxu0 %v4327
        %4364 = vmatprep.subr.bf16.mxu0 %v4332
        %4365 = vmatpush1.bf16.msra.mxu0 %v4331
        %4366 = vmatprep.subr.bf16.mxu0 %v4336
        %4367 = vmatpush1.bf16.msra.mxu0 %v4335
        %4368 = vmatprep.subr.bf16.mxu0 %v4340
        %4369 = vmatpush1.bf16.msra.mxu0 %v4339
        %4370 = vmatprep.subr.bf16.mxu0 0
        %4371 = vmatpush1.bf16.msra.mxu0 0
        %4372 = vmatprep.subr.bf16.mxu0 0
        %4373 = vmatpush1.bf16.msra.mxu0 0
        %4374 = vmatprep.subr.bf16.mxu0 0
        %4375 = vmatpush1.bf16.msra.mxu0 0
        %4376 = vmatprep.subr.bf16.mxu0 0
        %4377 = vmatpush1.bf16.msra.mxu0 0
        %4378 = vmatprep.subr.bf16.mxu0 0
        %4379 = vmatpush1.bf16.msra.mxu0 0
        %4380 = vmatprep.subr.bf16.mxu0 0
        %4381 = vmatpush1.bf16.msra.mxu0 0
        %4382 = vmatprep.subr.bf16.mxu0 0
        %4383 = vmatpush1.bf16.msra.mxu0 0
        %4384 = vmatprep.subr.bf16.mxu0 0
        %4385 = vmatpush1.bf16.msra.mxu0 0
        %4386 = vmatprep.subr.bf16.mxu0 0
        %4387 = vmatpush1.bf16.msra.mxu0 0
        %4388 = vmatprep.subr.bf16.mxu0 0
        %4389 = vmatpush1.bf16.msra.mxu0 0
        %4390 = vmatprep.subr.bf16.mxu0 0
        %4391 = vmatpush1.bf16.msra.mxu0 0
        %4392 = vmatprep.subr.bf16.mxu0 0
        %4393 = vmatpush1.bf16.msra.mxu0 0
        %4394 = vmatprep.mubr.bf16.mxu0 0
        %4395 = vmatmul.mubr.bf16.gmra.mrb[0].mxu0 %v4360
        %v4396 = vpop.f32.mrb[0].mxu0
        %v4397 = vadd.f32 0.0, %v4396
        %v4398 = vpop.f32.mrb[0].mxu0
        %v4399 = vadd.f32 0.0, %v4398
        %v4400 = vpop.f32.mrb[0].mxu0
        %v4401 = vpop.f32.mrb[0].mxu0
        %4402 = vdwg.mxu0
        %4403 = vmatprep.subr.bf16.mxu0 %v4330
        %4404 = vmatpush1.bf16.msra.mxu0 %v4329
        %4405 = vmatprep.subr.bf16.mxu0 %v4334
        %4406 = vmatpush1.bf16.msra.mxu0 %v4333
        %4407 = vmatprep.subr.bf16.mxu0 %v4338
        %4408 = vmatpush1.bf16.msra.mxu0 %v4337
        %4409 = vmatprep.subr.bf16.mxu0 %v4342
        %4410 = vmatpush1.bf16.msra.mxu0 %v4341
        %4411 = vmatprep.subr.bf16.mxu0 0
        %4412 = vmatpush1.bf16.msra.mxu0 0
        %4413 = vmatprep.subr.bf16.mxu0 0
        %4414 = vmatpush1.bf16.msra.mxu0 0
        %4415 = vmatprep.subr.bf16.mxu0 0
        %4416 = vmatpush1.bf16.msra.mxu0 0
        %4417 = vmatprep.subr.bf16.mxu0 0
        %4418 = vmatpush1.bf16.msra.mxu0 0
        %4419 = vmatprep.subr.bf16.mxu0 0
        %4420 = vmatpush1.bf16.msra.mxu0 0
        %4421 = vmatprep.subr.bf16.mxu0 0
        %4422 = vmatpush1.bf16.msra.mxu0 0
        %4423 = vmatprep.subr.bf16.mxu0 0
        %4424 = vmatpush1.bf16.msra.mxu0 0
        %4425 = vmatprep.subr.bf16.mxu0 0
        %4426 = vmatpush1.bf16.msra.mxu0 0
        %4427 = vmatprep.subr.bf16.mxu0 0
        %4428 = vmatpush1.bf16.msra.mxu0 0
        %4429 = vmatprep.subr.bf16.mxu0 0
        %4430 = vmatpush1.bf16.msra.mxu0 0
        %4431 = vmatprep.subr.bf16.mxu0 0
        %4432 = vmatpush1.bf16.msra.mxu0 0
        %4433 = vmatprep.subr.bf16.mxu0 0
        %4434 = vmatpush1.bf16.msra.mxu0 0
        %4435 = vmatprep.mubr.bf16.mxu0 0
        %4436 = vmatmul.mubr.bf16.gmra.mrb[0].mxu0 %v4360
        %v4437 = vpop.f32.mrb[0].mxu0
        %v4438 = vadd.f32 0.0, %v4437
        %v4439 = vpop.f32.mrb[0].mxu0
        %v4440 = vadd.f32 0.0, %v4439
        %v4441 = vpop.f32.mrb[0].mxu0
        %v4442 = vpop.f32.mrb[0].mxu0
        %4443 = vdwg.mxu0
        %v4448 = vcombine.low %v4397, %v4399
        %v4449 = vcombine.low %v4438, %v4440
        %v4451 = vunpack.c.l.s4 1966171168
        %v4452 = vunpack.c.0.s8 %v4451
        %v4453 = vlaneseq
        %v4454 = vshrl.u32 %v4453, 7
        %v4455 = vsub.s32 %v4452, %v4454
        %v4456 = vrot.slane %v4448, %v4455
        %v4458 = vunpack.c.l.s4 1966171168
        %v4459 = vunpack.c.0.s8 %v4458
        %v4460 = vlaneseq
        %v4461 = vshrl.u32 %v4460, 7
        %v4462 = vsub.s32 %v4459, %v4461
        %v4463 = vrot.slane %v4449, %v4462
        %v4464 = vcombine.low %v4456, %v4463
        %v4466 = vunpack.c.l.s4 1966171168
        %v4467 = vunpack.c.0.s8 %v4466
        %v4468 = vlaneseq
        %v4469 = vshrl.u32 %v4468, 7
        %v4470 = vsub.s32 %v4467, %v4469
        %v4471 = vrot.slane %v4464, %v4470
        %v4473 = vadd.f32 %v4259, %v4471
        %s4474 = scalar_lea.vmem %s5, 256
        %v4475 = vld [vmem:[%s4474] sm:$0xff]
        %v4476 = vld [vmem:[%s4474 + $0x8] sm:$0xff]
        %v4477 = vld [vmem:[%s4474 + $0x10] sm:$0xff]
        %v4478 = vld [vmem:[%s4474 + $0x18] sm:$0xff]
        %v4479 = vld [vmem:[%s4474 + $0x20] sm:$0xff]
        %v4480 = vld [vmem:[%s4474 + $0x28] sm:$0xff]
        %v4481 = vld [vmem:[%s4474 + $0x30] sm:$0xff]
        %v4482 = vld [vmem:[%s4474 + $0x38] sm:$0xff]
        %v4483 = vld [vmem:[%s4474 + $0x40] sm:$0xff]
        %v4484 = vld [vmem:[%s4474 + $0x48] sm:$0xff]
        %v4485 = vld [vmem:[%s4474 + $0x50] sm:$0xff]
        %v4486 = vld [vmem:[%s4474 + $0x58] sm:$0xff]
        %v4487 = vld [vmem:[%s4474 + $0x60] sm:$0xff]
        %v4488 = vld [vmem:[%s4474 + $0x68] sm:$0xff]
        %v4489 = vld [vmem:[%s4474 + $0x70] sm:$0xff]
        %v4490 = vld [vmem:[%s4474 + $0x78] sm:$0xff]
        %v4491 = vrot.slane %v4047, 2
        %v4508 = vunpack.c.l.b16 %v4475
        %v4509 = vunpack.c.h.b16 %v4475
        %v4510 = vunpack.c.l.b16 %v4476
        %v4511 = vunpack.c.h.b16 %v4476
        %v4512 = vunpack.c.l.b16 %v4477
        %v4513 = vunpack.c.h.b16 %v4477
        %v4514 = vunpack.c.l.b16 %v4478
        %v4515 = vunpack.c.h.b16 %v4478
        %v4516 = vunpack.c.l.b16 %v4479
        %v4517 = vunpack.c.h.b16 %v4479
        %v4518 = vunpack.c.l.b16 %v4480
        %v4519 = vunpack.c.h.b16 %v4480
        %v4520 = vunpack.c.l.b16 %v4481
        %v4521 = vunpack.c.h.b16 %v4481
        %v4522 = vunpack.c.l.b16 %v4482
        %v4523 = vunpack.c.h.b16 %v4482
        %v4524 = vunpack.c.l.b16 %v4483
        %v4525 = vunpack.c.h.b16 %v4483
        %v4526 = vunpack.c.l.b16 %v4484
        %v4527 = vunpack.c.h.b16 %v4484
        %v4528 = vunpack.c.l.b16 %v4485
        %v4529 = vunpack.c.h.b16 %v4485
        %v4530 = vunpack.c.l.b16 %v4486
        %v4531 = vunpack.c.h.b16 %v4486
        %v4532 = vunpack.c.l.b16 %v4487
        %v4533 = vunpack.c.h.b16 %v4487
        %v4534 = vunpack.c.l.b16 %v4488
        %v4535 = vunpack.c.h.b16 %v4488
        %v4536 = vunpack.c.l.b16 %v4489
        %v4537 = vunpack.c.h.b16 %v4489
        %v4538 = vunpack.c.l.b16 %v4490
        %v4539 = vunpack.c.h.b16 %v4490
        %v4540 = vpack.c.b16 %v4512, %v4508
        %v4541 = vpack.c.b16 %v4513, %v4509
        %v4542 = vpack.c.b16 %v4514, %v4510
        %v4543 = vpack.c.b16 %v4515, %v4511
        %v4544 = vpack.c.b16 %v4520, %v4516
        %v4545 = vpack.c.b16 %v4521, %v4517
        %v4546 = vpack.c.b16 %v4522, %v4518
        %v4547 = vpack.c.b16 %v4523, %v4519
        %v4548 = vpack.c.b16 %v4528, %v4524
        %v4549 = vpack.c.b16 %v4529, %v4525
        %v4550 = vpack.c.b16 %v4530, %v4526
        %v4551 = vpack.c.b16 %v4531, %v4527
        %v4552 = vpack.c.b16 %v4536, %v4532
        %v4553 = vpack.c.b16 %v4537, %v4533
        %v4554 = vpack.c.b16 %v4538, %v4534
        %v4555 = vpack.c.b16 %v4539, %v4535
        %v4573 = vsel %vm4144, %v4491, 0
        %4575 = vmatprep.subr.bf16.mxu0 %v4541
        %4576 = vmatpush1.bf16.msra.mxu0 %v4540
        %4577 = vmatprep.subr.bf16.mxu0 %v4545
        %4578 = vmatpush1.bf16.msra.mxu0 %v4544
        %4579 = vmatprep.subr.bf16.mxu0 %v4549
        %4580 = vmatpush1.bf16.msra.mxu0 %v4548
        %4581 = vmatprep.subr.bf16.mxu0 %v4553
        %4582 = vmatpush1.bf16.msra.mxu0 %v4552
        %4583 = vmatprep.subr.bf16.mxu0 0
        %4584 = vmatpush1.bf16.msra.mxu0 0
        %4585 = vmatprep.subr.bf16.mxu0 0
        %4586 = vmatpush1.bf16.msra.mxu0 0
        %4587 = vmatprep.subr.bf16.mxu0 0
        %4588 = vmatpush1.bf16.msra.mxu0 0
        %4589 = vmatprep.subr.bf16.mxu0 0
        %4590 = vmatpush1.bf16.msra.mxu0 0
        %4591 = vmatprep.subr.bf16.mxu0 0
        %4592 = vmatpush1.bf16.msra.mxu0 0
        %4593 = vmatprep.subr.bf16.mxu0 0
        %4594 = vmatpush1.bf16.msra.mxu0 0
        %4595 = vmatprep.subr.bf16.mxu0 0
        %4596 = vmatpush1.bf16.msra.mxu0 0
        %4597 = vmatprep.subr.bf16.mxu0 0
        %4598 = vmatpush1.bf16.msra.mxu0 0
        %4599 = vmatprep.subr.bf16.mxu0 0
        %4600 = vmatpush1.bf16.msra.mxu0 0
        %4601 = vmatprep.subr.bf16.mxu0 0
        %4602 = vmatpush1.bf16.msra.mxu0 0
        %4603 = vmatprep.subr.bf16.mxu0 0
        %4604 = vmatpush1.bf16.msra.mxu0 0
        %4605 = vmatprep.subr.bf16.mxu0 0
        %4606 = vmatpush1.bf16.msra.mxu0 0
        %4607 = vmatprep.mubr.bf16.mxu0 0
        %4608 = vmatmul.mubr.bf16.gmra.mrb[0].mxu0 %v4573
        %v4609 = vpop.f32.mrb[0].mxu0
        %v4610 = vadd.f32 0.0, %v4609
        %v4611 = vpop.f32.mrb[0].mxu0
        %v4612 = vadd.f32 0.0, %v4611
        %v4613 = vpop.f32.mrb[0].mxu0
        %v4614 = vpop.f32.mrb[0].mxu0
        %4615 = vdwg.mxu0
        %4616 = vmatprep.subr.bf16.mxu0 %v4543
        %4617 = vmatpush1.bf16.msra.mxu0 %v4542
        %4618 = vmatprep.subr.bf16.mxu0 %v4547
        %4619 = vmatpush1.bf16.msra.mxu0 %v4546
        %4620 = vmatprep.subr.bf16.mxu0 %v4551
        %4621 = vmatpush1.bf16.msra.mxu0 %v4550
        %4622 = vmatprep.subr.bf16.mxu0 %v4555
        %4623 = vmatpush1.bf16.msra.mxu0 %v4554
        %4624 = vmatprep.subr.bf16.mxu0 0
        %4625 = vmatpush1.bf16.msra.mxu0 0
        %4626 = vmatprep.subr.bf16.mxu0 0
        %4627 = vmatpush1.bf16.msra.mxu0 0
        %4628 = vmatprep.subr.bf16.mxu0 0
        %4629 = vmatpush1.bf16.msra.mxu0 0
        %4630 = vmatprep.subr.bf16.mxu0 0
        %4631 = vmatpush1.bf16.msra.mxu0 0
        %4632 = vmatprep.subr.bf16.mxu0 0
        %4633 = vmatpush1.bf16.msra.mxu0 0
        %4634 = vmatprep.subr.bf16.mxu0 0
        %4635 = vmatpush1.bf16.msra.mxu0 0
        %4636 = vmatprep.subr.bf16.mxu0 0
        %4637 = vmatpush1.bf16.msra.mxu0 0
        %4638 = vmatprep.subr.bf16.mxu0 0
        %4639 = vmatpush1.bf16.msra.mxu0 0
        %4640 = vmatprep.subr.bf16.mxu0 0
        %4641 = vmatpush1.bf16.msra.mxu0 0
        %4642 = vmatprep.subr.bf16.mxu0 0
        %4643 = vmatpush1.bf16.msra.mxu0 0
        %4644 = vmatprep.subr.bf16.mxu0 0
        %4645 = vmatpush1.bf16.msra.mxu0 0
        %4646 = vmatprep.subr.bf16.mxu0 0
        %4647 = vmatpush1.bf16.msra.mxu0 0
        %4648 = vmatprep.mubr.bf16.mxu0 0
        %4649 = vmatmul.mubr.bf16.gmra.mrb[0].mxu0 %v4573
        %v4650 = vpop.f32.mrb[0].mxu0
        %v4651 = vadd.f32 0.0, %v4650
        %v4652 = vpop.f32.mrb[0].mxu0
        %v4653 = vadd.f32 0.0, %v4652
        %v4654 = vpop.f32.mrb[0].mxu0
        %v4655 = vpop.f32.mrb[0].mxu0
        %4656 = vdwg.mxu0
        %v4661 = vcombine.low %v4610, %v4612
        %v4662 = vcombine.low %v4651, %v4653
        %v4664 = vunpack.c.l.s4 1966171168
        %v4665 = vunpack.c.0.s8 %v4664
        %v4666 = vlaneseq
        %v4667 = vshrl.u32 %v4666, 7
        %v4668 = vsub.s32 %v4665, %v4667
        %v4669 = vrot.slane %v4661, %v4668
        %v4671 = vunpack.c.l.s4 1966171168
        %v4672 = vunpack.c.0.s8 %v4671
        %v4673 = vlaneseq
        %v4674 = vshrl.u32 %v4673, 7
        %v4675 = vsub.s32 %v4672, %v4674
        %v4676 = vrot.slane %v4662, %v4675
        %v4677 = vcombine.low %v4669, %v4676
        %v4679 = vunpack.c.l.s4 1966171168
        %v4680 = vunpack.c.0.s8 %v4679
        %v4681 = vlaneseq
        %v4682 = vshrl.u32 %v4681, 7
        %v4683 = vsub.s32 %v4680, %v4682
        %v4684 = vrot.slane %v4677, %v4683
        %v4686 = vadd.f32 %v4473, %v4684
        %s4687 = scalar_lea.vmem %s5, 384
        %v4688 = vld [vmem:[%s4687] sm:$0xff]
        %v4689 = vld [vmem:[%s4687 + $0x8] sm:$0xff]
        %v4690 = vld [vmem:[%s4687 + $0x10] sm:$0xff]
        %v4691 = vld [vmem:[%s4687 + $0x18] sm:$0xff]
        %v4692 = vld [vmem:[%s4687 + $0x20] sm:$0xff]
        %v4693 = vld [vmem:[%s4687 + $0x28] sm:$0xff]
        %v4694 = vld [vmem:[%s4687 + $0x30] sm:$0xff]
        %v4695 = vld [vmem:[%s4687 + $0x38] sm:$0xff]
        %v4696 = vld [vmem:[%s4687 + $0x40] sm:$0xff]
        %v4697 = vld [vmem:[%s4687 + $0x48] sm:$0xff]
        %v4698 = vld [vmem:[%s4687 + $0x50] sm:$0xff]
        %v4699 = vld [vmem:[%s4687 + $0x58] sm:$0xff]
        %v4700 = vld [vmem:[%s4687 + $0x60] sm:$0xff]
        %v4701 = vld [vmem:[%s4687 + $0x68] sm:$0xff]
        %v4702 = vld [vmem:[%s4687 + $0x70] sm:$0xff]
        %v4703 = vld [vmem:[%s4687 + $0x78] sm:$0xff]
        %v4704 = vrot.slane %v4047, 3
        %v4721 = vunpack.c.l.b16 %v4688
        %v4722 = vunpack.c.h.b16 %v4688
        %v4723 = vunpack.c.l.b16 %v4689
        %v4724 = vunpack.c.h.b16 %v4689
        %v4725 = vunpack.c.l.b16 %v4690
        %v4726 = vunpack.c.h.b16 %v4690
        %v4727 = vunpack.c.l.b16 %v4691
        %v4728 = vunpack.c.h.b16 %v4691
        %v4729 = vunpack.c.l.b16 %v4692
        %v4730 = vunpack.c.h.b16 %v4692
        %v4731 = vunpack.c.l.b16 %v4693
        %v4732 = vunpack.c.h.b16 %v4693
        %v4733 = vunpack.c.l.b16 %v4694
        %v4734 = vunpack.c.h.b16 %v4694
        %v4735 = vunpack.c.l.b16 %v4695
        %v4736 = vunpack.c.h.b16 %v4695
        %v4737 = vunpack.c.l.b16 %v4696
        %v4738 = vunpack.c.h.b16 %v4696
        %v4739 = vunpack.c.l.b16 %v4697
        %v4740 = vunpack.c.h.b16 %v4697
        %v4741 = vunpack.c.l.b16 %v4698
        %v4742 = vunpack.c.h.b16 %v4698
        %v4743 = vunpack.c.l.b16 %v4699
        %v4744 = vunpack.c.h.b16 %v4699
        %v4745 = vunpack.c.l.b16 %v4700
        %v4746 = vunpack.c.h.b16 %v4700
        %v4747 = vunpack.c.l.b16 %v4701
        %v4748 = vunpack.c.h.b16 %v4701
        %v4749 = vunpack.c.l.b16 %v4702
        %v4750 = vunpack.c.h.b16 %v4702
        %v4751 = vunpack.c.l.b16 %v4703
        %v4752 = vunpack.c.h.b16 %v4703
        %v4753 = vpack.c.b16 %v4725, %v4721
        %v4754 = vpack.c.b16 %v4726, %v4722
        %v4755 = vpack.c.b16 %v4727, %v4723
        %v4756 = vpack.c.b16 %v4728, %v4724
        %v4757 = vpack.c.b16 %v4733, %v4729
        %v4758 = vpack.c.b16 %v4734, %v4730
        %v4759 = vpack.c.b16 %v4735, %v4731
        %v4760 = vpack.c.b16 %v4736, %v4732
        %v4761 = vpack.c.b16 %v4741, %v4737
        %v4762 = vpack.c.b16 %v4742, %v4738
        %v4763 = vpack.c.b16 %v4743, %v4739
        %v4764 = vpack.c.b16 %v4744, %v4740
        %v4765 = vpack.c.b16 %v4749, %v4745
        %v4766 = vpack.c.b16 %v4750, %v4746
        %v4767 = vpack.c.b16 %v4751, %v4747
        %v4768 = vpack.c.b16 %v4752, %v4748
        %v4786 = vsel %vm4144, %v4704, 0
        %4788 = vmatprep.subr.bf16.mxu0 %v4754
        %4789 = vmatpush1.bf16.msra.mxu0 %v4753
        %4790 = vmatprep.subr.bf16.mxu0 %v4758
        %4791 = vmatpush1.bf16.msra.mxu0 %v4757
        %4792 = vmatprep.subr.bf16.mxu0 %v4762
        %4793 = vmatpush1.bf16.msra.mxu0 %v4761
        %4794 = vmatprep.subr.bf16.mxu0 %v4766
        %4795 = vmatpush1.bf16.msra.mxu0 %v4765
        %4796 = vmatprep.subr.bf16.mxu0 0
        %4797 = vmatpush1.bf16.msra.mxu0 0
        %4798 = vmatprep.subr.bf16.mxu0 0
        %4799 = vmatpush1.bf16.msra.mxu0 0
        %4800 = vmatprep.subr.bf16.mxu0 0
        %4801 = vmatpush1.bf16.msra.mxu0 0
        %4802 = vmatprep.subr.bf16.mxu0 0
        %4803 = vmatpush1.bf16.msra.mxu0 0
        %4804 = vmatprep.subr.bf16.mxu0 0
        %4805 = vmatpush1.bf16.msra.mxu0 0
        %4806 = vmatprep.subr.bf16.mxu0 0
        %4807 = vmatpush1.bf16.msra.mxu0 0
        %4808 = vmatprep.subr.bf16.mxu0 0
        %4809 = vmatpush1.bf16.msra.mxu0 0
        %4810 = vmatprep.subr.bf16.mxu0 0
        %4811 = vmatpush1.bf16.msra.mxu0 0
        %4812 = vmatprep.subr.bf16.mxu0 0
        %4813 = vmatpush1.bf16.msra.mxu0 0
        %4814 = vmatprep.subr.bf16.mxu0 0
        %4815 = vmatpush1.bf16.msra.mxu0 0
        %4816 = vmatprep.subr.bf16.mxu0 0
        %4817 = vmatpush1.bf16.msra.mxu0 0
        %4818 = vmatprep.subr.bf16.mxu0 0
        %4819 = vmatpush1.bf16.msra.mxu0 0
        %4820 = vmatprep.mubr.bf16.mxu0 0
        %4821 = vmatmul.mubr.bf16.gmra.mrb[0].mxu0 %v4786
        %v4822 = vpop.f32.mrb[0].mxu0
        %v4823 = vadd.f32 0.0, %v4822
        %v4824 = vpop.f32.mrb[0].mxu0
        %v4825 = vadd.f32 0.0, %v4824
        %v4826 = vpop.f32.mrb[0].mxu0
        %v4827 = vpop.f32.mrb[0].mxu0
        %4828 = vdwg.mxu0
        %4829 = vmatprep.subr.bf16.mxu0 %v4756
        %4830 = vmatpush1.bf16.msra.mxu0 %v4755
        %4831 = vmatprep.subr.bf16.mxu0 %v4760
        %4832 = vmatpush1.bf16.msra.mxu0 %v4759
        %4833 = vmatprep.subr.bf16.mxu0 %v4764
        %4834 = vmatpush1.bf16.msra.mxu0 %v4763
        %4835 = vmatprep.subr.bf16.mxu0 %v4768
        %4836 = vmatpush1.bf16.msra.mxu0 %v4767
        %4837 = vmatprep.subr.bf16.mxu0 0
        %4838 = vmatpush1.bf16.msra.mxu0 0
        %4839 = vmatprep.subr.bf16.mxu0 0
        %4840 = vmatpush1.bf16.msra.mxu0 0
        %4841 = vmatprep.subr.bf16.mxu0 0
        %4842 = vmatpush1.bf16.msra.mxu0 0
        %4843 = vmatprep.subr.bf16.mxu0 0
        %4844 = vmatpush1.bf16.msra.mxu0 0
        %4845 = vmatprep.subr.bf16.mxu0 0
        %4846 = vmatpush1.bf16.msra.mxu0 0
        %4847 = vmatprep.subr.bf16.mxu0 0
        %4848 = vmatpush1.bf16.msra.mxu0 0
        %4849 = vmatprep.subr.bf16.mxu0 0
        %4850 = vmatpush1.bf16.msra.mxu0 0
        %4851 = vmatprep.subr.bf16.mxu0 0
        %4852 = vmatpush1.bf16.msra.mxu0 0
        %4853 = vmatprep.subr.bf16.mxu0 0
        %4854 = vmatpush1.bf16.msra.mxu0 0
        %4855 = vmatprep.subr.bf16.mxu0 0
        %4856 = vmatpush1.bf16.msra.mxu0 0
        %4857 = vmatprep.subr.bf16.mxu0 0
        %4858 = vmatpush1.bf16.msra.mxu0 0
        %4859 = vmatprep.subr.bf16.mxu0 0
        %4860 = vmatpush1.bf16.msra.mxu0 0
        %4861 = vmatprep.mubr.bf16.mxu0 0
        %4862 = vmatmul.mubr.bf16.gmra.mrb[0].mxu0 %v4786
        %v4863 = vpop.f32.mrb[0].mxu0
        %v4864 = vadd.f32 0.0, %v4863
        %v4865 = vpop.f32.mrb[0].mxu0
        %v4866 = vadd.f32 0.0, %v4865
        %v4867 = vpop.f32.mrb[0].mxu0
        %v4868 = vpop.f32.mrb[0].mxu0
        %4869 = vdwg.mxu0
        %v4874 = vcombine.low %v4823, %v4825
        %v4875 = vcombine.low %v4864, %v4866
        %v4877 = vunpack.c.l.s4 1966171168
        %v4878 = vunpack.c.0.s8 %v4877
        %v4879 = vlaneseq
        %v4880 = vshrl.u32 %v4879, 7
        %v4881 = vsub.s32 %v4878, %v4880
        %v4882 = vrot.slane %v4874, %v4881
        %v4884 = vunpack.c.l.s4 1966171168
        %v4885 = vunpack.c.0.s8 %v4884
        %v4886 = vlaneseq
        %v4887 = vshrl.u32 %v4886, 7
        %v4888 = vsub.s32 %v4885, %v4887
        %v4889 = vrot.slane %v4875, %v4888
        %v4890 = vcombine.low %v4882, %v4889
        %v4892 = vunpack.c.l.s4 1966171168
        %v4893 = vunpack.c.0.s8 %v4892
        %v4894 = vlaneseq
        %v4895 = vshrl.u32 %v4894, 7
        %v4896 = vsub.s32 %v4893, %v4895
        %v4897 = vrot.slane %v4890, %v4896
        %v4899 = vadd.f32 %v4686, %v4897
        %v4901 = vrot.slane %v4030, 1
        %v4903 = vmax.f32 %v4030, %v4901
        %v4905 = vrot.slane %v4031, 1
        %v4907 = vmax.f32 %v4031, %v4905
        %v4908 = vmax.f32 %v4903, %v4907
        %v4909 = vmax.f32 %v4908, 0.0
        %v4910 = vpack.c.bf16 %v4909, %v4909
        %s4911 = scalar_lea.vmem %s5, 512
        %v4912 = vld [vmem:[%s4911] sm:$0xff]
        %v4913 = vld [vmem:[%s4911 + $0x8] sm:$0xff]
        %v4914 = vld [vmem:[%s4911 + $0x10] sm:$0xff]
        %v4915 = vld [vmem:[%s4911 + $0x18] sm:$0xff]
        %v4916 = vld [vmem:[%s4911 + $0x20] sm:$0xff]
        %v4917 = vld [vmem:[%s4911 + $0x28] sm:$0xff]
        %v4918 = vld [vmem:[%s4911 + $0x30] sm:$0xff]
        %v4919 = vld [vmem:[%s4911 + $0x38] sm:$0xff]
        %v4920 = vld [vmem:[%s4911 + $0x40] sm:$0xff]
        %v4921 = vld [vmem:[%s4911 + $0x48] sm:$0xff]
        %v4922 = vld [vmem:[%s4911 + $0x50] sm:$0xff]
        %v4923 = vld [vmem:[%s4911 + $0x58] sm:$0xff]
        %v4924 = vld [vmem:[%s4911 + $0x60] sm:$0xff]
        %v4925 = vld [vmem:[%s4911 + $0x68] sm:$0xff]
        %v4926 = vld [vmem:[%s4911 + $0x70] sm:$0xff]
        %v4927 = vld [vmem:[%s4911 + $0x78] sm:$0xff]
        %v4944 = vunpack.c.l.b16 %v4912
        %v4945 = vunpack.c.h.b16 %v4912
        %v4946 = vunpack.c.l.b16 %v4913
        %v4947 = vunpack.c.h.b16 %v4913
        %v4948 = vunpack.c.l.b16 %v4914
        %v4949 = vunpack.c.h.b16 %v4914
        %v4950 = vunpack.c.l.b16 %v4915
        %v4951 = vunpack.c.h.b16 %v4915
        %v4952 = vunpack.c.l.b16 %v4916
        %v4953 = vunpack.c.h.b16 %v4916
        %v4954 = vunpack.c.l.b16 %v4917
        %v4955 = vunpack.c.h.b16 %v4917
        %v4956 = vunpack.c.l.b16 %v4918
        %v4957 = vunpack.c.h.b16 %v4918
        %v4958 = vunpack.c.l.b16 %v4919
        %v4959 = vunpack.c.h.b16 %v4919
        %v4960 = vunpack.c.l.b16 %v4920
        %v4961 = vunpack.c.h.b16 %v4920
        %v4962 = vunpack.c.l.b16 %v4921
        %v4963 = vunpack.c.h.b16 %v4921
        %v4964 = vunpack.c.l.b16 %v4922
        %v4965 = vunpack.c.h.b16 %v4922
        %v4966 = vunpack.c.l.b16 %v4923
        %v4967 = vunpack.c.h.b16 %v4923
        %v4968 = vunpack.c.l.b16 %v4924
        %v4969 = vunpack.c.h.b16 %v4924
        %v4970 = vunpack.c.l.b16 %v4925
        %v4971 = vunpack.c.h.b16 %v4925
        %v4972 = vunpack.c.l.b16 %v4926
        %v4973 = vunpack.c.h.b16 %v4926
        %v4974 = vunpack.c.l.b16 %v4927
        %v4975 = vunpack.c.h.b16 %v4927
        %v4976 = vpack.c.b16 %v4948, %v4944
        %v4977 = vpack.c.b16 %v4949, %v4945
        %v4978 = vpack.c.b16 %v4950, %v4946
        %v4979 = vpack.c.b16 %v4951, %v4947
        %v4980 = vpack.c.b16 %v4956, %v4952
        %v4981 = vpack.c.b16 %v4957, %v4953
        %v4982 = vpack.c.b16 %v4958, %v4954
        %v4983 = vpack.c.b16 %v4959, %v4955
        %v4984 = vpack.c.b16 %v4964, %v4960
        %v4985 = vpack.c.b16 %v4965, %v4961
        %v4986 = vpack.c.b16 %v4966, %v4962
        %v4987 = vpack.c.b16 %v4967, %v4963
        %v4988 = vpack.c.b16 %v4972, %v4968
        %v4989 = vpack.c.b16 %v4973, %v4969
        %v4990 = vpack.c.b16 %v4974, %v4970
        %v4991 = vpack.c.b16 %v4975, %v4971
        %v5009 = vsel %vm4144, %v4910, 0
        %5011 = vmatprep.subr.bf16.mxu0 %v4977
        %5012 = vmatpush1.bf16.msra.mxu0 %v4976
        %5013 = vmatprep.subr.bf16.mxu0 %v4981
        %5014 = vmatpush1.bf16.msra.mxu0 %v4980
        %5015 = vmatprep.subr.bf16.mxu0 %v4985
        %5016 = vmatpush1.bf16.msra.mxu0 %v4984
        %5017 = vmatprep.subr.bf16.mxu0 %v4989
        %5018 = vmatpush1.bf16.msra.mxu0 %v4988
        %5019 = vmatprep.subr.bf16.mxu0 0
        %5020 = vmatpush1.bf16.msra.mxu0 0
        %5021 = vmatprep.subr.bf16.mxu0 0
        %5022 = vmatpush1.bf16.msra.mxu0 0
        %5023 = vmatprep.subr.bf16.mxu0 0
        %5024 = vmatpush1.bf16.msra.mxu0 0
        %5025 = vmatprep.subr.bf16.mxu0 0
        %5026 = vmatpush1.bf16.msra.mxu0 0
        %5027 = vmatprep.subr.bf16.mxu0 0
        %5028 = vmatpush1.bf16.msra.mxu0 0
        %5029 = vmatprep.subr.bf16.mxu0 0
        %5030 = vmatpush1.bf16.msra.mxu0 0
        %5031 = vmatprep.subr.bf16.mxu0 0
        %5032 = vmatpush1.bf16.msra.mxu0 0
        %5033 = vmatprep.subr.bf16.mxu0 0
        %5034 = vmatpush1.bf16.msra.mxu0 0
        %5035 = vmatprep.subr.bf16.mxu0 0
        %5036 = vmatpush1.bf16.msra.mxu0 0
        %5037 = vmatprep.subr.bf16.mxu0 0
        %5038 = vmatpush1.bf16.msra.mxu0 0
        %5039 = vmatprep.subr.bf16.mxu0 0
        %5040 = vmatpush1.bf16.msra.mxu0 0
        %5041 = vmatprep.subr.bf16.mxu0 0
        %5042 = vmatpush1.bf16.msra.mxu0 0
        %5043 = vmatprep.mubr.bf16.mxu0 0
        %5044 = vmatmul.mubr.bf16.gmra.mrb[0].mxu0 %v5009
        %v5045 = vpop.f32.mrb[0].mxu0
        %v5046 = vadd.f32 0.0, %v5045
        %v5047 = vpop.f32.mrb[0].mxu0
        %v5048 = vadd.f32 0.0, %v5047
        %v5049 = vpop.f32.mrb[0].mxu0
        %v5050 = vpop.f32.mrb[0].mxu0
        %5051 = vdwg.mxu0
        %5052 = vmatprep.subr.bf16.mxu0 %v4979
        %5053 = vmatpush1.bf16.msra.mxu0 %v4978
        %5054 = vmatprep.subr.bf16.mxu0 %v4983
        %5055 = vmatpush1.bf16.msra.mxu0 %v4982
        %5056 = vmatprep.subr.bf16.mxu0 %v4987
        %5057 = vmatpush1.bf16.msra.mxu0 %v4986
        %5058 = vmatprep.subr.bf16.mxu0 %v4991
        %5059 = vmatpush1.bf16.msra.mxu0 %v4990
        %5060 = vmatprep.subr.bf16.mxu0 0
        %5061 = vmatpush1.bf16.msra.mxu0 0
        %5062 = vmatprep.subr.bf16.mxu0 0
        %5063 = vmatpush1.bf16.msra.mxu0 0
        %5064 = vmatprep.subr.bf16.mxu0 0
        %5065 = vmatpush1.bf16.msra.mxu0 0
        %5066 = vmatprep.subr.bf16.mxu0 0
        %5067 = vmatpush1.bf16.msra.mxu0 0
        %5068 = vmatprep.subr.bf16.mxu0 0
        %5069 = vmatpush1.bf16.msra.mxu0 0
        %5070 = vmatprep.subr.bf16.mxu0 0
        %5071 = vmatpush1.bf16.msra.mxu0 0
        %5072 = vmatprep.subr.bf16.mxu0 0
        %5073 = vmatpush1.bf16.msra.mxu0 0
        %5074 = vmatprep.subr.bf16.mxu0 0
        %5075 = vmatpush1.bf16.msra.mxu0 0
        %5076 = vmatprep.subr.bf16.mxu0 0
        %5077 = vmatpush1.bf16.msra.mxu0 0
        %5078 = vmatprep.subr.bf16.mxu0 0
        %5079 = vmatpush1.bf16.msra.mxu0 0
        %5080 = vmatprep.subr.bf16.mxu0 0
        %5081 = vmatpush1.bf16.msra.mxu0 0
        %5082 = vmatprep.subr.bf16.mxu0 0
        %5083 = vmatpush1.bf16.msra.mxu0 0
        %5084 = vmatprep.mubr.bf16.mxu0 0
        %5085 = vmatmul.mubr.bf16.gmra.mrb[0].mxu0 %v5009
        %v5086 = vpop.f32.mrb[0].mxu0
        %v5087 = vadd.f32 0.0, %v5086
        %v5088 = vpop.f32.mrb[0].mxu0
        %v5089 = vadd.f32 0.0, %v5088
        %v5090 = vpop.f32.mrb[0].mxu0
        %v5091 = vpop.f32.mrb[0].mxu0
        %5092 = vdwg.mxu0
        %v5097 = vcombine.low %v5046, %v5048
        %v5098 = vcombine.low %v5087, %v5089
        %v5100 = vunpack.c.l.s4 1966171168
        %v5101 = vunpack.c.0.s8 %v5100
        %v5102 = vlaneseq
        %v5103 = vshrl.u32 %v5102, 7
        %v5104 = vsub.s32 %v5101, %v5103
        %v5105 = vrot.slane %v5097, %v5104
        %v5107 = vunpack.c.l.s4 1966171168
        %v5108 = vunpack.c.0.s8 %v5107
        %v5109 = vlaneseq
        %v5110 = vshrl.u32 %v5109, 7
        %v5111 = vsub.s32 %v5108, %v5110
        %v5112 = vrot.slane %v5098, %v5111
        %v5113 = vcombine.low %v5105, %v5112
        %v5115 = vunpack.c.l.s4 1966171168
        %v5116 = vunpack.c.0.s8 %v5115
        %v5117 = vlaneseq
        %v5118 = vshrl.u32 %v5117, 7
        %v5119 = vsub.s32 %v5116, %v5118
        %v5120 = vrot.slane %v5113, %v5119
        %v5122 = vadd.f32 %v4899, %v5120
        %s5123 = scalar_lea.vmem %s5, 640
        %v5124 = vld [vmem:[%s5123] sm:$0xff]
        %v5125 = vld [vmem:[%s5123 + $0x8] sm:$0xff]
        %v5126 = vld [vmem:[%s5123 + $0x10] sm:$0xff]
        %v5127 = vld [vmem:[%s5123 + $0x18] sm:$0xff]
        %v5128 = vld [vmem:[%s5123 + $0x20] sm:$0xff]
        %v5129 = vld [vmem:[%s5123 + $0x28] sm:$0xff]
        %v5130 = vld [vmem:[%s5123 + $0x30] sm:$0xff]
        %v5131 = vld [vmem:[%s5123 + $0x38] sm:$0xff]
        %v5132 = vld [vmem:[%s5123 + $0x40] sm:$0xff]
        %v5133 = vld [vmem:[%s5123 + $0x48] sm:$0xff]
        %v5134 = vld [vmem:[%s5123 + $0x50] sm:$0xff]
        %v5135 = vld [vmem:[%s5123 + $0x58] sm:$0xff]
        %v5136 = vld [vmem:[%s5123 + $0x60] sm:$0xff]
        %v5137 = vld [vmem:[%s5123 + $0x68] sm:$0xff]
        %v5138 = vld [vmem:[%s5123 + $0x70] sm:$0xff]
        %v5139 = vld [vmem:[%s5123 + $0x78] sm:$0xff]
        %v5141 = vrot.slane %v4910, 1
        %v5158 = vunpack.c.l.b16 %v5124
        %v5159 = vunpack.c.h.b16 %v5124
        %v5160 = vunpack.c.l.b16 %v5125
        %v5161 = vunpack.c.h.b16 %v5125
        %v5162 = vunpack.c.l.b16 %v5126
        %v5163 = vunpack.c.h.b16 %v5126
        %v5164 = vunpack.c.l.b16 %v5127
        %v5165 = vunpack.c.h.b16 %v5127
        %v5166 = vunpack.c.l.b16 %v5128
        %v5167 = vunpack.c.h.b16 %v5128
        %v5168 = vunpack.c.l.b16 %v5129
        %v5169 = vunpack.c.h.b16 %v5129
        %v5170 = vunpack.c.l.b16 %v5130
        %v5171 = vunpack.c.h.b16 %v5130
        %v5172 = vunpack.c.l.b16 %v5131
        %v5173 = vunpack.c.h.b16 %v5131
        %v5174 = vunpack.c.l.b16 %v5132
        %v5175 = vunpack.c.h.b16 %v5132
        %v5176 = vunpack.c.l.b16 %v5133
        %v5177 = vunpack.c.h.b16 %v5133
        %v5178 = vunpack.c.l.b16 %v5134
        %v5179 = vunpack.c.h.b16 %v5134
        %v5180 = vunpack.c.l.b16 %v5135
        %v5181 = vunpack.c.h.b16 %v5135
        %v5182 = vunpack.c.l.b16 %v5136
        %v5183 = vunpack.c.h.b16 %v5136
        %v5184 = vunpack.c.l.b16 %v5137
        %v5185 = vunpack.c.h.b16 %v5137
        %v5186 = vunpack.c.l.b16 %v5138
        %v5187 = vunpack.c.h.b16 %v5138
        %v5188 = vunpack.c.l.b16 %v5139
        %v5189 = vunpack.c.h.b16 %v5139
        %v5190 = vpack.c.b16 %v5162, %v5158
        %v5191 = vpack.c.b16 %v5163, %v5159
        %v5192 = vpack.c.b16 %v5164, %v5160
        %v5193 = vpack.c.b16 %v5165, %v5161
        %v5194 = vpack.c.b16 %v5170, %v5166
        %v5195 = vpack.c.b16 %v5171, %v5167
        %v5196 = vpack.c.b16 %v5172, %v5168
        %v5197 = vpack.c.b16 %v5173, %v5169
        %v5198 = vpack.c.b16 %v5178, %v5174
        %v5199 = vpack.c.b16 %v5179, %v5175
        %v5200 = vpack.c.b16 %v5180, %v5176
        %v5201 = vpack.c.b16 %v5181, %v5177
        %v5202 = vpack.c.b16 %v5186, %v5182
        %v5203 = vpack.c.b16 %v5187, %v5183
        %v5204 = vpack.c.b16 %v5188, %v5184
        %v5205 = vpack.c.b16 %v5189, %v5185
        %v5223 = vsel %vm4144, %v5141, 0
        %5225 = vmatprep.subr.bf16.mxu0 %v5191
        %5226 = vmatpush1.bf16.msra.mxu0 %v5190
        %5227 = vmatprep.subr.bf16.mxu0 %v5195
        %5228 = vmatpush1.bf16.msra.mxu0 %v5194
        %5229 = vmatprep.subr.bf16.mxu0 %v5199
        %5230 = vmatpush1.bf16.msra.mxu0 %v5198
        %5231 = vmatprep.subr.bf16.mxu0 %v5203
        %5232 = vmatpush1.bf16.msra.mxu0 %v5202
        %5233 = vmatprep.subr.bf16.mxu0 0
        %5234 = vmatpush1.bf16.msra.mxu0 0
        %5235 = vmatprep.subr.bf16.mxu0 0
        %5236 = vmatpush1.bf16.msra.mxu0 0
        %5237 = vmatprep.subr.bf16.mxu0 0
        %5238 = vmatpush1.bf16.msra.mxu0 0
        %5239 = vmatprep.subr.bf16.mxu0 0
        %5240 = vmatpush1.bf16.msra.mxu0 0
        %5241 = vmatprep.subr.bf16.mxu0 0
        %5242 = vmatpush1.bf16.msra.mxu0 0
        %5243 = vmatprep.subr.bf16.mxu0 0
        %5244 = vmatpush1.bf16.msra.mxu0 0
        %5245 = vmatprep.subr.bf16.mxu0 0
        %5246 = vmatpush1.bf16.msra.mxu0 0
        %5247 = vmatprep.subr.bf16.mxu0 0
        %5248 = vmatpush1.bf16.msra.mxu0 0
        %5249 = vmatprep.subr.bf16.mxu0 0
        %5250 = vmatpush1.bf16.msra.mxu0 0
        %5251 = vmatprep.subr.bf16.mxu0 0
        %5252 = vmatpush1.bf16.msra.mxu0 0
        %5253 = vmatprep.subr.bf16.mxu0 0
        %5254 = vmatpush1.bf16.msra.mxu0 0
        %5255 = vmatprep.subr.bf16.mxu0 0
        %5256 = vmatpush1.bf16.msra.mxu0 0
        %5257 = vmatprep.mubr.bf16.mxu0 0
        %5258 = vmatmul.mubr.bf16.gmra.mrb[0].mxu0 %v5223
        %v5259 = vpop.f32.mrb[0].mxu0
        %v5260 = vadd.f32 0.0, %v5259
        %v5261 = vpop.f32.mrb[0].mxu0
        %v5262 = vadd.f32 0.0, %v5261
        %v5263 = vpop.f32.mrb[0].mxu0
        %v5264 = vpop.f32.mrb[0].mxu0
        %5265 = vdwg.mxu0
        %5266 = vmatprep.subr.bf16.mxu0 %v5193
        %5267 = vmatpush1.bf16.msra.mxu0 %v5192
        %5268 = vmatprep.subr.bf16.mxu0 %v5197
        %5269 = vmatpush1.bf16.msra.mxu0 %v5196
        %5270 = vmatprep.subr.bf16.mxu0 %v5201
        %5271 = vmatpush1.bf16.msra.mxu0 %v5200
        %5272 = vmatprep.subr.bf16.mxu0 %v5205
        %5273 = vmatpush1.bf16.msra.mxu0 %v5204
        %5274 = vmatprep.subr.bf16.mxu0 0
        %5275 = vmatpush1.bf16.msra.mxu0 0
        %5276 = vmatprep.subr.bf16.mxu0 0
        %5277 = vmatpush1.bf16.msra.mxu0 0
        %5278 = vmatprep.subr.bf16.mxu0 0
        %5279 = vmatpush1.bf16.msra.mxu0 0
        %5280 = vmatprep.subr.bf16.mxu0 0
        %5281 = vmatpush1.bf16.msra.mxu0 0
        %5282 = vmatprep.subr.bf16.mxu0 0
        %5283 = vmatpush1.bf16.msra.mxu0 0
        %5284 = vmatprep.subr.bf16.mxu0 0
        %5285 = vmatpush1.bf16.msra.mxu0 0
        %5286 = vmatprep.subr.bf16.mxu0 0
        %5287 = vmatpush1.bf16.msra.mxu0 0
        %5288 = vmatprep.subr.bf16.mxu0 0
        %5289 = vmatpush1.bf16.msra.mxu0 0
        %5290 = vmatprep.subr.bf16.mxu0 0
        %5291 = vmatpush1.bf16.msra.mxu0 0
        %5292 = vmatprep.subr.bf16.mxu0 0
        %5293 = vmatpush1.bf16.msra.mxu0 0
        %5294 = vmatprep.subr.bf16.mxu0 0
        %5295 = vmatpush1.bf16.msra.mxu0 0
        %5296 = vmatprep.subr.bf16.mxu0 0
        %5297 = vmatpush1.bf16.msra.mxu0 0
        %5298 = vmatprep.mubr.bf16.mxu0 0
        %5299 = vmatmul.mubr.bf16.gmra.mrb[0].mxu0 %v5223
        %v5300 = vpop.f32.mrb[0].mxu0
        %v5301 = vadd.f32 0.0, %v5300
        %v5302 = vpop.f32.mrb[0].mxu0
        %v5303 = vadd.f32 0.0, %v5302
        %v5304 = vpop.f32.mrb[0].mxu0
        %v5305 = vpop.f32.mrb[0].mxu0
        %5306 = vdwg.mxu0
        %v5311 = vcombine.low %v5260, %v5262
        %v5312 = vcombine.low %v5301, %v5303
        %v5314 = vunpack.c.l.s4 1966171168
        %v5315 = vunpack.c.0.s8 %v5314
        %v5316 = vlaneseq
        %v5317 = vshrl.u32 %v5316, 7
        %v5318 = vsub.s32 %v5315, %v5317
        %v5319 = vrot.slane %v5311, %v5318
        %v5321 = vunpack.c.l.s4 1966171168
        %v5322 = vunpack.c.0.s8 %v5321
        %v5323 = vlaneseq
        %v5324 = vshrl.u32 %v5323, 7
        %v5325 = vsub.s32 %v5322, %v5324
        %v5326 = vrot.slane %v5312, %v5325
        %v5327 = vcombine.low %v5319, %v5326
        %v5329 = vunpack.c.l.s4 1966171168
        %v5330 = vunpack.c.0.s8 %v5329
        %v5331 = vlaneseq
        %v5332 = vshrl.u32 %v5331, 7
        %v5333 = vsub.s32 %v5330, %v5332
        %v5334 = vrot.slane %v5327, %v5333
        %v5336 = vadd.f32 %v5122, %v5334
        %s5337 = scalar_lea.vmem %s5, 768
        %v5338 = vld [vmem:[%s5337] sm:$0xff]
        %v5339 = vld [vmem:[%s5337 + $0x8] sm:$0xff]
        %v5340 = vld [vmem:[%s5337 + $0x10] sm:$0xff]
        %v5341 = vld [vmem:[%s5337 + $0x18] sm:$0xff]
        %v5342 = vld [vmem:[%s5337 + $0x20] sm:$0xff]
        %v5343 = vld [vmem:[%s5337 + $0x28] sm:$0xff]
        %v5344 = vld [vmem:[%s5337 + $0x30] sm:$0xff]
        %v5345 = vld [vmem:[%s5337 + $0x38] sm:$0xff]
        %v5346 = vld [vmem:[%s5337 + $0x40] sm:$0xff]
        %v5347 = vld [vmem:[%s5337 + $0x48] sm:$0xff]
        %v5348 = vld [vmem:[%s5337 + $0x50] sm:$0xff]
        %v5349 = vld [vmem:[%s5337 + $0x58] sm:$0xff]
        %v5350 = vld [vmem:[%s5337 + $0x60] sm:$0xff]
        %v5351 = vld [vmem:[%s5337 + $0x68] sm:$0xff]
        %v5352 = vld [vmem:[%s5337 + $0x70] sm:$0xff]
        %v5353 = vld [vmem:[%s5337 + $0x78] sm:$0xff]
        %v5354 = vrot.slane %v4910, 2
        %v5371 = vunpack.c.l.b16 %v5338
        %v5372 = vunpack.c.h.b16 %v5338
        %v5373 = vunpack.c.l.b16 %v5339
        %v5374 = vunpack.c.h.b16 %v5339
        %v5375 = vunpack.c.l.b16 %v5340
        %v5376 = vunpack.c.h.b16 %v5340
        %v5377 = vunpack.c.l.b16 %v5341
        %v5378 = vunpack.c.h.b16 %v5341
        %v5379 = vunpack.c.l.b16 %v5342
        %v5380 = vunpack.c.h.b16 %v5342
        %v5381 = vunpack.c.l.b16 %v5343
        %v5382 = vunpack.c.h.b16 %v5343
        %v5383 = vunpack.c.l.b16 %v5344
        %v5384 = vunpack.c.h.b16 %v5344
        %v5385 = vunpack.c.l.b16 %v5345
        %v5386 = vunpack.c.h.b16 %v5345
        %v5387 = vunpack.c.l.b16 %v5346
        %v5388 = vunpack.c.h.b16 %v5346
        %v5389 = vunpack.c.l.b16 %v5347
        %v5390 = vunpack.c.h.b16 %v5347
        %v5391 = vunpack.c.l.b16 %v5348
        %v5392 = vunpack.c.h.b16 %v5348
        %v5393 = vunpack.c.l.b16 %v5349
        %v5394 = vunpack.c.h.b16 %v5349
        %v5395 = vunpack.c.l.b16 %v5350
        %v5396 = vunpack.c.h.b16 %v5350
        %v5397 = vunpack.c.l.b16 %v5351
        %v5398 = vunpack.c.h.b16 %v5351
        %v5399 = vunpack.c.l.b16 %v5352
        %v5400 = vunpack.c.h.b16 %v5352
        %v5401 = vunpack.c.l.b16 %v5353
        %v5402 = vunpack.c.h.b16 %v5353
        %v5403 = vpack.c.b16 %v5375, %v5371
        %v5404 = vpack.c.b16 %v5376, %v5372
        %v5405 = vpack.c.b16 %v5377, %v5373
        %v5406 = vpack.c.b16 %v5378, %v5374
        %v5407 = vpack.c.b16 %v5383, %v5379
        %v5408 = vpack.c.b16 %v5384, %v5380
        %v5409 = vpack.c.b16 %v5385, %v5381
        %v5410 = vpack.c.b16 %v5386, %v5382
        %v5411 = vpack.c.b16 %v5391, %v5387
        %v5412 = vpack.c.b16 %v5392, %v5388
        %v5413 = vpack.c.b16 %v5393, %v5389
        %v5414 = vpack.c.b16 %v5394, %v5390
        %v5415 = vpack.c.b16 %v5399, %v5395
        %v5416 = vpack.c.b16 %v5400, %v5396
        %v5417 = vpack.c.b16 %v5401, %v5397
        %v5418 = vpack.c.b16 %v5402, %v5398
        %v5436 = vsel %vm4144, %v5354, 0
        %5438 = vmatprep.subr.bf16.mxu0 %v5404
        %5439 = vmatpush1.bf16.msra.mxu0 %v5403
        %5440 = vmatprep.subr.bf16.mxu0 %v5408
        %5441 = vmatpush1.bf16.msra.mxu0 %v5407
        %5442 = vmatprep.subr.bf16.mxu0 %v5412
        %5443 = vmatpush1.bf16.msra.mxu0 %v5411
        %5444 = vmatprep.subr.bf16.mxu0 %v5416
        %5445 = vmatpush1.bf16.msra.mxu0 %v5415
        %5446 = vmatprep.subr.bf16.mxu0 0
        %5447 = vmatpush1.bf16.msra.mxu0 0
        %5448 = vmatprep.subr.bf16.mxu0 0
        %5449 = vmatpush1.bf16.msra.mxu0 0
        %5450 = vmatprep.subr.bf16.mxu0 0
        %5451 = vmatpush1.bf16.msra.mxu0 0
        %5452 = vmatprep.subr.bf16.mxu0 0
        %5453 = vmatpush1.bf16.msra.mxu0 0
        %5454 = vmatprep.subr.bf16.mxu0 0
        %5455 = vmatpush1.bf16.msra.mxu0 0
        %5456 = vmatprep.subr.bf16.mxu0 0
        %5457 = vmatpush1.bf16.msra.mxu0 0
        %5458 = vmatprep.subr.bf16.mxu0 0
        %5459 = vmatpush1.bf16.msra.mxu0 0
        %5460 = vmatprep.subr.bf16.mxu0 0
        %5461 = vmatpush1.bf16.msra.mxu0 0
        %5462 = vmatprep.subr.bf16.mxu0 0
        %5463 = vmatpush1.bf16.msra.mxu0 0
        %5464 = vmatprep.subr.bf16.mxu0 0
        %5465 = vmatpush1.bf16.msra.mxu0 0
        %5466 = vmatprep.subr.bf16.mxu0 0
        %5467 = vmatpush1.bf16.msra.mxu0 0
        %5468 = vmatprep.subr.bf16.mxu0 0
        %5469 = vmatpush1.bf16.msra.mxu0 0
        %5470 = vmatprep.mubr.bf16.mxu0 0
        %5471 = vmatmul.mubr.bf16.gmra.mrb[0].mxu0 %v5436
        %v5472 = vpop.f32.mrb[0].mxu0
        %v5473 = vadd.f32 0.0, %v5472
        %v5474 = vpop.f32.mrb[0].mxu0
        %v5475 = vadd.f32 0.0, %v5474
        %v5476 = vpop.f32.mrb[0].mxu0
        %v5477 = vpop.f32.mrb[0].mxu0
        %5478 = vdwg.mxu0
        %5479 = vmatprep.subr.bf16.mxu0 %v5406
        %5480 = vmatpush1.bf16.msra.mxu0 %v5405
        %5481 = vmatprep.subr.bf16.mxu0 %v5410
        %5482 = vmatpush1.bf16.msra.mxu0 %v5409
        %5483 = vmatprep.subr.bf16.mxu0 %v5414
        %5484 = vmatpush1.bf16.msra.mxu0 %v5413
        %5485 = vmatprep.subr.bf16.mxu0 %v5418
        %5486 = vmatpush1.bf16.msra.mxu0 %v5417
        %5487 = vmatprep.subr.bf16.mxu0 0
        %5488 = vmatpush1.bf16.msra.mxu0 0
        %5489 = vmatprep.subr.bf16.mxu0 0
        %5490 = vmatpush1.bf16.msra.mxu0 0
        %5491 = vmatprep.subr.bf16.mxu0 0
        %5492 = vmatpush1.bf16.msra.mxu0 0
        %5493 = vmatprep.subr.bf16.mxu0 0
        %5494 = vmatpush1.bf16.msra.mxu0 0
        %5495 = vmatprep.subr.bf16.mxu0 0
        %5496 = vmatpush1.bf16.msra.mxu0 0
        %5497 = vmatprep.subr.bf16.mxu0 0
        %5498 = vmatpush1.bf16.msra.mxu0 0
        %5499 = vmatprep.subr.bf16.mxu0 0
        %5500 = vmatpush1.bf16.msra.mxu0 0
        %5501 = vmatprep.subr.bf16.mxu0 0
        %5502 = vmatpush1.bf16.msra.mxu0 0
        %5503 = vmatprep.subr.bf16.mxu0 0
        %5504 = vmatpush1.bf16.msra.mxu0 0
        %5505 = vmatprep.subr.bf16.mxu0 0
        %5506 = vmatpush1.bf16.msra.mxu0 0
        %5507 = vmatprep.subr.bf16.mxu0 0
        %5508 = vmatpush1.bf16.msra.mxu0 0
        %5509 = vmatprep.subr.bf16.mxu0 0
        %5510 = vmatpush1.bf16.msra.mxu0 0
        %5511 = vmatprep.mubr.bf16.mxu0 0
        %5512 = vmatmul.mubr.bf16.gmra.mrb[0].mxu0 %v5436
        %v5513 = vpop.f32.mrb[0].mxu0
        %v5514 = vadd.f32 0.0, %v5513
        %v5515 = vpop.f32.mrb[0].mxu0
        %v5516 = vadd.f32 0.0, %v5515
        %v5517 = vpop.f32.mrb[0].mxu0
        %v5518 = vpop.f32.mrb[0].mxu0
        %5519 = vdwg.mxu0
        %v5524 = vcombine.low %v5473, %v5475
        %v5525 = vcombine.low %v5514, %v5516
        %v5527 = vunpack.c.l.s4 1966171168
        %v5528 = vunpack.c.0.s8 %v5527
        %v5529 = vlaneseq
        %v5530 = vshrl.u32 %v5529, 7
        %v5531 = vsub.s32 %v5528, %v5530
        %v5532 = vrot.slane %v5524, %v5531
        %v5534 = vunpack.c.l.s4 1966171168
        %v5535 = vunpack.c.0.s8 %v5534
        %v5536 = vlaneseq
        %v5537 = vshrl.u32 %v5536, 7
        %v5538 = vsub.s32 %v5535, %v5537
        %v5539 = vrot.slane %v5525, %v5538
        %v5540 = vcombine.low %v5532, %v5539
        %v5542 = vunpack.c.l.s4 1966171168
        %v5543 = vunpack.c.0.s8 %v5542
        %v5544 = vlaneseq
        %v5545 = vshrl.u32 %v5544, 7
        %v5546 = vsub.s32 %v5543, %v5545
        %v5547 = vrot.slane %v5540, %v5546
        %v5549 = vadd.f32 %v5336, %v5547
        %s5550 = scalar_lea.vmem %s5, 896
        %v5551 = vld [vmem:[%s5550] sm:$0xff]
        %v5552 = vld [vmem:[%s5550 + $0x8] sm:$0xff]
        %v5553 = vld [vmem:[%s5550 + $0x10] sm:$0xff]
        %v5554 = vld [vmem:[%s5550 + $0x18] sm:$0xff]
        %v5555 = vld [vmem:[%s5550 + $0x20] sm:$0xff]
        %v5556 = vld [vmem:[%s5550 + $0x28] sm:$0xff]
        %v5557 = vld [vmem:[%s5550 + $0x30] sm:$0xff]
        %v5558 = vld [vmem:[%s5550 + $0x38] sm:$0xff]
        %v5559 = vld [vmem:[%s5550 + $0x40] sm:$0xff]
        %v5560 = vld [vmem:[%s5550 + $0x48] sm:$0xff]
        %v5561 = vld [vmem:[%s5550 + $0x50] sm:$0xff]
        %v5562 = vld [vmem:[%s5550 + $0x58] sm:$0xff]
        %v5563 = vld [vmem:[%s5550 + $0x60] sm:$0xff]
        %v5564 = vld [vmem:[%s5550 + $0x68] sm:$0xff]
        %v5565 = vld [vmem:[%s5550 + $0x70] sm:$0xff]
        %v5566 = vld [vmem:[%s5550 + $0x78] sm:$0xff]
        %v5567 = vrot.slane %v4910, 3
        %v5584 = vunpack.c.l.b16 %v5551
        %v5585 = vunpack.c.h.b16 %v5551
        %v5586 = vunpack.c.l.b16 %v5552
        %v5587 = vunpack.c.h.b16 %v5552
        %v5588 = vunpack.c.l.b16 %v5553
        %v5589 = vunpack.c.h.b16 %v5553
        %v5590 = vunpack.c.l.b16 %v5554
        %v5591 = vunpack.c.h.b16 %v5554
        %v5592 = vunpack.c.l.b16 %v5555
        %v5593 = vunpack.c.h.b16 %v5555
        %v5594 = vunpack.c.l.b16 %v5556
        %v5595 = vunpack.c.h.b16 %v5556
        %v5596 = vunpack.c.l.b16 %v5557
        %v5597 = vunpack.c.h.b16 %v5557
        %v5598 = vunpack.c.l.b16 %v5558
        %v5599 = vunpack.c.h.b16 %v5558
        %v5600 = vunpack.c.l.b16 %v5559
        %v5601 = vunpack.c.h.b16 %v5559
        %v5602 = vunpack.c.l.b16 %v5560
        %v5603 = vunpack.c.h.b16 %v5560
        %v5604 = vunpack.c.l.b16 %v5561
        %v5605 = vunpack.c.h.b16 %v5561
        %v5606 = vunpack.c.l.b16 %v5562
        %v5607 = vunpack.c.h.b16 %v5562
        %v5608 = vunpack.c.l.b16 %v5563
        %v5609 = vunpack.c.h.b16 %v5563
        %v5610 = vunpack.c.l.b16 %v5564
        %v5611 = vunpack.c.h.b16 %v5564
        %v5612 = vunpack.c.l.b16 %v5565
        %v5613 = vunpack.c.h.b16 %v5565
        %v5614 = vunpack.c.l.b16 %v5566
        %v5615 = vunpack.c.h.b16 %v5566
        %v5616 = vpack.c.b16 %v5588, %v5584
        %v5617 = vpack.c.b16 %v5589, %v5585
        %v5618 = vpack.c.b16 %v5590, %v5586
        %v5619 = vpack.c.b16 %v5591, %v5587
        %v5620 = vpack.c.b16 %v5596, %v5592
        %v5621 = vpack.c.b16 %v5597, %v5593
        %v5622 = vpack.c.b16 %v5598, %v5594
        %v5623 = vpack.c.b16 %v5599, %v5595
        %v5624 = vpack.c.b16 %v5604, %v5600
        %v5625 = vpack.c.b16 %v5605, %v5601
        %v5626 = vpack.c.b16 %v5606, %v5602
        %v5627 = vpack.c.b16 %v5607, %v5603
        %v5628 = vpack.c.b16 %v5612, %v5608
        %v5629 = vpack.c.b16 %v5613, %v5609
        %v5630 = vpack.c.b16 %v5614, %v5610
        %v5631 = vpack.c.b16 %v5615, %v5611
        %v5649 = vsel %vm4144, %v5567, 0
        %5651 = vmatprep.subr.bf16.mxu0 %v5617
        %5652 = vmatpush1.bf16.msra.mxu0 %v5616
        %5653 = vmatprep.subr.bf16.mxu0 %v5621
        %5654 = vmatpush1.bf16.msra.mxu0 %v5620
        %5655 = vmatprep.subr.bf16.mxu0 %v5625
        %5656 = vmatpush1.bf16.msra.mxu0 %v5624
        %5657 = vmatprep.subr.bf16.mxu0 %v5629
        %5658 = vmatpush1.bf16.msra.mxu0 %v5628
        %5659 = vmatprep.subr.bf16.mxu0 0
        %5660 = vmatpush1.bf16.msra.mxu0 0
        %5661 = vmatprep.subr.bf16.mxu0 0
        %5662 = vmatpush1.bf16.msra.mxu0 0
        %5663 = vmatprep.subr.bf16.mxu0 0
        %5664 = vmatpush1.bf16.msra.mxu0 0
        %5665 = vmatprep.subr.bf16.mxu0 0
        %5666 = vmatpush1.bf16.msra.mxu0 0
        %5667 = vmatprep.subr.bf16.mxu0 0
        %5668 = vmatpush1.bf16.msra.mxu0 0
        %5669 = vmatprep.subr.bf16.mxu0 0
        %5670 = vmatpush1.bf16.msra.mxu0 0
        %5671 = vmatprep.subr.bf16.mxu0 0
        %5672 = vmatpush1.bf16.msra.mxu0 0
        %5673 = vmatprep.subr.bf16.mxu0 0
        %5674 = vmatpush1.bf16.msra.mxu0 0
        %5675 = vmatprep.subr.bf16.mxu0 0
        %5676 = vmatpush1.bf16.msra.mxu0 0
        %5677 = vmatprep.subr.bf16.mxu0 0
        %5678 = vmatpush1.bf16.msra.mxu0 0
        %5679 = vmatprep.subr.bf16.mxu0 0
        %5680 = vmatpush1.bf16.msra.mxu0 0
        %5681 = vmatprep.subr.bf16.mxu0 0
        %5682 = vmatpush1.bf16.msra.mxu0 0
        %5683 = vmatprep.mubr.bf16.mxu0 0
        %5684 = vmatmul.mubr.bf16.gmra.mrb[0].mxu0 %v5649
        %v5685 = vpop.f32.mrb[0].mxu0
        %v5686 = vadd.f32 0.0, %v5685
        %v5687 = vpop.f32.mrb[0].mxu0
        %v5688 = vadd.f32 0.0, %v5687
        %v5689 = vpop.f32.mrb[0].mxu0
        %v5690 = vpop.f32.mrb[0].mxu0
        %5691 = vdwg.mxu0
        %5692 = vmatprep.subr.bf16.mxu0 %v5619
        %5693 = vmatpush1.bf16.msra.mxu0 %v5618
        %5694 = vmatprep.subr.bf16.mxu0 %v5623
        %5695 = vmatpush1.bf16.msra.mxu0 %v5622
        %5696 = vmatprep.subr.bf16.mxu0 %v5627
        %5697 = vmatpush1.bf16.msra.mxu0 %v5626
        %5698 = vmatprep.subr.bf16.mxu0 %v5631
        %5699 = vmatpush1.bf16.msra.mxu0 %v5630
        %5700 = vmatprep.subr.bf16.mxu0 0
        %5701 = vmatpush1.bf16.msra.mxu0 0
        %5702 = vmatprep.subr.bf16.mxu0 0
        %5703 = vmatpush1.bf16.msra.mxu0 0
        %5704 = vmatprep.subr.bf16.mxu0 0
        %5705 = vmatpush1.bf16.msra.mxu0 0
        %5706 = vmatprep.subr.bf16.mxu0 0
        %5707 = vmatpush1.bf16.msra.mxu0 0
        %5708 = vmatprep.subr.bf16.mxu0 0
        %5709 = vmatpush1.bf16.msra.mxu0 0
        %5710 = vmatprep.subr.bf16.mxu0 0
        %5711 = vmatpush1.bf16.msra.mxu0 0
        %5712 = vmatprep.subr.bf16.mxu0 0
        %5713 = vmatpush1.bf16.msra.mxu0 0
        %5714 = vmatprep.subr.bf16.mxu0 0
        %5715 = vmatpush1.bf16.msra.mxu0 0
        %5716 = vmatprep.subr.bf16.mxu0 0
        %5717 = vmatpush1.bf16.msra.mxu0 0
        %5718 = vmatprep.subr.bf16.mxu0 0
        %5719 = vmatpush1.bf16.msra.mxu0 0
        %5720 = vmatprep.subr.bf16.mxu0 0
        %5721 = vmatpush1.bf16.msra.mxu0 0
        %5722 = vmatprep.subr.bf16.mxu0 0
        %5723 = vmatpush1.bf16.msra.mxu0 0
        %5724 = vmatprep.mubr.bf16.mxu0 0
        %5725 = vmatmul.mubr.bf16.gmra.mrb[0].mxu0 %v5649
        %v5726 = vpop.f32.mrb[0].mxu0
        %v5727 = vadd.f32 0.0, %v5726
        %v5728 = vpop.f32.mrb[0].mxu0
        %v5729 = vadd.f32 0.0, %v5728
        %v5730 = vpop.f32.mrb[0].mxu0
        %v5731 = vpop.f32.mrb[0].mxu0
        %5732 = vdwg.mxu0
        %v5737 = vcombine.low %v5686, %v5688
        %v5738 = vcombine.low %v5727, %v5729
        %v5740 = vunpack.c.l.s4 1966171168
        %v5741 = vunpack.c.0.s8 %v5740
        %v5742 = vlaneseq
        %v5743 = vshrl.u32 %v5742, 7
        %v5744 = vsub.s32 %v5741, %v5743
        %v5745 = vrot.slane %v5737, %v5744
        %v5747 = vunpack.c.l.s4 1966171168
        %v5748 = vunpack.c.0.s8 %v5747
        %v5749 = vlaneseq
        %v5750 = vshrl.u32 %v5749, 7
        %v5751 = vsub.s32 %v5748, %v5750
        %v5752 = vrot.slane %v5738, %v5751
        %v5753 = vcombine.low %v5745, %v5752
        %v5755 = vunpack.c.l.s4 1966171168
        %v5756 = vunpack.c.0.s8 %v5755
        %v5757 = vlaneseq
        %v5758 = vshrl.u32 %v5757, 7
        %v5759 = vsub.s32 %v5756, %v5758
        %v5760 = vrot.slane %v5753, %v5759
        %v5762 = vadd.f32 %v5549, %v5760
        %v5764 = vrot.slane %v4032, 1
        %v5766 = vmax.f32 %v4032, %v5764
        %v5768 = vrot.slane %v4033, 1
        %v5770 = vmax.f32 %v4033, %v5768
        %v5771 = vmax.f32 %v5766, %v5770
        %v5772 = vmax.f32 %v5771, 0.0
        %v5773 = vpack.c.bf16 %v5772, %v5772
        %s5774 = scalar_lea.vmem %s5, 1024
        %v5775 = vld [vmem:[%s5774] sm:$0xff]
        %v5776 = vld [vmem:[%s5774 + $0x8] sm:$0xff]
        %v5777 = vld [vmem:[%s5774 + $0x10] sm:$0xff]
        %v5778 = vld [vmem:[%s5774 + $0x18] sm:$0xff]
        %v5779 = vld [vmem:[%s5774 + $0x20] sm:$0xff]
        %v5780 = vld [vmem:[%s5774 + $0x28] sm:$0xff]
        %v5781 = vld [vmem:[%s5774 + $0x30] sm:$0xff]
        %v5782 = vld [vmem:[%s5774 + $0x38] sm:$0xff]
        %v5783 = vld [vmem:[%s5774 + $0x40] sm:$0xff]
        %v5784 = vld [vmem:[%s5774 + $0x48] sm:$0xff]
        %v5785 = vld [vmem:[%s5774 + $0x50] sm:$0xff]
        %v5786 = vld [vmem:[%s5774 + $0x58] sm:$0xff]
        %v5787 = vld [vmem:[%s5774 + $0x60] sm:$0xff]
        %v5788 = vld [vmem:[%s5774 + $0x68] sm:$0xff]
        %v5789 = vld [vmem:[%s5774 + $0x70] sm:$0xff]
        %v5790 = vld [vmem:[%s5774 + $0x78] sm:$0xff]
        %v5807 = vunpack.c.l.b16 %v5775
        %v5808 = vunpack.c.h.b16 %v5775
        %v5809 = vunpack.c.l.b16 %v5776
        %v5810 = vunpack.c.h.b16 %v5776
        %v5811 = vunpack.c.l.b16 %v5777
        %v5812 = vunpack.c.h.b16 %v5777
        %v5813 = vunpack.c.l.b16 %v5778
        %v5814 = vunpack.c.h.b16 %v5778
        %v5815 = vunpack.c.l.b16 %v5779
        %v5816 = vunpack.c.h.b16 %v5779
        %v5817 = vunpack.c.l.b16 %v5780
        %v5818 = vunpack.c.h.b16 %v5780
        %v5819 = vunpack.c.l.b16 %v5781
        %v5820 = vunpack.c.h.b16 %v5781
        %v5821 = vunpack.c.l.b16 %v5782
        %v5822 = vunpack.c.h.b16 %v5782
        %v5823 = vunpack.c.l.b16 %v5783
        %v5824 = vunpack.c.h.b16 %v5783
        %v5825 = vunpack.c.l.b16 %v5784
        %v5826 = vunpack.c.h.b16 %v5784
        %v5827 = vunpack.c.l.b16 %v5785
        %v5828 = vunpack.c.h.b16 %v5785
        %v5829 = vunpack.c.l.b16 %v5786
        %v5830 = vunpack.c.h.b16 %v5786
        %v5831 = vunpack.c.l.b16 %v5787
        %v5832 = vunpack.c.h.b16 %v5787
        %v5833 = vunpack.c.l.b16 %v5788
        %v5834 = vunpack.c.h.b16 %v5788
        %v5835 = vunpack.c.l.b16 %v5789
        %v5836 = vunpack.c.h.b16 %v5789
        %v5837 = vunpack.c.l.b16 %v5790
        %v5838 = vunpack.c.h.b16 %v5790
        %v5839 = vpack.c.b16 %v5811, %v5807
        %v5840 = vpack.c.b16 %v5812, %v5808
        %v5841 = vpack.c.b16 %v5813, %v5809
        %v5842 = vpack.c.b16 %v5814, %v5810
        %v5843 = vpack.c.b16 %v5819, %v5815
        %v5844 = vpack.c.b16 %v5820, %v5816
        %v5845 = vpack.c.b16 %v5821, %v5817
        %v5846 = vpack.c.b16 %v5822, %v5818
        %v5847 = vpack.c.b16 %v5827, %v5823
        %v5848 = vpack.c.b16 %v5828, %v5824
        %v5849 = vpack.c.b16 %v5829, %v5825
        %v5850 = vpack.c.b16 %v5830, %v5826
        %v5851 = vpack.c.b16 %v5835, %v5831
        %v5852 = vpack.c.b16 %v5836, %v5832
        %v5853 = vpack.c.b16 %v5837, %v5833
        %v5854 = vpack.c.b16 %v5838, %v5834
        %v5872 = vsel %vm4144, %v5773, 0
        %5874 = vmatprep.subr.bf16.mxu0 %v5840
        %5875 = vmatpush1.bf16.msra.mxu0 %v5839
        %5876 = vmatprep.subr.bf16.mxu0 %v5844
        %5877 = vmatpush1.bf16.msra.mxu0 %v5843
        %5878 = vmatprep.subr.bf16.mxu0 %v5848
        %5879 = vmatpush1.bf16.msra.mxu0 %v5847
        %5880 = vmatprep.subr.bf16.mxu0 %v5852
        %5881 = vmatpush1.bf16.msra.mxu0 %v5851
        %5882 = vmatprep.subr.bf16.mxu0 0
        %5883 = vmatpush1.bf16.msra.mxu0 0
        %5884 = vmatprep.subr.bf16.mxu0 0
        %5885 = vmatpush1.bf16.msra.mxu0 0
        %5886 = vmatprep.subr.bf16.mxu0 0
        %5887 = vmatpush1.bf16.msra.mxu0 0
        %5888 = vmatprep.subr.bf16.mxu0 0
        %5889 = vmatpush1.bf16.msra.mxu0 0
        %5890 = vmatprep.subr.bf16.mxu0 0
        %5891 = vmatpush1.bf16.msra.mxu0 0
        %5892 = vmatprep.subr.bf16.mxu0 0
        %5893 = vmatpush1.bf16.msra.mxu0 0
        %5894 = vmatprep.subr.bf16.mxu0 0
        %5895 = vmatpush1.bf16.msra.mxu0 0
        %5896 = vmatprep.subr.bf16.mxu0 0
        %5897 = vmatpush1.bf16.msra.mxu0 0
        %5898 = vmatprep.subr.bf16.mxu0 0
        %5899 = vmatpush1.bf16.msra.mxu0 0
        %5900 = vmatprep.subr.bf16.mxu0 0
        %5901 = vmatpush1.bf16.msra.mxu0 0
        %5902 = vmatprep.subr.bf16.mxu0 0
        %5903 = vmatpush1.bf16.msra.mxu0 0
        %5904 = vmatprep.subr.bf16.mxu0 0
        %5905 = vmatpush1.bf16.msra.mxu0 0
        %5906 = vmatprep.mubr.bf16.mxu0 0
        %5907 = vmatmul.mubr.bf16.gmra.mrb[0].mxu0 %v5872
        %v5908 = vpop.f32.mrb[0].mxu0
        %v5909 = vadd.f32 0.0, %v5908
        %v5910 = vpop.f32.mrb[0].mxu0
        %v5911 = vadd.f32 0.0, %v5910
        %v5912 = vpop.f32.mrb[0].mxu0
        %v5913 = vpop.f32.mrb[0].mxu0
        %5914 = vdwg.mxu0
        %5915 = vmatprep.subr.bf16.mxu0 %v5842
        %5916 = vmatpush1.bf16.msra.mxu0 %v5841
        %5917 = vmatprep.subr.bf16.mxu0 %v5846
        %5918 = vmatpush1.bf16.msra.mxu0 %v5845
        %5919 = vmatprep.subr.bf16.mxu0 %v5850
        %5920 = vmatpush1.bf16.msra.mxu0 %v5849
        %5921 = vmatprep.subr.bf16.mxu0 %v5854
        %5922 = vmatpush1.bf16.msra.mxu0 %v5853
        %5923 = vmatprep.subr.bf16.mxu0 0
        %5924 = vmatpush1.bf16.msra.mxu0 0
        %5925 = vmatprep.subr.bf16.mxu0 0
        %5926 = vmatpush1.bf16.msra.mxu0 0
        %5927 = vmatprep.subr.bf16.mxu0 0
        %5928 = vmatpush1.bf16.msra.mxu0 0
        %5929 = vmatprep.subr.bf16.mxu0 0
        %5930 = vmatpush1.bf16.msra.mxu0 0
        %5931 = vmatprep.subr.bf16.mxu0 0
        %5932 = vmatpush1.bf16.msra.mxu0 0
        %5933 = vmatprep.subr.bf16.mxu0 0
        %5934 = vmatpush1.bf16.msra.mxu0 0
        %5935 = vmatprep.subr.bf16.mxu0 0
        %5936 = vmatpush1.bf16.msra.mxu0 0
        %5937 = vmatprep.subr.bf16.mxu0 0
        %5938 = vmatpush1.bf16.msra.mxu0 0
        %5939 = vmatprep.subr.bf16.mxu0 0
        %5940 = vmatpush1.bf16.msra.mxu0 0
        %5941 = vmatprep.subr.bf16.mxu0 0
        %5942 = vmatpush1.bf16.msra.mxu0 0
        %5943 = vmatprep.subr.bf16.mxu0 0
        %5944 = vmatpush1.bf16.msra.mxu0 0
        %5945 = vmatprep.subr.bf16.mxu0 0
        %5946 = vmatpush1.bf16.msra.mxu0 0
        %5947 = vmatprep.mubr.bf16.mxu0 0
        %5948 = vmatmul.mubr.bf16.gmra.mrb[0].mxu0 %v5872
        %v5949 = vpop.f32.mrb[0].mxu0
        %v5950 = vadd.f32 0.0, %v5949
        %v5951 = vpop.f32.mrb[0].mxu0
        %v5952 = vadd.f32 0.0, %v5951
        %v5953 = vpop.f32.mrb[0].mxu0
        %v5954 = vpop.f32.mrb[0].mxu0
        %5955 = vdwg.mxu0
        %v5960 = vcombine.low %v5909, %v5911
        %v5961 = vcombine.low %v5950, %v5952
        %v5963 = vunpack.c.l.s4 1966171168
        %v5964 = vunpack.c.0.s8 %v5963
        %v5965 = vlaneseq
        %v5966 = vshrl.u32 %v5965, 7
        %v5967 = vsub.s32 %v5964, %v5966
        %v5968 = vrot.slane %v5960, %v5967
        %v5970 = vunpack.c.l.s4 1966171168
        %v5971 = vunpack.c.0.s8 %v5970
        %v5972 = vlaneseq
        %v5973 = vshrl.u32 %v5972, 7
        %v5974 = vsub.s32 %v5971, %v5973
        %v5975 = vrot.slane %v5961, %v5974
        %v5976 = vcombine.low %v5968, %v5975
        %v5978 = vunpack.c.l.s4 1966171168
        %v5979 = vunpack.c.0.s8 %v5978
        %v5980 = vlaneseq
        %v5981 = vshrl.u32 %v5980, 7
        %v5982 = vsub.s32 %v5979, %v5981
        %v5983 = vrot.slane %v5976, %v5982
        %v5985 = vadd.f32 %v5762, %v5983
        %s5986 = scalar_lea.vmem %s5, 1152
        %v5987 = vld [vmem:[%s5986] sm:$0xff]
        %v5988 = vld [vmem:[%s5986 + $0x8] sm:$0xff]
        %v5989 = vld [vmem:[%s5986 + $0x10] sm:$0xff]
        %v5990 = vld [vmem:[%s5986 + $0x18] sm:$0xff]
        %v5991 = vld [vmem:[%s5986 + $0x20] sm:$0xff]
        %v5992 = vld [vmem:[%s5986 + $0x28] sm:$0xff]
        %v5993 = vld [vmem:[%s5986 + $0x30] sm:$0xff]
        %v5994 = vld [vmem:[%s5986 + $0x38] sm:$0xff]
        %v5995 = vld [vmem:[%s5986 + $0x40] sm:$0xff]
        %v5996 = vld [vmem:[%s5986 + $0x48] sm:$0xff]
        %v5997 = vld [vmem:[%s5986 + $0x50] sm:$0xff]
        %v5998 = vld [vmem:[%s5986 + $0x58] sm:$0xff]
        %v5999 = vld [vmem:[%s5986 + $0x60] sm:$0xff]
        %v6000 = vld [vmem:[%s5986 + $0x68] sm:$0xff]
        %v6001 = vld [vmem:[%s5986 + $0x70] sm:$0xff]
        %v6002 = vld [vmem:[%s5986 + $0x78] sm:$0xff]
        %v6004 = vrot.slane %v5773, 1
        %v6021 = vunpack.c.l.b16 %v5987
        %v6022 = vunpack.c.h.b16 %v5987
        %v6023 = vunpack.c.l.b16 %v5988
        %v6024 = vunpack.c.h.b16 %v5988
        %v6025 = vunpack.c.l.b16 %v5989
        %v6026 = vunpack.c.h.b16 %v5989
        %v6027 = vunpack.c.l.b16 %v5990
        %v6028 = vunpack.c.h.b16 %v5990
        %v6029 = vunpack.c.l.b16 %v5991
        %v6030 = vunpack.c.h.b16 %v5991
        %v6031 = vunpack.c.l.b16 %v5992
        %v6032 = vunpack.c.h.b16 %v5992
        %v6033 = vunpack.c.l.b16 %v5993
        %v6034 = vunpack.c.h.b16 %v5993
        %v6035 = vunpack.c.l.b16 %v5994
        %v6036 = vunpack.c.h.b16 %v5994
        %v6037 = vunpack.c.l.b16 %v5995
        %v6038 = vunpack.c.h.b16 %v5995
        %v6039 = vunpack.c.l.b16 %v5996
        %v6040 = vunpack.c.h.b16 %v5996
        %v6041 = vunpack.c.l.b16 %v5997
        %v6042 = vunpack.c.h.b16 %v5997
        %v6043 = vunpack.c.l.b16 %v5998
        %v6044 = vunpack.c.h.b16 %v5998
        %v6045 = vunpack.c.l.b16 %v5999
        %v6046 = vunpack.c.h.b16 %v5999
        %v6047 = vunpack.c.l.b16 %v6000
        %v6048 = vunpack.c.h.b16 %v6000
        %v6049 = vunpack.c.l.b16 %v6001
        %v6050 = vunpack.c.h.b16 %v6001
        %v6051 = vunpack.c.l.b16 %v6002
        %v6052 = vunpack.c.h.b16 %v6002
        %v6053 = vpack.c.b16 %v6025, %v6021
        %v6054 = vpack.c.b16 %v6026, %v6022
        %v6055 = vpack.c.b16 %v6027, %v6023
        %v6056 = vpack.c.b16 %v6028, %v6024
        %v6057 = vpack.c.b16 %v6033, %v6029
        %v6058 = vpack.c.b16 %v6034, %v6030
        %v6059 = vpack.c.b16 %v6035, %v6031
        %v6060 = vpack.c.b16 %v6036, %v6032
        %v6061 = vpack.c.b16 %v6041, %v6037
        %v6062 = vpack.c.b16 %v6042, %v6038
        %v6063 = vpack.c.b16 %v6043, %v6039
        %v6064 = vpack.c.b16 %v6044, %v6040
        %v6065 = vpack.c.b16 %v6049, %v6045
        %v6066 = vpack.c.b16 %v6050, %v6046
        %v6067 = vpack.c.b16 %v6051, %v6047
        %v6068 = vpack.c.b16 %v6052, %v6048
        %v6086 = vsel %vm4144, %v6004, 0
        %6088 = vmatprep.subr.bf16.mxu0 %v6054
        %6089 = vmatpush1.bf16.msra.mxu0 %v6053
        %6090 = vmatprep.subr.bf16.mxu0 %v6058
        %6091 = vmatpush1.bf16.msra.mxu0 %v6057
        %6092 = vmatprep.subr.bf16.mxu0 %v6062
        %6093 = vmatpush1.bf16.msra.mxu0 %v6061
        %6094 = vmatprep.subr.bf16.mxu0 %v6066
        %6095 = vmatpush1.bf16.msra.mxu0 %v6065
        %6096 = vmatprep.subr.bf16.mxu0 0
        %6097 = vmatpush1.bf16.msra.mxu0 0
        %6098 = vmatprep.subr.bf16.mxu0 0
        %6099 = vmatpush1.bf16.msra.mxu0 0
        %6100 = vmatprep.subr.bf16.mxu0 0
        %6101 = vmatpush1.bf16.msra.mxu0 0
        %6102 = vmatprep.subr.bf16.mxu0 0
        %6103 = vmatpush1.bf16.msra.mxu0 0
        %6104 = vmatprep.subr.bf16.mxu0 0
        %6105 = vmatpush1.bf16.msra.mxu0 0
        %6106 = vmatprep.subr.bf16.mxu0 0
        %6107 = vmatpush1.bf16.msra.mxu0 0
        %6108 = vmatprep.subr.bf16.mxu0 0
        %6109 = vmatpush1.bf16.msra.mxu0 0
        %6110 = vmatprep.subr.bf16.mxu0 0
        %6111 = vmatpush1.bf16.msra.mxu0 0
        %6112 = vmatprep.subr.bf16.mxu0 0
        %6113 = vmatpush1.bf16.msra.mxu0 0
        %6114 = vmatprep.subr.bf16.mxu0 0
        %6115 = vmatpush1.bf16.msra.mxu0 0
        %6116 = vmatprep.subr.bf16.mxu0 0
        %6117 = vmatpush1.bf16.msra.mxu0 0
        %6118 = vmatprep.subr.bf16.mxu0 0
        %6119 = vmatpush1.bf16.msra.mxu0 0
        %6120 = vmatprep.mubr.bf16.mxu0 0
        %6121 = vmatmul.mubr.bf16.gmra.mrb[0].mxu0 %v6086
        %v6122 = vpop.f32.mrb[0].mxu0
        %v6123 = vadd.f32 0.0, %v6122
        %v6124 = vpop.f32.mrb[0].mxu0
        %v6125 = vadd.f32 0.0, %v6124
        %v6126 = vpop.f32.mrb[0].mxu0
        %v6127 = vpop.f32.mrb[0].mxu0
        %6128 = vdwg.mxu0
        %6129 = vmatprep.subr.bf16.mxu0 %v6056
        %6130 = vmatpush1.bf16.msra.mxu0 %v6055
        %6131 = vmatprep.subr.bf16.mxu0 %v6060
        %6132 = vmatpush1.bf16.msra.mxu0 %v6059
        %6133 = vmatprep.subr.bf16.mxu0 %v6064
        %6134 = vmatpush1.bf16.msra.mxu0 %v6063
        %6135 = vmatprep.subr.bf16.mxu0 %v6068
        %6136 = vmatpush1.bf16.msra.mxu0 %v6067
        %6137 = vmatprep.subr.bf16.mxu0 0
        %6138 = vmatpush1.bf16.msra.mxu0 0
        %6139 = vmatprep.subr.bf16.mxu0 0
        %6140 = vmatpush1.bf16.msra.mxu0 0
        %6141 = vmatprep.subr.bf16.mxu0 0
        %6142 = vmatpush1.bf16.msra.mxu0 0
        %6143 = vmatprep.subr.bf16.mxu0 0
        %6144 = vmatpush1.bf16.msra.mxu0 0
        %6145 = vmatprep.subr.bf16.mxu0 0
        %6146 = vmatpush1.bf16.msra.mxu0 0
        %6147 = vmatprep.subr.bf16.mxu0 0
        %6148 = vmatpush1.bf16.msra.mxu0 0
        %6149 = vmatprep.subr.bf16.mxu0 0
        %6150 = vmatpush1.bf16.msra.mxu0 0
        %6151 = vmatprep.subr.bf16.mxu0 0
        %6152 = vmatpush1.bf16.msra.mxu0 0
        %6153 = vmatprep.subr.bf16.mxu0 0
        %6154 = vmatpush1.bf16.msra.mxu0 0
        %6155 = vmatprep.subr.bf16.mxu0 0
        %6156 = vmatpush1.bf16.msra.mxu0 0
        %6157 = vmatprep.subr.bf16.mxu0 0
        %6158 = vmatpush1.bf16.msra.mxu0 0
        %6159 = vmatprep.subr.bf16.mxu0 0
        %6160 = vmatpush1.bf16.msra.mxu0 0
        %6161 = vmatprep.mubr.bf16.mxu0 0
        %6162 = vmatmul.mubr.bf16.gmra.mrb[0].mxu0 %v6086
        %v6163 = vpop.f32.mrb[0].mxu0
        %v6164 = vadd.f32 0.0, %v6163
        %v6165 = vpop.f32.mrb[0].mxu0
        %v6166 = vadd.f32 0.0, %v6165
        %v6167 = vpop.f32.mrb[0].mxu0
        %v6168 = vpop.f32.mrb[0].mxu0
        %6169 = vdwg.mxu0
        %v6174 = vcombine.low %v6123, %v6125
        %v6175 = vcombine.low %v6164, %v6166
        %v6177 = vunpack.c.l.s4 1966171168
        %v6178 = vunpack.c.0.s8 %v6177
        %v6179 = vlaneseq
        %v6180 = vshrl.u32 %v6179, 7
        %v6181 = vsub.s32 %v6178, %v6180
        %v6182 = vrot.slane %v6174, %v6181
        %v6184 = vunpack.c.l.s4 1966171168
        %v6185 = vunpack.c.0.s8 %v6184
        %v6186 = vlaneseq
        %v6187 = vshrl.u32 %v6186, 7
        %v6188 = vsub.s32 %v6185, %v6187
        %v6189 = vrot.slane %v6175, %v6188
        %v6190 = vcombine.low %v6182, %v6189
        %v6192 = vunpack.c.l.s4 1966171168
        %v6193 = vunpack.c.0.s8 %v6192
        %v6194 = vlaneseq
        %v6195 = vshrl.u32 %v6194, 7
        %v6196 = vsub.s32 %v6193, %v6195
        %v6197 = vrot.slane %v6190, %v6196
        %v6199 = vadd.f32 %v5985, %v6197
        %s6200 = scalar_lea.vmem %s5, 1280
        %v6201 = vld [vmem:[%s6200] sm:$0xff]
        %v6202 = vld [vmem:[%s6200 + $0x8] sm:$0xff]
        %v6203 = vld [vmem:[%s6200 + $0x10] sm:$0xff]
        %v6204 = vld [vmem:[%s6200 + $0x18] sm:$0xff]
        %v6205 = vld [vmem:[%s6200 + $0x20] sm:$0xff]
        %v6206 = vld [vmem:[%s6200 + $0x28] sm:$0xff]
        %v6207 = vld [vmem:[%s6200 + $0x30] sm:$0xff]
        %v6208 = vld [vmem:[%s6200 + $0x38] sm:$0xff]
        %v6209 = vld [vmem:[%s6200 + $0x40] sm:$0xff]
        %v6210 = vld [vmem:[%s6200 + $0x48] sm:$0xff]
        %v6211 = vld [vmem:[%s6200 + $0x50] sm:$0xff]
        %v6212 = vld [vmem:[%s6200 + $0x58] sm:$0xff]
        %v6213 = vld [vmem:[%s6200 + $0x60] sm:$0xff]
        %v6214 = vld [vmem:[%s6200 + $0x68] sm:$0xff]
        %v6215 = vld [vmem:[%s6200 + $0x70] sm:$0xff]
        %v6216 = vld [vmem:[%s6200 + $0x78] sm:$0xff]
        %v6217 = vrot.slane %v5773, 2
        %v6234 = vunpack.c.l.b16 %v6201
        %v6235 = vunpack.c.h.b16 %v6201
        %v6236 = vunpack.c.l.b16 %v6202
        %v6237 = vunpack.c.h.b16 %v6202
        %v6238 = vunpack.c.l.b16 %v6203
        %v6239 = vunpack.c.h.b16 %v6203
        %v6240 = vunpack.c.l.b16 %v6204
        %v6241 = vunpack.c.h.b16 %v6204
        %v6242 = vunpack.c.l.b16 %v6205
        %v6243 = vunpack.c.h.b16 %v6205
        %v6244 = vunpack.c.l.b16 %v6206
        %v6245 = vunpack.c.h.b16 %v6206
        %v6246 = vunpack.c.l.b16 %v6207
        %v6247 = vunpack.c.h.b16 %v6207
        %v6248 = vunpack.c.l.b16 %v6208
        %v6249 = vunpack.c.h.b16 %v6208
        %v6250 = vunpack.c.l.b16 %v6209
        %v6251 = vunpack.c.h.b16 %v6209
        %v6252 = vunpack.c.l.b16 %v6210
        %v6253 = vunpack.c.h.b16 %v6210
        %v6254 = vunpack.c.l.b16 %v6211
        %v6255 = vunpack.c.h.b16 %v6211
        %v6256 = vunpack.c.l.b16 %v6212
        %v6257 = vunpack.c.h.b16 %v6212
        %v6258 = vunpack.c.l.b16 %v6213
        %v6259 = vunpack.c.h.b16 %v6213
        %v6260 = vunpack.c.l.b16 %v6214
        %v6261 = vunpack.c.h.b16 %v6214
        %v6262 = vunpack.c.l.b16 %v6215
        %v6263 = vunpack.c.h.b16 %v6215
        %v6264 = vunpack.c.l.b16 %v6216
        %v6265 = vunpack.c.h.b16 %v6216
        %v6266 = vpack.c.b16 %v6238, %v6234
        %v6267 = vpack.c.b16 %v6239, %v6235
        %v6268 = vpack.c.b16 %v6240, %v6236
        %v6269 = vpack.c.b16 %v6241, %v6237
        %v6270 = vpack.c.b16 %v6246, %v6242
        %v6271 = vpack.c.b16 %v6247, %v6243
        %v6272 = vpack.c.b16 %v6248, %v6244
        %v6273 = vpack.c.b16 %v6249, %v6245
        %v6274 = vpack.c.b16 %v6254, %v6250
        %v6275 = vpack.c.b16 %v6255, %v6251
        %v6276 = vpack.c.b16 %v6256, %v6252
        %v6277 = vpack.c.b16 %v6257, %v6253
        %v6278 = vpack.c.b16 %v6262, %v6258
        %v6279 = vpack.c.b16 %v6263, %v6259
        %v6280 = vpack.c.b16 %v6264, %v6260
        %v6281 = vpack.c.b16 %v6265, %v6261
        %v6299 = vsel %vm4144, %v6217, 0
        %6301 = vmatprep.subr.bf16.mxu0 %v6267
        %6302 = vmatpush1.bf16.msra.mxu0 %v6266
        %6303 = vmatprep.subr.bf16.mxu0 %v6271
        %6304 = vmatpush1.bf16.msra.mxu0 %v6270
        %6305 = vmatprep.subr.bf16.mxu0 %v6275
        %6306 = vmatpush1.bf16.msra.mxu0 %v6274
        %6307 = vmatprep.subr.bf16.mxu0 %v6279
        %6308 = vmatpush1.bf16.msra.mxu0 %v6278
        %6309 = vmatprep.subr.bf16.mxu0 0
        %6310 = vmatpush1.bf16.msra.mxu0 0
        %6311 = vmatprep.subr.bf16.mxu0 0
        %6312 = vmatpush1.bf16.msra.mxu0 0
        %6313 = vmatprep.subr.bf16.mxu0 0
        %6314 = vmatpush1.bf16.msra.mxu0 0
        %6315 = vmatprep.subr.bf16.mxu0 0
        %6316 = vmatpush1.bf16.msra.mxu0 0
        %6317 = vmatprep.subr.bf16.mxu0 0
        %6318 = vmatpush1.bf16.msra.mxu0 0
        %6319 = vmatprep.subr.bf16.mxu0 0
        %6320 = vmatpush1.bf16.msra.mxu0 0
        %6321 = vmatprep.subr.bf16.mxu0 0
        %6322 = vmatpush1.bf16.msra.mxu0 0
        %6323 = vmatprep.subr.bf16.mxu0 0
        %6324 = vmatpush1.bf16.msra.mxu0 0
        %6325 = vmatprep.subr.bf16.mxu0 0
        %6326 = vmatpush1.bf16.msra.mxu0 0
        %6327 = vmatprep.subr.bf16.mxu0 0
        %6328 = vmatpush1.bf16.msra.mxu0 0
        %6329 = vmatprep.subr.bf16.mxu0 0
        %6330 = vmatpush1.bf16.msra.mxu0 0
        %6331 = vmatprep.subr.bf16.mxu0 0
        %6332 = vmatpush1.bf16.msra.mxu0 0
        %6333 = vmatprep.mubr.bf16.mxu0 0
        %6334 = vmatmul.mubr.bf16.gmra.mrb[0].mxu0 %v6299
        %v6335 = vpop.f32.mrb[0].mxu0
        %v6336 = vadd.f32 0.0, %v6335
        %v6337 = vpop.f32.mrb[0].mxu0
        %v6338 = vadd.f32 0.0, %v6337
        %v6339 = vpop.f32.mrb[0].mxu0
        %v6340 = vpop.f32.mrb[0].mxu0
        %6341 = vdwg.mxu0
        %6342 = vmatprep.subr.bf16.mxu0 %v6269
        %6343 = vmatpush1.bf16.msra.mxu0 %v6268
        %6344 = vmatprep.subr.bf16.mxu0 %v6273
        %6345 = vmatpush1.bf16.msra.mxu0 %v6272
        %6346 = vmatprep.subr.bf16.mxu0 %v6277
        %6347 = vmatpush1.bf16.msra.mxu0 %v6276
        %6348 = vmatprep.subr.bf16.mxu0 %v6281
        %6349 = vmatpush1.bf16.msra.mxu0 %v6280
        %6350 = vmatprep.subr.bf16.mxu0 0
        %6351 = vmatpush1.bf16.msra.mxu0 0
        %6352 = vmatprep.subr.bf16.mxu0 0
        %6353 = vmatpush1.bf16.msra.mxu0 0
        %6354 = vmatprep.subr.bf16.mxu0 0
        %6355 = vmatpush1.bf16.msra.mxu0 0
        %6356 = vmatprep.subr.bf16.mxu0 0
        %6357 = vmatpush1.bf16.msra.mxu0 0
        %6358 = vmatprep.subr.bf16.mxu0 0
        %6359 = vmatpush1.bf16.msra.mxu0 0
        %6360 = vmatprep.subr.bf16.mxu0 0
        %6361 = vmatpush1.bf16.msra.mxu0 0
        %6362 = vmatprep.subr.bf16.mxu0 0
        %6363 = vmatpush1.bf16.msra.mxu0 0
        %6364 = vmatprep.subr.bf16.mxu0 0
        %6365 = vmatpush1.bf16.msra.mxu0 0
        %6366 = vmatprep.subr.bf16.mxu0 0
        %6367 = vmatpush1.bf16.msra.mxu0 0
        %6368 = vmatprep.subr.bf16.mxu0 0
        %6369 = vmatpush1.bf16.msra.mxu0 0
        %6370 = vmatprep.subr.bf16.mxu0 0
        %6371 = vmatpush1.bf16.msra.mxu0 0
        %6372 = vmatprep.subr.bf16.mxu0 0
        %6373 = vmatpush1.bf16.msra.mxu0 0
        %6374 = vmatprep.mubr.bf16.mxu0 0
        %6375 = vmatmul.mubr.bf16.gmra.mrb[0].mxu0 %v6299
        %v6376 = vpop.f32.mrb[0].mxu0
        %v6377 = vadd.f32 0.0, %v6376
        %v6378 = vpop.f32.mrb[0].mxu0
        %v6379 = vadd.f32 0.0, %v6378
        %v6380 = vpop.f32.mrb[0].mxu0
        %v6381 = vpop.f32.mrb[0].mxu0
        %6382 = vdwg.mxu0
        %v6387 = vcombine.low %v6336, %v6338
        %v6388 = vcombine.low %v6377, %v6379
        %v6390 = vunpack.c.l.s4 1966171168
        %v6391 = vunpack.c.0.s8 %v6390
        %v6392 = vlaneseq
        %v6393 = vshrl.u32 %v6392, 7
        %v6394 = vsub.s32 %v6391, %v6393
        %v6395 = vrot.slane %v6387, %v6394
        %v6397 = vunpack.c.l.s4 1966171168
        %v6398 = vunpack.c.0.s8 %v6397
        %v6399 = vlaneseq
        %v6400 = vshrl.u32 %v6399, 7
        %v6401 = vsub.s32 %v6398, %v6400
        %v6402 = vrot.slane %v6388, %v6401
        %v6403 = vcombine.low %v6395, %v6402
        %v6405 = vunpack.c.l.s4 1966171168
        %v6406 = vunpack.c.0.s8 %v6405
        %v6407 = vlaneseq
        %v6408 = vshrl.u32 %v6407, 7
        %v6409 = vsub.s32 %v6406, %v6408
        %v6410 = vrot.slane %v6403, %v6409
        %v6412 = vadd.f32 %v6199, %v6410
        %s6413 = scalar_lea.vmem %s5, 1408
        %v6414 = vld [vmem:[%s6413] sm:$0xff]
        %v6415 = vld [vmem:[%s6413 + $0x8] sm:$0xff]
        %v6416 = vld [vmem:[%s6413 + $0x10] sm:$0xff]
        %v6417 = vld [vmem:[%s6413 + $0x18] sm:$0xff]
        %v6418 = vld [vmem:[%s6413 + $0x20] sm:$0xff]
        %v6419 = vld [vmem:[%s6413 + $0x28] sm:$0xff]
        %v6420 = vld [vmem:[%s6413 + $0x30] sm:$0xff]
        %v6421 = vld [vmem:[%s6413 + $0x38] sm:$0xff]
        %v6422 = vld [vmem:[%s6413 + $0x40] sm:$0xff]
        %v6423 = vld [vmem:[%s6413 + $0x48] sm:$0xff]
        %v6424 = vld [vmem:[%s6413 + $0x50] sm:$0xff]
        %v6425 = vld [vmem:[%s6413 + $0x58] sm:$0xff]
        %v6426 = vld [vmem:[%s6413 + $0x60] sm:$0xff]
        %v6427 = vld [vmem:[%s6413 + $0x68] sm:$0xff]
        %v6428 = vld [vmem:[%s6413 + $0x70] sm:$0xff]
        %v6429 = vld [vmem:[%s6413 + $0x78] sm:$0xff]
        %v6430 = vrot.slane %v5773, 3
        %v6447 = vunpack.c.l.b16 %v6414
        %v6448 = vunpack.c.h.b16 %v6414
        %v6449 = vunpack.c.l.b16 %v6415
        %v6450 = vunpack.c.h.b16 %v6415
        %v6451 = vunpack.c.l.b16 %v6416
        %v6452 = vunpack.c.h.b16 %v6416
        %v6453 = vunpack.c.l.b16 %v6417
        %v6454 = vunpack.c.h.b16 %v6417
        %v6455 = vunpack.c.l.b16 %v6418
        %v6456 = vunpack.c.h.b16 %v6418
        %v6457 = vunpack.c.l.b16 %v6419
        %v6458 = vunpack.c.h.b16 %v6419
        %v6459 = vunpack.c.l.b16 %v6420
        %v6460 = vunpack.c.h.b16 %v6420
        %v6461 = vunpack.c.l.b16 %v6421
        %v6462 = vunpack.c.h.b16 %v6421
        %v6463 = vunpack.c.l.b16 %v6422
        %v6464 = vunpack.c.h.b16 %v6422
        %v6465 = vunpack.c.l.b16 %v6423
        %v6466 = vunpack.c.h.b16 %v6423
        %v6467 = vunpack.c.l.b16 %v6424
        %v6468 = vunpack.c.h.b16 %v6424
        %v6469 = vunpack.c.l.b16 %v6425
        %v6470 = vunpack.c.h.b16 %v6425
        %v6471 = vunpack.c.l.b16 %v6426
        %v6472 = vunpack.c.h.b16 %v6426
        %v6473 = vunpack.c.l.b16 %v6427
        %v6474 = vunpack.c.h.b16 %v6427
        %v6475 = vunpack.c.l.b16 %v6428
        %v6476 = vunpack.c.h.b16 %v6428
        %v6477 = vunpack.c.l.b16 %v6429
        %v6478 = vunpack.c.h.b16 %v6429
        %v6479 = vpack.c.b16 %v6451, %v6447
        %v6480 = vpack.c.b16 %v6452, %v6448
        %v6481 = vpack.c.b16 %v6453, %v6449
        %v6482 = vpack.c.b16 %v6454, %v6450
        %v6483 = vpack.c.b16 %v6459, %v6455
        %v6484 = vpack.c.b16 %v6460, %v6456
        %v6485 = vpack.c.b16 %v6461, %v6457
        %v6486 = vpack.c.b16 %v6462, %v6458
        %v6487 = vpack.c.b16 %v6467, %v6463
        %v6488 = vpack.c.b16 %v6468, %v6464
        %v6489 = vpack.c.b16 %v6469, %v6465
        %v6490 = vpack.c.b16 %v6470, %v6466
        %v6491 = vpack.c.b16 %v6475, %v6471
        %v6492 = vpack.c.b16 %v6476, %v6472
        %v6493 = vpack.c.b16 %v6477, %v6473
        %v6494 = vpack.c.b16 %v6478, %v6474
        %v6512 = vsel %vm4144, %v6430, 0
        %6514 = vmatprep.subr.bf16.mxu0 %v6480
        %6515 = vmatpush1.bf16.msra.mxu0 %v6479
        %6516 = vmatprep.subr.bf16.mxu0 %v6484
        %6517 = vmatpush1.bf16.msra.mxu0 %v6483
        %6518 = vmatprep.subr.bf16.mxu0 %v6488
        %6519 = vmatpush1.bf16.msra.mxu0 %v6487
        %6520 = vmatprep.subr.bf16.mxu0 %v6492
        %6521 = vmatpush1.bf16.msra.mxu0 %v6491
        %6522 = vmatprep.subr.bf16.mxu0 0
        %6523 = vmatpush1.bf16.msra.mxu0 0
        %6524 = vmatprep.subr.bf16.mxu0 0
        %6525 = vmatpush1.bf16.msra.mxu0 0
        %6526 = vmatprep.subr.bf16.mxu0 0
        %6527 = vmatpush1.bf16.msra.mxu0 0
        %6528 = vmatprep.subr.bf16.mxu0 0
        %6529 = vmatpush1.bf16.msra.mxu0 0
        %6530 = vmatprep.subr.bf16.mxu0 0
        %6531 = vmatpush1.bf16.msra.mxu0 0
        %6532 = vmatprep.subr.bf16.mxu0 0
        %6533 = vmatpush1.bf16.msra.mxu0 0
        %6534 = vmatprep.subr.bf16.mxu0 0
        %6535 = vmatpush1.bf16.msra.mxu0 0
        %6536 = vmatprep.subr.bf16.mxu0 0
        %6537 = vmatpush1.bf16.msra.mxu0 0
        %6538 = vmatprep.subr.bf16.mxu0 0
        %6539 = vmatpush1.bf16.msra.mxu0 0
        %6540 = vmatprep.subr.bf16.mxu0 0
        %6541 = vmatpush1.bf16.msra.mxu0 0
        %6542 = vmatprep.subr.bf16.mxu0 0
        %6543 = vmatpush1.bf16.msra.mxu0 0
        %6544 = vmatprep.subr.bf16.mxu0 0
        %6545 = vmatpush1.bf16.msra.mxu0 0
        %6546 = vmatprep.mubr.bf16.mxu0 0
        %6547 = vmatmul.mubr.bf16.gmra.mrb[0].mxu0 %v6512
        %v6548 = vpop.f32.mrb[0].mxu0
        %v6549 = vadd.f32 0.0, %v6548
        %v6550 = vpop.f32.mrb[0].mxu0
        %v6551 = vadd.f32 0.0, %v6550
        %v6552 = vpop.f32.mrb[0].mxu0
        %v6553 = vpop.f32.mrb[0].mxu0
        %6554 = vdwg.mxu0
        %6555 = vmatprep.subr.bf16.mxu0 %v6482
        %6556 = vmatpush1.bf16.msra.mxu0 %v6481
        %6557 = vmatprep.subr.bf16.mxu0 %v6486
        %6558 = vmatpush1.bf16.msra.mxu0 %v6485
        %6559 = vmatprep.subr.bf16.mxu0 %v6490
        %6560 = vmatpush1.bf16.msra.mxu0 %v6489
        %6561 = vmatprep.subr.bf16.mxu0 %v6494
        %6562 = vmatpush1.bf16.msra.mxu0 %v6493
        %6563 = vmatprep.subr.bf16.mxu0 0
        %6564 = vmatpush1.bf16.msra.mxu0 0
        %6565 = vmatprep.subr.bf16.mxu0 0
        %6566 = vmatpush1.bf16.msra.mxu0 0
        %6567 = vmatprep.subr.bf16.mxu0 0
        %6568 = vmatpush1.bf16.msra.mxu0 0
        %6569 = vmatprep.subr.bf16.mxu0 0
        %6570 = vmatpush1.bf16.msra.mxu0 0
        %6571 = vmatprep.subr.bf16.mxu0 0
        %6572 = vmatpush1.bf16.msra.mxu0 0
        %6573 = vmatprep.subr.bf16.mxu0 0
        %6574 = vmatpush1.bf16.msra.mxu0 0
        %6575 = vmatprep.subr.bf16.mxu0 0
        %6576 = vmatpush1.bf16.msra.mxu0 0
        %6577 = vmatprep.subr.bf16.mxu0 0
        %6578 = vmatpush1.bf16.msra.mxu0 0
        %6579 = vmatprep.subr.bf16.mxu0 0
        %6580 = vmatpush1.bf16.msra.mxu0 0
        %6581 = vmatprep.subr.bf16.mxu0 0
        %6582 = vmatpush1.bf16.msra.mxu0 0
        %6583 = vmatprep.subr.bf16.mxu0 0
        %6584 = vmatpush1.bf16.msra.mxu0 0
        %6585 = vmatprep.subr.bf16.mxu0 0
        %6586 = vmatpush1.bf16.msra.mxu0 0
        %6587 = vmatprep.mubr.bf16.mxu0 0
        %6588 = vmatmul.mubr.bf16.gmra.mrb[0].mxu0 %v6512
        %v6589 = vpop.f32.mrb[0].mxu0
        %v6590 = vadd.f32 0.0, %v6589
        %v6591 = vpop.f32.mrb[0].mxu0
        %v6592 = vadd.f32 0.0, %v6591
        %v6593 = vpop.f32.mrb[0].mxu0
        %v6594 = vpop.f32.mrb[0].mxu0
        %6595 = vdwg.mxu0
        %v6600 = vcombine.low %v6549, %v6551
        %v6601 = vcombine.low %v6590, %v6592
        %v6603 = vunpack.c.l.s4 1966171168
        %v6604 = vunpack.c.0.s8 %v6603
        %v6605 = vlaneseq
        %v6606 = vshrl.u32 %v6605, 7
        %v6607 = vsub.s32 %v6604, %v6606
        %v6608 = vrot.slane %v6600, %v6607
        %v6610 = vunpack.c.l.s4 1966171168
        %v6611 = vunpack.c.0.s8 %v6610
        %v6612 = vlaneseq
        %v6613 = vshrl.u32 %v6612, 7
        %v6614 = vsub.s32 %v6611, %v6613
        %v6615 = vrot.slane %v6601, %v6614
        %v6616 = vcombine.low %v6608, %v6615
        %v6618 = vunpack.c.l.s4 1966171168
        %v6619 = vunpack.c.0.s8 %v6618
        %v6620 = vlaneseq
        %v6621 = vshrl.u32 %v6620, 7
        %v6622 = vsub.s32 %v6619, %v6621
        %v6623 = vrot.slane %v6616, %v6622
        %v6625 = vadd.f32 %v6412, %v6623
        %v6627 = vrot.slane %v4034, 1
        %v6629 = vmax.f32 %v4034, %v6627
        %v6631 = vrot.slane %v4035, 1
        %v6633 = vmax.f32 %v4035, %v6631
        %v6634 = vmax.f32 %v6629, %v6633
        %v6635 = vmax.f32 %v6634, 0.0
        %v6636 = vpack.c.bf16 %v6635, %v6635
        %s6637 = scalar_lea.vmem %s5, 1536
        %v6638 = vld [vmem:[%s6637] sm:$0xff]
        %v6639 = vld [vmem:[%s6637 + $0x8] sm:$0xff]
        %v6640 = vld [vmem:[%s6637 + $0x10] sm:$0xff]
        %v6641 = vld [vmem:[%s6637 + $0x18] sm:$0xff]
        %v6642 = vld [vmem:[%s6637 + $0x20] sm:$0xff]
        %v6643 = vld [vmem:[%s6637 + $0x28] sm:$0xff]
        %v6644 = vld [vmem:[%s6637 + $0x30] sm:$0xff]
        %v6645 = vld [vmem:[%s6637 + $0x38] sm:$0xff]
        %v6646 = vld [vmem:[%s6637 + $0x40] sm:$0xff]
        %v6647 = vld [vmem:[%s6637 + $0x48] sm:$0xff]
        %v6648 = vld [vmem:[%s6637 + $0x50] sm:$0xff]
        %v6649 = vld [vmem:[%s6637 + $0x58] sm:$0xff]
        %v6650 = vld [vmem:[%s6637 + $0x60] sm:$0xff]
        %v6651 = vld [vmem:[%s6637 + $0x68] sm:$0xff]
        %v6652 = vld [vmem:[%s6637 + $0x70] sm:$0xff]
        %v6653 = vld [vmem:[%s6637 + $0x78] sm:$0xff]
        %v6670 = vunpack.c.l.b16 %v6638
        %v6671 = vunpack.c.h.b16 %v6638
        %v6672 = vunpack.c.l.b16 %v6639
        %v6673 = vunpack.c.h.b16 %v6639
        %v6674 = vunpack.c.l.b16 %v6640
        %v6675 = vunpack.c.h.b16 %v6640
        %v6676 = vunpack.c.l.b16 %v6641
        %v6677 = vunpack.c.h.b16 %v6641
        %v6678 = vunpack.c.l.b16 %v6642
        %v6679 = vunpack.c.h.b16 %v6642
        %v6680 = vunpack.c.l.b16 %v6643
        %v6681 = vunpack.c.h.b16 %v6643
        %v6682 = vunpack.c.l.b16 %v6644
        %v6683 = vunpack.c.h.b16 %v6644
        %v6684 = vunpack.c.l.b16 %v6645
        %v6685 = vunpack.c.h.b16 %v6645
        %v6686 = vunpack.c.l.b16 %v6646
        %v6687 = vunpack.c.h.b16 %v6646
        %v6688 = vunpack.c.l.b16 %v6647
        %v6689 = vunpack.c.h.b16 %v6647
        %v6690 = vunpack.c.l.b16 %v6648
        %v6691 = vunpack.c.h.b16 %v6648
        %v6692 = vunpack.c.l.b16 %v6649
        %v6693 = vunpack.c.h.b16 %v6649
        %v6694 = vunpack.c.l.b16 %v6650
        %v6695 = vunpack.c.h.b16 %v6650
        %v6696 = vunpack.c.l.b16 %v6651
        %v6697 = vunpack.c.h.b16 %v6651
        %v6698 = vunpack.c.l.b16 %v6652
        %v6699 = vunpack.c.h.b16 %v6652
        %v6700 = vunpack.c.l.b16 %v6653
        %v6701 = vunpack.c.h.b16 %v6653
        %v6702 = vpack.c.b16 %v6674, %v6670
        %v6703 = vpack.c.b16 %v6675, %v6671
        %v6704 = vpack.c.b16 %v6676, %v6672
        %v6705 = vpack.c.b16 %v6677, %v6673
        %v6706 = vpack.c.b16 %v6682, %v6678
        %v6707 = vpack.c.b16 %v6683, %v6679
        %v6708 = vpack.c.b16 %v6684, %v6680
        %v6709 = vpack.c.b16 %v6685, %v6681
        %v6710 = vpack.c.b16 %v6690, %v6686
        %v6711 = vpack.c.b16 %v6691, %v6687
        %v6712 = vpack.c.b16 %v6692, %v6688
        %v6713 = vpack.c.b16 %v6693, %v6689
        %v6714 = vpack.c.b16 %v6698, %v6694
        %v6715 = vpack.c.b16 %v6699, %v6695
        %v6716 = vpack.c.b16 %v6700, %v6696
        %v6717 = vpack.c.b16 %v6701, %v6697
        %v6735 = vsel %vm4144, %v6636, 0
        %6737 = vmatprep.subr.bf16.mxu0 %v6703
        %6738 = vmatpush1.bf16.msra.mxu0 %v6702
        %6739 = vmatprep.subr.bf16.mxu0 %v6707
        %6740 = vmatpush1.bf16.msra.mxu0 %v6706
        %6741 = vmatprep.subr.bf16.mxu0 %v6711
        %6742 = vmatpush1.bf16.msra.mxu0 %v6710
        %6743 = vmatprep.subr.bf16.mxu0 %v6715
        %6744 = vmatpush1.bf16.msra.mxu0 %v6714
        %6745 = vmatprep.subr.bf16.mxu0 0
        %6746 = vmatpush1.bf16.msra.mxu0 0
        %6747 = vmatprep.subr.bf16.mxu0 0
        %6748 = vmatpush1.bf16.msra.mxu0 0
        %6749 = vmatprep.subr.bf16.mxu0 0
        %6750 = vmatpush1.bf16.msra.mxu0 0
        %6751 = vmatprep.subr.bf16.mxu0 0
        %6752 = vmatpush1.bf16.msra.mxu0 0
        %6753 = vmatprep.subr.bf16.mxu0 0
        %6754 = vmatpush1.bf16.msra.mxu0 0
        %6755 = vmatprep.subr.bf16.mxu0 0
        %6756 = vmatpush1.bf16.msra.mxu0 0
        %6757 = vmatprep.subr.bf16.mxu0 0
        %6758 = vmatpush1.bf16.msra.mxu0 0
        %6759 = vmatprep.subr.bf16.mxu0 0
        %6760 = vmatpush1.bf16.msra.mxu0 0
        %6761 = vmatprep.subr.bf16.mxu0 0
        %6762 = vmatpush1.bf16.msra.mxu0 0
        %6763 = vmatprep.subr.bf16.mxu0 0
        %6764 = vmatpush1.bf16.msra.mxu0 0
        %6765 = vmatprep.subr.bf16.mxu0 0
        %6766 = vmatpush1.bf16.msra.mxu0 0
        %6767 = vmatprep.subr.bf16.mxu0 0
        %6768 = vmatpush1.bf16.msra.mxu0 0
        %6769 = vmatprep.mubr.bf16.mxu0 0
        %6770 = vmatmul.mubr.bf16.gmra.mrb[0].mxu0 %v6735
        %v6771 = vpop.f32.mrb[0].mxu0
        %v6772 = vadd.f32 0.0, %v6771
        %v6773 = vpop.f32.mrb[0].mxu0
        %v6774 = vadd.f32 0.0, %v6773
        %v6775 = vpop.f32.mrb[0].mxu0
        %v6776 = vpop.f32.mrb[0].mxu0
        %6777 = vdwg.mxu0
        %6778 = vmatprep.subr.bf16.mxu0 %v6705
        %6779 = vmatpush1.bf16.msra.mxu0 %v6704
        %6780 = vmatprep.subr.bf16.mxu0 %v6709
        %6781 = vmatpush1.bf16.msra.mxu0 %v6708
        %6782 = vmatprep.subr.bf16.mxu0 %v6713
        %6783 = vmatpush1.bf16.msra.mxu0 %v6712
        %6784 = vmatprep.subr.bf16.mxu0 %v6717
        %6785 = vmatpush1.bf16.msra.mxu0 %v6716
        %6786 = vmatprep.subr.bf16.mxu0 0
        %6787 = vmatpush1.bf16.msra.mxu0 0
        %6788 = vmatprep.subr.bf16.mxu0 0
        %6789 = vmatpush1.bf16.msra.mxu0 0
        %6790 = vmatprep.subr.bf16.mxu0 0
        %6791 = vmatpush1.bf16.msra.mxu0 0
        %6792 = vmatprep.subr.bf16.mxu0 0
        %6793 = vmatpush1.bf16.msra.mxu0 0
        %6794 = vmatprep.subr.bf16.mxu0 0
        %6795 = vmatpush1.bf16.msra.mxu0 0
        %6796 = vmatprep.subr.bf16.mxu0 0
        %6797 = vmatpush1.bf16.msra.mxu0 0
        %6798 = vmatprep.subr.bf16.mxu0 0
        %6799 = vmatpush1.bf16.msra.mxu0 0
        %6800 = vmatprep.subr.bf16.mxu0 0
        %6801 = vmatpush1.bf16.msra.mxu0 0
        %6802 = vmatprep.subr.bf16.mxu0 0
        %6803 = vmatpush1.bf16.msra.mxu0 0
        %6804 = vmatprep.subr.bf16.mxu0 0
        %6805 = vmatpush1.bf16.msra.mxu0 0
        %6806 = vmatprep.subr.bf16.mxu0 0
        %6807 = vmatpush1.bf16.msra.mxu0 0
        %6808 = vmatprep.subr.bf16.mxu0 0
        %6809 = vmatpush1.bf16.msra.mxu0 0
        %6810 = vmatprep.mubr.bf16.mxu0 0
        %6811 = vmatmul.mubr.bf16.gmra.mrb[0].mxu0 %v6735
        %v6812 = vpop.f32.mrb[0].mxu0
        %v6813 = vadd.f32 0.0, %v6812
        %v6814 = vpop.f32.mrb[0].mxu0
        %v6815 = vadd.f32 0.0, %v6814
        %v6816 = vpop.f32.mrb[0].mxu0
        %v6817 = vpop.f32.mrb[0].mxu0
        %6818 = vdwg.mxu0
        %v6823 = vcombine.low %v6772, %v6774
        %v6824 = vcombine.low %v6813, %v6815
        %v6826 = vunpack.c.l.s4 1966171168
        %v6827 = vunpack.c.0.s8 %v6826
        %v6828 = vlaneseq
        %v6829 = vshrl.u32 %v6828, 7
        %v6830 = vsub.s32 %v6827, %v6829
        %v6831 = vrot.slane %v6823, %v6830
        %v6833 = vunpack.c.l.s4 1966171168
        %v6834 = vunpack.c.0.s8 %v6833
        %v6835 = vlaneseq
        %v6836 = vshrl.u32 %v6835, 7
        %v6837 = vsub.s32 %v6834, %v6836
        %v6838 = vrot.slane %v6824, %v6837
        %v6839 = vcombine.low %v6831, %v6838
        %v6841 = vunpack.c.l.s4 1966171168
        %v6842 = vunpack.c.0.s8 %v6841
        %v6843 = vlaneseq
        %v6844 = vshrl.u32 %v6843, 7
        %v6845 = vsub.s32 %v6842, %v6844
        %v6846 = vrot.slane %v6839, %v6845
        %v6848 = vadd.f32 %v6625, %v6846
        %s6849 = scalar_lea.vmem %s5, 1664
        %v6850 = vld [vmem:[%s6849] sm:$0xff]
        %v6851 = vld [vmem:[%s6849 + $0x8] sm:$0xff]
        %v6852 = vld [vmem:[%s6849 + $0x10] sm:$0xff]
        %v6853 = vld [vmem:[%s6849 + $0x18] sm:$0xff]
        %v6854 = vld [vmem:[%s6849 + $0x20] sm:$0xff]
        %v6855 = vld [vmem:[%s6849 + $0x28] sm:$0xff]
        %v6856 = vld [vmem:[%s6849 + $0x30] sm:$0xff]
        %v6857 = vld [vmem:[%s6849 + $0x38] sm:$0xff]
        %v6858 = vld [vmem:[%s6849 + $0x40] sm:$0xff]
        %v6859 = vld [vmem:[%s6849 + $0x48] sm:$0xff]
        %v6860 = vld [vmem:[%s6849 + $0x50] sm:$0xff]
        %v6861 = vld [vmem:[%s6849 + $0x58] sm:$0xff]
        %v6862 = vld [vmem:[%s6849 + $0x60] sm:$0xff]
        %v6863 = vld [vmem:[%s6849 + $0x68] sm:$0xff]
        %v6864 = vld [vmem:[%s6849 + $0x70] sm:$0xff]
        %v6865 = vld [vmem:[%s6849 + $0x78] sm:$0xff]
        %v6867 = vrot.slane %v6636, 1
        %v6884 = vunpack.c.l.b16 %v6850
        %v6885 = vunpack.c.h.b16 %v6850
        %v6886 = vunpack.c.l.b16 %v6851
        %v6887 = vunpack.c.h.b16 %v6851
        %v6888 = vunpack.c.l.b16 %v6852
        %v6889 = vunpack.c.h.b16 %v6852
        %v6890 = vunpack.c.l.b16 %v6853
        %v6891 = vunpack.c.h.b16 %v6853
        %v6892 = vunpack.c.l.b16 %v6854
        %v6893 = vunpack.c.h.b16 %v6854
        %v6894 = vunpack.c.l.b16 %v6855
        %v6895 = vunpack.c.h.b16 %v6855
        %v6896 = vunpack.c.l.b16 %v6856
        %v6897 = vunpack.c.h.b16 %v6856
        %v6898 = vunpack.c.l.b16 %v6857
        %v6899 = vunpack.c.h.b16 %v6857
        %v6900 = vunpack.c.l.b16 %v6858
        %v6901 = vunpack.c.h.b16 %v6858
        %v6902 = vunpack.c.l.b16 %v6859
        %v6903 = vunpack.c.h.b16 %v6859
        %v6904 = vunpack.c.l.b16 %v6860
        %v6905 = vunpack.c.h.b16 %v6860
        %v6906 = vunpack.c.l.b16 %v6861
        %v6907 = vunpack.c.h.b16 %v6861
        %v6908 = vunpack.c.l.b16 %v6862
        %v6909 = vunpack.c.h.b16 %v6862
        %v6910 = vunpack.c.l.b16 %v6863
        %v6911 = vunpack.c.h.b16 %v6863
        %v6912 = vunpack.c.l.b16 %v6864
        %v6913 = vunpack.c.h.b16 %v6864
        %v6914 = vunpack.c.l.b16 %v6865
        %v6915 = vunpack.c.h.b16 %v6865
        %v6916 = vpack.c.b16 %v6888, %v6884
        %v6917 = vpack.c.b16 %v6889, %v6885
        %v6918 = vpack.c.b16 %v6890, %v6886
        %v6919 = vpack.c.b16 %v6891, %v6887
        %v6920 = vpack.c.b16 %v6896, %v6892
        %v6921 = vpack.c.b16 %v6897, %v6893
        %v6922 = vpack.c.b16 %v6898, %v6894
        %v6923 = vpack.c.b16 %v6899, %v6895
        %v6924 = vpack.c.b16 %v6904, %v6900
        %v6925 = vpack.c.b16 %v6905, %v6901
        %v6926 = vpack.c.b16 %v6906, %v6902
        %v6927 = vpack.c.b16 %v6907, %v6903
        %v6928 = vpack.c.b16 %v6912, %v6908
        %v6929 = vpack.c.b16 %v6913, %v6909
        %v6930 = vpack.c.b16 %v6914, %v6910
        %v6931 = vpack.c.b16 %v6915, %v6911
        %v6949 = vsel %vm4144, %v6867, 0
        %6951 = vmatprep.subr.bf16.mxu0 %v6917
        %6952 = vmatpush1.bf16.msra.mxu0 %v6916
        %6953 = vmatprep.subr.bf16.mxu0 %v6921
        %6954 = vmatpush1.bf16.msra.mxu0 %v6920
        %6955 = vmatprep.subr.bf16.mxu0 %v6925
        %6956 = vmatpush1.bf16.msra.mxu0 %v6924
        %6957 = vmatprep.subr.bf16.mxu0 %v6929
        %6958 = vmatpush1.bf16.msra.mxu0 %v6928
        %6959 = vmatprep.subr.bf16.mxu0 0
        %6960 = vmatpush1.bf16.msra.mxu0 0
        %6961 = vmatprep.subr.bf16.mxu0 0
        %6962 = vmatpush1.bf16.msra.mxu0 0
        %6963 = vmatprep.subr.bf16.mxu0 0
        %6964 = vmatpush1.bf16.msra.mxu0 0
        %6965 = vmatprep.subr.bf16.mxu0 0
        %6966 = vmatpush1.bf16.msra.mxu0 0
        %6967 = vmatprep.subr.bf16.mxu0 0
        %6968 = vmatpush1.bf16.msra.mxu0 0
        %6969 = vmatprep.subr.bf16.mxu0 0
        %6970 = vmatpush1.bf16.msra.mxu0 0
        %6971 = vmatprep.subr.bf16.mxu0 0
        %6972 = vmatpush1.bf16.msra.mxu0 0
        %6973 = vmatprep.subr.bf16.mxu0 0
        %6974 = vmatpush1.bf16.msra.mxu0 0
        %6975 = vmatprep.subr.bf16.mxu0 0
        %6976 = vmatpush1.bf16.msra.mxu0 0
        %6977 = vmatprep.subr.bf16.mxu0 0
        %6978 = vmatpush1.bf16.msra.mxu0 0
        %6979 = vmatprep.subr.bf16.mxu0 0
        %6980 = vmatpush1.bf16.msra.mxu0 0
        %6981 = vmatprep.subr.bf16.mxu0 0
        %6982 = vmatpush1.bf16.msra.mxu0 0
        %6983 = vmatprep.mubr.bf16.mxu0 0
        %6984 = vmatmul.mubr.bf16.gmra.mrb[0].mxu0 %v6949
        %v6985 = vpop.f32.mrb[0].mxu0
        %v6986 = vadd.f32 0.0, %v6985
        %v6987 = vpop.f32.mrb[0].mxu0
        %v6988 = vadd.f32 0.0, %v6987
        %v6989 = vpop.f32.mrb[0].mxu0
        %v6990 = vpop.f32.mrb[0].mxu0
        %6991 = vdwg.mxu0
        %6992 = vmatprep.subr.bf16.mxu0 %v6919
        %6993 = vmatpush1.bf16.msra.mxu0 %v6918
        %6994 = vmatprep.subr.bf16.mxu0 %v6923
        %6995 = vmatpush1.bf16.msra.mxu0 %v6922
        %6996 = vmatprep.subr.bf16.mxu0 %v6927
        %6997 = vmatpush1.bf16.msra.mxu0 %v6926
        %6998 = vmatprep.subr.bf16.mxu0 %v6931
        %6999 = vmatpush1.bf16.msra.mxu0 %v6930
        %7000 = vmatprep.subr.bf16.mxu0 0
        %7001 = vmatpush1.bf16.msra.mxu0 0
        %7002 = vmatprep.subr.bf16.mxu0 0
        %7003 = vmatpush1.bf16.msra.mxu0 0
        %7004 = vmatprep.subr.bf16.mxu0 0
        %7005 = vmatpush1.bf16.msra.mxu0 0
        %7006 = vmatprep.subr.bf16.mxu0 0
        %7007 = vmatpush1.bf16.msra.mxu0 0
        %7008 = vmatprep.subr.bf16.mxu0 0
        %7009 = vmatpush1.bf16.msra.mxu0 0
        %7010 = vmatprep.subr.bf16.mxu0 0
        %7011 = vmatpush1.bf16.msra.mxu0 0
        %7012 = vmatprep.subr.bf16.mxu0 0
        %7013 = vmatpush1.bf16.msra.mxu0 0
        %7014 = vmatprep.subr.bf16.mxu0 0
        %7015 = vmatpush1.bf16.msra.mxu0 0
        %7016 = vmatprep.subr.bf16.mxu0 0
        %7017 = vmatpush1.bf16.msra.mxu0 0
        %7018 = vmatprep.subr.bf16.mxu0 0
        %7019 = vmatpush1.bf16.msra.mxu0 0
        %7020 = vmatprep.subr.bf16.mxu0 0
        %7021 = vmatpush1.bf16.msra.mxu0 0
        %7022 = vmatprep.subr.bf16.mxu0 0
        %7023 = vmatpush1.bf16.msra.mxu0 0
        %7024 = vmatprep.mubr.bf16.mxu0 0
        %7025 = vmatmul.mubr.bf16.gmra.mrb[0].mxu0 %v6949
        %v7026 = vpop.f32.mrb[0].mxu0
        %v7027 = vadd.f32 0.0, %v7026
        %v7028 = vpop.f32.mrb[0].mxu0
        %v7029 = vadd.f32 0.0, %v7028
        %v7030 = vpop.f32.mrb[0].mxu0
        %v7031 = vpop.f32.mrb[0].mxu0
        %7032 = vdwg.mxu0
        %v7037 = vcombine.low %v6986, %v6988
        %v7038 = vcombine.low %v7027, %v7029
        %v7040 = vunpack.c.l.s4 1966171168
        %v7041 = vunpack.c.0.s8 %v7040
        %v7042 = vlaneseq
        %v7043 = vshrl.u32 %v7042, 7
        %v7044 = vsub.s32 %v7041, %v7043
        %v7045 = vrot.slane %v7037, %v7044
        %v7047 = vunpack.c.l.s4 1966171168
        %v7048 = vunpack.c.0.s8 %v7047
        %v7049 = vlaneseq
        %v7050 = vshrl.u32 %v7049, 7
        %v7051 = vsub.s32 %v7048, %v7050
        %v7052 = vrot.slane %v7038, %v7051
        %v7053 = vcombine.low %v7045, %v7052
        %v7055 = vunpack.c.l.s4 1966171168
        %v7056 = vunpack.c.0.s8 %v7055
        %v7057 = vlaneseq
        %v7058 = vshrl.u32 %v7057, 7
        %v7059 = vsub.s32 %v7056, %v7058
        %v7060 = vrot.slane %v7053, %v7059
        %v7062 = vadd.f32 %v6848, %v7060
        %s7063 = scalar_lea.vmem %s5, 1792
        %v7064 = vld [vmem:[%s7063] sm:$0xff]
        %v7065 = vld [vmem:[%s7063 + $0x8] sm:$0xff]
        %v7066 = vld [vmem:[%s7063 + $0x10] sm:$0xff]
        %v7067 = vld [vmem:[%s7063 + $0x18] sm:$0xff]
        %v7068 = vld [vmem:[%s7063 + $0x20] sm:$0xff]
        %v7069 = vld [vmem:[%s7063 + $0x28] sm:$0xff]
        %v7070 = vld [vmem:[%s7063 + $0x30] sm:$0xff]
        %v7071 = vld [vmem:[%s7063 + $0x38] sm:$0xff]
        %v7072 = vld [vmem:[%s7063 + $0x40] sm:$0xff]
        %v7073 = vld [vmem:[%s7063 + $0x48] sm:$0xff]
        %v7074 = vld [vmem:[%s7063 + $0x50] sm:$0xff]
        %v7075 = vld [vmem:[%s7063 + $0x58] sm:$0xff]
        %v7076 = vld [vmem:[%s7063 + $0x60] sm:$0xff]
        %v7077 = vld [vmem:[%s7063 + $0x68] sm:$0xff]
        %v7078 = vld [vmem:[%s7063 + $0x70] sm:$0xff]
        %v7079 = vld [vmem:[%s7063 + $0x78] sm:$0xff]
        %v7080 = vrot.slane %v6636, 2
        %v7097 = vunpack.c.l.b16 %v7064
        %v7098 = vunpack.c.h.b16 %v7064
        %v7099 = vunpack.c.l.b16 %v7065
        %v7100 = vunpack.c.h.b16 %v7065
        %v7101 = vunpack.c.l.b16 %v7066
        %v7102 = vunpack.c.h.b16 %v7066
        %v7103 = vunpack.c.l.b16 %v7067
        %v7104 = vunpack.c.h.b16 %v7067
        %v7105 = vunpack.c.l.b16 %v7068
        %v7106 = vunpack.c.h.b16 %v7068
        %v7107 = vunpack.c.l.b16 %v7069
        %v7108 = vunpack.c.h.b16 %v7069
        %v7109 = vunpack.c.l.b16 %v7070
        %v7110 = vunpack.c.h.b16 %v7070
        %v7111 = vunpack.c.l.b16 %v7071
        %v7112 = vunpack.c.h.b16 %v7071
        %v7113 = vunpack.c.l.b16 %v7072
        %v7114 = vunpack.c.h.b16 %v7072
        %v7115 = vunpack.c.l.b16 %v7073
        %v7116 = vunpack.c.h.b16 %v7073
        %v7117 = vunpack.c.l.b16 %v7074
        %v7118 = vunpack.c.h.b16 %v7074
        %v7119 = vunpack.c.l.b16 %v7075
        %v7120 = vunpack.c.h.b16 %v7075
        %v7121 = vunpack.c.l.b16 %v7076
        %v7122 = vunpack.c.h.b16 %v7076
        %v7123 = vunpack.c.l.b16 %v7077
        %v7124 = vunpack.c.h.b16 %v7077
        %v7125 = vunpack.c.l.b16 %v7078
        %v7126 = vunpack.c.h.b16 %v7078
        %v7127 = vunpack.c.l.b16 %v7079
        %v7128 = vunpack.c.h.b16 %v7079
        %v7129 = vpack.c.b16 %v7101, %v7097
        %v7130 = vpack.c.b16 %v7102, %v7098
        %v7131 = vpack.c.b16 %v7103, %v7099
        %v7132 = vpack.c.b16 %v7104, %v7100
        %v7133 = vpack.c.b16 %v7109, %v7105
        %v7134 = vpack.c.b16 %v7110, %v7106
        %v7135 = vpack.c.b16 %v7111, %v7107
        %v7136 = vpack.c.b16 %v7112, %v7108
        %v7137 = vpack.c.b16 %v7117, %v7113
        %v7138 = vpack.c.b16 %v7118, %v7114
        %v7139 = vpack.c.b16 %v7119, %v7115
        %v7140 = vpack.c.b16 %v7120, %v7116
        %v7141 = vpack.c.b16 %v7125, %v7121
        %v7142 = vpack.c.b16 %v7126, %v7122
        %v7143 = vpack.c.b16 %v7127, %v7123
        %v7144 = vpack.c.b16 %v7128, %v7124
        %v7162 = vsel %vm4144, %v7080, 0
        %7164 = vmatprep.subr.bf16.mxu0 %v7130
        %7165 = vmatpush1.bf16.msra.mxu0 %v7129
        %7166 = vmatprep.subr.bf16.mxu0 %v7134
        %7167 = vmatpush1.bf16.msra.mxu0 %v7133
        %7168 = vmatprep.subr.bf16.mxu0 %v7138
        %7169 = vmatpush1.bf16.msra.mxu0 %v7137
        %7170 = vmatprep.subr.bf16.mxu0 %v7142
        %7171 = vmatpush1.bf16.msra.mxu0 %v7141
        %7172 = vmatprep.subr.bf16.mxu0 0
        %7173 = vmatpush1.bf16.msra.mxu0 0
        %7174 = vmatprep.subr.bf16.mxu0 0
        %7175 = vmatpush1.bf16.msra.mxu0 0
        %7176 = vmatprep.subr.bf16.mxu0 0
        %7177 = vmatpush1.bf16.msra.mxu0 0
        %7178 = vmatprep.subr.bf16.mxu0 0
        %7179 = vmatpush1.bf16.msra.mxu0 0
        %7180 = vmatprep.subr.bf16.mxu0 0
        %7181 = vmatpush1.bf16.msra.mxu0 0
        %7182 = vmatprep.subr.bf16.mxu0 0
        %7183 = vmatpush1.bf16.msra.mxu0 0
        %7184 = vmatprep.subr.bf16.mxu0 0
        %7185 = vmatpush1.bf16.msra.mxu0 0
        %7186 = vmatprep.subr.bf16.mxu0 0
        %7187 = vmatpush1.bf16.msra.mxu0 0
        %7188 = vmatprep.subr.bf16.mxu0 0
        %7189 = vmatpush1.bf16.msra.mxu0 0
        %7190 = vmatprep.subr.bf16.mxu0 0
        %7191 = vmatpush1.bf16.msra.mxu0 0
        %7192 = vmatprep.subr.bf16.mxu0 0
        %7193 = vmatpush1.bf16.msra.mxu0 0
        %7194 = vmatprep.subr.bf16.mxu0 0
        %7195 = vmatpush1.bf16.msra.mxu0 0
        %7196 = vmatprep.mubr.bf16.mxu0 0
        %7197 = vmatmul.mubr.bf16.gmra.mrb[0].mxu0 %v7162
        %v7198 = vpop.f32.mrb[0].mxu0
        %v7199 = vadd.f32 0.0, %v7198
        %v7200 = vpop.f32.mrb[0].mxu0
        %v7201 = vadd.f32 0.0, %v7200
        %v7202 = vpop.f32.mrb[0].mxu0
        %v7203 = vpop.f32.mrb[0].mxu0
        %7204 = vdwg.mxu0
        %7205 = vmatprep.subr.bf16.mxu0 %v7132
        %7206 = vmatpush1.bf16.msra.mxu0 %v7131
        %7207 = vmatprep.subr.bf16.mxu0 %v7136
        %7208 = vmatpush1.bf16.msra.mxu0 %v7135
        %7209 = vmatprep.subr.bf16.mxu0 %v7140
        %7210 = vmatpush1.bf16.msra.mxu0 %v7139
        %7211 = vmatprep.subr.bf16.mxu0 %v7144
        %7212 = vmatpush1.bf16.msra.mxu0 %v7143
        %7213 = vmatprep.subr.bf16.mxu0 0
        %7214 = vmatpush1.bf16.msra.mxu0 0
        %7215 = vmatprep.subr.bf16.mxu0 0
        %7216 = vmatpush1.bf16.msra.mxu0 0
        %7217 = vmatprep.subr.bf16.mxu0 0
        %7218 = vmatpush1.bf16.msra.mxu0 0
        %7219 = vmatprep.subr.bf16.mxu0 0
        %7220 = vmatpush1.bf16.msra.mxu0 0
        %7221 = vmatprep.subr.bf16.mxu0 0
        %7222 = vmatpush1.bf16.msra.mxu0 0
        %7223 = vmatprep.subr.bf16.mxu0 0
        %7224 = vmatpush1.bf16.msra.mxu0 0
        %7225 = vmatprep.subr.bf16.mxu0 0
        %7226 = vmatpush1.bf16.msra.mxu0 0
        %7227 = vmatprep.subr.bf16.mxu0 0
        %7228 = vmatpush1.bf16.msra.mxu0 0
        %7229 = vmatprep.subr.bf16.mxu0 0
        %7230 = vmatpush1.bf16.msra.mxu0 0
        %7231 = vmatprep.subr.bf16.mxu0 0
        %7232 = vmatpush1.bf16.msra.mxu0 0
        %7233 = vmatprep.subr.bf16.mxu0 0
        %7234 = vmatpush1.bf16.msra.mxu0 0
        %7235 = vmatprep.subr.bf16.mxu0 0
        %7236 = vmatpush1.bf16.msra.mxu0 0
        %7237 = vmatprep.mubr.bf16.mxu0 0
        %7238 = vmatmul.mubr.bf16.gmra.mrb[0].mxu0 %v7162
        %v7239 = vpop.f32.mrb[0].mxu0
        %v7240 = vadd.f32 0.0, %v7239
        %v7241 = vpop.f32.mrb[0].mxu0
        %v7242 = vadd.f32 0.0, %v7241
        %v7243 = vpop.f32.mrb[0].mxu0
        %v7244 = vpop.f32.mrb[0].mxu0
        %7245 = vdwg.mxu0
        %v7250 = vcombine.low %v7199, %v7201
        %v7251 = vcombine.low %v7240, %v7242
        %v7253 = vunpack.c.l.s4 1966171168
        %v7254 = vunpack.c.0.s8 %v7253
        %v7255 = vlaneseq
        %v7256 = vshrl.u32 %v7255, 7
        %v7257 = vsub.s32 %v7254, %v7256
        %v7258 = vrot.slane %v7250, %v7257
        %v7260 = vunpack.c.l.s4 1966171168
        %v7261 = vunpack.c.0.s8 %v7260
        %v7262 = vlaneseq
        %v7263 = vshrl.u32 %v7262, 7
        %v7264 = vsub.s32 %v7261, %v7263
        %v7265 = vrot.slane %v7251, %v7264
        %v7266 = vcombine.low %v7258, %v7265
        %v7268 = vunpack.c.l.s4 1966171168
        %v7269 = vunpack.c.0.s8 %v7268
        %v7270 = vlaneseq
        %v7271 = vshrl.u32 %v7270, 7
        %v7272 = vsub.s32 %v7269, %v7271
        %v7273 = vrot.slane %v7266, %v7272
        %v7275 = vadd.f32 %v7062, %v7273
        %s7276 = scalar_lea.vmem %s5, 1920
        %v7277 = vld [vmem:[%s7276] sm:$0xff]
        %v7278 = vld [vmem:[%s7276 + $0x8] sm:$0xff]
        %v7279 = vld [vmem:[%s7276 + $0x10] sm:$0xff]
        %v7280 = vld [vmem:[%s7276 + $0x18] sm:$0xff]
        %v7281 = vld [vmem:[%s7276 + $0x20] sm:$0xff]
        %v7282 = vld [vmem:[%s7276 + $0x28] sm:$0xff]
        %v7283 = vld [vmem:[%s7276 + $0x30] sm:$0xff]
        %v7284 = vld [vmem:[%s7276 + $0x38] sm:$0xff]
        %v7285 = vld [vmem:[%s7276 + $0x40] sm:$0xff]
        %v7286 = vld [vmem:[%s7276 + $0x48] sm:$0xff]
        %v7287 = vld [vmem:[%s7276 + $0x50] sm:$0xff]
        %v7288 = vld [vmem:[%s7276 + $0x58] sm:$0xff]
        %v7289 = vld [vmem:[%s7276 + $0x60] sm:$0xff]
        %v7290 = vld [vmem:[%s7276 + $0x68] sm:$0xff]
        %v7291 = vld [vmem:[%s7276 + $0x70] sm:$0xff]
        %v7292 = vld [vmem:[%s7276 + $0x78] sm:$0xff]
        %v7293 = vrot.slane %v6636, 3
        %v7310 = vunpack.c.l.b16 %v7277
        %v7311 = vunpack.c.h.b16 %v7277
        %v7312 = vunpack.c.l.b16 %v7278
        %v7313 = vunpack.c.h.b16 %v7278
        %v7314 = vunpack.c.l.b16 %v7279
        %v7315 = vunpack.c.h.b16 %v7279
        %v7316 = vunpack.c.l.b16 %v7280
        %v7317 = vunpack.c.h.b16 %v7280
        %v7318 = vunpack.c.l.b16 %v7281
        %v7319 = vunpack.c.h.b16 %v7281
        %v7320 = vunpack.c.l.b16 %v7282
        %v7321 = vunpack.c.h.b16 %v7282
        %v7322 = vunpack.c.l.b16 %v7283
        %v7323 = vunpack.c.h.b16 %v7283
        %v7324 = vunpack.c.l.b16 %v7284
        %v7325 = vunpack.c.h.b16 %v7284
        %v7326 = vunpack.c.l.b16 %v7285
        %v7327 = vunpack.c.h.b16 %v7285
        %v7328 = vunpack.c.l.b16 %v7286
        %v7329 = vunpack.c.h.b16 %v7286
        %v7330 = vunpack.c.l.b16 %v7287
        %v7331 = vunpack.c.h.b16 %v7287
        %v7332 = vunpack.c.l.b16 %v7288
        %v7333 = vunpack.c.h.b16 %v7288
        %v7334 = vunpack.c.l.b16 %v7289
        %v7335 = vunpack.c.h.b16 %v7289
        %v7336 = vunpack.c.l.b16 %v7290
        %v7337 = vunpack.c.h.b16 %v7290
        %v7338 = vunpack.c.l.b16 %v7291
        %v7339 = vunpack.c.h.b16 %v7291
        %v7340 = vunpack.c.l.b16 %v7292
        %v7341 = vunpack.c.h.b16 %v7292
        %v7342 = vpack.c.b16 %v7314, %v7310
        %v7343 = vpack.c.b16 %v7315, %v7311
        %v7344 = vpack.c.b16 %v7316, %v7312
        %v7345 = vpack.c.b16 %v7317, %v7313
        %v7346 = vpack.c.b16 %v7322, %v7318
        %v7347 = vpack.c.b16 %v7323, %v7319
        %v7348 = vpack.c.b16 %v7324, %v7320
        %v7349 = vpack.c.b16 %v7325, %v7321
        %v7350 = vpack.c.b16 %v7330, %v7326
        %v7351 = vpack.c.b16 %v7331, %v7327
        %v7352 = vpack.c.b16 %v7332, %v7328
        %v7353 = vpack.c.b16 %v7333, %v7329
        %v7354 = vpack.c.b16 %v7338, %v7334
        %v7355 = vpack.c.b16 %v7339, %v7335
        %v7356 = vpack.c.b16 %v7340, %v7336
        %v7357 = vpack.c.b16 %v7341, %v7337
        %v7375 = vsel %vm4144, %v7293, 0
        %7377 = vmatprep.subr.bf16.mxu0 %v7343
        %7378 = vmatpush1.bf16.msra.mxu0 %v7342
        %7379 = vmatprep.subr.bf16.mxu0 %v7347
        %7380 = vmatpush1.bf16.msra.mxu0 %v7346
        %7381 = vmatprep.subr.bf16.mxu0 %v7351
        %7382 = vmatpush1.bf16.msra.mxu0 %v7350
        %7383 = vmatprep.subr.bf16.mxu0 %v7355
        %7384 = vmatpush1.bf16.msra.mxu0 %v7354
        %7385 = vmatprep.subr.bf16.mxu0 0
        %7386 = vmatpush1.bf16.msra.mxu0 0
        %7387 = vmatprep.subr.bf16.mxu0 0
        %7388 = vmatpush1.bf16.msra.mxu0 0
        %7389 = vmatprep.subr.bf16.mxu0 0
        %7390 = vmatpush1.bf16.msra.mxu0 0
        %7391 = vmatprep.subr.bf16.mxu0 0
        %7392 = vmatpush1.bf16.msra.mxu0 0
        %7393 = vmatprep.subr.bf16.mxu0 0
        %7394 = vmatpush1.bf16.msra.mxu0 0
        %7395 = vmatprep.subr.bf16.mxu0 0
        %7396 = vmatpush1.bf16.msra.mxu0 0
        %7397 = vmatprep.subr.bf16.mxu0 0
        %7398 = vmatpush1.bf16.msra.mxu0 0
        %7399 = vmatprep.subr.bf16.mxu0 0
        %7400 = vmatpush1.bf16.msra.mxu0 0
        %7401 = vmatprep.subr.bf16.mxu0 0
        %7402 = vmatpush1.bf16.msra.mxu0 0
        %7403 = vmatprep.subr.bf16.mxu0 0
        %7404 = vmatpush1.bf16.msra.mxu0 0
        %7405 = vmatprep.subr.bf16.mxu0 0
        %7406 = vmatpush1.bf16.msra.mxu0 0
        %7407 = vmatprep.subr.bf16.mxu0 0
        %7408 = vmatpush1.bf16.msra.mxu0 0
        %7409 = vmatprep.mubr.bf16.mxu0 0
        %7410 = vmatmul.mubr.bf16.gmra.mrb[0].mxu0 %v7375
        %v7411 = vpop.f32.mrb[0].mxu0
        %v7412 = vadd.f32 0.0, %v7411
        %v7413 = vpop.f32.mrb[0].mxu0
        %v7414 = vadd.f32 0.0, %v7413
        %v7415 = vpop.f32.mrb[0].mxu0
        %v7416 = vpop.f32.mrb[0].mxu0
        %7417 = vdwg.mxu0
        %7418 = vmatprep.subr.bf16.mxu0 %v7345
        %7419 = vmatpush1.bf16.msra.mxu0 %v7344
        %7420 = vmatprep.subr.bf16.mxu0 %v7349
        %7421 = vmatpush1.bf16.msra.mxu0 %v7348
        %7422 = vmatprep.subr.bf16.mxu0 %v7353
        %7423 = vmatpush1.bf16.msra.mxu0 %v7352
        %7424 = vmatprep.subr.bf16.mxu0 %v7357
        %7425 = vmatpush1.bf16.msra.mxu0 %v7356
        %7426 = vmatprep.subr.bf16.mxu0 0
        %7427 = vmatpush1.bf16.msra.mxu0 0
        %7428 = vmatprep.subr.bf16.mxu0 0
        %7429 = vmatpush1.bf16.msra.mxu0 0
        %7430 = vmatprep.subr.bf16.mxu0 0
        %7431 = vmatpush1.bf16.msra.mxu0 0
        %7432 = vmatprep.subr.bf16.mxu0 0
        %7433 = vmatpush1.bf16.msra.mxu0 0
        %7434 = vmatprep.subr.bf16.mxu0 0
        %7435 = vmatpush1.bf16.msra.mxu0 0
        %7436 = vmatprep.subr.bf16.mxu0 0
        %7437 = vmatpush1.bf16.msra.mxu0 0
        %7438 = vmatprep.subr.bf16.mxu0 0
        %7439 = vmatpush1.bf16.msra.mxu0 0
        %7440 = vmatprep.subr.bf16.mxu0 0
        %7441 = vmatpush1.bf16.msra.mxu0 0
        %7442 = vmatprep.subr.bf16.mxu0 0
        %7443 = vmatpush1.bf16.msra.mxu0 0
        %7444 = vmatprep.subr.bf16.mxu0 0
        %7445 = vmatpush1.bf16.msra.mxu0 0
        %7446 = vmatprep.subr.bf16.mxu0 0
        %7447 = vmatpush1.bf16.msra.mxu0 0
        %7448 = vmatprep.subr.bf16.mxu0 0
        %7449 = vmatpush1.bf16.msra.mxu0 0
        %7450 = vmatprep.mubr.bf16.mxu0 0
        %7451 = vmatmul.mubr.bf16.gmra.mrb[0].mxu0 %v7375
        %v7452 = vpop.f32.mrb[0].mxu0
        %v7453 = vadd.f32 0.0, %v7452
        %v7454 = vpop.f32.mrb[0].mxu0
        %v7455 = vadd.f32 0.0, %v7454
        %v7456 = vpop.f32.mrb[0].mxu0
        %v7457 = vpop.f32.mrb[0].mxu0
        %7458 = vdwg.mxu0
        %v7463 = vcombine.low %v7412, %v7414
        %v7464 = vcombine.low %v7453, %v7455
        %v7466 = vunpack.c.l.s4 1966171168
        %v7467 = vunpack.c.0.s8 %v7466
        %v7468 = vlaneseq
        %v7469 = vshrl.u32 %v7468, 7
        %v7470 = vsub.s32 %v7467, %v7469
        %v7471 = vrot.slane %v7463, %v7470
        %v7473 = vunpack.c.l.s4 1966171168
        %v7474 = vunpack.c.0.s8 %v7473
        %v7475 = vlaneseq
        %v7476 = vshrl.u32 %v7475, 7
        %v7477 = vsub.s32 %v7474, %v7476
        %v7478 = vrot.slane %v7464, %v7477
        %v7479 = vcombine.low %v7471, %v7478
        %v7481 = vunpack.c.l.s4 1966171168
        %v7482 = vunpack.c.0.s8 %v7481
        %v7483 = vlaneseq
        %v7484 = vshrl.u32 %v7483, 7
        %v7485 = vsub.s32 %v7482, %v7484
        %v7486 = vrot.slane %v7479, %v7485
        %v7488 = vadd.f32 %v7275, %v7486
        %v7489 = vmax.f32 %v7488, 0.0
        %v7491 = vlaneseq
        %v7492 = vshrl.u32 %v7491, 7
        %v7493 = vsub.s32 0, %v7492
        %v7494 = vrot.slane %v7489, %v7493
        %v7495 = vlaneseq
        %v7496 = vshrl.u32 %v7495, 7
        %v7497 = vsub.s32 1, %v7496
        %v7498 = vrot.slane %v7489, %v7497
        %v7499 = vlaneseq
        %v7500 = vshrl.u32 %v7499, 7
        %v7501 = vsub.s32 2, %v7500
        %v7502 = vrot.slane %v7489, %v7501
        %v7503 = vlaneseq
        %v7504 = vshrl.u32 %v7503, 7
        %v7505 = vsub.s32 3, %v7504
        %v7506 = vrot.slane %v7489, %v7505
        %v7511 = vpack.c.bf16 %v7494, %v7494
        %v7512 = vpack.c.bf16 %v7498, %v7498
        %v7513 = vpack.c.bf16 %v7502, %v7502
        %v7514 = vpack.c.bf16 %v7506, %v7506
        %v7515 = vld [vmem:[%s7] sm:$0xf]
        %v7516 = vld [vmem:[%s7 + $0x4] sm:$0xf]
        %v7517 = vld [vmem:[%s7 + $0x8] sm:$0xf]
        %v7518 = vld [vmem:[%s7 + $0xc] sm:$0xf]
        %v7519 = vld [vmem:[%s7 + $0x10] sm:$0xf]
        %v7520 = vld [vmem:[%s7 + $0x14] sm:$0xf]
        %v7521 = vld [vmem:[%s7 + $0x18] sm:$0xf]
        %v7522 = vld [vmem:[%s7 + $0x1c] sm:$0xf]
        %v7523 = vld [vmem:[%s7 + $0x20] sm:$0xf]
        %v7524 = vld [vmem:[%s7 + $0x24] sm:$0xf]
        %v7525 = vld [vmem:[%s7 + $0x28] sm:$0xf]
        %v7526 = vld [vmem:[%s7 + $0x2c] sm:$0xf]
        %v7527 = vld [vmem:[%s7 + $0x30] sm:$0xf]
        %v7528 = vld [vmem:[%s7 + $0x34] sm:$0xf]
        %v7529 = vld [vmem:[%s7 + $0x38] sm:$0xf]
        %v7530 = vld [vmem:[%s7 + $0x3c] sm:$0xf]
        %v7531 = vld [vmem:[%s7 + $0x40] sm:$0xf]
        %v7532 = vld [vmem:[%s7 + $0x44] sm:$0xf]
        %v7533 = vld [vmem:[%s7 + $0x48] sm:$0xf]
        %v7534 = vld [vmem:[%s7 + $0x4c] sm:$0xf]
        %v7535 = vld [vmem:[%s7 + $0x50] sm:$0xf]
        %v7536 = vld [vmem:[%s7 + $0x54] sm:$0xf]
        %v7537 = vld [vmem:[%s7 + $0x58] sm:$0xf]
        %v7538 = vld [vmem:[%s7 + $0x5c] sm:$0xf]
        %v7539 = vld [vmem:[%s7 + $0x60] sm:$0xf]
        %v7540 = vld [vmem:[%s7 + $0x64] sm:$0xf]
        %v7541 = vld [vmem:[%s7 + $0x68] sm:$0xf]
        %v7542 = vld [vmem:[%s7 + $0x6c] sm:$0xf]
        %v7543 = vld [vmem:[%s7 + $0x70] sm:$0xf]
        %v7544 = vld [vmem:[%s7 + $0x74] sm:$0xf]
        %v7545 = vld [vmem:[%s7 + $0x78] sm:$0xf]
        %v7546 = vld [vmem:[%s7 + $0x7c] sm:$0xf]
        %v7547 = vld [vmem:[%s7 + $0x80] sm:$0xf]
        %v7548 = vld [vmem:[%s7 + $0x84] sm:$0xf]
        %v7549 = vld [vmem:[%s7 + $0x88] sm:$0xf]
        %v7550 = vld [vmem:[%s7 + $0x8c] sm:$0xf]
        %v7551 = vld [vmem:[%s7 + $0x90] sm:$0xf]
        %v7552 = vld [vmem:[%s7 + $0x94] sm:$0xf]
        %v7553 = vld [vmem:[%s7 + $0x98] sm:$0xf]
        %v7554 = vld [vmem:[%s7 + $0x9c] sm:$0xf]
        %v7555 = vld [vmem:[%s7 + $0xa0] sm:$0xf]
        %v7556 = vld [vmem:[%s7 + $0xa4] sm:$0xf]
        %v7557 = vld [vmem:[%s7 + $0xa8] sm:$0xf]
        %v7558 = vld [vmem:[%s7 + $0xac] sm:$0xf]
        %v7559 = vld [vmem:[%s7 + $0xb0] sm:$0xf]
        %v7560 = vld [vmem:[%s7 + $0xb4] sm:$0xf]
        %v7561 = vld [vmem:[%s7 + $0xb8] sm:$0xf]
        %v7562 = vld [vmem:[%s7 + $0xbc] sm:$0xf]
        %v7563 = vld [vmem:[%s7 + $0xc0] sm:$0xf]
        %v7564 = vld [vmem:[%s7 + $0xc4] sm:$0xf]
        %v7565 = vld [vmem:[%s7 + $0xc8] sm:$0xf]
        %v7566 = vld [vmem:[%s7 + $0xcc] sm:$0xf]
        %v7567 = vld [vmem:[%s7 + $0xd0] sm:$0xf]
        %v7568 = vld [vmem:[%s7 + $0xd4] sm:$0xf]
        %v7569 = vld [vmem:[%s7 + $0xd8] sm:$0xf]
        %v7570 = vld [vmem:[%s7 + $0xdc] sm:$0xf]
        %v7571 = vld [vmem:[%s7 + $0xe0] sm:$0xf]
        %v7572 = vld [vmem:[%s7 + $0xe4] sm:$0xf]
        %v7573 = vld [vmem:[%s7 + $0xe8] sm:$0xf]
        %v7574 = vld [vmem:[%s7 + $0xec] sm:$0xf]
        %v7575 = vld [vmem:[%s7 + $0xf0] sm:$0xf]
        %v7576 = vld [vmem:[%s7 + $0xf4] sm:$0xf]
        %v7577 = vld [vmem:[%s7 + $0xf8] sm:$0xf]
        %v7578 = vld [vmem:[%s7 + $0xfc] sm:$0xf]
        %v7579 = vld [vmem:[%s8] sm:$0x1]
        %v7644 = vunpack.c.l.b16 %v7515
        %v7645 = vunpack.c.l.b16 %v7516
        %v7646 = vunpack.c.l.b16 %v7517
        %v7647 = vunpack.c.l.b16 %v7518
        %v7648 = vunpack.c.l.b16 %v7519
        %v7649 = vunpack.c.l.b16 %v7520
        %v7650 = vunpack.c.l.b16 %v7521
        %v7651 = vunpack.c.l.b16 %v7522
        %v7652 = vunpack.c.l.b16 %v7523
        %v7653 = vunpack.c.l.b16 %v7524
        %v7654 = vunpack.c.l.b16 %v7525
        %v7655 = vunpack.c.l.b16 %v7526
        %v7656 = vunpack.c.l.b16 %v7527
        %v7657 = vunpack.c.l.b16 %v7528
        %v7658 = vunpack.c.l.b16 %v7529
        %v7659 = vunpack.c.l.b16 %v7530
        %v7660 = vunpack.c.l.b16 %v7531
        %v7661 = vunpack.c.l.b16 %v7532
        %v7662 = vunpack.c.l.b16 %v7533
        %v7663 = vunpack.c.l.b16 %v7534
        %v7664 = vunpack.c.l.b16 %v7535
        %v7665 = vunpack.c.l.b16 %v7536
        %v7666 = vunpack.c.l.b16 %v7537
        %v7667 = vunpack.c.l.b16 %v7538
        %v7668 = vunpack.c.l.b16 %v7539
        %v7669 = vunpack.c.l.b16 %v7540
        %v7670 = vunpack.c.l.b16 %v7541
        %v7671 = vunpack.c.l.b16 %v7542
        %v7672 = vunpack.c.l.b16 %v7543
        %v7673 = vunpack.c.l.b16 %v7544
        %v7674 = vunpack.c.l.b16 %v7545
        %v7675 = vunpack.c.l.b16 %v7546
        %v7676 = vunpack.c.l.b16 %v7547
        %v7677 = vunpack.c.l.b16 %v7548
        %v7678 = vunpack.c.l.b16 %v7549
        %v7679 = vunpack.c.l.b16 %v7550
        %v7680 = vunpack.c.l.b16 %v7551
        %v7681 = vunpack.c.l.b16 %v7552
        %v7682 = vunpack.c.l.b16 %v7553
        %v7683 = vunpack.c.l.b16 %v7554
        %v7684 = vunpack.c.l.b16 %v7555
        %v7685 = vunpack.c.l.b16 %v7556
        %v7686 = vunpack.c.l.b16 %v7557
        %v7687 = vunpack.c.l.b16 %v7558
        %v7688 = vunpack.c.l.b16 %v7559
        %v7689 = vunpack.c.l.b16 %v7560
        %v7690 = vunpack.c.l.b16 %v7561
        %v7691 = vunpack.c.l.b16 %v7562
        %v7692 = vunpack.c.l.b16 %v7563
        %v7693 = vunpack.c.l.b16 %v7564
        %v7694 = vunpack.c.l.b16 %v7565
        %v7695 = vunpack.c.l.b16 %v7566
        %v7696 = vunpack.c.l.b16 %v7567
        %v7697 = vunpack.c.l.b16 %v7568
        %v7698 = vunpack.c.l.b16 %v7569
        %v7699 = vunpack.c.l.b16 %v7570
        %v7700 = vunpack.c.l.b16 %v7571
        %v7701 = vunpack.c.l.b16 %v7572
        %v7702 = vunpack.c.l.b16 %v7573
        %v7703 = vunpack.c.l.b16 %v7574
        %v7704 = vunpack.c.l.b16 %v7575
        %v7705 = vunpack.c.l.b16 %v7576
        %v7706 = vunpack.c.l.b16 %v7577
        %v7707 = vunpack.c.l.b16 %v7578
        %v7708 = vpack.c.b16 %v7645, %v7644
        %v7709 = vpack.c.b16 %v7647, %v7646
        %v7710 = vpack.c.b16 %v7649, %v7648
        %v7711 = vpack.c.b16 %v7651, %v7650
        %v7712 = vpack.c.b16 %v7653, %v7652
        %v7713 = vpack.c.b16 %v7655, %v7654
        %v7714 = vpack.c.b16 %v7657, %v7656
        %v7715 = vpack.c.b16 %v7659, %v7658
        %v7716 = vpack.c.b16 %v7661, %v7660
        %v7717 = vpack.c.b16 %v7663, %v7662
        %v7718 = vpack.c.b16 %v7665, %v7664
        %v7719 = vpack.c.b16 %v7667, %v7666
        %v7720 = vpack.c.b16 %v7669, %v7668
        %v7721 = vpack.c.b16 %v7671, %v7670
        %v7722 = vpack.c.b16 %v7673, %v7672
        %v7723 = vpack.c.b16 %v7675, %v7674
        %v7724 = vpack.c.b16 %v7677, %v7676
        %v7725 = vpack.c.b16 %v7679, %v7678
        %v7726 = vpack.c.b16 %v7681, %v7680
        %v7727 = vpack.c.b16 %v7683, %v7682
        %v7728 = vpack.c.b16 %v7685, %v7684
        %v7729 = vpack.c.b16 %v7687, %v7686
        %v7730 = vpack.c.b16 %v7689, %v7688
        %v7731 = vpack.c.b16 %v7691, %v7690
        %v7732 = vpack.c.b16 %v7693, %v7692
        %v7733 = vpack.c.b16 %v7695, %v7694
        %v7734 = vpack.c.b16 %v7697, %v7696
        %v7735 = vpack.c.b16 %v7699, %v7698
        %v7736 = vpack.c.b16 %v7701, %v7700
        %v7737 = vpack.c.b16 %v7703, %v7702
        %v7738 = vpack.c.b16 %v7705, %v7704
        %v7739 = vpack.c.b16 %v7707, %v7706
        %7772 = vmatprep.subr.bf16.mxu0 0
        %7773 = vmatpush1.bf16.msra.mxu0 %v7708
        %7774 = vmatprep.subr.bf16.mxu0 0
        %7775 = vmatpush1.bf16.msra.mxu0 %v7709
        %7776 = vmatprep.subr.bf16.mxu0 0
        %7777 = vmatpush1.bf16.msra.mxu0 %v7710
        %7778 = vmatprep.subr.bf16.mxu0 0
        %7779 = vmatpush1.bf16.msra.mxu0 %v7711
        %7780 = vmatprep.subr.bf16.mxu0 0
        %7781 = vmatpush1.bf16.msra.mxu0 %v7712
        %7782 = vmatprep.subr.bf16.mxu0 0
        %7783 = vmatpush1.bf16.msra.mxu0 %v7713
        %7784 = vmatprep.subr.bf16.mxu0 0
        %7785 = vmatpush1.bf16.msra.mxu0 %v7714
        %7786 = vmatprep.subr.bf16.mxu0 0
        %7787 = vmatpush1.bf16.msra.mxu0 %v7715
        %7788 = vmatprep.subr.bf16.mxu0 0
        %7789 = vmatpush1.bf16.msra.mxu0 %v7716
        %7790 = vmatprep.subr.bf16.mxu0 0
        %7791 = vmatpush1.bf16.msra.mxu0 %v7717
        %7792 = vmatprep.subr.bf16.mxu0 0
        %7793 = vmatpush1.bf16.msra.mxu0 %v7718
        %7794 = vmatprep.subr.bf16.mxu0 0
        %7795 = vmatpush1.bf16.msra.mxu0 %v7719
        %7796 = vmatprep.subr.bf16.mxu0 0
        %7797 = vmatpush1.bf16.msra.mxu0 %v7720
        %7798 = vmatprep.subr.bf16.mxu0 0
        %7799 = vmatpush1.bf16.msra.mxu0 %v7721
        %7800 = vmatprep.subr.bf16.mxu0 0
        %7801 = vmatpush1.bf16.msra.mxu0 %v7722
        %7802 = vmatprep.subr.bf16.mxu0 0
        %7803 = vmatpush1.bf16.msra.mxu0 %v7723
        %7804 = vmatprep.mubr.bf16.mxu0 %v7512
        %7805 = vmatmul.mubr.bf16.gmra.mrb[0].mxu0 %v7511
        %v7806 = vpop.f32.mrb[0].mxu0
        %v7807 = vadd.f32 %v7579, %v7806
        %v7808 = vpop.f32.mrb[0].mxu0
        %v7809 = vpop.f32.mrb[0].mxu0
        %v7810 = vpop.f32.mrb[0].mxu0
        %7811 = vdwg.mxu0
        %7812 = vmatprep.subr.bf16.mxu0 0
        %7813 = vmatpush1.bf16.msra.mxu0 %v7724
        %7814 = vmatprep.subr.bf16.mxu0 0
        %7815 = vmatpush1.bf16.msra.mxu0 %v7725
        %7816 = vmatprep.subr.bf16.mxu0 0
        %7817 = vmatpush1.bf16.msra.mxu0 %v7726
        %7818 = vmatprep.subr.bf16.mxu0 0
        %7819 = vmatpush1.bf16.msra.mxu0 %v7727
        %7820 = vmatprep.subr.bf16.mxu0 0
        %7821 = vmatpush1.bf16.msra.mxu0 %v7728
        %7822 = vmatprep.subr.bf16.mxu0 0
        %7823 = vmatpush1.bf16.msra.mxu0 %v7729
        %7824 = vmatprep.subr.bf16.mxu0 0
        %7825 = vmatpush1.bf16.msra.mxu0 %v7730
        %7826 = vmatprep.subr.bf16.mxu0 0
        %7827 = vmatpush1.bf16.msra.mxu0 %v7731
        %7828 = vmatprep.subr.bf16.mxu0 0
        %7829 = vmatpush1.bf16.msra.mxu0 %v7732
        %7830 = vmatprep.subr.bf16.mxu0 0
        %7831 = vmatpush1.bf16.msra.mxu0 %v7733
        %7832 = vmatprep.subr.bf16.mxu0 0
        %7833 = vmatpush1.bf16.msra.mxu0 %v7734
        %7834 = vmatprep.subr.bf16.mxu0 0
        %7835 = vmatpush1.bf16.msra.mxu0 %v7735
        %7836 = vmatprep.subr.bf16.mxu0 0
        %7837 = vmatpush1.bf16.msra.mxu0 %v7736
        %7838 = vmatprep.subr.bf16.mxu0 0
        %7839 = vmatpush1.bf16.msra.mxu0 %v7737
        %7840 = vmatprep.subr.bf16.mxu0 0
        %7841 = vmatpush1.bf16.msra.mxu0 %v7738
        %7842 = vmatprep.subr.bf16.mxu0 0
        %7843 = vmatpush1.bf16.msra.mxu0 %v7739
        %7844 = vmatprep.mubr.bf16.mxu0 %v7514
        %7845 = vmatmul.mubr.bf16.gmra.mrb[0].mxu0 %v7513
        %v7846 = vpop.f32.mrb[0].mxu0
        %v7847 = vadd.f32 %v7807, %v7846
        %v7848 = vpop.f32.mrb[0].mxu0
        %v7849 = vpop.f32.mrb[0].mxu0
        %v7850 = vpop.f32.mrb[0].mxu0
        %7851 = vdwg.mxu0
        %vm7852 = vcmask 73728
        %v7853 = vsel %vm7852, %v7847, -inf
        %7854 = vmax.xlane.f32.xlu0 %v7853
        %v7855 = vpop.xlane.xlu0 %7854
        %v7856 = vsub.f32 %v7847, %v7855
        %v7857 = vmul.f32 %v7856, 1.442695
        %v7858 = vpow.pop %v7857
        %v7859 = vsel %vm7852, %v7858, 0.0
        %7860 = vadd.xlane.f32.xlu0 %v7859
        %v7861 = vpop.xlane.xlu0 %7860
        %v7862 = vrcp.pop %v7861
        %v7863 = vmul.f32 %v7858, %v7862
        %7864 = vst.msk [vmem:[%s324] sm:$0x1] %vm7852, %v7863
        %s7865 = sand.u32 %s225, 1
        %s7866 = scalar_lea.sflag [#allocation3], %s7865
        %s7867 = sand.u32 %s225, 1
        %s7868 = scalar_lea.vmem [#allocation2], %s7867
        // Predicated region
        $region57: #{cnn_mnist_forward.1} parent=55 // pred_check
          %p7869 = pneg %p235
        $region58: #{cnn_mnist_forward.1} parent=55 // pred_check_branch
          %7871 = sbr.rel (%p7869) target = $region60
        $region59: #{cnn_mnist_forward.1} parent=55 // pred_region
          %s7873 = ssub.s32 16, 16
          %7874 = vsyncadd %s7866, %s7873
          %s7875 = smul.addr %s23, 16
          %s7876 = scalar_lea.hbm %s9, %s7875
          %s7878 = sshll.u32 %s7868, 4
          %s7879 = int_to_ptr.vmem [resolvable:$true] %s7878
          %7881 = dma.vmem_to_hbm [thread:$0]  %s7879, 16, %s7876, %s7866
        $region60: #{cnn_mnist_forward.1} parent=55 // pred_fallthru
          _
      $region56: #{cnn_mnist_forward.1} parent=5 // pred_fallthru
        _
      %p7882 = scmp.le.s32.totalorder 2, %s18
      // Predicated region
      $region61: #{cnn_mnist_forward.1} parent=5 // pred_check
        %p7883 = pneg %p7882
      $region62: #{cnn_mnist_forward.1} parent=5 // pred_check_branch
        %7885 = sbr.rel (%p7883) target = $region64
      $region63: #{cnn_mnist_forward.1} parent=5 // pred_region
        %s7886 = ssub.s32 %s18, 2
        // Predicated region
        $region65: #{cnn_mnist_forward.1} parent=63 // pred_check
          %p7887 = pneg %p241
        $region66: #{cnn_mnist_forward.1} parent=63 // pred_check_branch
          %7889 = sbr.rel (%p7887) target = $region68
        $region67: #{cnn_mnist_forward.1} parent=63 // pred_region
          %s7890 = sand.u32 %s226, 1
          %s7891 = scalar_lea.sflag [#allocation3], %s7890
          %s7892 = sand.u32 %s226, 1
          %s7893 = scalar_lea.vmem [#allocation2], %s7892
          %7894 = dma.done %s7891, 16
        $region68: #{cnn_mnist_forward.1} parent=63 // pred_fallthru
          _
      $region64: #{cnn_mnist_forward.1} parent=5 // pred_fallthru
        _
    $region6: #{cnn_mnist_forward.1} parent=1 // loop_footer
      %s22 = sadd.s32 1, %s18
    $region7: #{cnn_mnist_forward.1} parent=1 // loop_footer_branch
      %17 = sbr.rel target = $region3
    $region8: #{cnn_mnist_forward.1} parent=1 // loop_exit
      _
    %7895 = vsyncpa [#allocation3], 1
    %s7896 = scalar_lea.sflag [#allocation3], 1
    %7897 = vsyncpa %s7896, 1

</llo_original>
